<compile_context>
chip_gen: v6e
topology: v6e:2x2x1
jax: 0.10.0
libtpu: 0.0.40
codegen_flags: <defaults>
</compile_context>

<pallas_src>
import functools

import jax
import jax.numpy as jnp
from jax.experimental import pallas as pl
from jax.experimental.pallas import tpu as pltpu


def _silu(x):
    return x * jax.nn.sigmoid(x)


def mamba_block_kernel(
    # ---- inputs ----
    x_ref,                 # (M, D)        raw embeddings, M = Bb*L rows
    rms_w_ref,             # (1, D)        RMSNorm weight
    w_in_d_ref,            # (D, 4D)       [inp_proj | D] fused weight
    b_in_d_ref,            # (1, 4D)       [inp_proj | D] fused bias
    wconv_ref,             # (3M, M)       block-diag conv taps, stacked [tap0; tap1; tap2]
    conv_b_ref,            # (M, 1)        conv bias per output row
    clin_w_ref,            # (2D, 2D)      conv_linear weight
    clin_b_ref,            # (1, 2D)
    ws6_ref,               # (2D, 2D+2Np)  [fc1 | fc2(pad) | fc3(pad)] fused weight
    bs6_ref,               # (1, 2D+2Np)
    out_w_ref,             # (2D, D)       out_proj weight
    out_b_ref,             # (1, D)
    # ---- outputs ----
    y_ref,                 # (M, D)        MambaBlock output
    pool_ref,              # (Bb, D)       AdaptiveMaxPool2d((1, d_model))
    *, L, Np,
):
    f32 = jnp.float32

    x = x_ref[...].astype(f32)                        # (M, D)
    M, D = x.shape
    D2 = 2 * D
    Bb = M // L

    # --- Mamba.layer_norm: per-sample mean/var over all L*D elements.
    #     (M, D) -> (Bb, L, D) only splits the leading (sublane-major) dim;
    #     stats stay exact in f32.
    x3 = x.reshape(Bb, L, D)
    mean = jnp.mean(jnp.mean(x3, axis=2, keepdims=True), axis=1, keepdims=True)
    xc3 = x3 - mean
    var = jnp.mean(jnp.mean(xc3 * xc3, axis=2, keepdims=True), axis=1, keepdims=True)
    x_ln = (xc3 * jax.lax.rsqrt(var + 1e-5)).reshape(M, D)

    # --- RMSNorm over the feature axis ---
    inv_rms = jax.lax.rsqrt(jnp.mean(x_ln * x_ln, axis=-1, keepdims=True) + 1e-5)
    xn = x_ln * inv_rms * rms_w_ref[...]

    # --- fused inp_proj | D(residual) projection: one (D -> 4D) dot ---
    proj = jnp.dot(xn, w_in_d_ref[...], preferred_element_type=f32) + b_in_d_ref[...]
    x_proj = proj[:, :D2]                              # lane-aligned slice
    x_res_pre = proj[:, D2:]                           # lane-aligned slice

    # --- Conv1d(L, L, kernel=3, padding=1): channels = seq axis, spatial = feature axis.
    #     One block-diagonal matmul covers all Bb samples and all 3 taps
    #     (output rows stacked as [tap0; tap1; tap2]); the +/-1 feature shifts
    #     of taps 0/2 are XLU rolls with a boundary lane mask.
    t = jnp.dot(wconv_ref[...], x_proj, preferred_element_type=f32)   # (3M, 2D)
    t0 = t[:M]
    t1 = t[M:2 * M]
    t2 = t[2 * M:]
    lane = jax.lax.broadcasted_iota(jnp.int32, (M, D2), 1)
    t0s = jnp.where(lane >= 1, pltpu.roll(t0, shift=1, axis=1), 0.0)
    t2s = jnp.where(lane < D2 - 1, pltpu.roll(t2, shift=D2 - 1, axis=1), 0.0)
    x_conv = t0s + t1 + t2s + conv_b_ref[...]
    x_conv_act = _silu(x_conv)

    # --- conv_linear: Linear(2D -> 2D) ---
    u = jnp.dot(x_conv_act, clin_w_ref[...], preferred_element_type=f32) + clin_b_ref[...]

    # --- S6 (fused fc1|fc2|fc3).  h0 == 0 in the reference, so
    #     y[l,d] = u[l,d] * delta[l,d] * sum_n C[l,n]*B[l,n]  (exact). ---
    s6 = jnp.dot(u, ws6_ref[...], preferred_element_type=f32) + bs6_ref[...]   # (M, 2D+2Np)
    delta = jax.nn.softplus(s6[:, :D2])
    Bm = s6[:, D2:D2 + Np]                             # zero-padded columns contribute 0
    Cm = s6[:, D2 + Np:D2 + 2 * Np]
    cb = jnp.sum(Bm * Cm, axis=-1, keepdims=True)      # (M, 1)
    y_ssm = u * delta * cb

    # --- gating + out_proj ---
    x_comb = _silu(y_ssm) * _silu(x_res_pre)
    x_out = jnp.dot(x_comb, out_w_ref[...], preferred_element_type=f32) + out_b_ref[...]

    y_ref[...] = x_out.astype(y_ref.dtype)

    # AdaptiveMaxPool2d((1, d_model)): max over the L rows of each sample.
    pool_ref[...] = jnp.max(x_out.reshape(Bb, L, D), axis=1).astype(pool_ref.dtype)


def mamba_forward_pallas(input_ids, p, block_batch=None):
    # Embedding lookup + eval-mode dropout are glue in plain JAX.
    embeds = jnp.take(p["embed"], input_ids, axis=0)               # (B, L, D) f32
    B, L, D = embeds.shape
    D2 = 2 * D
    N = p["fc2_w"].shape[1]
    Np = ((N + 127) // 128) * 128      # lane-pad the B/C column blocks to 128

    if block_batch is None:
        # Bb*L ~ 256 rows keeps the MXU M dimension full.
        block_batch = max(1, min(B, 256 // L))
    Bb = block_batch
    assert B % Bb == 0, "demo requires B divisible by the batch block"
    nb = B // Bb
    M = Bb * L

    f32 = jnp.float32

    # ----- wrapper-side (plain XLA) weight fusion / layout prep -----
    x2d = embeds.reshape(B * L, D).astype(f32)

    w_in_d = jnp.concatenate([p["inp_w"], p["d_w"]], axis=1).astype(f32)      # (D, 4D)
    b_in_d = jnp.concatenate([p["inp_b"], p["d_b"]]).reshape(1, 4 * D).astype(f32)

    eyeb = jnp.eye(Bb, dtype=f32)
    wconv = jnp.concatenate(
        [jnp.kron(eyeb, p["conv_w"][:, :, k]) for k in range(3)], axis=0
    ).astype(f32)                                                             # (3M, M)
    conv_b = jnp.tile(p["conv_b"], Bb).reshape(M, 1).astype(f32)              # (M, 1)

    clin_w = p["clin_w"].astype(f32)
    clin_b = p["clin_b"].reshape(1, D2).astype(f32)

    pad = Np - N
    fc2_w = jnp.pad(p["fc2_w"], ((0, 0), (0, pad)))
    fc3_w = jnp.pad(p["fc3_w"], ((0, 0), (0, pad)))
    fc2_b = jnp.pad(p["fc2_b"], (0, pad))
    fc3_b = jnp.pad(p["fc3_b"], (0, pad))
    w_s6 = jnp.concatenate([p["fc1_w"], fc2_w, fc3_w], axis=1).astype(f32)    # (2D, 2D+2Np)
    b_s6 = jnp.concatenate([p["fc1_b"], fc2_b, fc3_b]).reshape(1, D2 + 2 * Np).astype(f32)

    out_w = p["out_w"].astype(f32)
    out_b = p["out_b"].reshape(1, D).astype(f32)
    rms_w = p["rms_w"].reshape(1, D).astype(f32)

    ins = [x2d, rms_w, w_in_d, b_in_d, wconv, conv_b,
           clin_w, clin_b, w_s6, b_s6, out_w, out_b]

    def rep(a):
        nd = a.ndim
        return pl.BlockSpec(a.shape, lambda i, _nd=nd: (0,) * _nd)   # grid-invariant

    in_specs = [pl.BlockSpec((M, D), lambda i: (i, 0))] + [rep(a) for a in ins[1:]]
    out_specs = [
        pl.BlockSpec((M, D), lambda i: (i, 0)),      # lane-dense (D multiple of 128)
        pl.BlockSpec((Bb, D), lambda i: (i, 0)),
    ]
    out_shape = (
        jax.ShapeDtypeStruct((B * L, D), f32),
        jax.ShapeDtypeStruct((B, D), f32),
    )

    kernel = functools.partial(mamba_block_kernel, L=L, Np=Np)

    flops_step = (2 * M * D * (4 * D)                # fused inp|D projection
                  + 2 * (3 * M) * M * D2             # block-diag conv taps
                  + 2 * M * D2 * D2                  # conv_linear
                  + 2 * M * D2 * (D2 + 2 * Np)       # fused S6
                  + 2 * M * D2 * D)                  # out_proj
    bytes_step = (4 * (2 * M * D + Bb * D)
                  + 4 * sum(a.size for a in ins[1:]))
    cost = pl.CostEstimate(flops=nb * flops_step,
                           transcendentals=nb * 5 * M * D2,
                           bytes_accessed=nb * bytes_step)

    y2d, pool = pl.pallas_call(
        kernel,
        out_shape=out_shape,
        grid_spec=pltpu.PrefetchScalarGridSpec(
            num_scalar_prefetch=0,
            grid=(nb,),
            in_specs=in_specs,
            out_specs=out_specs,
        ),
        compiler_params=pltpu.CompilerParams(
            dimension_semantics=("parallel",),        # batch blocks independent (v7x: 2 TCs)
            vmem_limit_bytes=32 * 1024 * 1024,
        ),
        cost_estimate=cost,
    )(*ins)

    return y2d.reshape(B, L, D), pool.reshape(B, 1, D)


def mamba_forward_reference(input_ids, p):
    """Pure-JAX reference mirroring the PyTorch forward literally (incl. 4-D S6 einsums)."""
    x = jnp.take(p["embed"], input_ids, axis=0)
    mu = jnp.mean(x, axis=(1, 2), keepdims=True)
    var = jnp.mean((x - mu) ** 2, axis=(1, 2), keepdims=True)
    x = (x - mu) / jnp.sqrt(var + 1e-5)
    xn = x * jax.lax.rsqrt(jnp.mean(x * x, axis=-1, keepdims=True) + 1e-5) * p["rms_w"]
    x_proj = xn @ p["inp_w"] + p["inp_b"]
    F2 = x_proj.shape[-1]
    xp = jnp.pad(x_proj, ((0, 0), (0, 0), (1, 1)))
    x_conv = p["conv_b"][None, :, None]
    for k in range(3):
        x_conv = x_conv + jnp.einsum("oc,bcf->bof", p["conv_w"][:, :, k], xp[:, :, k:k + F2])
    u = _silu(x_conv) @ p["clin_w"] + p["clin_b"]
    Bm = u @ p["fc2_w"] + p["fc2_b"]
    Cm = u @ p["fc3_w"] + p["fc3_b"]
    delta = jax.nn.softplus(u @ p["fc1_w"] + p["fc1_b"])
    dA = jnp.exp(jnp.einsum("bld,dn->bldn", delta, p["A"]))
    dB = jnp.einsum("bld,bln->bldn", delta, Bm)
    h = dA * jnp.zeros_like(dA) + u[..., None] * dB
    y = jnp.einsum("bln,bldn->bld", Cm, h)
    x_out = (_silu(y) * _silu(xn @ p["d_w"] + p["d_b"])) @ p["out_w"] + p["out_b"]
    pool = jnp.max(x_out, axis=1, keepdims=True)
    return x_out, pool


def init_params(key, vocab, L, D, N):
    D2 = 2 * D
    ks = jax.random.split(key, 17)

    def w(k, shape, scale=0.1):
        return scale * jax.random.normal(k, shape, dtype=jnp.float32)

    return dict(
        embed=w(ks[0], (vocab, D), 1.0),
        rms_w=jnp.ones((D,), jnp.float32),
        inp_w=w(ks[1], (D, D2)), inp_b=w(ks[2], (D2,)),
        conv_w=w(ks[3], (L, L, 3)), conv_b=w(ks[4], (L,)),
        clin_w=w(ks[5], (D2, D2)), clin_b=w(ks[6], (D2,)),
        fc1_w=w(ks[7], (D2, D2)), fc1_b=w(ks[8], (D2,)),
        fc2_w=w(ks[9], (D2, N)), fc2_b=w(ks[10], (N,)),
        fc3_w=w(ks[11], (D2, N)), fc3_b=w(ks[12], (N,)),
        A=w(ks[13], (D2, N)),                       # dead at runtime (multiplies h == 0), kept for fidelity
        d_w=w(ks[14], (D, D2)), d_b=w(ks[15], (D2,)),
        out_w=w(ks[16], (D2, D)),
        out_b=jnp.ones((D,), jnp.float32),          # nn.init.constant_(out_proj.bias, 1.0)
    )


if __name__ == "__main__":
    # batch, max_seq_length, embedding_size, state_size, vocab
    B, L, D, N, VOCAB = 64, 8, 128, 16, 512
    key = jax.random.PRNGKey(0)
    pkey, ikey = jax.random.split(key)
    params = init_params(pkey, VOCAB, L, D, N)
    input_ids = jax.random.randint(ikey, (B, L), 0, VOCAB, dtype=jnp.int32)

    y, pool = mamba_forward_pallas(input_ids, params)
    y, pool = jax.block_until_ready((y, pool))

    # Reference at full f32 matmul precision so the comparison is against the
    # true forward pass, not XLA's default bf16-pass matmuls.
    with jax.default_matmul_precision("highest"):
        y_ref, pool_ref = mamba_forward_reference(input_ids, params)
    y_ref, pool_ref = jax.block_until_ready((y_ref, pool_ref))

    assert y.shape == (B, L, D) and pool.shape == (B, 1, D)
    err_y = float(jnp.max(jnp.abs(y - y_ref)))
    err_p = float(jnp.max(jnp.abs(pool - pool_ref)))
    assert jnp.allclose(y, y_ref, atol=2e-2, rtol=2e-2), err_y
    assert jnp.allclose(pool, pool_ref, atol=2e-2, rtol=2e-2), err_p
    print("KERNEL_OK")
</pallas_src>

<mosaic_0001>
module attributes {stable_mosaic.version = 11 : i64} {
  func.func @mamba_block_kernel(%arg0: i32, %arg1: memref<256x128xf32, #tpu.memory_space<vmem>>, %arg2: memref<1x128xf32, #tpu.memory_space<vmem>>, %arg3: memref<128x512xf32, #tpu.memory_space<vmem>>, %arg4: memref<1x512xf32, #tpu.memory_space<vmem>>, %arg5: memref<768x256xf32, #tpu.memory_space<vmem>>, %arg6: memref<256x1xf32, #tpu.memory_space<vmem>>, %arg7: memref<256x256xf32, #tpu.memory_space<vmem>>, %arg8: memref<1x256xf32, #tpu.memory_space<vmem>>, %arg9: memref<256x512xf32, #tpu.memory_space<vmem>>, %arg10: memref<1x512xf32, #tpu.memory_space<vmem>>, %arg11: memref<256x128xf32, #tpu.memory_space<vmem>>, %arg12: memref<1x128xf32, #tpu.memory_space<vmem>>, %arg13: memref<256x128xf32, #tpu.memory_space<vmem>>, %arg14: memref<32x128xf32, #tpu.memory_space<vmem>>) attributes {dimension_semantics = [#tpu.dimension_semantics<parallel>], iteration_bounds = array<i64: 2>, scalar_prefetch = 0 : i64, scratch_operands = 0 : i64, tpu.core_type = #tpu.core_type<tc>, window_params = [{transform_indices = @transform_0, window_bounds = array<i64: 256, 128>}, {pipeline_mode = #tpu.pipeline_mode<synchronous>, transform_indices = @transform_1, window_bounds = array<i64: 1, 128>}, {pipeline_mode = #tpu.pipeline_mode<synchronous>, transform_indices = @transform_2, window_bounds = array<i64: 128, 512>}, {pipeline_mode = #tpu.pipeline_mode<synchronous>, transform_indices = @transform_3, window_bounds = array<i64: 1, 512>}, {pipeline_mode = #tpu.pipeline_mode<synchronous>, transform_indices = @transform_4, window_bounds = array<i64: 768, 256>}, {pipeline_mode = #tpu.pipeline_mode<synchronous>, transform_indices = @transform_5, window_bounds = array<i64: 256, 1>}, {pipeline_mode = #tpu.pipeline_mode<synchronous>, transform_indices = @transform_6, window_bounds = array<i64: 256, 256>}, {pipeline_mode = #tpu.pipeline_mode<synchronous>, transform_indices = @transform_7, window_bounds = array<i64: 1, 256>}, {pipeline_mode = #tpu.pipeline_mode<synchronous>, transform_indices = @transform_8, window_bounds = array<i64: 256, 512>}, {pipeline_mode = #tpu.pipeline_mode<synchronous>, transform_indices = @transform_9, window_bounds = array<i64: 1, 512>}, {pipeline_mode = #tpu.pipeline_mode<synchronous>, transform_indices = @transform_10, window_bounds = array<i64: 256, 128>}, {pipeline_mode = #tpu.pipeline_mode<synchronous>, transform_indices = @transform_11, window_bounds = array<i64: 1, 128>}, {transform_indices = @transform_12, window_bounds = array<i64: 256, 128>}, {transform_indices = @transform_13, window_bounds = array<i64: 32, 128>}]} {
    %c0 = arith.constant 0 : index
    %c0_0 = arith.constant 0 : index
    %0 = vector.load %arg1[%c0, %c0_0] : memref<256x128xf32, #tpu.memory_space<vmem>>, vector<256x128xf32>
    %1 = vector.shape_cast %0 : vector<256x128xf32> to vector<32x8x128xf32>
    %cst = arith.constant dense<0.000000e+00> : vector<32x8xf32>
    %2 = vector.multi_reduction <add>, %1, %cst [2] : vector<32x8x128xf32> to vector<32x8xf32>
    %3 = vector.shape_cast %2 : vector<32x8xf32> to vector<32x8x1xf32>
    %cst_1 = arith.constant 1.280000e+02 : f32
    %4 = vector.broadcast %cst_1 : f32 to vector<32x8x1xf32>
    %5 = arith.divf %3, %4 : vector<32x8x1xf32>
    %cst_2 = arith.constant dense<0.000000e+00> : vector<32x1xf32>
    %6 = vector.multi_reduction <add>, %5, %cst_2 [1] : vector<32x8x1xf32> to vector<32x1xf32>
    %7 = vector.shape_cast %6 : vector<32x1xf32> to vector<32x1x1xf32>
    %cst_3 = arith.constant 8.000000e+00 : f32
    %8 = vector.broadcast %cst_3 : f32 to vector<32x1x1xf32>
    %9 = arith.divf %7, %8 : vector<32x1x1xf32>
    %10 = vector.broadcast %9 : vector<32x1x1xf32> to vector<32x8x128xf32>
    %11 = arith.subf %1, %10 : vector<32x8x128xf32>
    %12 = arith.mulf %11, %11 : vector<32x8x128xf32>
    %cst_4 = arith.constant dense<0.000000e+00> : vector<32x8xf32>
    %13 = vector.multi_reduction <add>, %12, %cst_4 [2] : vector<32x8x128xf32> to vector<32x8xf32>
    %14 = vector.shape_cast %13 : vector<32x8xf32> to vector<32x8x1xf32>
    %cst_5 = arith.constant 1.280000e+02 : f32
    %15 = vector.broadcast %cst_5 : f32 to vector<32x8x1xf32>
    %16 = arith.divf %14, %15 : vector<32x8x1xf32>
    %cst_6 = arith.constant dense<0.000000e+00> : vector<32x1xf32>
    %17 = vector.multi_reduction <add>, %16, %cst_6 [1] : vector<32x8x1xf32> to vector<32x1xf32>
    %18 = vector.shape_cast %17 : vector<32x1xf32> to vector<32x1x1xf32>
    %cst_7 = arith.constant 8.000000e+00 : f32
    %19 = vector.broadcast %cst_7 : f32 to vector<32x1x1xf32>
    %20 = arith.divf %18, %19 : vector<32x1x1xf32>
    %cst_8 = arith.constant 9.99999974E-6 : f32
    %21 = vector.broadcast %cst_8 : f32 to vector<32x1x1xf32>
    %22 = arith.addf %20, %21 : vector<32x1x1xf32>
    %23 = math.rsqrt %22 : vector<32x1x1xf32>
    %24 = vector.broadcast %23 : vector<32x1x1xf32> to vector<32x8x128xf32>
    %25 = arith.mulf %11, %24 : vector<32x8x128xf32>
    %26 = vector.shape_cast %25 : vector<32x8x128xf32> to vector<256x128xf32>
    %27 = arith.mulf %26, %26 : vector<256x128xf32>
    %cst_9 = arith.constant dense<0.000000e+00> : vector<256xf32>
    %28 = vector.multi_reduction <add>, %27, %cst_9 [1] : vector<256x128xf32> to vector<256xf32>
    %29 = vector.shape_cast %28 : vector<256xf32> to vector<256x1xf32>
    %cst_10 = arith.constant 1.280000e+02 : f32
    %30 = vector.broadcast %cst_10 : f32 to vector<256x1xf32>
    %31 = arith.divf %29, %30 : vector<256x1xf32>
    %cst_11 = arith.constant 9.99999974E-6 : f32
    %32 = vector.broadcast %cst_11 : f32 to vector<256x1xf32>
    %33 = arith.addf %31, %32 : vector<256x1xf32>
    %34 = math.rsqrt %33 : vector<256x1xf32>
    %35 = vector.broadcast %34 : vector<256x1xf32> to vector<256x128xf32>
    %36 = arith.mulf %26, %35 : vector<256x128xf32>
    %c0_12 = arith.constant 0 : index
    %c0_13 = arith.constant 0 : index
    %37 = vector.load %arg2[%c0_12, %c0_13] : memref<1x128xf32, #tpu.memory_space<vmem>>, vector<1x128xf32>
    %38 = vector.broadcast %37 : vector<1x128xf32> to vector<256x128xf32>
    %39 = arith.mulf %36, %38 : vector<256x128xf32>
    %c0_14 = arith.constant 0 : index
    %c0_15 = arith.constant 0 : index
    %40 = vector.load %arg3[%c0_14, %c0_15] : memref<128x512xf32, #tpu.memory_space<vmem>>, vector<128x512xf32>
    %cst_16 = arith.constant dense<0.000000e+00> : vector<256x512xf32>
    %41 = tpu.matmul %39, %40, %cst_16 {dimension_numbers = #tpu.dot_dimension_numbers<[1], [0], [0], [1], [0, 0, 1, 1], [], []>} : vector<256x128xf32>, vector<128x512xf32>, vector<256x512xf32> -> vector<256x512xf32>
    %c0_17 = arith.constant 0 : index
    %c0_18 = arith.constant 0 : index
    %42 = vector.load %arg4[%c0_17, %c0_18] : memref<1x512xf32, #tpu.memory_space<vmem>>, vector<1x512xf32>
    %43 = vector.broadcast %42 : vector<1x512xf32> to vector<256x512xf32>
    %44 = arith.addf %41, %43 : vector<256x512xf32>
    %45 = vector.extract_strided_slice %44 {offsets = [0, 0], sizes = [256, 256], strides = [1, 1]} : vector<256x512xf32> to vector<256x256xf32>
    %46 = vector.extract_strided_slice %44 {offsets = [0, 256], sizes = [256, 256], strides = [1, 1]} : vector<256x512xf32> to vector<256x256xf32>
    %c0_19 = arith.constant 0 : index
    %c0_20 = arith.constant 0 : index
    %47 = vector.load %arg5[%c0_19, %c0_20] : memref<768x256xf32, #tpu.memory_space<vmem>>, vector<768x256xf32>
    %cst_21 = arith.constant dense<0.000000e+00> : vector<768x256xf32>
    %48 = tpu.matmul %47, %45, %cst_21 {dimension_numbers = #tpu.dot_dimension_numbers<[1], [0], [0], [1], [0, 0, 1, 1], [], []>} : vector<768x256xf32>, vector<256x256xf32>, vector<768x256xf32> -> vector<768x256xf32>
    %49 = vector.extract_strided_slice %48 {offsets = [0, 0], sizes = [256, 256], strides = [1, 1]} : vector<768x256xf32> to vector<256x256xf32>
    %50 = vector.extract_strided_slice %48 {offsets = [256, 0], sizes = [256, 256], strides = [1, 1]} : vector<768x256xf32> to vector<256x256xf32>
    %51 = vector.extract_strided_slice %48 {offsets = [512, 0], sizes = [256, 256], strides = [1, 1]} : vector<768x256xf32> to vector<256x256xf32>
    %52 = tpu.iota {dimensions = array<i32: 1>} : vector<256x256xi32>
    %c1_i32 = arith.constant 1 : i32
    %53 = vector.broadcast %c1_i32 : i32 to vector<256x256xi32>
    %54 = arith.cmpi sge, %52, %53 : vector<256x256xi32>
    %c1_i32_22 = arith.constant 1 : i32
    %55 = tpu.dynamic_rotate %49 by %c1_i32_22 dim 1 : vector<256x256xf32>, i32 -> vector<256x256xf32>
    %cst_23 = arith.constant 0.000000e+00 : f32
    %56 = vector.broadcast %cst_23 : f32 to vector<256x256xf32>
    %57 = arith.select %54, %55, %56 : vector<256x256xi1>, vector<256x256xf32>
    %c255_i32 = arith.constant 255 : i32
    %58 = vector.broadcast %c255_i32 : i32 to vector<256x256xi32>
    %59 = arith.cmpi slt, %52, %58 : vector<256x256xi32>
    %c255_i32_24 = arith.constant 255 : i32
    %60 = tpu.dynamic_rotate %51 by %c255_i32_24 dim 1 : vector<256x256xf32>, i32 -> vector<256x256xf32>
    %cst_25 = arith.constant 0.000000e+00 : f32
    %61 = vector.broadcast %cst_25 : f32 to vector<256x256xf32>
    %62 = arith.select %59, %60, %61 : vector<256x256xi1>, vector<256x256xf32>
    %63 = arith.addf %57, %50 : vector<256x256xf32>
    %64 = arith.addf %63, %62 : vector<256x256xf32>
    %c0_26 = arith.constant 0 : index
    %c0_27 = arith.constant 0 : index
    %65 = vector.load %arg6[%c0_26, %c0_27] : memref<256x1xf32, #tpu.memory_space<vmem>>, vector<256x1xf32>
    %66 = vector.broadcast %65 : vector<256x1xf32> to vector<256x256xf32>
    %67 = arith.addf %64, %66 : vector<256x256xf32>
    %68 = arith.negf %67 : vector<256x256xf32>
    %69 = math.exp %68 : vector<256x256xf32>
    %cst_28 = arith.constant 1.000000e+00 : f32
    %70 = vector.broadcast %cst_28 : f32 to vector<256x256xf32>
    %71 = arith.addf %70, %69 : vector<256x256xf32>
    %72 = arith.divf %70, %71 : vector<256x256xf32>
    %73 = arith.mulf %67, %72 : vector<256x256xf32>
    %c0_29 = arith.constant 0 : index
    %c0_30 = arith.constant 0 : index
    %74 = vector.load %arg7[%c0_29, %c0_30] : memref<256x256xf32, #tpu.memory_space<vmem>>, vector<256x256xf32>
    %cst_31 = arith.constant dense<0.000000e+00> : vector<256x256xf32>
    %75 = tpu.matmul %73, %74, %cst_31 {dimension_numbers = #tpu.dot_dimension_numbers<[1], [0], [0], [1], [0, 0, 1, 1], [], []>} : vector<256x256xf32>, vector<256x256xf32>, vector<256x256xf32> -> vector<256x256xf32>
    %c0_32 = arith.constant 0 : index
    %c0_33 = arith.constant 0 : index
    %76 = vector.load %arg8[%c0_32, %c0_33] : memref<1x256xf32, #tpu.memory_space<vmem>>, vector<1x256xf32>
    %77 = vector.broadcast %76 : vector<1x256xf32> to vector<256x256xf32>
    %78 = arith.addf %75, %77 : vector<256x256xf32>
    %c0_34 = arith.constant 0 : index
    %c0_35 = arith.constant 0 : index
    %79 = vector.load %arg9[%c0_34, %c0_35] : memref<256x512xf32, #tpu.memory_space<vmem>>, vector<256x512xf32>
    %cst_36 = arith.constant dense<0.000000e+00> : vector<256x512xf32>
    %80 = tpu.matmul %78, %79, %cst_36 {dimension_numbers = #tpu.dot_dimension_numbers<[1], [0], [0], [1], [0, 0, 1, 1], [], []>} : vector<256x256xf32>, vector<256x512xf32>, vector<256x512xf32> -> vector<256x512xf32>
    %c0_37 = arith.constant 0 : index
    %c0_38 = arith.constant 0 : index
    %81 = vector.load %arg10[%c0_37, %c0_38] : memref<1x512xf32, #tpu.memory_space<vmem>>, vector<1x512xf32>
    %82 = vector.broadcast %81 : vector<1x512xf32> to vector<256x512xf32>
    %83 = arith.addf %80, %82 : vector<256x512xf32>
    %84 = vector.extract_strided_slice %83 {offsets = [0, 0], sizes = [256, 256], strides = [1, 1]} : vector<256x512xf32> to vector<256x256xf32>
    %cst_39 = arith.constant 0.000000e+00 : f32
    %85 = vector.broadcast %cst_39 : f32 to vector<256x256xf32>
    %86 = arith.maximumf %84, %85 : vector<256x256xf32>
    %87 = vector.broadcast %cst_39 : f32 to vector<256x256xf32>
    %88 = arith.subf %84, %87 : vector<256x256xf32>
    %89 = arith.cmpf one, %88, %88 : vector<256x256xf32>
    %90 = vector.broadcast %cst_39 : f32 to vector<256x256xf32>
    %91 = arith.addf %84, %90 : vector<256x256xf32>
    %92 = math.absf %88 : vector<256x256xf32>
    %cst_40 = arith.constant 0.000000e+00 : f32
    %93 = vector.broadcast %cst_40 : f32 to vector<256x256xf32>
    %94 = arith.subf %93, %92 : vector<256x256xf32>
    %95 = math.exp %94 : vector<256x256xf32>
    %96 = math.log1p %95 : vector<256x256xf32>
    %97 = arith.addf %86, %96 : vector<256x256xf32>
    %98 = arith.select %89, %91, %97 : vector<256x256xi1>, vector<256x256xf32>
    %99 = vector.extract_strided_slice %83 {offsets = [0, 256], sizes = [256, 128], strides = [1, 1]} : vector<256x512xf32> to vector<256x128xf32>
    %100 = vector.extract_strided_slice %83 {offsets = [0, 384], sizes = [256, 128], strides = [1, 1]} : vector<256x512xf32> to vector<256x128xf32>
    %101 = arith.mulf %99, %100 : vector<256x128xf32>
    %cst_41 = arith.constant dense<0.000000e+00> : vector<256xf32>
    %102 = vector.multi_reduction <add>, %101, %cst_41 [1] : vector<256x128xf32> to vector<256xf32>
    %103 = vector.shape_cast %102 : vector<256xf32> to vector<256x1xf32>
    %104 = arith.mulf %78, %98 : vector<256x256xf32>
    %105 = vector.broadcast %103 : vector<256x1xf32> to vector<256x256xf32>
    %106 = arith.mulf %104, %105 : vector<256x256xf32>
    %107 = arith.negf %106 : vector<256x256xf32>
    %108 = math.exp %107 : vector<256x256xf32>
    %cst_42 = arith.constant 1.000000e+00 : f32
    %109 = vector.broadcast %cst_42 : f32 to vector<256x256xf32>
    %110 = arith.addf %109, %108 : vector<256x256xf32>
    %111 = arith.divf %109, %110 : vector<256x256xf32>
    %112 = arith.mulf %106, %111 : vector<256x256xf32>
    %113 = arith.negf %46 : vector<256x256xf32>
    %114 = math.exp %113 : vector<256x256xf32>
    %cst_43 = arith.constant 1.000000e+00 : f32
    %115 = vector.broadcast %cst_43 : f32 to vector<256x256xf32>
    %116 = arith.addf %115, %114 : vector<256x256xf32>
    %117 = arith.divf %115, %116 : vector<256x256xf32>
    %118 = arith.mulf %46, %117 : vector<256x256xf32>
    %119 = arith.mulf %112, %118 : vector<256x256xf32>
    %c0_44 = arith.constant 0 : index
    %c0_45 = arith.constant 0 : index
    %120 = vector.load %arg11[%c0_44, %c0_45] : memref<256x128xf32, #tpu.memory_space<vmem>>, vector<256x128xf32>
    %cst_46 = arith.constant dense<0.000000e+00> : vector<256x128xf32>
    %121 = tpu.matmul %119, %120, %cst_46 {dimension_numbers = #tpu.dot_dimension_numbers<[1], [0], [0], [1], [0, 0, 1, 1], [], []>} : vector<256x256xf32>, vector<256x128xf32>, vector<256x128xf32> -> vector<256x128xf32>
    %c0_47 = arith.constant 0 : index
    %c0_48 = arith.constant 0 : index
    %122 = vector.load %arg12[%c0_47, %c0_48] : memref<1x128xf32, #tpu.memory_space<vmem>>, vector<1x128xf32>
    %123 = vector.broadcast %122 : vector<1x128xf32> to vector<256x128xf32>
    %124 = arith.addf %121, %123 : vector<256x128xf32>
    %c0_49 = arith.constant 0 : index
    %c0_50 = arith.constant 0 : index
    %125 = vector.load %arg13[%c0_49, %c0_50] : memref<256x128xf32, #tpu.memory_space<vmem>>, vector<256x128xf32>
    tpu.vector_store %arg13[%c0_49, %c0_50], %124 {strides = array<i32>} : memref<256x128xf32, #tpu.memory_space<vmem>>, vector<256x128xf32>,
    %126 = vector.shape_cast %124 : vector<256x128xf32> to vector<32x8x128xf32>
    %cst_51 = arith.constant dense<0xFF800000> : vector<32x128xf32>
    %127 = vector.multi_reduction <maximumf>, %126, %cst_51 [1] : vector<32x8x128xf32> to vector<32x128xf32>
    %c0_52 = arith.constant 0 : index
    %c0_53 = arith.constant 0 : index
    %128 = vector.load %arg14[%c0_52, %c0_53] : memref<32x128xf32, #tpu.memory_space<vmem>>, vector<32x128xf32>
    tpu.vector_store %arg14[%c0_52, %c0_53], %127 {strides = array<i32>} : memref<32x128xf32, #tpu.memory_space<vmem>>, vector<32x128xf32>,
    return
  }
  func.func @transform_0(%arg0: i32) -> (i32, i32) {
    %c0_i32 = arith.constant 0 : i32
    %c0_i32_0 = arith.constant 0 : i32
    return %arg0, %c0_i32 : i32, i32
  }
  func.func @transform_1(%arg0: i32) -> (i32, i32) {
    %c0_i32 = arith.constant 0 : i32
    %c0_i32_0 = arith.constant 0 : i32
    %c0_i32_1 = arith.constant 0 : i32
    return %c0_i32, %c0_i32_0 : i32, i32
  }
  func.func @transform_2(%arg0: i32) -> (i32, i32) {
    %c0_i32 = arith.constant 0 : i32
    %c0_i32_0 = arith.constant 0 : i32
    %c0_i32_1 = arith.constant 0 : i32
    return %c0_i32, %c0_i32_0 : i32, i32
  }
  func.func @transform_3(%arg0: i32) -> (i32, i32) {
    %c0_i32 = arith.constant 0 : i32
    %c0_i32_0 = arith.constant 0 : i32
    %c0_i32_1 = arith.constant 0 : i32
    return %c0_i32, %c0_i32_0 : i32, i32
  }
  func.func @transform_4(%arg0: i32) -> (i32, i32) {
    %c0_i32 = arith.constant 0 : i32
    %c0_i32_0 = arith.constant 0 : i32
    %c0_i32_1 = arith.constant 0 : i32
    return %c0_i32, %c0_i32_0 : i32, i32
  }
  func.func @transform_5(%arg0: i32) -> (i32, i32) {
    %c0_i32 = arith.constant 0 : i32
    %c0_i32_0 = arith.constant 0 : i32
    %c0_i32_1 = arith.constant 0 : i32
    return %c0_i32, %c0_i32_0 : i32, i32
  }
  func.func @transform_6(%arg0: i32) -> (i32, i32) {
    %c0_i32 = arith.constant 0 : i32
    %c0_i32_0 = arith.constant 0 : i32
    %c0_i32_1 = arith.constant 0 : i32
    return %c0_i32, %c0_i32_0 : i32, i32
  }
  func.func @transform_7(%arg0: i32) -> (i32, i32) {
    %c0_i32 = arith.constant 0 : i32
    %c0_i32_0 = arith.constant 0 : i32
    %c0_i32_1 = arith.constant 0 : i32
    return %c0_i32, %c0_i32_0 : i32, i32
  }
  func.func @transform_8(%arg0: i32) -> (i32, i32) {
    %c0_i32 = arith.constant 0 : i32
    %c0_i32_0 = arith.constant 0 : i32
    %c0_i32_1 = arith.constant 0 : i32
    return %c0_i32, %c0_i32_0 : i32, i32
  }
  func.func @transform_9(%arg0: i32) -> (i32, i32) {
    %c0_i32 = arith.constant 0 : i32
    %c0_i32_0 = arith.constant 0 : i32
    %c0_i32_1 = arith.constant 0 : i32
    return %c0_i32, %c0_i32_0 : i32, i32
  }
  func.func @transform_10(%arg0: i32) -> (i32, i32) {
    %c0_i32 = arith.constant 0 : i32
    %c0_i32_0 = arith.constant 0 : i32
    %c0_i32_1 = arith.constant 0 : i32
    return %c0_i32, %c0_i32_0 : i32, i32
  }
  func.func @transform_11(%arg0: i32) -> (i32, i32) {
    %c0_i32 = arith.constant 0 : i32
    %c0_i32_0 = arith.constant 0 : i32
    %c0_i32_1 = arith.constant 0 : i32
    return %c0_i32, %c0_i32_0 : i32, i32
  }
  func.func @transform_12(%arg0: i32) -> (i32, i32) {
    %c0_i32 = arith.constant 0 : i32
    %c0_i32_0 = arith.constant 0 : i32
    return %arg0, %c0_i32 : i32, i32
  }
  func.func @transform_13(%arg0: i32) -> (i32, i32) {
    %c0_i32 = arith.constant 0 : i32
    %c0_i32_0 = arith.constant 0 : i32
    return %arg0, %c0_i32 : i32, i32
  }
}

</mosaic_0001>

<llo_original>
// kernel: tpu_custom_call.1
$region0: #{tpu_custom_call.1}
  #allocation0 [shape = 'u32[]', space=smem, size = 0x4, offset = 0x4, fixed_abs, tag = 'smem constant byte address 0x4 - core index']
  #allocation1 [shape = 'u32[144,128]{1,0:T(1,128)}', space=vmem, size = 0x12000, scoped, tag = 'internal scratch']
  %s0 = inlined_call_operand.hbm [shape: f32[512,128], index: 0, kind: input, shape index: {}]
  %s1 = inlined_call_operand.vmem [shape: f32[1,128], index: 1, kind: input, shape index: {}]
  %s2 = inlined_call_operand.hbm [shape: f32[128,512], index: 2, kind: input, shape index: {}]
  %s3 = inlined_call_operand.vmem [shape: f32[1,512], index: 3, kind: input, shape index: {}]
  %s4 = inlined_call_operand.hbm [shape: f32[768,256], index: 4, kind: input, shape index: {}]
  %s5 = inlined_call_operand.vmem [shape: f32[256,1], index: 5, kind: input, shape index: {}]
  %s6 = inlined_call_operand.hbm [shape: f32[256,256], index: 6, kind: input, shape index: {}]
  %s7 = inlined_call_operand.vmem [shape: f32[1,256], index: 7, kind: input, shape index: {}]
  %s8 = inlined_call_operand.hbm [shape: f32[256,512], index: 8, kind: input, shape index: {}]
  %s9 = inlined_call_operand.vmem [shape: f32[1,512], index: 9, kind: input, shape index: {}]
  %s10 = inlined_call_operand.vmem [shape: f32[256,128], index: 10, kind: input, shape index: {}]
  %s11 = inlined_call_operand.vmem [shape: f32[1,128], index: 11, kind: input, shape index: {}]
  %s12 = inlined_call_operand.hbm [shape: f32[512,128], index: 12, kind: output, shape index: {0}]
  %s13 = inlined_call_operand.hbm [shape: f32[64,128], index: 13, kind: output, shape index: {1}]
  %14 = xla_tuple %s12, %s13
  %s15 = sld [smem:[#allocation0]]
  $region109: #{tpu_custom_call.1} parent=0
    _
  %s17 = ssub.s32 1, %s15
  %s18 = scalar_select 0, %s17, %s15
  $region1: #{tpu_custom_call.1} parent=0
    #allocation2 [shape = 'u8[262144]{0}', space=vmem, size = 0x40000, scoped, tag = 'input window, operand 0']
    #allocation3 [shape = 's32[2]{0}', space=sflag, size = 0x8, scoped, tag = 'scoped memory for tpu_custom_call.1']
    #allocation4 [shape = 's32[2]{0}', space=sflag, size = 0x8, scoped, tag = 'scoped memory for tpu_custom_call.1']
    #allocation5 [shape = 'u8[262144]{0}', space=vmem, size = 0x40000, scoped, tag = 'input window, operand 2, single buffered']
    #allocation6 [shape = 's32[1]{0}', space=sflag, size = 0x4, scoped, tag = 'scoped memory for tpu_custom_call.1']
    #allocation7 [shape = 'u8[786432]{0}', space=vmem, size = 0xc0000, scoped, tag = 'input window, operand 4, single buffered']
    #allocation8 [shape = 'u8[262144]{0}', space=vmem, size = 0x40000, scoped, tag = 'input window, operand 6, single buffered']
    #allocation9 [shape = 's32[1]{0}', space=sflag, size = 0x4, scoped, tag = 'scoped memory for tpu_custom_call.1']
    #allocation10 [shape = 'u8[524288]{0}', space=vmem, size = 0x80000, scoped, tag = 'input window, operand 8, single buffered']
    #allocation11 [shape = 'u8[262144]{0}', space=vmem, size = 0x40000, scoped, tag = 'output window, operand 0']
    #allocation12 [shape = 'u8[32768]{0}', space=vmem, size = 0x8000, scoped, tag = 'output window, operand 1']
    #allocation13 [shape = 's32[2]{0}', space=sflag, size = 0x8, scoped, tag = 'scoped memory for tpu_custom_call.1']
    %19 = vsyncpa [#allocation3], 0
    %s20 = scalar_lea.sflag [#allocation3], 1
    %21 = vsyncpa %s20, 0
    %22 = vsyncpa [#allocation6], 0
    %23 = vsyncpa [#allocation9], 0
    %24 = vsyncpa [#allocation4], 0
    %s25 = scalar_lea.sflag [#allocation4], 1
    %26 = vsyncpa %s25, 0
    %27 = vsyncpa [#allocation13], 0
    %s28 = scalar_lea.sflag [#allocation13], 1
    %29 = vsyncpa %s28, 0
    loop: start=0, step=1, limit=4
    $region2: #{tpu_custom_call.1} parent=1 // loop_pre_header
      _
    $region3: #{tpu_custom_call.1} parent=1 // loop_header
      %s31 = sphi 0, %s35
      %p32 = scmp.ge.s32.totalorder %s31, 4
      %s41 = sphi 0, %s43
      %s44 = sphi 0, %s41
      %s45 = sphi 0, %s44
      %s61 = sphi 0, %s45
      %s65 = sphi 0, %s65
      %s67 = sphi 0, %s65
      %s68 = sphi 0, %s67
      %s82 = sphi 0, %s68
      %s86 = sphi 0, %s86
      %s88 = sphi 0, %s86
      %s89 = sphi 0, %s88
      %s103 = sphi 0, %s89
      %s107 = sphi 0, %s107
      %s109 = sphi 0, %s107
      %s110 = sphi 0, %s109
      %s124 = sphi 0, %s110
      %s128 = sphi 0, %s128
      %s130 = sphi 0, %s128
      %s131 = sphi 0, %s130
      %s145 = sphi 0, %s131
      %s149 = sphi 0, %s149
      %s151 = sphi 0, %s149
      %s152 = sphi 0, %s151
      %s166 = sphi 0, %s152
      %s170 = sphi 0, %s170
      %s172 = sphi 0, %s170
      %s173 = sphi 0, %s172
      %s187 = sphi 0, %s173
      %s191 = sphi 0, %s191
      %s193 = sphi 0, %s191
      %s194 = sphi 0, %s193
      %s208 = sphi 0, %s194
      %s212 = sphi 0, %s212
      %s214 = sphi 0, %s212
      %s215 = sphi 0, %s214
      %s229 = sphi 0, %s215
      %s233 = sphi 0, %s233
      %s235 = sphi 0, %s233
      %s236 = sphi 0, %s235
      %s250 = sphi 0, %s236
      %s254 = sphi 0, %s254
      %s256 = sphi 0, %s254
      %s257 = sphi 0, %s256
      %s271 = sphi 0, %s257
      %s275 = sphi 0, %s275
      %s277 = sphi 0, %s275
      %s278 = sphi 0, %s277
      %s292 = sphi 0, %s278
      %s298 = sphi 0, %s300
      %s301 = sphi 0, %s298
      %s302 = sphi 0, %s301
      %s318 = sphi 0, %s302
      %s324 = sphi 0, %s326
      %s327 = sphi 0, %s324
      %s328 = sphi 0, %s327
      %s344 = sphi 0, %s328
    $region4: #{tpu_custom_call.1} parent=1 // loop_header_branch
      %34 = sbr.rel (%p32) target = $region8
    $region5: #{tpu_custom_call.1} parent=1 // loop_body
      %s36 = ssub.s32 %s31, 1
      %s37 = ssub.s32 %s31, 2
      %s38 = sadd.s32 %s31, 1
      %s39 = ssub.s32 %s31, %s38
      %p40 = scmp.eq.s32.totalorder %s39, 0
      %s42 = sadd.s32 %s41, 1
      %s43 = scalar_select %p40, %s41, %s42
      %p46 = pneg %p40
      %p47 = scmp.eq.s32.totalorder %s31, 1
      %p48 = por %p46, %p47
      %p49 = scmp.ne.s32.totalorder %s41, %s44
      %p50 = scmp.eq.s32.totalorder %s31, 0
      %p51 = por %p49, %p50
      %p52 = scmp.ne.s32.totalorder %s41, %s44
      %p53 = scmp.eq.s32.totalorder %s36, 1
      %p54 = por %p52, %p53
      %p55 = scmp.ne.s32.totalorder %s44, %s45
      %p56 = scmp.eq.s32.totalorder %s36, 0
      %p57 = por %p55, %p56
      %p58 = scmp.ne.s32.totalorder %s44, %s45
      %p59 = scmp.eq.s32.totalorder %s37, 1
      %p60 = por %p58, %p59
      %p62 = scmp.ne.s32.totalorder %s45, %s61
      %p63 = scmp.eq.s32.totalorder %s37, 0
      %p64 = por %p62, %p63
      %s66 = sadd.s32 %s65, 1
      %p69 = scmp.eq.s32.totalorder %s31, 1
      %p70 = scmp.ne.s32.totalorder %s65, %s67
      %p71 = scmp.eq.s32.totalorder %s31, 0
      %p72 = por %p70, %p71
      %p73 = scmp.ne.s32.totalorder %s65, %s67
      %p74 = scmp.eq.s32.totalorder %s36, 1
      %p75 = por %p73, %p74
      %p76 = scmp.ne.s32.totalorder %s67, %s68
      %p77 = scmp.eq.s32.totalorder %s36, 0
      %p78 = por %p76, %p77
      %p79 = scmp.ne.s32.totalorder %s67, %s68
      %p80 = scmp.eq.s32.totalorder %s37, 1
      %p81 = por %p79, %p80
      %p83 = scmp.ne.s32.totalorder %s68, %s82
      %p84 = scmp.eq.s32.totalorder %s37, 0
      %p85 = por %p83, %p84
      %s87 = sadd.s32 %s86, 1
      %p90 = scmp.eq.s32.totalorder %s31, 1
      %p91 = scmp.ne.s32.totalorder %s86, %s88
      %p92 = scmp.eq.s32.totalorder %s31, 0
      %p93 = por %p91, %p92
      %p94 = scmp.ne.s32.totalorder %s86, %s88
      %p95 = scmp.eq.s32.totalorder %s36, 1
      %p96 = por %p94, %p95
      %p97 = scmp.ne.s32.totalorder %s88, %s89
      %p98 = scmp.eq.s32.totalorder %s36, 0
      %p99 = por %p97, %p98
      %p100 = scmp.ne.s32.totalorder %s88, %s89
      %p101 = scmp.eq.s32.totalorder %s37, 1
      %p102 = por %p100, %p101
      %p104 = scmp.ne.s32.totalorder %s89, %s103
      %p105 = scmp.eq.s32.totalorder %s37, 0
      %p106 = por %p104, %p105
      %s108 = sadd.s32 %s107, 1
      %p111 = scmp.eq.s32.totalorder %s31, 1
      %p112 = scmp.ne.s32.totalorder %s107, %s109
      %p113 = scmp.eq.s32.totalorder %s31, 0
      %p114 = por %p112, %p113
      %p115 = scmp.ne.s32.totalorder %s107, %s109
      %p116 = scmp.eq.s32.totalorder %s36, 1
      %p117 = por %p115, %p116
      %p118 = scmp.ne.s32.totalorder %s109, %s110
      %p119 = scmp.eq.s32.totalorder %s36, 0
      %p120 = por %p118, %p119
      %p121 = scmp.ne.s32.totalorder %s109, %s110
      %p122 = scmp.eq.s32.totalorder %s37, 1
      %p123 = por %p121, %p122
      %p125 = scmp.ne.s32.totalorder %s110, %s124
      %p126 = scmp.eq.s32.totalorder %s37, 0
      %p127 = por %p125, %p126
      %s129 = sadd.s32 %s128, 1
      %p132 = scmp.eq.s32.totalorder %s31, 1
      %p133 = scmp.ne.s32.totalorder %s128, %s130
      %p134 = scmp.eq.s32.totalorder %s31, 0
      %p135 = por %p133, %p134
      %p136 = scmp.ne.s32.totalorder %s128, %s130
      %p137 = scmp.eq.s32.totalorder %s36, 1
      %p138 = por %p136, %p137
      %p139 = scmp.ne.s32.totalorder %s130, %s131
      %p140 = scmp.eq.s32.totalorder %s36, 0
      %p141 = por %p139, %p140
      %p142 = scmp.ne.s32.totalorder %s130, %s131
      %p143 = scmp.eq.s32.totalorder %s37, 1
      %p144 = por %p142, %p143
      %p146 = scmp.ne.s32.totalorder %s131, %s145
      %p147 = scmp.eq.s32.totalorder %s37, 0
      %p148 = por %p146, %p147
      %s150 = sadd.s32 %s149, 1
      %p153 = scmp.eq.s32.totalorder %s31, 1
      %p154 = scmp.ne.s32.totalorder %s149, %s151
      %p155 = scmp.eq.s32.totalorder %s31, 0
      %p156 = por %p154, %p155
      %p157 = scmp.ne.s32.totalorder %s149, %s151
      %p158 = scmp.eq.s32.totalorder %s36, 1
      %p159 = por %p157, %p158
      %p160 = scmp.ne.s32.totalorder %s151, %s152
      %p161 = scmp.eq.s32.totalorder %s36, 0
      %p162 = por %p160, %p161
      %p163 = scmp.ne.s32.totalorder %s151, %s152
      %p164 = scmp.eq.s32.totalorder %s37, 1
      %p165 = por %p163, %p164
      %p167 = scmp.ne.s32.totalorder %s152, %s166
      %p168 = scmp.eq.s32.totalorder %s37, 0
      %p169 = por %p167, %p168
      %s171 = sadd.s32 %s170, 1
      %p174 = scmp.eq.s32.totalorder %s31, 1
      %p175 = scmp.ne.s32.totalorder %s170, %s172
      %p176 = scmp.eq.s32.totalorder %s31, 0
      %p177 = por %p175, %p176
      %p178 = scmp.ne.s32.totalorder %s170, %s172
      %p179 = scmp.eq.s32.totalorder %s36, 1
      %p180 = por %p178, %p179
      %p181 = scmp.ne.s32.totalorder %s172, %s173
      %p182 = scmp.eq.s32.totalorder %s36, 0
      %p183 = por %p181, %p182
      %p184 = scmp.ne.s32.totalorder %s172, %s173
      %p185 = scmp.eq.s32.totalorder %s37, 1
      %p186 = por %p184, %p185
      %p188 = scmp.ne.s32.totalorder %s173, %s187
      %p189 = scmp.eq.s32.totalorder %s37, 0
      %p190 = por %p188, %p189
      %s192 = sadd.s32 %s191, 1
      %p195 = scmp.eq.s32.totalorder %s31, 1
      %p196 = scmp.ne.s32.totalorder %s191, %s193
      %p197 = scmp.eq.s32.totalorder %s31, 0
      %p198 = por %p196, %p197
      %p199 = scmp.ne.s32.totalorder %s191, %s193
      %p200 = scmp.eq.s32.totalorder %s36, 1
      %p201 = por %p199, %p200
      %p202 = scmp.ne.s32.totalorder %s193, %s194
      %p203 = scmp.eq.s32.totalorder %s36, 0
      %p204 = por %p202, %p203
      %p205 = scmp.ne.s32.totalorder %s193, %s194
      %p206 = scmp.eq.s32.totalorder %s37, 1
      %p207 = por %p205, %p206
      %p209 = scmp.ne.s32.totalorder %s194, %s208
      %p210 = scmp.eq.s32.totalorder %s37, 0
      %p211 = por %p209, %p210
      %s213 = sadd.s32 %s212, 1
      %p216 = scmp.eq.s32.totalorder %s31, 1
      %p217 = scmp.ne.s32.totalorder %s212, %s214
      %p218 = scmp.eq.s32.totalorder %s31, 0
      %p219 = por %p217, %p218
      %p220 = scmp.ne.s32.totalorder %s212, %s214
      %p221 = scmp.eq.s32.totalorder %s36, 1
      %p222 = por %p220, %p221
      %p223 = scmp.ne.s32.totalorder %s214, %s215
      %p224 = scmp.eq.s32.totalorder %s36, 0
      %p225 = por %p223, %p224
      %p226 = scmp.ne.s32.totalorder %s214, %s215
      %p227 = scmp.eq.s32.totalorder %s37, 1
      %p228 = por %p226, %p227
      %p230 = scmp.ne.s32.totalorder %s215, %s229
      %p231 = scmp.eq.s32.totalorder %s37, 0
      %p232 = por %p230, %p231
      %s234 = sadd.s32 %s233, 1
      %p237 = scmp.eq.s32.totalorder %s31, 1
      %p238 = scmp.ne.s32.totalorder %s233, %s235
      %p239 = scmp.eq.s32.totalorder %s31, 0
      %p240 = por %p238, %p239
      %p241 = scmp.ne.s32.totalorder %s233, %s235
      %p242 = scmp.eq.s32.totalorder %s36, 1
      %p243 = por %p241, %p242
      %p244 = scmp.ne.s32.totalorder %s235, %s236
      %p245 = scmp.eq.s32.totalorder %s36, 0
      %p246 = por %p244, %p245
      %p247 = scmp.ne.s32.totalorder %s235, %s236
      %p248 = scmp.eq.s32.totalorder %s37, 1
      %p249 = por %p247, %p248
      %p251 = scmp.ne.s32.totalorder %s236, %s250
      %p252 = scmp.eq.s32.totalorder %s37, 0
      %p253 = por %p251, %p252
      %s255 = sadd.s32 %s254, 1
      %p258 = scmp.eq.s32.totalorder %s31, 1
      %p259 = scmp.ne.s32.totalorder %s254, %s256
      %p260 = scmp.eq.s32.totalorder %s31, 0
      %p261 = por %p259, %p260
      %p262 = scmp.ne.s32.totalorder %s254, %s256
      %p263 = scmp.eq.s32.totalorder %s36, 1
      %p264 = por %p262, %p263
      %p265 = scmp.ne.s32.totalorder %s256, %s257
      %p266 = scmp.eq.s32.totalorder %s36, 0
      %p267 = por %p265, %p266
      %p268 = scmp.ne.s32.totalorder %s256, %s257
      %p269 = scmp.eq.s32.totalorder %s37, 1
      %p270 = por %p268, %p269
      %p272 = scmp.ne.s32.totalorder %s257, %s271
      %p273 = scmp.eq.s32.totalorder %s37, 0
      %p274 = por %p272, %p273
      %s276 = sadd.s32 %s275, 1
      %p279 = scmp.eq.s32.totalorder %s31, 1
      %p280 = scmp.ne.s32.totalorder %s275, %s277
      %p281 = scmp.eq.s32.totalorder %s31, 0
      %p282 = por %p280, %p281
      %p283 = scmp.ne.s32.totalorder %s275, %s277
      %p284 = scmp.eq.s32.totalorder %s36, 1
      %p285 = por %p283, %p284
      %p286 = scmp.ne.s32.totalorder %s277, %s278
      %p287 = scmp.eq.s32.totalorder %s36, 0
      %p288 = por %p286, %p287
      %p289 = scmp.ne.s32.totalorder %s277, %s278
      %p290 = scmp.eq.s32.totalorder %s37, 1
      %p291 = por %p289, %p290
      %p293 = scmp.ne.s32.totalorder %s278, %s292
      %p294 = scmp.eq.s32.totalorder %s37, 0
      %p295 = por %p293, %p294
      %s296 = ssub.s32 %s31, %s38
      %p297 = scmp.eq.s32.totalorder %s296, 0
      %s299 = sadd.s32 %s298, 1
      %s300 = scalar_select %p297, %s298, %s299
      %p303 = pneg %p297
      %p304 = scmp.eq.s32.totalorder %s31, 1
      %p305 = por %p303, %p304
      %p306 = scmp.ne.s32.totalorder %s298, %s301
      %p307 = scmp.eq.s32.totalorder %s31, 0
      %p308 = por %p306, %p307
      %p309 = scmp.ne.s32.totalorder %s298, %s301
      %p310 = scmp.eq.s32.totalorder %s36, 1
      %p311 = por %p309, %p310
      %p312 = scmp.ne.s32.totalorder %s301, %s302
      %p313 = scmp.eq.s32.totalorder %s36, 0
      %p314 = por %p312, %p313
      %p315 = scmp.ne.s32.totalorder %s301, %s302
      %p316 = scmp.eq.s32.totalorder %s37, 1
      %p317 = por %p315, %p316
      %p319 = scmp.ne.s32.totalorder %s302, %s318
      %p320 = scmp.eq.s32.totalorder %s37, 0
      %p321 = por %p319, %p320
      %s322 = ssub.s32 %s31, %s38
      %p323 = scmp.eq.s32.totalorder %s322, 0
      %s325 = sadd.s32 %s324, 1
      %s326 = scalar_select %p323, %s324, %s325
      %p329 = pneg %p323
      %p330 = scmp.eq.s32.totalorder %s31, 1
      %p331 = por %p329, %p330
      %p332 = scmp.ne.s32.totalorder %s324, %s327
      %p333 = scmp.eq.s32.totalorder %s31, 0
      %p334 = por %p332, %p333
      %p335 = scmp.ne.s32.totalorder %s324, %s327
      %p336 = scmp.eq.s32.totalorder %s36, 1
      %p337 = por %p335, %p336
      %p338 = scmp.ne.s32.totalorder %s327, %s328
      %p339 = scmp.eq.s32.totalorder %s36, 0
      %p340 = por %p338, %p339
      %p341 = scmp.ne.s32.totalorder %s327, %s328
      %p342 = scmp.eq.s32.totalorder %s37, 1
      %p343 = por %p341, %p342
      %p345 = scmp.ne.s32.totalorder %s328, %s344
      %p346 = scmp.eq.s32.totalorder %s37, 0
      %p347 = por %p345, %p346
      %p348 = scmp.le.s32.totalorder 1, %s31
      %p349 = scmp.lt.s32.totalorder %s31, 3
      %p350 = pnand %p348, %p349
      %p351 = pneg %p350
      // Predicated region
      $region9: #{tpu_custom_call.1} parent=5 // pred_check
        _
      $region10: #{tpu_custom_call.1} parent=5 // pred_check_branch
        %353 = sbr.rel (%p350) target = $region12
      $region11: #{tpu_custom_call.1} parent=5 // pred_region
        %s354 = ssub.s32 %s31, 1
        // Predicated region
        $region13: #{tpu_custom_call.1} parent=11 // pred_check
          %p355 = pneg %p78
        $region14: #{tpu_custom_call.1} parent=11 // pred_check_branch
          %357 = sbr.rel (%p355) target = $region16
        $region15: #{tpu_custom_call.1} parent=11 // pred_region
          _
        $region16: #{tpu_custom_call.1} parent=11 // pred_fallthru
          _
        // Predicated region
        $region17: #{tpu_custom_call.1} parent=11 // pred_check
          %p358 = pneg %p99
        $region18: #{tpu_custom_call.1} parent=11 // pred_check_branch
          %360 = sbr.rel (%p358) target = $region20
        $region19: #{tpu_custom_call.1} parent=11 // pred_region
          %s362 = ssub.s32 8192, 8192
          %363 = vsyncadd [#allocation6], %s362
          %s364 = sshll.u32 [#allocation5], 4
          %s365 = int_to_ptr.vmem [resolvable:$true] %s364
          %370 = dma.hbm_to_vmem [thread:$0]  %s2, 8192, %s365, [#allocation6], 512, 512, 32
        $region20: #{tpu_custom_call.1} parent=11 // pred_fallthru
          _
        // Predicated region
        $region21: #{tpu_custom_call.1} parent=11 // pred_check
          %p371 = pneg %p120
        $region22: #{tpu_custom_call.1} parent=11 // pred_check_branch
          %373 = sbr.rel (%p371) target = $region24
        $region23: #{tpu_custom_call.1} parent=11 // pred_region
          _
        $region24: #{tpu_custom_call.1} parent=11 // pred_fallthru
          _
        // Predicated region
        $region25: #{tpu_custom_call.1} parent=11 // pred_check
          %p374 = pneg %p141
        $region26: #{tpu_custom_call.1} parent=11 // pred_check_branch
          %376 = sbr.rel (%p374) target = $region28
        $region27: #{tpu_custom_call.1} parent=11 // pred_region
          %s378 = ssub.s32 24576, 24576
          %379 = vsyncadd [#allocation6], %s378
          %s380 = sshll.u32 [#allocation7], 4
          %s381 = int_to_ptr.vmem [resolvable:$true] %s380
          %386 = dma.hbm_to_vmem [thread:$0]  %s4, 24576, %s381, [#allocation6], 256, 256, 16
        $region28: #{tpu_custom_call.1} parent=11 // pred_fallthru
          _
        // Predicated region
        $region29: #{tpu_custom_call.1} parent=11 // pred_check
          %p387 = pneg %p162
        $region30: #{tpu_custom_call.1} parent=11 // pred_check_branch
          %389 = sbr.rel (%p387) target = $region32
        $region31: #{tpu_custom_call.1} parent=11 // pred_region
          _
        $region32: #{tpu_custom_call.1} parent=11 // pred_fallthru
          _
        // Predicated region
        $region33: #{tpu_custom_call.1} parent=11 // pred_check
          %p390 = pneg %p183
        $region34: #{tpu_custom_call.1} parent=11 // pred_check_branch
          %392 = sbr.rel (%p390) target = $region36
        $region35: #{tpu_custom_call.1} parent=11 // pred_region
          %s394 = ssub.s32 8192, 8192
          %395 = vsyncadd [#allocation9], %s394
          %s396 = sshll.u32 [#allocation8], 4
          %s397 = int_to_ptr.vmem [resolvable:$true] %s396
          %402 = dma.hbm_to_vmem [thread:$0]  %s6, 8192, %s397, [#allocation9], 256, 256, 16
        $region36: #{tpu_custom_call.1} parent=11 // pred_fallthru
          _
        // Predicated region
        $region37: #{tpu_custom_call.1} parent=11 // pred_check
          %p403 = pneg %p204
        $region38: #{tpu_custom_call.1} parent=11 // pred_check_branch
          %405 = sbr.rel (%p403) target = $region40
        $region39: #{tpu_custom_call.1} parent=11 // pred_region
          _
        $region40: #{tpu_custom_call.1} parent=11 // pred_fallthru
          _
        // Predicated region
        $region41: #{tpu_custom_call.1} parent=11 // pred_check
          %p406 = pneg %p225
        $region42: #{tpu_custom_call.1} parent=11 // pred_check_branch
          %408 = sbr.rel (%p406) target = $region44
        $region43: #{tpu_custom_call.1} parent=11 // pred_region
          %s410 = ssub.s32 16384, 16384
          %411 = vsyncadd [#allocation9], %s410
          %s412 = sshll.u32 [#allocation10], 4
          %s413 = int_to_ptr.vmem [resolvable:$true] %s412
          %418 = dma.hbm_to_vmem [thread:$0]  %s8, 16384, %s413, [#allocation9], 512, 512, 32
        $region44: #{tpu_custom_call.1} parent=11 // pred_fallthru
          _
        // Predicated region
        $region45: #{tpu_custom_call.1} parent=11 // pred_check
          %p419 = pneg %p246
        $region46: #{tpu_custom_call.1} parent=11 // pred_check_branch
          %421 = sbr.rel (%p419) target = $region48
        $region47: #{tpu_custom_call.1} parent=11 // pred_region
          _
        $region48: #{tpu_custom_call.1} parent=11 // pred_fallthru
          _
        // Predicated region
        $region49: #{tpu_custom_call.1} parent=11 // pred_check
          %p422 = pneg %p267
        $region50: #{tpu_custom_call.1} parent=11 // pred_check_branch
          %424 = sbr.rel (%p422) target = $region52
        $region51: #{tpu_custom_call.1} parent=11 // pred_region
          _
        $region52: #{tpu_custom_call.1} parent=11 // pred_fallthru
          _
        // Predicated region
        $region53: #{tpu_custom_call.1} parent=11 // pred_check
          %p425 = pneg %p288
        $region54: #{tpu_custom_call.1} parent=11 // pred_check_branch
          %427 = sbr.rel (%p425) target = $region56
        $region55: #{tpu_custom_call.1} parent=11 // pred_region
          _
        $region56: #{tpu_custom_call.1} parent=11 // pred_fallthru
          _
      $region12: #{tpu_custom_call.1} parent=5 // pred_fallthru
        _
      %p428 = scmp.lt.s32.totalorder %s31, 2
      // Predicated region
      $region57: #{tpu_custom_call.1} parent=5 // pred_check
        %p429 = pneg %p428
      $region58: #{tpu_custom_call.1} parent=5 // pred_check_branch
        %431 = sbr.rel (%p429) target = $region60
      $region59: #{tpu_custom_call.1} parent=5 // pred_region
        // Predicated region
        $region61: #{tpu_custom_call.1} parent=59 // pred_check
          %p432 = pneg %p51
        $region62: #{tpu_custom_call.1} parent=59 // pred_check_branch
          %434 = sbr.rel (%p432) target = $region64
        $region63: #{tpu_custom_call.1} parent=59 // pred_region
          %s435 = sand.u32 %s41, 1
          %s436 = scalar_lea.sflag [#allocation3], %s435
          %s437 = sand.u32 %s41, 1
          %s438 = smul.addr %s437, 256
          %s439 = scalar_lea.vmem [#allocation2], %s438
          %s440 = smul.u32 32, %s31
          %s442 = ssub.s32 4096, 4096
          %443 = vsyncadd %s436, %s442
          %s444 = smul.addr %s440, 128
          %s445 = scalar_lea.hbm %s0, %s444
          %s446 = sshll.u32 %s439, 4
          %s447 = int_to_ptr.vmem [resolvable:$true] %s446
          %452 = dma.hbm_to_vmem [thread:$0]  %s445, 4096, %s447, %s436, 128, 128, 8
        $region64: #{tpu_custom_call.1} parent=59 // pred_fallthru
          _
      $region60: #{tpu_custom_call.1} parent=5 // pred_fallthru
        _
      %p453 = scmp.le.s32.totalorder 1, %s31
      %p454 = scmp.lt.s32.totalorder %s31, 3
      %p455 = pnand %p453, %p454
      %p456 = pneg %p455
      // Predicated region
      $region65: #{tpu_custom_call.1} parent=5 // pred_check
        _
      $region66: #{tpu_custom_call.1} parent=5 // pred_check_branch
        %458 = sbr.rel (%p455) target = $region68
      $region67: #{tpu_custom_call.1} parent=5 // pred_region
        %s459 = ssub.s32 %s31, 1
        %s460 = sand.u32 %s44, 1
        %s461 = scalar_lea.sflag [#allocation3], %s460
        %s462 = sand.u32 %s44, 1
        %s463 = smul.addr %s462, 256
        %s464 = scalar_lea.vmem [#allocation2], %s463
        // Predicated region
        $region69: #{tpu_custom_call.1} parent=67 // pred_check
          %p465 = pneg %p57
        $region70: #{tpu_custom_call.1} parent=67 // pred_check_branch
          %467 = sbr.rel (%p465) target = $region72
        $region71: #{tpu_custom_call.1} parent=67 // pred_region
          %468 = dma.done %s461, 4096
        $region72: #{tpu_custom_call.1} parent=67 // pred_fallthru
          _
        // Predicated region
        $region73: #{tpu_custom_call.1} parent=67 // pred_check
          %p469 = pneg %p99
        $region74: #{tpu_custom_call.1} parent=67 // pred_check_branch
          %471 = sbr.rel (%p469) target = $region76
        $region75: #{tpu_custom_call.1} parent=67 // pred_region
          %472 = dma.done [#allocation6], 8192
        $region76: #{tpu_custom_call.1} parent=67 // pred_fallthru
          _
        // Predicated region
        $region77: #{tpu_custom_call.1} parent=67 // pred_check
          %p473 = pneg %p141
        $region78: #{tpu_custom_call.1} parent=67 // pred_check_branch
          %475 = sbr.rel (%p473) target = $region80
        $region79: #{tpu_custom_call.1} parent=67 // pred_region
          %476 = dma.done [#allocation6], 24576
        $region80: #{tpu_custom_call.1} parent=67 // pred_fallthru
          _
        // Predicated region
        $region81: #{tpu_custom_call.1} parent=67 // pred_check
          %p477 = pneg %p183
        $region82: #{tpu_custom_call.1} parent=67 // pred_check_branch
          %479 = sbr.rel (%p477) target = $region84
        $region83: #{tpu_custom_call.1} parent=67 // pred_region
          %480 = dma.done [#allocation9], 8192
        $region84: #{tpu_custom_call.1} parent=67 // pred_fallthru
          _
        // Predicated region
        $region85: #{tpu_custom_call.1} parent=67 // pred_check
          %p481 = pneg %p225
        $region86: #{tpu_custom_call.1} parent=67 // pred_check_branch
          %483 = sbr.rel (%p481) target = $region88
        $region87: #{tpu_custom_call.1} parent=67 // pred_region
          %484 = dma.done [#allocation9], 16384
        $region88: #{tpu_custom_call.1} parent=67 // pred_fallthru
          _
        %s485 = sand.u32 %s44, 1
        %s486 = scalar_lea.sflag [#allocation3], %s485
        %s487 = sand.u32 %s44, 1
        %s488 = smul.addr %s487, 256
        %s489 = scalar_lea.vmem [#allocation2], %s488
        %p490 = pneg %p57
        %p491 = pneg %p54
        %p492 = pneg %p78
        %p493 = pneg %p75
        %p494 = pneg %p99
        %p495 = pneg %p96
        %p496 = pneg %p120
        %p497 = pneg %p117
        %p498 = pneg %p141
        %p499 = pneg %p138
        %p500 = pneg %p162
        %p501 = pneg %p159
        %p502 = pneg %p183
        %p503 = pneg %p180
        %p504 = pneg %p204
        %p505 = pneg %p201
        %p506 = pneg %p225
        %p507 = pneg %p222
        %p508 = pneg %p246
        %p509 = pneg %p243
        %p510 = pneg %p267
        %p511 = pneg %p264
        %p512 = pneg %p288
        %p513 = pneg %p285
        %p514 = pneg %p314
        %p515 = pneg %p311
        %s516 = sand.u32 %s301, 1
        %s517 = scalar_lea.sflag [#allocation4], %s516
        %s518 = sand.u32 %s301, 1
        %s519 = smul.addr %s518, 256
        %s520 = scalar_lea.vmem [#allocation11], %s519
        %p521 = pneg %p340
        %p522 = pneg %p337
        %s523 = sand.u32 %s327, 1
        %s524 = scalar_lea.sflag [#allocation13], %s523
        %s525 = sand.u32 %s327, 1
        %s526 = smul.addr %s525, 32
        %s527 = scalar_lea.vmem [#allocation12], %s526
        %s528 = smul.u32 32, %s36
        %s529 = smul.u32 32, %s36
        %s530 = smul.u32 4, %s36
        %v531 = vld [vmem:[%s464] sm:$0xff]
        %v532 = vld [vmem:[%s464 + $0x8] sm:$0xff]
        %v533 = vld [vmem:[%s464 + $0x10] sm:$0xff]
        %v534 = vld [vmem:[%s464 + $0x18] sm:$0xff]
        %v535 = vld [vmem:[%s464 + $0x20] sm:$0xff]
        %v536 = vld [vmem:[%s464 + $0x28] sm:$0xff]
        %v537 = vld [vmem:[%s464 + $0x30] sm:$0xff]
        %v538 = vld [vmem:[%s464 + $0x38] sm:$0xff]
        %v539 = vld [vmem:[%s464 + $0x40] sm:$0xff]
        %v540 = vld [vmem:[%s464 + $0x48] sm:$0xff]
        %v541 = vld [vmem:[%s464 + $0x50] sm:$0xff]
        %v542 = vld [vmem:[%s464 + $0x58] sm:$0xff]
        %v543 = vld [vmem:[%s464 + $0x60] sm:$0xff]
        %v544 = vld [vmem:[%s464 + $0x68] sm:$0xff]
        %v545 = vld [vmem:[%s464 + $0x70] sm:$0xff]
        %v546 = vld [vmem:[%s464 + $0x78] sm:$0xff]
        %v547 = vld [vmem:[%s464 + $0x80] sm:$0xff]
        %v548 = vld [vmem:[%s464 + $0x88] sm:$0xff]
        %v549 = vld [vmem:[%s464 + $0x90] sm:$0xff]
        %v550 = vld [vmem:[%s464 + $0x98] sm:$0xff]
        %v551 = vld [vmem:[%s464 + $0xa0] sm:$0xff]
        %v552 = vld [vmem:[%s464 + $0xa8] sm:$0xff]
        %v553 = vld [vmem:[%s464 + $0xb0] sm:$0xff]
        %v554 = vld [vmem:[%s464 + $0xb8] sm:$0xff]
        %v555 = vld [vmem:[%s464 + $0xc0] sm:$0xff]
        %v556 = vld [vmem:[%s464 + $0xc8] sm:$0xff]
        %v557 = vld [vmem:[%s464 + $0xd0] sm:$0xff]
        %v558 = vld [vmem:[%s464 + $0xd8] sm:$0xff]
        %v559 = vld [vmem:[%s464 + $0xe0] sm:$0xff]
        %v560 = vld [vmem:[%s464 + $0xe8] sm:$0xff]
        %v561 = vld [vmem:[%s464 + $0xf0] sm:$0xff]
        %v562 = vld [vmem:[%s464 + $0xf8] sm:$0xff]
        %563 = vadd.xlane.f32.xlu0 %v531
        %v564 = vpop.xlane.xlu0 %563
        %565 = vadd.xlane.f32.xlu0 %v532
        %v566 = vpop.xlane.xlu0 %565
        %567 = vadd.xlane.f32.xlu0 %v533
        %v568 = vpop.xlane.xlu0 %567
        %569 = vadd.xlane.f32.xlu0 %v534
        %v570 = vpop.xlane.xlu0 %569
        %571 = vadd.xlane.f32.xlu0 %v535
        %v572 = vpop.xlane.xlu0 %571
        %573 = vadd.xlane.f32.xlu0 %v536
        %v574 = vpop.xlane.xlu0 %573
        %575 = vadd.xlane.f32.xlu0 %v537
        %v576 = vpop.xlane.xlu0 %575
        %577 = vadd.xlane.f32.xlu0 %v538
        %v578 = vpop.xlane.xlu0 %577
        %579 = vadd.xlane.f32.xlu0 %v539
        %v580 = vpop.xlane.xlu0 %579
        %581 = vadd.xlane.f32.xlu0 %v540
        %v582 = vpop.xlane.xlu0 %581
        %583 = vadd.xlane.f32.xlu0 %v541
        %v584 = vpop.xlane.xlu0 %583
        %585 = vadd.xlane.f32.xlu0 %v542
        %v586 = vpop.xlane.xlu0 %585
        %587 = vadd.xlane.f32.xlu0 %v543
        %v588 = vpop.xlane.xlu0 %587
        %589 = vadd.xlane.f32.xlu0 %v544
        %v590 = vpop.xlane.xlu0 %589
        %591 = vadd.xlane.f32.xlu0 %v545
        %v592 = vpop.xlane.xlu0 %591
        %593 = vadd.xlane.f32.xlu0 %v546
        %v594 = vpop.xlane.xlu0 %593
        %595 = vadd.xlane.f32.xlu0 %v547
        %v596 = vpop.xlane.xlu0 %595
        %597 = vadd.xlane.f32.xlu0 %v548
        %v598 = vpop.xlane.xlu0 %597
        %599 = vadd.xlane.f32.xlu0 %v549
        %v600 = vpop.xlane.xlu0 %599
        %601 = vadd.xlane.f32.xlu0 %v550
        %v602 = vpop.xlane.xlu0 %601
        %603 = vadd.xlane.f32.xlu0 %v551
        %v604 = vpop.xlane.xlu0 %603
        %605 = vadd.xlane.f32.xlu0 %v552
        %v606 = vpop.xlane.xlu0 %605
        %607 = vadd.xlane.f32.xlu0 %v553
        %v608 = vpop.xlane.xlu0 %607
        %609 = vadd.xlane.f32.xlu0 %v554
        %v610 = vpop.xlane.xlu0 %609
        %611 = vadd.xlane.f32.xlu0 %v555
        %v612 = vpop.xlane.xlu0 %611
        %613 = vadd.xlane.f32.xlu0 %v556
        %v614 = vpop.xlane.xlu0 %613
        %615 = vadd.xlane.f32.xlu0 %v557
        %v616 = vpop.xlane.xlu0 %615
        %617 = vadd.xlane.f32.xlu0 %v558
        %v618 = vpop.xlane.xlu0 %617
        %619 = vadd.xlane.f32.xlu0 %v559
        %v620 = vpop.xlane.xlu0 %619
        %621 = vadd.xlane.f32.xlu0 %v560
        %v622 = vpop.xlane.xlu0 %621
        %623 = vadd.xlane.f32.xlu0 %v561
        %v624 = vpop.xlane.xlu0 %623
        %625 = vadd.xlane.f32.xlu0 %v562
        %v626 = vpop.xlane.xlu0 %625
        %v627 = vrcp.pop 128.0
        %v628 = vmul.f32 %v564, %v627
        %v629 = vmul.f32 %v566, %v627
        %v630 = vmul.f32 %v568, %v627
        %v631 = vmul.f32 %v570, %v627
        %v632 = vmul.f32 %v572, %v627
        %v633 = vmul.f32 %v574, %v627
        %v634 = vmul.f32 %v576, %v627
        %v635 = vmul.f32 %v578, %v627
        %v636 = vmul.f32 %v580, %v627
        %v637 = vmul.f32 %v582, %v627
        %v638 = vmul.f32 %v584, %v627
        %v639 = vmul.f32 %v586, %v627
        %v640 = vmul.f32 %v588, %v627
        %v641 = vmul.f32 %v590, %v627
        %v642 = vmul.f32 %v592, %v627
        %v643 = vmul.f32 %v594, %v627
        %v644 = vmul.f32 %v596, %v627
        %v645 = vmul.f32 %v598, %v627
        %v646 = vmul.f32 %v600, %v627
        %v647 = vmul.f32 %v602, %v627
        %v648 = vmul.f32 %v604, %v627
        %v649 = vmul.f32 %v606, %v627
        %v650 = vmul.f32 %v608, %v627
        %v651 = vmul.f32 %v610, %v627
        %v652 = vmul.f32 %v612, %v627
        %v653 = vmul.f32 %v614, %v627
        %v654 = vmul.f32 %v616, %v627
        %v655 = vmul.f32 %v618, %v627
        %v656 = vmul.f32 %v620, %v627
        %v657 = vmul.f32 %v622, %v627
        %v658 = vmul.f32 %v624, %v627
        %v659 = vmul.f32 %v626, %v627
        %v660 = vrot.slane %v628, 4
        %v661 = vadd.f32 %v628, %v660
        %v662 = vrot.slane %v661, 2
        %v663 = vadd.f32 %v661, %v662
        %v664 = vrot.slane %v663, 1
        %v665 = vadd.f32 %v663, %v664
        %v666 = vrot.slane %v629, 4
        %v667 = vadd.f32 %v629, %v666
        %v668 = vrot.slane %v667, 2
        %v669 = vadd.f32 %v667, %v668
        %v670 = vrot.slane %v669, 1
        %v671 = vadd.f32 %v669, %v670
        %v672 = vrot.slane %v630, 4
        %v673 = vadd.f32 %v630, %v672
        %v674 = vrot.slane %v673, 2
        %v675 = vadd.f32 %v673, %v674
        %v676 = vrot.slane %v675, 1
        %v677 = vadd.f32 %v675, %v676
        %v678 = vrot.slane %v631, 4
        %v679 = vadd.f32 %v631, %v678
        %v680 = vrot.slane %v679, 2
        %v681 = vadd.f32 %v679, %v680
        %v682 = vrot.slane %v681, 1
        %v683 = vadd.f32 %v681, %v682
        %v684 = vrot.slane %v632, 4
        %v685 = vadd.f32 %v632, %v684
        %v686 = vrot.slane %v685, 2
        %v687 = vadd.f32 %v685, %v686
        %v688 = vrot.slane %v687, 1
        %v689 = vadd.f32 %v687, %v688
        %v690 = vrot.slane %v633, 4
        %v691 = vadd.f32 %v633, %v690
        %v692 = vrot.slane %v691, 2
        %v693 = vadd.f32 %v691, %v692
        %v694 = vrot.slane %v693, 1
        %v695 = vadd.f32 %v693, %v694
        %v696 = vrot.slane %v634, 4
        %v697 = vadd.f32 %v634, %v696
        %v698 = vrot.slane %v697, 2
        %v699 = vadd.f32 %v697, %v698
        %v700 = vrot.slane %v699, 1
        %v701 = vadd.f32 %v699, %v700
        %v702 = vrot.slane %v635, 4
        %v703 = vadd.f32 %v635, %v702
        %v704 = vrot.slane %v703, 2
        %v705 = vadd.f32 %v703, %v704
        %v706 = vrot.slane %v705, 1
        %v707 = vadd.f32 %v705, %v706
        %v708 = vrot.slane %v636, 4
        %v709 = vadd.f32 %v636, %v708
        %v710 = vrot.slane %v709, 2
        %v711 = vadd.f32 %v709, %v710
        %v712 = vrot.slane %v711, 1
        %v713 = vadd.f32 %v711, %v712
        %v714 = vrot.slane %v637, 4
        %v715 = vadd.f32 %v637, %v714
        %v716 = vrot.slane %v715, 2
        %v717 = vadd.f32 %v715, %v716
        %v718 = vrot.slane %v717, 1
        %v719 = vadd.f32 %v717, %v718
        %v720 = vrot.slane %v638, 4
        %v721 = vadd.f32 %v638, %v720
        %v722 = vrot.slane %v721, 2
        %v723 = vadd.f32 %v721, %v722
        %v724 = vrot.slane %v723, 1
        %v725 = vadd.f32 %v723, %v724
        %v726 = vrot.slane %v639, 4
        %v727 = vadd.f32 %v639, %v726
        %v728 = vrot.slane %v727, 2
        %v729 = vadd.f32 %v727, %v728
        %v730 = vrot.slane %v729, 1
        %v731 = vadd.f32 %v729, %v730
        %v732 = vrot.slane %v640, 4
        %v733 = vadd.f32 %v640, %v732
        %v734 = vrot.slane %v733, 2
        %v735 = vadd.f32 %v733, %v734
        %v736 = vrot.slane %v735, 1
        %v737 = vadd.f32 %v735, %v736
        %v738 = vrot.slane %v641, 4
        %v739 = vadd.f32 %v641, %v738
        %v740 = vrot.slane %v739, 2
        %v741 = vadd.f32 %v739, %v740
        %v742 = vrot.slane %v741, 1
        %v743 = vadd.f32 %v741, %v742
        %v744 = vrot.slane %v642, 4
        %v745 = vadd.f32 %v642, %v744
        %v746 = vrot.slane %v745, 2
        %v747 = vadd.f32 %v745, %v746
        %v748 = vrot.slane %v747, 1
        %v749 = vadd.f32 %v747, %v748
        %v750 = vrot.slane %v643, 4
        %v751 = vadd.f32 %v643, %v750
        %v752 = vrot.slane %v751, 2
        %v753 = vadd.f32 %v751, %v752
        %v754 = vrot.slane %v753, 1
        %v755 = vadd.f32 %v753, %v754
        %v756 = vrot.slane %v644, 4
        %v757 = vadd.f32 %v644, %v756
        %v758 = vrot.slane %v757, 2
        %v759 = vadd.f32 %v757, %v758
        %v760 = vrot.slane %v759, 1
        %v761 = vadd.f32 %v759, %v760
        %v762 = vrot.slane %v645, 4
        %v763 = vadd.f32 %v645, %v762
        %v764 = vrot.slane %v763, 2
        %v765 = vadd.f32 %v763, %v764
        %v766 = vrot.slane %v765, 1
        %v767 = vadd.f32 %v765, %v766
        %v768 = vrot.slane %v646, 4
        %v769 = vadd.f32 %v646, %v768
        %v770 = vrot.slane %v769, 2
        %v771 = vadd.f32 %v769, %v770
        %v772 = vrot.slane %v771, 1
        %v773 = vadd.f32 %v771, %v772
        %v774 = vrot.slane %v647, 4
        %v775 = vadd.f32 %v647, %v774
        %v776 = vrot.slane %v775, 2
        %v777 = vadd.f32 %v775, %v776
        %v778 = vrot.slane %v777, 1
        %v779 = vadd.f32 %v777, %v778
        %v780 = vrot.slane %v648, 4
        %v781 = vadd.f32 %v648, %v780
        %v782 = vrot.slane %v781, 2
        %v783 = vadd.f32 %v781, %v782
        %v784 = vrot.slane %v783, 1
        %v785 = vadd.f32 %v783, %v784
        %v786 = vrot.slane %v649, 4
        %v787 = vadd.f32 %v649, %v786
        %v788 = vrot.slane %v787, 2
        %v789 = vadd.f32 %v787, %v788
        %v790 = vrot.slane %v789, 1
        %v791 = vadd.f32 %v789, %v790
        %v792 = vrot.slane %v650, 4
        %v793 = vadd.f32 %v650, %v792
        %v794 = vrot.slane %v793, 2
        %v795 = vadd.f32 %v793, %v794
        %v796 = vrot.slane %v795, 1
        %v797 = vadd.f32 %v795, %v796
        %v798 = vrot.slane %v651, 4
        %v799 = vadd.f32 %v651, %v798
        %v800 = vrot.slane %v799, 2
        %v801 = vadd.f32 %v799, %v800
        %v802 = vrot.slane %v801, 1
        %v803 = vadd.f32 %v801, %v802
        %v804 = vrot.slane %v652, 4
        %v805 = vadd.f32 %v652, %v804
        %v806 = vrot.slane %v805, 2
        %v807 = vadd.f32 %v805, %v806
        %v808 = vrot.slane %v807, 1
        %v809 = vadd.f32 %v807, %v808
        %v810 = vrot.slane %v653, 4
        %v811 = vadd.f32 %v653, %v810
        %v812 = vrot.slane %v811, 2
        %v813 = vadd.f32 %v811, %v812
        %v814 = vrot.slane %v813, 1
        %v815 = vadd.f32 %v813, %v814
        %v816 = vrot.slane %v654, 4
        %v817 = vadd.f32 %v654, %v816
        %v818 = vrot.slane %v817, 2
        %v819 = vadd.f32 %v817, %v818
        %v820 = vrot.slane %v819, 1
        %v821 = vadd.f32 %v819, %v820
        %v822 = vrot.slane %v655, 4
        %v823 = vadd.f32 %v655, %v822
        %v824 = vrot.slane %v823, 2
        %v825 = vadd.f32 %v823, %v824
        %v826 = vrot.slane %v825, 1
        %v827 = vadd.f32 %v825, %v826
        %v828 = vrot.slane %v656, 4
        %v829 = vadd.f32 %v656, %v828
        %v830 = vrot.slane %v829, 2
        %v831 = vadd.f32 %v829, %v830
        %v832 = vrot.slane %v831, 1
        %v833 = vadd.f32 %v831, %v832
        %v834 = vrot.slane %v657, 4
        %v835 = vadd.f32 %v657, %v834
        %v836 = vrot.slane %v835, 2
        %v837 = vadd.f32 %v835, %v836
        %v838 = vrot.slane %v837, 1
        %v839 = vadd.f32 %v837, %v838
        %v840 = vrot.slane %v658, 4
        %v841 = vadd.f32 %v658, %v840
        %v842 = vrot.slane %v841, 2
        %v843 = vadd.f32 %v841, %v842
        %v844 = vrot.slane %v843, 1
        %v845 = vadd.f32 %v843, %v844
        %v846 = vrot.slane %v659, 4
        %v847 = vadd.f32 %v659, %v846
        %v848 = vrot.slane %v847, 2
        %v849 = vadd.f32 %v847, %v848
        %v850 = vrot.slane %v849, 1
        %v851 = vadd.f32 %v849, %v850
        %v852 = vrcp.pop 8.0
        %v853 = vmul.f32 %v665, %v852
        %v854 = vmul.f32 %v671, %v852
        %v855 = vmul.f32 %v677, %v852
        %v856 = vmul.f32 %v683, %v852
        %v857 = vmul.f32 %v689, %v852
        %v858 = vmul.f32 %v695, %v852
        %v859 = vmul.f32 %v701, %v852
        %v860 = vmul.f32 %v707, %v852
        %v861 = vmul.f32 %v713, %v852
        %v862 = vmul.f32 %v719, %v852
        %v863 = vmul.f32 %v725, %v852
        %v864 = vmul.f32 %v731, %v852
        %v865 = vmul.f32 %v737, %v852
        %v866 = vmul.f32 %v743, %v852
        %v867 = vmul.f32 %v749, %v852
        %v868 = vmul.f32 %v755, %v852
        %v869 = vmul.f32 %v761, %v852
        %v870 = vmul.f32 %v767, %v852
        %v871 = vmul.f32 %v773, %v852
        %v872 = vmul.f32 %v779, %v852
        %v873 = vmul.f32 %v785, %v852
        %v874 = vmul.f32 %v791, %v852
        %v875 = vmul.f32 %v797, %v852
        %v876 = vmul.f32 %v803, %v852
        %v877 = vmul.f32 %v809, %v852
        %v878 = vmul.f32 %v815, %v852
        %v879 = vmul.f32 %v821, %v852
        %v880 = vmul.f32 %v827, %v852
        %v881 = vmul.f32 %v833, %v852
        %v882 = vmul.f32 %v839, %v852
        %v883 = vmul.f32 %v845, %v852
        %v884 = vmul.f32 %v851, %v852
        %v885 = vsub.f32 %v531, %v853
        %v886 = vsub.f32 %v532, %v854
        %v887 = vsub.f32 %v533, %v855
        %v888 = vsub.f32 %v534, %v856
        %v889 = vsub.f32 %v535, %v857
        %v890 = vsub.f32 %v536, %v858
        %v891 = vsub.f32 %v537, %v859
        %v892 = vsub.f32 %v538, %v860
        %v893 = vsub.f32 %v539, %v861
        %v894 = vsub.f32 %v540, %v862
        %v895 = vsub.f32 %v541, %v863
        %v896 = vsub.f32 %v542, %v864
        %v897 = vsub.f32 %v543, %v865
        %v898 = vsub.f32 %v544, %v866
        %v899 = vsub.f32 %v545, %v867
        %v900 = vsub.f32 %v546, %v868
        %v901 = vsub.f32 %v547, %v869
        %v902 = vsub.f32 %v548, %v870
        %v903 = vsub.f32 %v549, %v871
        %v904 = vsub.f32 %v550, %v872
        %v905 = vsub.f32 %v551, %v873
        %v906 = vsub.f32 %v552, %v874
        %v907 = vsub.f32 %v553, %v875
        %v908 = vsub.f32 %v554, %v876
        %v909 = vsub.f32 %v555, %v877
        %v910 = vsub.f32 %v556, %v878
        %v911 = vsub.f32 %v557, %v879
        %v912 = vsub.f32 %v558, %v880
        %v913 = vsub.f32 %v559, %v881
        %v914 = vsub.f32 %v560, %v882
        %v915 = vsub.f32 %v561, %v883
        %v916 = vsub.f32 %v562, %v884
        %v917 = vmul.f32 %v885, %v885
        %v918 = vmul.f32 %v886, %v886
        %v919 = vmul.f32 %v887, %v887
        %v920 = vmul.f32 %v888, %v888
        %v921 = vmul.f32 %v889, %v889
        %v922 = vmul.f32 %v890, %v890
        %v923 = vmul.f32 %v891, %v891
        %v924 = vmul.f32 %v892, %v892
        %v925 = vmul.f32 %v893, %v893
        %v926 = vmul.f32 %v894, %v894
        %v927 = vmul.f32 %v895, %v895
        %v928 = vmul.f32 %v896, %v896
        %v929 = vmul.f32 %v897, %v897
        %v930 = vmul.f32 %v898, %v898
        %v931 = vmul.f32 %v899, %v899
        %v932 = vmul.f32 %v900, %v900
        %v933 = vmul.f32 %v901, %v901
        %v934 = vmul.f32 %v902, %v902
        %v935 = vmul.f32 %v903, %v903
        %v936 = vmul.f32 %v904, %v904
        %v937 = vmul.f32 %v905, %v905
        %v938 = vmul.f32 %v906, %v906
        %v939 = vmul.f32 %v907, %v907
        %v940 = vmul.f32 %v908, %v908
        %v941 = vmul.f32 %v909, %v909
        %v942 = vmul.f32 %v910, %v910
        %v943 = vmul.f32 %v911, %v911
        %v944 = vmul.f32 %v912, %v912
        %v945 = vmul.f32 %v913, %v913
        %v946 = vmul.f32 %v914, %v914
        %v947 = vmul.f32 %v915, %v915
        %v948 = vmul.f32 %v916, %v916
        %949 = vadd.xlane.f32.xlu0 %v917
        %v950 = vpop.xlane.xlu0 %949
        %951 = vadd.xlane.f32.xlu0 %v918
        %v952 = vpop.xlane.xlu0 %951
        %953 = vadd.xlane.f32.xlu0 %v919
        %v954 = vpop.xlane.xlu0 %953
        %955 = vadd.xlane.f32.xlu0 %v920
        %v956 = vpop.xlane.xlu0 %955
        %957 = vadd.xlane.f32.xlu0 %v921
        %v958 = vpop.xlane.xlu0 %957
        %959 = vadd.xlane.f32.xlu0 %v922
        %v960 = vpop.xlane.xlu0 %959
        %961 = vadd.xlane.f32.xlu0 %v923
        %v962 = vpop.xlane.xlu0 %961
        %963 = vadd.xlane.f32.xlu0 %v924
        %v964 = vpop.xlane.xlu0 %963
        %965 = vadd.xlane.f32.xlu0 %v925
        %v966 = vpop.xlane.xlu0 %965
        %967 = vadd.xlane.f32.xlu0 %v926
        %v968 = vpop.xlane.xlu0 %967
        %969 = vadd.xlane.f32.xlu0 %v927
        %v970 = vpop.xlane.xlu0 %969
        %971 = vadd.xlane.f32.xlu0 %v928
        %v972 = vpop.xlane.xlu0 %971
        %973 = vadd.xlane.f32.xlu0 %v929
        %v974 = vpop.xlane.xlu0 %973
        %975 = vadd.xlane.f32.xlu0 %v930
        %v976 = vpop.xlane.xlu0 %975
        %977 = vadd.xlane.f32.xlu0 %v931
        %v978 = vpop.xlane.xlu0 %977
        %979 = vadd.xlane.f32.xlu0 %v932
        %v980 = vpop.xlane.xlu0 %979
        %981 = vadd.xlane.f32.xlu0 %v933
        %v982 = vpop.xlane.xlu0 %981
        %983 = vadd.xlane.f32.xlu0 %v934
        %v984 = vpop.xlane.xlu0 %983
        %985 = vadd.xlane.f32.xlu0 %v935
        %v986 = vpop.xlane.xlu0 %985
        %987 = vadd.xlane.f32.xlu0 %v936
        %v988 = vpop.xlane.xlu0 %987
        %989 = vadd.xlane.f32.xlu0 %v937
        %v990 = vpop.xlane.xlu0 %989
        %991 = vadd.xlane.f32.xlu0 %v938
        %v992 = vpop.xlane.xlu0 %991
        %993 = vadd.xlane.f32.xlu0 %v939
        %v994 = vpop.xlane.xlu0 %993
        %995 = vadd.xlane.f32.xlu0 %v940
        %v996 = vpop.xlane.xlu0 %995
        %997 = vadd.xlane.f32.xlu0 %v941
        %v998 = vpop.xlane.xlu0 %997
        %999 = vadd.xlane.f32.xlu0 %v942
        %v1000 = vpop.xlane.xlu0 %999
        %1001 = vadd.xlane.f32.xlu0 %v943
        %v1002 = vpop.xlane.xlu0 %1001
        %1003 = vadd.xlane.f32.xlu0 %v944
        %v1004 = vpop.xlane.xlu0 %1003
        %1005 = vadd.xlane.f32.xlu0 %v945
        %v1006 = vpop.xlane.xlu0 %1005
        %1007 = vadd.xlane.f32.xlu0 %v946
        %v1008 = vpop.xlane.xlu0 %1007
        %1009 = vadd.xlane.f32.xlu0 %v947
        %v1010 = vpop.xlane.xlu0 %1009
        %1011 = vadd.xlane.f32.xlu0 %v948
        %v1012 = vpop.xlane.xlu0 %1011
        %v1013 = vmul.f32 %v950, %v627
        %v1014 = vmul.f32 %v952, %v627
        %v1015 = vmul.f32 %v954, %v627
        %v1016 = vmul.f32 %v956, %v627
        %v1017 = vmul.f32 %v958, %v627
        %v1018 = vmul.f32 %v960, %v627
        %v1019 = vmul.f32 %v962, %v627
        %v1020 = vmul.f32 %v964, %v627
        %v1021 = vmul.f32 %v966, %v627
        %v1022 = vmul.f32 %v968, %v627
        %v1023 = vmul.f32 %v970, %v627
        %v1024 = vmul.f32 %v972, %v627
        %v1025 = vmul.f32 %v974, %v627
        %v1026 = vmul.f32 %v976, %v627
        %v1027 = vmul.f32 %v978, %v627
        %v1028 = vmul.f32 %v980, %v627
        %v1029 = vmul.f32 %v982, %v627
        %v1030 = vmul.f32 %v984, %v627
        %v1031 = vmul.f32 %v986, %v627
        %v1032 = vmul.f32 %v988, %v627
        %v1033 = vmul.f32 %v990, %v627
        %v1034 = vmul.f32 %v992, %v627
        %v1035 = vmul.f32 %v994, %v627
        %v1036 = vmul.f32 %v996, %v627
        %v1037 = vmul.f32 %v998, %v627
        %v1038 = vmul.f32 %v1000, %v627
        %v1039 = vmul.f32 %v1002, %v627
        %v1040 = vmul.f32 %v1004, %v627
        %v1041 = vmul.f32 %v1006, %v627
        %v1042 = vmul.f32 %v1008, %v627
        %v1043 = vmul.f32 %v1010, %v627
        %v1044 = vmul.f32 %v1012, %v627
        %v1045 = vrot.slane %v1013, 4
        %v1046 = vadd.f32 %v1013, %v1045
        %v1047 = vrot.slane %v1046, 2
        %v1048 = vadd.f32 %v1046, %v1047
        %v1049 = vrot.slane %v1048, 1
        %v1050 = vadd.f32 %v1048, %v1049
        %v1051 = vrot.slane %v1014, 4
        %v1052 = vadd.f32 %v1014, %v1051
        %v1053 = vrot.slane %v1052, 2
        %v1054 = vadd.f32 %v1052, %v1053
        %v1055 = vrot.slane %v1054, 1
        %v1056 = vadd.f32 %v1054, %v1055
        %v1057 = vrot.slane %v1015, 4
        %v1058 = vadd.f32 %v1015, %v1057
        %v1059 = vrot.slane %v1058, 2
        %v1060 = vadd.f32 %v1058, %v1059
        %v1061 = vrot.slane %v1060, 1
        %v1062 = vadd.f32 %v1060, %v1061
        %v1063 = vrot.slane %v1016, 4
        %v1064 = vadd.f32 %v1016, %v1063
        %v1065 = vrot.slane %v1064, 2
        %v1066 = vadd.f32 %v1064, %v1065
        %v1067 = vrot.slane %v1066, 1
        %v1068 = vadd.f32 %v1066, %v1067
        %v1069 = vrot.slane %v1017, 4
        %v1070 = vadd.f32 %v1017, %v1069
        %v1071 = vrot.slane %v1070, 2
        %v1072 = vadd.f32 %v1070, %v1071
        %v1073 = vrot.slane %v1072, 1
        %v1074 = vadd.f32 %v1072, %v1073
        %v1075 = vrot.slane %v1018, 4
        %v1076 = vadd.f32 %v1018, %v1075
        %v1077 = vrot.slane %v1076, 2
        %v1078 = vadd.f32 %v1076, %v1077
        %v1079 = vrot.slane %v1078, 1
        %v1080 = vadd.f32 %v1078, %v1079
        %v1081 = vrot.slane %v1019, 4
        %v1082 = vadd.f32 %v1019, %v1081
        %v1083 = vrot.slane %v1082, 2
        %v1084 = vadd.f32 %v1082, %v1083
        %v1085 = vrot.slane %v1084, 1
        %v1086 = vadd.f32 %v1084, %v1085
        %v1087 = vrot.slane %v1020, 4
        %v1088 = vadd.f32 %v1020, %v1087
        %v1089 = vrot.slane %v1088, 2
        %v1090 = vadd.f32 %v1088, %v1089
        %v1091 = vrot.slane %v1090, 1
        %v1092 = vadd.f32 %v1090, %v1091
        %v1093 = vrot.slane %v1021, 4
        %v1094 = vadd.f32 %v1021, %v1093
        %v1095 = vrot.slane %v1094, 2
        %v1096 = vadd.f32 %v1094, %v1095
        %v1097 = vrot.slane %v1096, 1
        %v1098 = vadd.f32 %v1096, %v1097
        %v1099 = vrot.slane %v1022, 4
        %v1100 = vadd.f32 %v1022, %v1099
        %v1101 = vrot.slane %v1100, 2
        %v1102 = vadd.f32 %v1100, %v1101
        %v1103 = vrot.slane %v1102, 1
        %v1104 = vadd.f32 %v1102, %v1103
        %v1105 = vrot.slane %v1023, 4
        %v1106 = vadd.f32 %v1023, %v1105
        %v1107 = vrot.slane %v1106, 2
        %v1108 = vadd.f32 %v1106, %v1107
        %v1109 = vrot.slane %v1108, 1
        %v1110 = vadd.f32 %v1108, %v1109
        %v1111 = vrot.slane %v1024, 4
        %v1112 = vadd.f32 %v1024, %v1111
        %v1113 = vrot.slane %v1112, 2
        %v1114 = vadd.f32 %v1112, %v1113
        %v1115 = vrot.slane %v1114, 1
        %v1116 = vadd.f32 %v1114, %v1115
        %v1117 = vrot.slane %v1025, 4
        %v1118 = vadd.f32 %v1025, %v1117
        %v1119 = vrot.slane %v1118, 2
        %v1120 = vadd.f32 %v1118, %v1119
        %v1121 = vrot.slane %v1120, 1
        %v1122 = vadd.f32 %v1120, %v1121
        %v1123 = vrot.slane %v1026, 4
        %v1124 = vadd.f32 %v1026, %v1123
        %v1125 = vrot.slane %v1124, 2
        %v1126 = vadd.f32 %v1124, %v1125
        %v1127 = vrot.slane %v1126, 1
        %v1128 = vadd.f32 %v1126, %v1127
        %v1129 = vrot.slane %v1027, 4
        %v1130 = vadd.f32 %v1027, %v1129
        %v1131 = vrot.slane %v1130, 2
        %v1132 = vadd.f32 %v1130, %v1131
        %v1133 = vrot.slane %v1132, 1
        %v1134 = vadd.f32 %v1132, %v1133
        %v1135 = vrot.slane %v1028, 4
        %v1136 = vadd.f32 %v1028, %v1135
        %v1137 = vrot.slane %v1136, 2
        %v1138 = vadd.f32 %v1136, %v1137
        %v1139 = vrot.slane %v1138, 1
        %v1140 = vadd.f32 %v1138, %v1139
        %v1141 = vrot.slane %v1029, 4
        %v1142 = vadd.f32 %v1029, %v1141
        %v1143 = vrot.slane %v1142, 2
        %v1144 = vadd.f32 %v1142, %v1143
        %v1145 = vrot.slane %v1144, 1
        %v1146 = vadd.f32 %v1144, %v1145
        %v1147 = vrot.slane %v1030, 4
        %v1148 = vadd.f32 %v1030, %v1147
        %v1149 = vrot.slane %v1148, 2
        %v1150 = vadd.f32 %v1148, %v1149
        %v1151 = vrot.slane %v1150, 1
        %v1152 = vadd.f32 %v1150, %v1151
        %v1153 = vrot.slane %v1031, 4
        %v1154 = vadd.f32 %v1031, %v1153
        %v1155 = vrot.slane %v1154, 2
        %v1156 = vadd.f32 %v1154, %v1155
        %v1157 = vrot.slane %v1156, 1
        %v1158 = vadd.f32 %v1156, %v1157
        %v1159 = vrot.slane %v1032, 4
        %v1160 = vadd.f32 %v1032, %v1159
        %v1161 = vrot.slane %v1160, 2
        %v1162 = vadd.f32 %v1160, %v1161
        %v1163 = vrot.slane %v1162, 1
        %v1164 = vadd.f32 %v1162, %v1163
        %v1165 = vrot.slane %v1033, 4
        %v1166 = vadd.f32 %v1033, %v1165
        %v1167 = vrot.slane %v1166, 2
        %v1168 = vadd.f32 %v1166, %v1167
        %v1169 = vrot.slane %v1168, 1
        %v1170 = vadd.f32 %v1168, %v1169
        %v1171 = vrot.slane %v1034, 4
        %v1172 = vadd.f32 %v1034, %v1171
        %v1173 = vrot.slane %v1172, 2
        %v1174 = vadd.f32 %v1172, %v1173
        %v1175 = vrot.slane %v1174, 1
        %v1176 = vadd.f32 %v1174, %v1175
        %v1177 = vrot.slane %v1035, 4
        %v1178 = vadd.f32 %v1035, %v1177
        %v1179 = vrot.slane %v1178, 2
        %v1180 = vadd.f32 %v1178, %v1179
        %v1181 = vrot.slane %v1180, 1
        %v1182 = vadd.f32 %v1180, %v1181
        %v1183 = vrot.slane %v1036, 4
        %v1184 = vadd.f32 %v1036, %v1183
        %v1185 = vrot.slane %v1184, 2
        %v1186 = vadd.f32 %v1184, %v1185
        %v1187 = vrot.slane %v1186, 1
        %v1188 = vadd.f32 %v1186, %v1187
        %v1189 = vrot.slane %v1037, 4
        %v1190 = vadd.f32 %v1037, %v1189
        %v1191 = vrot.slane %v1190, 2
        %v1192 = vadd.f32 %v1190, %v1191
        %v1193 = vrot.slane %v1192, 1
        %v1194 = vadd.f32 %v1192, %v1193
        %v1195 = vrot.slane %v1038, 4
        %v1196 = vadd.f32 %v1038, %v1195
        %v1197 = vrot.slane %v1196, 2
        %v1198 = vadd.f32 %v1196, %v1197
        %v1199 = vrot.slane %v1198, 1
        %v1200 = vadd.f32 %v1198, %v1199
        %v1201 = vrot.slane %v1039, 4
        %v1202 = vadd.f32 %v1039, %v1201
        %v1203 = vrot.slane %v1202, 2
        %v1204 = vadd.f32 %v1202, %v1203
        %v1205 = vrot.slane %v1204, 1
        %v1206 = vadd.f32 %v1204, %v1205
        %v1207 = vrot.slane %v1040, 4
        %v1208 = vadd.f32 %v1040, %v1207
        %v1209 = vrot.slane %v1208, 2
        %v1210 = vadd.f32 %v1208, %v1209
        %v1211 = vrot.slane %v1210, 1
        %v1212 = vadd.f32 %v1210, %v1211
        %v1213 = vrot.slane %v1041, 4
        %v1214 = vadd.f32 %v1041, %v1213
        %v1215 = vrot.slane %v1214, 2
        %v1216 = vadd.f32 %v1214, %v1215
        %v1217 = vrot.slane %v1216, 1
        %v1218 = vadd.f32 %v1216, %v1217
        %v1219 = vrot.slane %v1042, 4
        %v1220 = vadd.f32 %v1042, %v1219
        %v1221 = vrot.slane %v1220, 2
        %v1222 = vadd.f32 %v1220, %v1221
        %v1223 = vrot.slane %v1222, 1
        %v1224 = vadd.f32 %v1222, %v1223
        %v1225 = vrot.slane %v1043, 4
        %v1226 = vadd.f32 %v1043, %v1225
        %v1227 = vrot.slane %v1226, 2
        %v1228 = vadd.f32 %v1226, %v1227
        %v1229 = vrot.slane %v1228, 1
        %v1230 = vadd.f32 %v1228, %v1229
        %v1231 = vrot.slane %v1044, 4
        %v1232 = vadd.f32 %v1044, %v1231
        %v1233 = vrot.slane %v1232, 2
        %v1234 = vadd.f32 %v1232, %v1233
        %v1235 = vrot.slane %v1234, 1
        %v1236 = vadd.f32 %v1234, %v1235
        %v1237 = vmul.f32 %v1050, %v852
        %v1238 = vmul.f32 %v1056, %v852
        %v1239 = vmul.f32 %v1062, %v852
        %v1240 = vmul.f32 %v1068, %v852
        %v1241 = vmul.f32 %v1074, %v852
        %v1242 = vmul.f32 %v1080, %v852
        %v1243 = vmul.f32 %v1086, %v852
        %v1244 = vmul.f32 %v1092, %v852
        %v1245 = vmul.f32 %v1098, %v852
        %v1246 = vmul.f32 %v1104, %v852
        %v1247 = vmul.f32 %v1110, %v852
        %v1248 = vmul.f32 %v1116, %v852
        %v1249 = vmul.f32 %v1122, %v852
        %v1250 = vmul.f32 %v1128, %v852
        %v1251 = vmul.f32 %v1134, %v852
        %v1252 = vmul.f32 %v1140, %v852
        %v1253 = vmul.f32 %v1146, %v852
        %v1254 = vmul.f32 %v1152, %v852
        %v1255 = vmul.f32 %v1158, %v852
        %v1256 = vmul.f32 %v1164, %v852
        %v1257 = vmul.f32 %v1170, %v852
        %v1258 = vmul.f32 %v1176, %v852
        %v1259 = vmul.f32 %v1182, %v852
        %v1260 = vmul.f32 %v1188, %v852
        %v1261 = vmul.f32 %v1194, %v852
        %v1262 = vmul.f32 %v1200, %v852
        %v1263 = vmul.f32 %v1206, %v852
        %v1264 = vmul.f32 %v1212, %v852
        %v1265 = vmul.f32 %v1218, %v852
        %v1266 = vmul.f32 %v1224, %v852
        %v1267 = vmul.f32 %v1230, %v852
        %v1268 = vmul.f32 %v1236, %v852
        %v1269 = vadd.f32 %v1237, 1e-05
        %v1270 = vadd.f32 %v1238, 1e-05
        %v1271 = vadd.f32 %v1239, 1e-05
        %v1272 = vadd.f32 %v1240, 1e-05
        %v1273 = vadd.f32 %v1241, 1e-05
        %v1274 = vadd.f32 %v1242, 1e-05
        %v1275 = vadd.f32 %v1243, 1e-05
        %v1276 = vadd.f32 %v1244, 1e-05
        %v1277 = vadd.f32 %v1245, 1e-05
        %v1278 = vadd.f32 %v1246, 1e-05
        %v1279 = vadd.f32 %v1247, 1e-05
        %v1280 = vadd.f32 %v1248, 1e-05
        %v1281 = vadd.f32 %v1249, 1e-05
        %v1282 = vadd.f32 %v1250, 1e-05
        %v1283 = vadd.f32 %v1251, 1e-05
        %v1284 = vadd.f32 %v1252, 1e-05
        %v1285 = vadd.f32 %v1253, 1e-05
        %v1286 = vadd.f32 %v1254, 1e-05
        %v1287 = vadd.f32 %v1255, 1e-05
        %v1288 = vadd.f32 %v1256, 1e-05
        %v1289 = vadd.f32 %v1257, 1e-05
        %v1290 = vadd.f32 %v1258, 1e-05
        %v1291 = vadd.f32 %v1259, 1e-05
        %v1292 = vadd.f32 %v1260, 1e-05
        %v1293 = vadd.f32 %v1261, 1e-05
        %v1294 = vadd.f32 %v1262, 1e-05
        %v1295 = vadd.f32 %v1263, 1e-05
        %v1296 = vadd.f32 %v1264, 1e-05
        %v1297 = vadd.f32 %v1265, 1e-05
        %v1298 = vadd.f32 %v1266, 1e-05
        %v1299 = vadd.f32 %v1267, 1e-05
        %v1300 = vadd.f32 %v1268, 1e-05
        %v1301 = vrsqrt.pop %v1269
        %v1302 = vrsqrt.pop %v1270
        %v1303 = vrsqrt.pop %v1271
        %v1304 = vrsqrt.pop %v1272
        %v1305 = vrsqrt.pop %v1273
        %v1306 = vrsqrt.pop %v1274
        %v1307 = vrsqrt.pop %v1275
        %v1308 = vrsqrt.pop %v1276
        %v1309 = vrsqrt.pop %v1277
        %v1310 = vrsqrt.pop %v1278
        %v1311 = vrsqrt.pop %v1279
        %v1312 = vrsqrt.pop %v1280
        %v1313 = vrsqrt.pop %v1281
        %v1314 = vrsqrt.pop %v1282
        %v1315 = vrsqrt.pop %v1283
        %v1316 = vrsqrt.pop %v1284
        %v1317 = vrsqrt.pop %v1285
        %v1318 = vrsqrt.pop %v1286
        %v1319 = vrsqrt.pop %v1287
        %v1320 = vrsqrt.pop %v1288
        %v1321 = vrsqrt.pop %v1289
        %v1322 = vrsqrt.pop %v1290
        %v1323 = vrsqrt.pop %v1291
        %v1324 = vrsqrt.pop %v1292
        %v1325 = vrsqrt.pop %v1293
        %v1326 = vrsqrt.pop %v1294
        %v1327 = vrsqrt.pop %v1295
        %v1328 = vrsqrt.pop %v1296
        %v1329 = vrsqrt.pop %v1297
        %v1330 = vrsqrt.pop %v1298
        %v1331 = vrsqrt.pop %v1299
        %v1332 = vrsqrt.pop %v1300
        %v1333 = vmul.f32 %v885, %v1301
        %v1334 = vmul.f32 %v886, %v1302
        %v1335 = vmul.f32 %v887, %v1303
        %v1336 = vmul.f32 %v888, %v1304
        %v1337 = vmul.f32 %v889, %v1305
        %v1338 = vmul.f32 %v890, %v1306
        %v1339 = vmul.f32 %v891, %v1307
        %v1340 = vmul.f32 %v892, %v1308
        %v1341 = vmul.f32 %v893, %v1309
        %v1342 = vmul.f32 %v894, %v1310
        %v1343 = vmul.f32 %v895, %v1311
        %v1344 = vmul.f32 %v896, %v1312
        %v1345 = vmul.f32 %v897, %v1313
        %v1346 = vmul.f32 %v898, %v1314
        %v1347 = vmul.f32 %v899, %v1315
        %v1348 = vmul.f32 %v900, %v1316
        %v1349 = vmul.f32 %v901, %v1317
        %v1350 = vmul.f32 %v902, %v1318
        %v1351 = vmul.f32 %v903, %v1319
        %v1352 = vmul.f32 %v904, %v1320
        %v1353 = vmul.f32 %v905, %v1321
        %v1354 = vmul.f32 %v906, %v1322
        %v1355 = vmul.f32 %v907, %v1323
        %v1356 = vmul.f32 %v908, %v1324
        %v1357 = vmul.f32 %v909, %v1325
        %v1358 = vmul.f32 %v910, %v1326
        %v1359 = vmul.f32 %v911, %v1327
        %v1360 = vmul.f32 %v912, %v1328
        %v1361 = vmul.f32 %v913, %v1329
        %v1362 = vmul.f32 %v914, %v1330
        %v1363 = vmul.f32 %v915, %v1331
        %v1364 = vmul.f32 %v916, %v1332
        %v1365 = vmul.f32 %v1333, %v1333
        %v1366 = vmul.f32 %v1334, %v1334
        %v1367 = vmul.f32 %v1335, %v1335
        %v1368 = vmul.f32 %v1336, %v1336
        %v1369 = vmul.f32 %v1337, %v1337
        %v1370 = vmul.f32 %v1338, %v1338
        %v1371 = vmul.f32 %v1339, %v1339
        %v1372 = vmul.f32 %v1340, %v1340
        %v1373 = vmul.f32 %v1341, %v1341
        %v1374 = vmul.f32 %v1342, %v1342
        %v1375 = vmul.f32 %v1343, %v1343
        %v1376 = vmul.f32 %v1344, %v1344
        %v1377 = vmul.f32 %v1345, %v1345
        %v1378 = vmul.f32 %v1346, %v1346
        %v1379 = vmul.f32 %v1347, %v1347
        %v1380 = vmul.f32 %v1348, %v1348
        %v1381 = vmul.f32 %v1349, %v1349
        %v1382 = vmul.f32 %v1350, %v1350
        %v1383 = vmul.f32 %v1351, %v1351
        %v1384 = vmul.f32 %v1352, %v1352
        %v1385 = vmul.f32 %v1353, %v1353
        %v1386 = vmul.f32 %v1354, %v1354
        %v1387 = vmul.f32 %v1355, %v1355
        %v1388 = vmul.f32 %v1356, %v1356
        %v1389 = vmul.f32 %v1357, %v1357
        %v1390 = vmul.f32 %v1358, %v1358
        %v1391 = vmul.f32 %v1359, %v1359
        %v1392 = vmul.f32 %v1360, %v1360
        %v1393 = vmul.f32 %v1361, %v1361
        %v1394 = vmul.f32 %v1362, %v1362
        %v1395 = vmul.f32 %v1363, %v1363
        %v1396 = vmul.f32 %v1364, %v1364
        %1397 = vadd.xlane.f32.xlu0 %v1365
        %v1398 = vpop.xlane.xlu0 %1397
        %1399 = vadd.xlane.f32.xlu0 %v1366
        %v1400 = vpop.xlane.xlu0 %1399
        %1401 = vadd.xlane.f32.xlu0 %v1367
        %v1402 = vpop.xlane.xlu0 %1401
        %1403 = vadd.xlane.f32.xlu0 %v1368
        %v1404 = vpop.xlane.xlu0 %1403
        %1405 = vadd.xlane.f32.xlu0 %v1369
        %v1406 = vpop.xlane.xlu0 %1405
        %1407 = vadd.xlane.f32.xlu0 %v1370
        %v1408 = vpop.xlane.xlu0 %1407
        %1409 = vadd.xlane.f32.xlu0 %v1371
        %v1410 = vpop.xlane.xlu0 %1409
        %1411 = vadd.xlane.f32.xlu0 %v1372
        %v1412 = vpop.xlane.xlu0 %1411
        %1413 = vadd.xlane.f32.xlu0 %v1373
        %v1414 = vpop.xlane.xlu0 %1413
        %1415 = vadd.xlane.f32.xlu0 %v1374
        %v1416 = vpop.xlane.xlu0 %1415
        %1417 = vadd.xlane.f32.xlu0 %v1375
        %v1418 = vpop.xlane.xlu0 %1417
        %1419 = vadd.xlane.f32.xlu0 %v1376
        %v1420 = vpop.xlane.xlu0 %1419
        %1421 = vadd.xlane.f32.xlu0 %v1377
        %v1422 = vpop.xlane.xlu0 %1421
        %1423 = vadd.xlane.f32.xlu0 %v1378
        %v1424 = vpop.xlane.xlu0 %1423
        %1425 = vadd.xlane.f32.xlu0 %v1379
        %v1426 = vpop.xlane.xlu0 %1425
        %1427 = vadd.xlane.f32.xlu0 %v1380
        %v1428 = vpop.xlane.xlu0 %1427
        %1429 = vadd.xlane.f32.xlu0 %v1381
        %v1430 = vpop.xlane.xlu0 %1429
        %1431 = vadd.xlane.f32.xlu0 %v1382
        %v1432 = vpop.xlane.xlu0 %1431
        %1433 = vadd.xlane.f32.xlu0 %v1383
        %v1434 = vpop.xlane.xlu0 %1433
        %1435 = vadd.xlane.f32.xlu0 %v1384
        %v1436 = vpop.xlane.xlu0 %1435
        %1437 = vadd.xlane.f32.xlu0 %v1385
        %v1438 = vpop.xlane.xlu0 %1437
        %1439 = vadd.xlane.f32.xlu0 %v1386
        %v1440 = vpop.xlane.xlu0 %1439
        %1441 = vadd.xlane.f32.xlu0 %v1387
        %v1442 = vpop.xlane.xlu0 %1441
        %1443 = vadd.xlane.f32.xlu0 %v1388
        %v1444 = vpop.xlane.xlu0 %1443
        %1445 = vadd.xlane.f32.xlu0 %v1389
        %v1446 = vpop.xlane.xlu0 %1445
        %1447 = vadd.xlane.f32.xlu0 %v1390
        %v1448 = vpop.xlane.xlu0 %1447
        %1449 = vadd.xlane.f32.xlu0 %v1391
        %v1450 = vpop.xlane.xlu0 %1449
        %1451 = vadd.xlane.f32.xlu0 %v1392
        %v1452 = vpop.xlane.xlu0 %1451
        %1453 = vadd.xlane.f32.xlu0 %v1393
        %v1454 = vpop.xlane.xlu0 %1453
        %1455 = vadd.xlane.f32.xlu0 %v1394
        %v1456 = vpop.xlane.xlu0 %1455
        %1457 = vadd.xlane.f32.xlu0 %v1395
        %v1458 = vpop.xlane.xlu0 %1457
        %1459 = vadd.xlane.f32.xlu0 %v1396
        %v1460 = vpop.xlane.xlu0 %1459
        %v1461 = vmul.f32 %v1398, %v627
        %v1462 = vmul.f32 %v1400, %v627
        %v1463 = vmul.f32 %v1402, %v627
        %v1464 = vmul.f32 %v1404, %v627
        %v1465 = vmul.f32 %v1406, %v627
        %v1466 = vmul.f32 %v1408, %v627
        %v1467 = vmul.f32 %v1410, %v627
        %v1468 = vmul.f32 %v1412, %v627
        %v1469 = vmul.f32 %v1414, %v627
        %v1470 = vmul.f32 %v1416, %v627
        %v1471 = vmul.f32 %v1418, %v627
        %v1472 = vmul.f32 %v1420, %v627
        %v1473 = vmul.f32 %v1422, %v627
        %v1474 = vmul.f32 %v1424, %v627
        %v1475 = vmul.f32 %v1426, %v627
        %v1476 = vmul.f32 %v1428, %v627
        %v1477 = vmul.f32 %v1430, %v627
        %v1478 = vmul.f32 %v1432, %v627
        %v1479 = vmul.f32 %v1434, %v627
        %v1480 = vmul.f32 %v1436, %v627
        %v1481 = vmul.f32 %v1438, %v627
        %v1482 = vmul.f32 %v1440, %v627
        %v1483 = vmul.f32 %v1442, %v627
        %v1484 = vmul.f32 %v1444, %v627
        %v1485 = vmul.f32 %v1446, %v627
        %v1486 = vmul.f32 %v1448, %v627
        %v1487 = vmul.f32 %v1450, %v627
        %v1488 = vmul.f32 %v1452, %v627
        %v1489 = vmul.f32 %v1454, %v627
        %v1490 = vmul.f32 %v1456, %v627
        %v1491 = vmul.f32 %v1458, %v627
        %v1492 = vmul.f32 %v1460, %v627
        %v1493 = vadd.f32 %v1461, 1e-05
        %v1494 = vadd.f32 %v1462, 1e-05
        %v1495 = vadd.f32 %v1463, 1e-05
        %v1496 = vadd.f32 %v1464, 1e-05
        %v1497 = vadd.f32 %v1465, 1e-05
        %v1498 = vadd.f32 %v1466, 1e-05
        %v1499 = vadd.f32 %v1467, 1e-05
        %v1500 = vadd.f32 %v1468, 1e-05
        %v1501 = vadd.f32 %v1469, 1e-05
        %v1502 = vadd.f32 %v1470, 1e-05
        %v1503 = vadd.f32 %v1471, 1e-05
        %v1504 = vadd.f32 %v1472, 1e-05
        %v1505 = vadd.f32 %v1473, 1e-05
        %v1506 = vadd.f32 %v1474, 1e-05
        %v1507 = vadd.f32 %v1475, 1e-05
        %v1508 = vadd.f32 %v1476, 1e-05
        %v1509 = vadd.f32 %v1477, 1e-05
        %v1510 = vadd.f32 %v1478, 1e-05
        %v1511 = vadd.f32 %v1479, 1e-05
        %v1512 = vadd.f32 %v1480, 1e-05
        %v1513 = vadd.f32 %v1481, 1e-05
        %v1514 = vadd.f32 %v1482, 1e-05
        %v1515 = vadd.f32 %v1483, 1e-05
        %v1516 = vadd.f32 %v1484, 1e-05
        %v1517 = vadd.f32 %v1485, 1e-05
        %v1518 = vadd.f32 %v1486, 1e-05
        %v1519 = vadd.f32 %v1487, 1e-05
        %v1520 = vadd.f32 %v1488, 1e-05
        %v1521 = vadd.f32 %v1489, 1e-05
        %v1522 = vadd.f32 %v1490, 1e-05
        %v1523 = vadd.f32 %v1491, 1e-05
        %v1524 = vadd.f32 %v1492, 1e-05
        %v1525 = vrsqrt.pop %v1493
        %v1526 = vrsqrt.pop %v1494
        %v1527 = vrsqrt.pop %v1495
        %v1528 = vrsqrt.pop %v1496
        %v1529 = vrsqrt.pop %v1497
        %v1530 = vrsqrt.pop %v1498
        %v1531 = vrsqrt.pop %v1499
        %v1532 = vrsqrt.pop %v1500
        %v1533 = vrsqrt.pop %v1501
        %v1534 = vrsqrt.pop %v1502
        %v1535 = vrsqrt.pop %v1503
        %v1536 = vrsqrt.pop %v1504
        %v1537 = vrsqrt.pop %v1505
        %v1538 = vrsqrt.pop %v1506
        %v1539 = vrsqrt.pop %v1507
        %v1540 = vrsqrt.pop %v1508
        %v1541 = vrsqrt.pop %v1509
        %v1542 = vrsqrt.pop %v1510
        %v1543 = vrsqrt.pop %v1511
        %v1544 = vrsqrt.pop %v1512
        %v1545 = vrsqrt.pop %v1513
        %v1546 = vrsqrt.pop %v1514
        %v1547 = vrsqrt.pop %v1515
        %v1548 = vrsqrt.pop %v1516
        %v1549 = vrsqrt.pop %v1517
        %v1550 = vrsqrt.pop %v1518
        %v1551 = vrsqrt.pop %v1519
        %v1552 = vrsqrt.pop %v1520
        %v1553 = vrsqrt.pop %v1521
        %v1554 = vrsqrt.pop %v1522
        %v1555 = vrsqrt.pop %v1523
        %v1556 = vrsqrt.pop %v1524
        %v1557 = vmul.f32 %v1333, %v1525
        %v1558 = vmul.f32 %v1334, %v1526
        %v1559 = vmul.f32 %v1335, %v1527
        %v1560 = vmul.f32 %v1336, %v1528
        %v1561 = vmul.f32 %v1337, %v1529
        %v1562 = vmul.f32 %v1338, %v1530
        %v1563 = vmul.f32 %v1339, %v1531
        %v1564 = vmul.f32 %v1340, %v1532
        %v1565 = vmul.f32 %v1341, %v1533
        %v1566 = vmul.f32 %v1342, %v1534
        %v1567 = vmul.f32 %v1343, %v1535
        %v1568 = vmul.f32 %v1344, %v1536
        %v1569 = vmul.f32 %v1345, %v1537
        %v1570 = vmul.f32 %v1346, %v1538
        %v1571 = vmul.f32 %v1347, %v1539
        %v1572 = vmul.f32 %v1348, %v1540
        %v1573 = vmul.f32 %v1349, %v1541
        %v1574 = vmul.f32 %v1350, %v1542
        %v1575 = vmul.f32 %v1351, %v1543
        %v1576 = vmul.f32 %v1352, %v1544
        %v1577 = vmul.f32 %v1353, %v1545
        %v1578 = vmul.f32 %v1354, %v1546
        %v1579 = vmul.f32 %v1355, %v1547
        %v1580 = vmul.f32 %v1356, %v1548
        %v1581 = vmul.f32 %v1357, %v1549
        %v1582 = vmul.f32 %v1358, %v1550
        %v1583 = vmul.f32 %v1359, %v1551
        %v1584 = vmul.f32 %v1360, %v1552
        %v1585 = vmul.f32 %v1361, %v1553
        %v1586 = vmul.f32 %v1362, %v1554
        %v1587 = vmul.f32 %v1363, %v1555
        %v1588 = vmul.f32 %v1364, %v1556
        %v1589 = vld [vmem:[%s1] sm:$0x1]
        %v1591 = vlaneseq
        %v1592 = vshrl.u32 %v1591, 7
        %v1593 = vsub.s32 0, %v1592
        %v1594 = vrot.slane %v1589, %v1593
        %v1596 = vmul.f32 %v1557, %v1594
        %v1597 = vmul.f32 %v1558, %v1594
        %v1598 = vmul.f32 %v1559, %v1594
        %v1599 = vmul.f32 %v1560, %v1594
        %v1600 = vmul.f32 %v1561, %v1594
        %v1601 = vmul.f32 %v1562, %v1594
        %v1602 = vmul.f32 %v1563, %v1594
        %v1603 = vmul.f32 %v1564, %v1594
        %v1604 = vmul.f32 %v1565, %v1594
        %v1605 = vmul.f32 %v1566, %v1594
        %v1606 = vmul.f32 %v1567, %v1594
        %v1607 = vmul.f32 %v1568, %v1594
        %v1608 = vmul.f32 %v1569, %v1594
        %v1609 = vmul.f32 %v1570, %v1594
        %v1610 = vmul.f32 %v1571, %v1594
        %v1611 = vmul.f32 %v1572, %v1594
        %v1612 = vmul.f32 %v1573, %v1594
        %v1613 = vmul.f32 %v1574, %v1594
        %v1614 = vmul.f32 %v1575, %v1594
        %v1615 = vmul.f32 %v1576, %v1594
        %v1616 = vmul.f32 %v1577, %v1594
        %v1617 = vmul.f32 %v1578, %v1594
        %v1618 = vmul.f32 %v1579, %v1594
        %v1619 = vmul.f32 %v1580, %v1594
        %v1620 = vmul.f32 %v1581, %v1594
        %v1621 = vmul.f32 %v1582, %v1594
        %v1622 = vmul.f32 %v1583, %v1594
        %v1623 = vmul.f32 %v1584, %v1594
        %v1624 = vmul.f32 %v1585, %v1594
        %v1625 = vmul.f32 %v1586, %v1594
        %v1626 = vmul.f32 %v1587, %v1594
        %v1627 = vmul.f32 %v1588, %v1594
        %v1628 = vld [vmem:[#allocation5] sm:$0xff]
        %v1629 = vld [vmem:[#allocation5 + $0x8] sm:$0xff]
        %v1630 = vld [vmem:[#allocation5 + $0x10] sm:$0xff]
        %v1631 = vld [vmem:[#allocation5 + $0x18] sm:$0xff]
        %v1632 = vld [vmem:[#allocation5 + $0x20] sm:$0xff]
        %v1633 = vld [vmem:[#allocation5 + $0x28] sm:$0xff]
        %v1634 = vld [vmem:[#allocation5 + $0x30] sm:$0xff]
        %v1635 = vld [vmem:[#allocation5 + $0x38] sm:$0xff]
        %v1636 = vld [vmem:[#allocation5 + $0x40] sm:$0xff]
        %v1637 = vld [vmem:[#allocation5 + $0x48] sm:$0xff]
        %v1638 = vld [vmem:[#allocation5 + $0x50] sm:$0xff]
        %v1639 = vld [vmem:[#allocation5 + $0x58] sm:$0xff]
        %v1640 = vld [vmem:[#allocation5 + $0x60] sm:$0xff]
        %v1641 = vld [vmem:[#allocation5 + $0x68] sm:$0xff]
        %v1642 = vld [vmem:[#allocation5 + $0x70] sm:$0xff]
        %v1643 = vld [vmem:[#allocation5 + $0x78] sm:$0xff]
        %v1644 = vld [vmem:[#allocation5 + $0x80] sm:$0xff]
        %v1645 = vld [vmem:[#allocation5 + $0x88] sm:$0xff]
        %v1646 = vld [vmem:[#allocation5 + $0x90] sm:$0xff]
        %v1647 = vld [vmem:[#allocation5 + $0x98] sm:$0xff]
        %v1648 = vld [vmem:[#allocation5 + $0xa0] sm:$0xff]
        %v1649 = vld [vmem:[#allocation5 + $0xa8] sm:$0xff]
        %v1650 = vld [vmem:[#allocation5 + $0xb0] sm:$0xff]
        %v1651 = vld [vmem:[#allocation5 + $0xb8] sm:$0xff]
        %v1652 = vld [vmem:[#allocation5 + $0xc0] sm:$0xff]
        %v1653 = vld [vmem:[#allocation5 + $0xc8] sm:$0xff]
        %v1654 = vld [vmem:[#allocation5 + $0xd0] sm:$0xff]
        %v1655 = vld [vmem:[#allocation5 + $0xd8] sm:$0xff]
        %v1656 = vld [vmem:[#allocation5 + $0xe0] sm:$0xff]
        %v1657 = vld [vmem:[#allocation5 + $0xe8] sm:$0xff]
        %v1658 = vld [vmem:[#allocation5 + $0xf0] sm:$0xff]
        %v1659 = vld [vmem:[#allocation5 + $0xf8] sm:$0xff]
        %v1660 = vld [vmem:[#allocation5 + $0x100] sm:$0xff]
        %v1661 = vld [vmem:[#allocation5 + $0x108] sm:$0xff]
        %v1662 = vld [vmem:[#allocation5 + $0x110] sm:$0xff]
        %v1663 = vld [vmem:[#allocation5 + $0x118] sm:$0xff]
        %v1664 = vld [vmem:[#allocation5 + $0x120] sm:$0xff]
        %v1665 = vld [vmem:[#allocation5 + $0x128] sm:$0xff]
        %v1666 = vld [vmem:[#allocation5 + $0x130] sm:$0xff]
        %v1667 = vld [vmem:[#allocation5 + $0x138] sm:$0xff]
        %v1668 = vld [vmem:[#allocation5 + $0x140] sm:$0xff]
        %v1669 = vld [vmem:[#allocation5 + $0x148] sm:$0xff]
        %v1670 = vld [vmem:[#allocation5 + $0x150] sm:$0xff]
        %v1671 = vld [vmem:[#allocation5 + $0x158] sm:$0xff]
        %v1672 = vld [vmem:[#allocation5 + $0x160] sm:$0xff]
        %v1673 = vld [vmem:[#allocation5 + $0x168] sm:$0xff]
        %v1674 = vld [vmem:[#allocation5 + $0x170] sm:$0xff]
        %v1675 = vld [vmem:[#allocation5 + $0x178] sm:$0xff]
        %v1676 = vld [vmem:[#allocation5 + $0x180] sm:$0xff]
        %v1677 = vld [vmem:[#allocation5 + $0x188] sm:$0xff]
        %v1678 = vld [vmem:[#allocation5 + $0x190] sm:$0xff]
        %v1679 = vld [vmem:[#allocation5 + $0x198] sm:$0xff]
        %v1680 = vld [vmem:[#allocation5 + $0x1a0] sm:$0xff]
        %v1681 = vld [vmem:[#allocation5 + $0x1a8] sm:$0xff]
        %v1682 = vld [vmem:[#allocation5 + $0x1b0] sm:$0xff]
        %v1683 = vld [vmem:[#allocation5 + $0x1b8] sm:$0xff]
        %v1684 = vld [vmem:[#allocation5 + $0x1c0] sm:$0xff]
        %v1685 = vld [vmem:[#allocation5 + $0x1c8] sm:$0xff]
        %v1686 = vld [vmem:[#allocation5 + $0x1d0] sm:$0xff]
        %v1687 = vld [vmem:[#allocation5 + $0x1d8] sm:$0xff]
        %v1688 = vld [vmem:[#allocation5 + $0x1e0] sm:$0xff]
        %v1689 = vld [vmem:[#allocation5 + $0x1e8] sm:$0xff]
        %v1690 = vld [vmem:[#allocation5 + $0x1f0] sm:$0xff]
        %v1691 = vld [vmem:[#allocation5 + $0x1f8] sm:$0xff]
        %v1692 = vld [vmem:[%s3] sm:$0xf]
        %v1694 = vlaneseq
        %v1695 = vshrl.u32 %v1694, 7
        %v1696 = vsub.s32 0, %v1695
        %v1697 = vrot.slane %v1692, %v1696
        %v1698 = vlaneseq
        %v1699 = vshrl.u32 %v1698, 7
        %v1700 = vsub.s32 1, %v1699
        %v1701 = vrot.slane %v1692, %v1700
        %v1702 = vlaneseq
        %v1703 = vshrl.u32 %v1702, 7
        %v1704 = vsub.s32 2, %v1703
        %v1705 = vrot.slane %v1692, %v1704
        %v1706 = vlaneseq
        %v1707 = vshrl.u32 %v1706, 7
        %v1708 = vsub.s32 3, %v1707
        %v1709 = vrot.slane %v1692, %v1708
        %1714 = vmatprep.subr.mxu0 %v1689
        %1715 = vmatpush1.msra.mxu0 %v1688
        %1716 = vmatprep.subr.mxu0 %v1685
        %1717 = vmatpush1.msra.mxu0 %v1684
        %1718 = vmatprep.subr.mxu0 %v1681
        %1719 = vmatpush1.msra.mxu0 %v1680
        %1720 = vmatprep.subr.mxu0 %v1677
        %1721 = vmatpush1.msra.mxu0 %v1676
        %1722 = vmatprep.subr.mxu0 %v1673
        %1723 = vmatpush1.msra.mxu0 %v1672
        %1724 = vmatprep.subr.mxu0 %v1669
        %1725 = vmatpush1.msra.mxu0 %v1668
        %1726 = vmatprep.subr.mxu0 %v1665
        %1727 = vmatpush1.msra.mxu0 %v1664
        %1728 = vmatprep.subr.mxu0 %v1661
        %1729 = vmatpush1.msra.mxu0 %v1660
        %1730 = vmatprep.subr.mxu0 %v1657
        %1731 = vmatpush1.msra.mxu0 %v1656
        %1732 = vmatprep.subr.mxu0 %v1653
        %1733 = vmatpush1.msra.mxu0 %v1652
        %1734 = vmatprep.subr.mxu0 %v1649
        %1735 = vmatpush1.msra.mxu0 %v1648
        %1736 = vmatprep.subr.mxu0 %v1645
        %1737 = vmatpush1.msra.mxu0 %v1644
        %1738 = vmatprep.subr.mxu0 %v1641
        %1739 = vmatpush1.msra.mxu0 %v1640
        %1740 = vmatprep.subr.mxu0 %v1637
        %1741 = vmatpush1.msra.mxu0 %v1636
        %1742 = vmatprep.subr.mxu0 %v1633
        %1743 = vmatpush1.msra.mxu0 %v1632
        %1744 = vmatprep.subr.mxu0 %v1629
        %1745 = vmatpush1.msra.mxu0 %v1628
        %1746 = vmatprep.subr.mxu0 0.0
        %1747 = vmatpush2.msra.mxu0 0.0
        %1748 = vmatprep.subr.mxu0 0.0
        %1749 = vmatpush2.msra.mxu0 0.0
        %1750 = vmatprep.subr.mxu0 0.0
        %1751 = vmatpush2.msra.mxu0 0.0
        %1752 = vmatprep.subr.mxu0 0.0
        %1753 = vmatpush2.msra.mxu0 0.0
        %1754 = vmatprep.subr.mxu0 0.0
        %1755 = vmatpush2.msra.mxu0 0.0
        %1756 = vmatprep.subr.mxu0 0.0
        %1757 = vmatpush2.msra.mxu0 0.0
        %1758 = vmatprep.subr.mxu0 0.0
        %1759 = vmatpush2.msra.mxu0 0.0
        %1760 = vmatprep.subr.mxu0 0.0
        %1761 = vmatpush2.msra.mxu0 0.0
        %1762 = vmatprep.subr.mxu0 0.0
        %1763 = vmatpush2.msra.mxu0 0.0
        %1764 = vmatprep.subr.mxu0 0.0
        %1765 = vmatpush2.msra.mxu0 0.0
        %1766 = vmatprep.subr.mxu0 0.0
        %1767 = vmatpush2.msra.mxu0 0.0
        %1768 = vmatprep.subr.mxu0 0.0
        %1769 = vmatpush2.msra.mxu0 0.0
        %1770 = vmatprep.subr.mxu0 0.0
        %1771 = vmatpush2.msra.mxu0 0.0
        %1772 = vmatprep.subr.mxu0 0.0
        %1773 = vmatpush2.msra.mxu0 0.0
        %1774 = vmatprep.subr.mxu0 0.0
        %1775 = vmatpush2.msra.mxu0 0.0
        %1776 = vmatprep.subr.mxu0 0.0
        %1777 = vmatpush2.msra.mxu0 0.0
        %1778 = vmatprep.mubr.f32.mxu0 0.0
        %1779 = vmatmul.mubr.f32.gmra.mxu0 %v1596
        %v1780 = vpop.f32.mrf.mxu0
        %v1781 = vadd.f32 %v1697, %v1780
        %v1782 = vpop.f32.mrf.mxu0
        %v1783 = vadd.f32 %v1701, %v1782
        %1784 = vmatprep.mubr.f32.mxu0 0.0
        %1785 = vmatmul.mubr.f32.gmra.mxu0 %v1597
        %v1786 = vpop.f32.mrf.mxu0
        %v1787 = vadd.f32 %v1697, %v1786
        %v1788 = vpop.f32.mrf.mxu0
        %v1789 = vadd.f32 %v1701, %v1788
        %1790 = vmatprep.mubr.f32.mxu0 0.0
        %1791 = vmatmul.mubr.f32.gmra.mxu0 %v1598
        %v1792 = vpop.f32.mrf.mxu0
        %v1793 = vadd.f32 %v1697, %v1792
        %v1794 = vpop.f32.mrf.mxu0
        %v1795 = vadd.f32 %v1701, %v1794
        %1796 = vmatprep.mubr.f32.mxu0 0.0
        %1797 = vmatmul.mubr.f32.gmra.mxu0 %v1599
        %v1798 = vpop.f32.mrf.mxu0
        %v1799 = vadd.f32 %v1697, %v1798
        %v1800 = vpop.f32.mrf.mxu0
        %v1801 = vadd.f32 %v1701, %v1800
        %1802 = vmatprep.mubr.f32.mxu0 0.0
        %1803 = vmatmul.mubr.f32.gmra.mxu0 %v1600
        %v1804 = vpop.f32.mrf.mxu0
        %v1805 = vadd.f32 %v1697, %v1804
        %v1806 = vpop.f32.mrf.mxu0
        %v1807 = vadd.f32 %v1701, %v1806
        %1808 = vmatprep.mubr.f32.mxu0 0.0
        %1809 = vmatmul.mubr.f32.gmra.mxu0 %v1601
        %v1810 = vpop.f32.mrf.mxu0
        %v1811 = vadd.f32 %v1697, %v1810
        %v1812 = vpop.f32.mrf.mxu0
        %v1813 = vadd.f32 %v1701, %v1812
        %1814 = vmatprep.mubr.f32.mxu0 0.0
        %1815 = vmatmul.mubr.f32.gmra.mxu0 %v1602
        %v1816 = vpop.f32.mrf.mxu0
        %v1817 = vadd.f32 %v1697, %v1816
        %v1818 = vpop.f32.mrf.mxu0
        %v1819 = vadd.f32 %v1701, %v1818
        %1820 = vmatprep.mubr.f32.mxu0 0.0
        %1821 = vmatmul.mubr.f32.gmra.mxu0 %v1603
        %v1822 = vpop.f32.mrf.mxu0
        %v1823 = vadd.f32 %v1697, %v1822
        %v1824 = vpop.f32.mrf.mxu0
        %v1825 = vadd.f32 %v1701, %v1824
        %1826 = vmatprep.mubr.f32.mxu0 0.0
        %1827 = vmatmul.mubr.f32.gmra.mxu0 %v1604
        %v1828 = vpop.f32.mrf.mxu0
        %v1829 = vadd.f32 %v1697, %v1828
        %v1830 = vpop.f32.mrf.mxu0
        %v1831 = vadd.f32 %v1701, %v1830
        %1832 = vmatprep.mubr.f32.mxu0 0.0
        %1833 = vmatmul.mubr.f32.gmra.mxu0 %v1605
        %v1834 = vpop.f32.mrf.mxu0
        %v1835 = vadd.f32 %v1697, %v1834
        %v1836 = vpop.f32.mrf.mxu0
        %v1837 = vadd.f32 %v1701, %v1836
        %1838 = vmatprep.mubr.f32.mxu0 0.0
        %1839 = vmatmul.mubr.f32.gmra.mxu0 %v1606
        %v1840 = vpop.f32.mrf.mxu0
        %v1841 = vadd.f32 %v1697, %v1840
        %v1842 = vpop.f32.mrf.mxu0
        %v1843 = vadd.f32 %v1701, %v1842
        %1844 = vmatprep.mubr.f32.mxu0 0.0
        %1845 = vmatmul.mubr.f32.gmra.mxu0 %v1607
        %v1846 = vpop.f32.mrf.mxu0
        %v1847 = vadd.f32 %v1697, %v1846
        %v1848 = vpop.f32.mrf.mxu0
        %v1849 = vadd.f32 %v1701, %v1848
        %1850 = vmatprep.mubr.f32.mxu0 0.0
        %1851 = vmatmul.mubr.f32.gmra.mxu0 %v1608
        %v1852 = vpop.f32.mrf.mxu0
        %v1853 = vadd.f32 %v1697, %v1852
        %v1854 = vpop.f32.mrf.mxu0
        %v1855 = vadd.f32 %v1701, %v1854
        %1856 = vmatprep.mubr.f32.mxu0 0.0
        %1857 = vmatmul.mubr.f32.gmra.mxu0 %v1609
        %v1858 = vpop.f32.mrf.mxu0
        %v1859 = vadd.f32 %v1697, %v1858
        %v1860 = vpop.f32.mrf.mxu0
        %v1861 = vadd.f32 %v1701, %v1860
        %1862 = vmatprep.mubr.f32.mxu0 0.0
        %1863 = vmatmul.mubr.f32.gmra.mxu0 %v1610
        %v1864 = vpop.f32.mrf.mxu0
        %v1865 = vadd.f32 %v1697, %v1864
        %v1866 = vpop.f32.mrf.mxu0
        %v1867 = vadd.f32 %v1701, %v1866
        %1868 = vmatprep.mubr.f32.mxu0 0.0
        %1869 = vmatmul.mubr.f32.gmra.mxu0 %v1611
        %v1870 = vpop.f32.mrf.mxu0
        %v1871 = vadd.f32 %v1697, %v1870
        %v1872 = vpop.f32.mrf.mxu0
        %v1873 = vadd.f32 %v1701, %v1872
        %1874 = vmatprep.mubr.f32.mxu0 0.0
        %1875 = vmatmul.mubr.f32.gmra.mxu0 %v1612
        %v1876 = vpop.f32.mrf.mxu0
        %v1877 = vadd.f32 %v1697, %v1876
        %v1878 = vpop.f32.mrf.mxu0
        %v1879 = vadd.f32 %v1701, %v1878
        %1880 = vmatprep.mubr.f32.mxu0 0.0
        %1881 = vmatmul.mubr.f32.gmra.mxu0 %v1613
        %v1882 = vpop.f32.mrf.mxu0
        %v1883 = vadd.f32 %v1697, %v1882
        %v1884 = vpop.f32.mrf.mxu0
        %v1885 = vadd.f32 %v1701, %v1884
        %1886 = vmatprep.mubr.f32.mxu0 0.0
        %1887 = vmatmul.mubr.f32.gmra.mxu0 %v1614
        %v1888 = vpop.f32.mrf.mxu0
        %v1889 = vadd.f32 %v1697, %v1888
        %v1890 = vpop.f32.mrf.mxu0
        %v1891 = vadd.f32 %v1701, %v1890
        %1892 = vmatprep.mubr.f32.mxu0 0.0
        %1893 = vmatmul.mubr.f32.gmra.mxu0 %v1615
        %v1894 = vpop.f32.mrf.mxu0
        %v1895 = vadd.f32 %v1697, %v1894
        %v1896 = vpop.f32.mrf.mxu0
        %v1897 = vadd.f32 %v1701, %v1896
        %1898 = vmatprep.mubr.f32.mxu0 0.0
        %1899 = vmatmul.mubr.f32.gmra.mxu0 %v1616
        %v1900 = vpop.f32.mrf.mxu0
        %v1901 = vadd.f32 %v1697, %v1900
        %v1902 = vpop.f32.mrf.mxu0
        %v1903 = vadd.f32 %v1701, %v1902
        %1904 = vmatprep.mubr.f32.mxu0 0.0
        %1905 = vmatmul.mubr.f32.gmra.mxu0 %v1617
        %v1906 = vpop.f32.mrf.mxu0
        %v1907 = vadd.f32 %v1697, %v1906
        %v1908 = vpop.f32.mrf.mxu0
        %v1909 = vadd.f32 %v1701, %v1908
        %1910 = vmatprep.mubr.f32.mxu0 0.0
        %1911 = vmatmul.mubr.f32.gmra.mxu0 %v1618
        %v1912 = vpop.f32.mrf.mxu0
        %v1913 = vadd.f32 %v1697, %v1912
        %v1914 = vpop.f32.mrf.mxu0
        %v1915 = vadd.f32 %v1701, %v1914
        %1916 = vmatprep.mubr.f32.mxu0 0.0
        %1917 = vmatmul.mubr.f32.gmra.mxu0 %v1619
        %v1918 = vpop.f32.mrf.mxu0
        %v1919 = vadd.f32 %v1697, %v1918
        %v1920 = vpop.f32.mrf.mxu0
        %v1921 = vadd.f32 %v1701, %v1920
        %1922 = vmatprep.mubr.f32.mxu0 0.0
        %1923 = vmatmul.mubr.f32.gmra.mxu0 %v1620
        %v1924 = vpop.f32.mrf.mxu0
        %v1925 = vadd.f32 %v1697, %v1924
        %v1926 = vpop.f32.mrf.mxu0
        %v1927 = vadd.f32 %v1701, %v1926
        %1928 = vmatprep.mubr.f32.mxu0 0.0
        %1929 = vmatmul.mubr.f32.gmra.mxu0 %v1621
        %v1930 = vpop.f32.mrf.mxu0
        %v1931 = vadd.f32 %v1697, %v1930
        %v1932 = vpop.f32.mrf.mxu0
        %v1933 = vadd.f32 %v1701, %v1932
        %1934 = vmatprep.mubr.f32.mxu0 0.0
        %1935 = vmatmul.mubr.f32.gmra.mxu0 %v1622
        %v1936 = vpop.f32.mrf.mxu0
        %v1937 = vadd.f32 %v1697, %v1936
        %v1938 = vpop.f32.mrf.mxu0
        %v1939 = vadd.f32 %v1701, %v1938
        %1940 = vmatprep.mubr.f32.mxu0 0.0
        %1941 = vmatmul.mubr.f32.gmra.mxu0 %v1623
        %v1942 = vpop.f32.mrf.mxu0
        %v1943 = vadd.f32 %v1697, %v1942
        %v1944 = vpop.f32.mrf.mxu0
        %v1945 = vadd.f32 %v1701, %v1944
        %1946 = vmatprep.mubr.f32.mxu0 0.0
        %1947 = vmatmul.mubr.f32.gmra.mxu0 %v1624
        %v1948 = vpop.f32.mrf.mxu0
        %v1949 = vadd.f32 %v1697, %v1948
        %v1950 = vpop.f32.mrf.mxu0
        %v1951 = vadd.f32 %v1701, %v1950
        %1952 = vmatprep.mubr.f32.mxu0 0.0
        %1953 = vmatmul.mubr.f32.gmra.mxu0 %v1625
        %v1954 = vpop.f32.mrf.mxu0
        %v1955 = vadd.f32 %v1697, %v1954
        %v1956 = vpop.f32.mrf.mxu0
        %v1957 = vadd.f32 %v1701, %v1956
        %1958 = vmatprep.mubr.f32.mxu0 0.0
        %1959 = vmatmul.mubr.f32.gmra.mxu0 %v1626
        %v1960 = vpop.f32.mrf.mxu0
        %v1961 = vadd.f32 %v1697, %v1960
        %v1962 = vpop.f32.mrf.mxu0
        %v1963 = vadd.f32 %v1701, %v1962
        %1964 = vmatprep.mubr.f32.mxu0 0.0
        %1965 = vmatmul.mubr.f32.gmra.mxu0 %v1627
        %v1966 = vpop.f32.mrf.mxu0
        %v1967 = vadd.f32 %v1697, %v1966
        %v1968 = vpop.f32.mrf.mxu0
        %v1969 = vadd.f32 %v1701, %v1968
        %1970 = vdwg.mxu0
        %1971 = vmatprep.subr.mxu0 %v1691
        %1972 = vmatpush1.msra.mxu0 %v1690
        %1973 = vmatprep.subr.mxu0 %v1687
        %1974 = vmatpush1.msra.mxu0 %v1686
        %1975 = vmatprep.subr.mxu0 %v1683
        %1976 = vmatpush1.msra.mxu0 %v1682
        %1977 = vmatprep.subr.mxu0 %v1679
        %1978 = vmatpush1.msra.mxu0 %v1678
        %1979 = vmatprep.subr.mxu0 %v1675
        %1980 = vmatpush1.msra.mxu0 %v1674
        %1981 = vmatprep.subr.mxu0 %v1671
        %1982 = vmatpush1.msra.mxu0 %v1670
        %1983 = vmatprep.subr.mxu0 %v1667
        %1984 = vmatpush1.msra.mxu0 %v1666
        %1985 = vmatprep.subr.mxu0 %v1663
        %1986 = vmatpush1.msra.mxu0 %v1662
        %1987 = vmatprep.subr.mxu0 %v1659
        %1988 = vmatpush1.msra.mxu0 %v1658
        %1989 = vmatprep.subr.mxu0 %v1655
        %1990 = vmatpush1.msra.mxu0 %v1654
        %1991 = vmatprep.subr.mxu0 %v1651
        %1992 = vmatpush1.msra.mxu0 %v1650
        %1993 = vmatprep.subr.mxu0 %v1647
        %1994 = vmatpush1.msra.mxu0 %v1646
        %1995 = vmatprep.subr.mxu0 %v1643
        %1996 = vmatpush1.msra.mxu0 %v1642
        %1997 = vmatprep.subr.mxu0 %v1639
        %1998 = vmatpush1.msra.mxu0 %v1638
        %1999 = vmatprep.subr.mxu0 %v1635
        %2000 = vmatpush1.msra.mxu0 %v1634
        %2001 = vmatprep.subr.mxu0 %v1631
        %2002 = vmatpush1.msra.mxu0 %v1630
        %2003 = vmatprep.subr.mxu0 0.0
        %2004 = vmatpush2.msra.mxu0 0.0
        %2005 = vmatprep.subr.mxu0 0.0
        %2006 = vmatpush2.msra.mxu0 0.0
        %2007 = vmatprep.subr.mxu0 0.0
        %2008 = vmatpush2.msra.mxu0 0.0
        %2009 = vmatprep.subr.mxu0 0.0
        %2010 = vmatpush2.msra.mxu0 0.0
        %2011 = vmatprep.subr.mxu0 0.0
        %2012 = vmatpush2.msra.mxu0 0.0
        %2013 = vmatprep.subr.mxu0 0.0
        %2014 = vmatpush2.msra.mxu0 0.0
        %2015 = vmatprep.subr.mxu0 0.0
        %2016 = vmatpush2.msra.mxu0 0.0
        %2017 = vmatprep.subr.mxu0 0.0
        %2018 = vmatpush2.msra.mxu0 0.0
        %2019 = vmatprep.subr.mxu0 0.0
        %2020 = vmatpush2.msra.mxu0 0.0
        %2021 = vmatprep.subr.mxu0 0.0
        %2022 = vmatpush2.msra.mxu0 0.0
        %2023 = vmatprep.subr.mxu0 0.0
        %2024 = vmatpush2.msra.mxu0 0.0
        %2025 = vmatprep.subr.mxu0 0.0
        %2026 = vmatpush2.msra.mxu0 0.0
        %2027 = vmatprep.subr.mxu0 0.0
        %2028 = vmatpush2.msra.mxu0 0.0
        %2029 = vmatprep.subr.mxu0 0.0
        %2030 = vmatpush2.msra.mxu0 0.0
        %2031 = vmatprep.subr.mxu0 0.0
        %2032 = vmatpush2.msra.mxu0 0.0
        %2033 = vmatprep.subr.mxu0 0.0
        %2034 = vmatpush2.msra.mxu0 0.0
        %2035 = vmatprep.mubr.f32.mxu0 0.0
        %2036 = vmatmul.mubr.f32.gmra.mxu0 %v1596
        %v2037 = vpop.f32.mrf.mxu0
        %v2038 = vadd.f32 %v1705, %v2037
        %v2039 = vpop.f32.mrf.mxu0
        %v2040 = vadd.f32 %v1709, %v2039
        %2041 = vmatprep.mubr.f32.mxu0 0.0
        %2042 = vmatmul.mubr.f32.gmra.mxu0 %v1597
        %v2043 = vpop.f32.mrf.mxu0
        %v2044 = vadd.f32 %v1705, %v2043
        %v2045 = vpop.f32.mrf.mxu0
        %v2046 = vadd.f32 %v1709, %v2045
        %2047 = vmatprep.mubr.f32.mxu0 0.0
        %2048 = vmatmul.mubr.f32.gmra.mxu0 %v1598
        %v2049 = vpop.f32.mrf.mxu0
        %v2050 = vadd.f32 %v1705, %v2049
        %v2051 = vpop.f32.mrf.mxu0
        %v2052 = vadd.f32 %v1709, %v2051
        %2053 = vmatprep.mubr.f32.mxu0 0.0
        %2054 = vmatmul.mubr.f32.gmra.mxu0 %v1599
        %v2055 = vpop.f32.mrf.mxu0
        %v2056 = vadd.f32 %v1705, %v2055
        %v2057 = vpop.f32.mrf.mxu0
        %v2058 = vadd.f32 %v1709, %v2057
        %2059 = vmatprep.mubr.f32.mxu0 0.0
        %2060 = vmatmul.mubr.f32.gmra.mxu0 %v1600
        %v2061 = vpop.f32.mrf.mxu0
        %v2062 = vadd.f32 %v1705, %v2061
        %v2063 = vpop.f32.mrf.mxu0
        %v2064 = vadd.f32 %v1709, %v2063
        %2065 = vmatprep.mubr.f32.mxu0 0.0
        %2066 = vmatmul.mubr.f32.gmra.mxu0 %v1601
        %v2067 = vpop.f32.mrf.mxu0
        %v2068 = vadd.f32 %v1705, %v2067
        %v2069 = vpop.f32.mrf.mxu0
        %v2070 = vadd.f32 %v1709, %v2069
        %2071 = vmatprep.mubr.f32.mxu0 0.0
        %2072 = vmatmul.mubr.f32.gmra.mxu0 %v1602
        %v2073 = vpop.f32.mrf.mxu0
        %v2074 = vadd.f32 %v1705, %v2073
        %v2075 = vpop.f32.mrf.mxu0
        %v2076 = vadd.f32 %v1709, %v2075
        %2077 = vmatprep.mubr.f32.mxu0 0.0
        %2078 = vmatmul.mubr.f32.gmra.mxu0 %v1603
        %v2079 = vpop.f32.mrf.mxu0
        %v2080 = vadd.f32 %v1705, %v2079
        %v2081 = vpop.f32.mrf.mxu0
        %v2082 = vadd.f32 %v1709, %v2081
        %2083 = vmatprep.mubr.f32.mxu0 0.0
        %2084 = vmatmul.mubr.f32.gmra.mxu0 %v1604
        %v2085 = vpop.f32.mrf.mxu0
        %v2086 = vadd.f32 %v1705, %v2085
        %v2087 = vpop.f32.mrf.mxu0
        %v2088 = vadd.f32 %v1709, %v2087
        %2089 = vmatprep.mubr.f32.mxu0 0.0
        %2090 = vmatmul.mubr.f32.gmra.mxu0 %v1605
        %v2091 = vpop.f32.mrf.mxu0
        %v2092 = vadd.f32 %v1705, %v2091
        %v2093 = vpop.f32.mrf.mxu0
        %v2094 = vadd.f32 %v1709, %v2093
        %2095 = vmatprep.mubr.f32.mxu0 0.0
        %2096 = vmatmul.mubr.f32.gmra.mxu0 %v1606
        %v2097 = vpop.f32.mrf.mxu0
        %v2098 = vadd.f32 %v1705, %v2097
        %v2099 = vpop.f32.mrf.mxu0
        %v2100 = vadd.f32 %v1709, %v2099
        %2101 = vmatprep.mubr.f32.mxu0 0.0
        %2102 = vmatmul.mubr.f32.gmra.mxu0 %v1607
        %v2103 = vpop.f32.mrf.mxu0
        %v2104 = vadd.f32 %v1705, %v2103
        %v2105 = vpop.f32.mrf.mxu0
        %v2106 = vadd.f32 %v1709, %v2105
        %2107 = vmatprep.mubr.f32.mxu0 0.0
        %2108 = vmatmul.mubr.f32.gmra.mxu0 %v1608
        %v2109 = vpop.f32.mrf.mxu0
        %v2110 = vadd.f32 %v1705, %v2109
        %v2111 = vpop.f32.mrf.mxu0
        %v2112 = vadd.f32 %v1709, %v2111
        %2113 = vmatprep.mubr.f32.mxu0 0.0
        %2114 = vmatmul.mubr.f32.gmra.mxu0 %v1609
        %v2115 = vpop.f32.mrf.mxu0
        %v2116 = vadd.f32 %v1705, %v2115
        %v2117 = vpop.f32.mrf.mxu0
        %v2118 = vadd.f32 %v1709, %v2117
        %2119 = vmatprep.mubr.f32.mxu0 0.0
        %2120 = vmatmul.mubr.f32.gmra.mxu0 %v1610
        %v2121 = vpop.f32.mrf.mxu0
        %v2122 = vadd.f32 %v1705, %v2121
        %v2123 = vpop.f32.mrf.mxu0
        %v2124 = vadd.f32 %v1709, %v2123
        %2125 = vmatprep.mubr.f32.mxu0 0.0
        %2126 = vmatmul.mubr.f32.gmra.mxu0 %v1611
        %v2127 = vpop.f32.mrf.mxu0
        %v2128 = vadd.f32 %v1705, %v2127
        %v2129 = vpop.f32.mrf.mxu0
        %v2130 = vadd.f32 %v1709, %v2129
        %2131 = vmatprep.mubr.f32.mxu0 0.0
        %2132 = vmatmul.mubr.f32.gmra.mxu0 %v1612
        %v2133 = vpop.f32.mrf.mxu0
        %v2134 = vadd.f32 %v1705, %v2133
        %v2135 = vpop.f32.mrf.mxu0
        %v2136 = vadd.f32 %v1709, %v2135
        %2137 = vmatprep.mubr.f32.mxu0 0.0
        %2138 = vmatmul.mubr.f32.gmra.mxu0 %v1613
        %v2139 = vpop.f32.mrf.mxu0
        %v2140 = vadd.f32 %v1705, %v2139
        %v2141 = vpop.f32.mrf.mxu0
        %v2142 = vadd.f32 %v1709, %v2141
        %2143 = vmatprep.mubr.f32.mxu0 0.0
        %2144 = vmatmul.mubr.f32.gmra.mxu0 %v1614
        %v2145 = vpop.f32.mrf.mxu0
        %v2146 = vadd.f32 %v1705, %v2145
        %v2147 = vpop.f32.mrf.mxu0
        %v2148 = vadd.f32 %v1709, %v2147
        %2149 = vmatprep.mubr.f32.mxu0 0.0
        %2150 = vmatmul.mubr.f32.gmra.mxu0 %v1615
        %v2151 = vpop.f32.mrf.mxu0
        %v2152 = vadd.f32 %v1705, %v2151
        %v2153 = vpop.f32.mrf.mxu0
        %v2154 = vadd.f32 %v1709, %v2153
        %2155 = vmatprep.mubr.f32.mxu0 0.0
        %2156 = vmatmul.mubr.f32.gmra.mxu0 %v1616
        %v2157 = vpop.f32.mrf.mxu0
        %v2158 = vadd.f32 %v1705, %v2157
        %v2159 = vpop.f32.mrf.mxu0
        %v2160 = vadd.f32 %v1709, %v2159
        %2161 = vmatprep.mubr.f32.mxu0 0.0
        %2162 = vmatmul.mubr.f32.gmra.mxu0 %v1617
        %v2163 = vpop.f32.mrf.mxu0
        %v2164 = vadd.f32 %v1705, %v2163
        %v2165 = vpop.f32.mrf.mxu0
        %v2166 = vadd.f32 %v1709, %v2165
        %2167 = vmatprep.mubr.f32.mxu0 0.0
        %2168 = vmatmul.mubr.f32.gmra.mxu0 %v1618
        %v2169 = vpop.f32.mrf.mxu0
        %v2170 = vadd.f32 %v1705, %v2169
        %v2171 = vpop.f32.mrf.mxu0
        %v2172 = vadd.f32 %v1709, %v2171
        %2173 = vmatprep.mubr.f32.mxu0 0.0
        %2174 = vmatmul.mubr.f32.gmra.mxu0 %v1619
        %v2175 = vpop.f32.mrf.mxu0
        %v2176 = vadd.f32 %v1705, %v2175
        %v2177 = vpop.f32.mrf.mxu0
        %v2178 = vadd.f32 %v1709, %v2177
        %2179 = vmatprep.mubr.f32.mxu0 0.0
        %2180 = vmatmul.mubr.f32.gmra.mxu0 %v1620
        %v2181 = vpop.f32.mrf.mxu0
        %v2182 = vadd.f32 %v1705, %v2181
        %v2183 = vpop.f32.mrf.mxu0
        %v2184 = vadd.f32 %v1709, %v2183
        %2185 = vmatprep.mubr.f32.mxu0 0.0
        %2186 = vmatmul.mubr.f32.gmra.mxu0 %v1621
        %v2187 = vpop.f32.mrf.mxu0
        %v2188 = vadd.f32 %v1705, %v2187
        %v2189 = vpop.f32.mrf.mxu0
        %v2190 = vadd.f32 %v1709, %v2189
        %2191 = vmatprep.mubr.f32.mxu0 0.0
        %2192 = vmatmul.mubr.f32.gmra.mxu0 %v1622
        %v2193 = vpop.f32.mrf.mxu0
        %v2194 = vadd.f32 %v1705, %v2193
        %v2195 = vpop.f32.mrf.mxu0
        %v2196 = vadd.f32 %v1709, %v2195
        %2197 = vmatprep.mubr.f32.mxu0 0.0
        %2198 = vmatmul.mubr.f32.gmra.mxu0 %v1623
        %v2199 = vpop.f32.mrf.mxu0
        %v2200 = vadd.f32 %v1705, %v2199
        %v2201 = vpop.f32.mrf.mxu0
        %v2202 = vadd.f32 %v1709, %v2201
        %2203 = vmatprep.mubr.f32.mxu0 0.0
        %2204 = vmatmul.mubr.f32.gmra.mxu0 %v1624
        %v2205 = vpop.f32.mrf.mxu0
        %v2206 = vadd.f32 %v1705, %v2205
        %v2207 = vpop.f32.mrf.mxu0
        %v2208 = vadd.f32 %v1709, %v2207
        %2209 = vmatprep.mubr.f32.mxu0 0.0
        %2210 = vmatmul.mubr.f32.gmra.mxu0 %v1625
        %v2211 = vpop.f32.mrf.mxu0
        %v2212 = vadd.f32 %v1705, %v2211
        %v2213 = vpop.f32.mrf.mxu0
        %v2214 = vadd.f32 %v1709, %v2213
        %2215 = vmatprep.mubr.f32.mxu0 0.0
        %2216 = vmatmul.mubr.f32.gmra.mxu0 %v1626
        %v2217 = vpop.f32.mrf.mxu0
        %v2218 = vadd.f32 %v1705, %v2217
        %v2219 = vpop.f32.mrf.mxu0
        %v2220 = vadd.f32 %v1709, %v2219
        %2221 = vmatprep.mubr.f32.mxu0 0.0
        %2222 = vmatmul.mubr.f32.gmra.mxu0 %v1627
        %v2223 = vpop.f32.mrf.mxu0
        %v2224 = vadd.f32 %v1705, %v2223
        %v2225 = vpop.f32.mrf.mxu0
        %v2226 = vadd.f32 %v1709, %v2225
        %2227 = vdwg.mxu0
        %v2228 = vld [vmem:[#allocation7] sm:$0xff]
        %v2229 = vld [vmem:[#allocation7 + $0x8] sm:$0xff]
        %v2230 = vld [vmem:[#allocation7 + $0x10] sm:$0xff]
        %v2231 = vld [vmem:[#allocation7 + $0x18] sm:$0xff]
        %v2232 = vld [vmem:[#allocation7 + $0x20] sm:$0xff]
        %v2233 = vld [vmem:[#allocation7 + $0x28] sm:$0xff]
        %v2234 = vld [vmem:[#allocation7 + $0x30] sm:$0xff]
        %v2235 = vld [vmem:[#allocation7 + $0x38] sm:$0xff]
        %v2236 = vld [vmem:[#allocation7 + $0x40] sm:$0xff]
        %v2237 = vld [vmem:[#allocation7 + $0x48] sm:$0xff]
        %v2238 = vld [vmem:[#allocation7 + $0x50] sm:$0xff]
        %v2239 = vld [vmem:[#allocation7 + $0x58] sm:$0xff]
        %v2240 = vld [vmem:[#allocation7 + $0x60] sm:$0xff]
        %v2241 = vld [vmem:[#allocation7 + $0x68] sm:$0xff]
        %v2242 = vld [vmem:[#allocation7 + $0x70] sm:$0xff]
        %v2243 = vld [vmem:[#allocation7 + $0x78] sm:$0xff]
        %v2244 = vld [vmem:[#allocation7 + $0x80] sm:$0xff]
        %v2245 = vld [vmem:[#allocation7 + $0x88] sm:$0xff]
        %v2246 = vld [vmem:[#allocation7 + $0x90] sm:$0xff]
        %v2247 = vld [vmem:[#allocation7 + $0x98] sm:$0xff]
        %v2248 = vld [vmem:[#allocation7 + $0xa0] sm:$0xff]
        %v2249 = vld [vmem:[#allocation7 + $0xa8] sm:$0xff]
        %v2250 = vld [vmem:[#allocation7 + $0xb0] sm:$0xff]
        %v2251 = vld [vmem:[#allocation7 + $0xb8] sm:$0xff]
        %v2252 = vld [vmem:[#allocation7 + $0xc0] sm:$0xff]
        %v2253 = vld [vmem:[#allocation7 + $0xc8] sm:$0xff]
        %v2254 = vld [vmem:[#allocation7 + $0xd0] sm:$0xff]
        %v2255 = vld [vmem:[#allocation7 + $0xd8] sm:$0xff]
        %v2256 = vld [vmem:[#allocation7 + $0xe0] sm:$0xff]
        %v2257 = vld [vmem:[#allocation7 + $0xe8] sm:$0xff]
        %v2258 = vld [vmem:[#allocation7 + $0xf0] sm:$0xff]
        %v2259 = vld [vmem:[#allocation7 + $0xf8] sm:$0xff]
        %v2260 = vld [vmem:[#allocation7 + $0x100] sm:$0xff]
        %v2261 = vld [vmem:[#allocation7 + $0x108] sm:$0xff]
        %v2262 = vld [vmem:[#allocation7 + $0x110] sm:$0xff]
        %v2263 = vld [vmem:[#allocation7 + $0x118] sm:$0xff]
        %v2264 = vld [vmem:[#allocation7 + $0x120] sm:$0xff]
        %v2265 = vld [vmem:[#allocation7 + $0x128] sm:$0xff]
        %v2266 = vld [vmem:[#allocation7 + $0x130] sm:$0xff]
        %v2267 = vld [vmem:[#allocation7 + $0x138] sm:$0xff]
        %v2268 = vld [vmem:[#allocation7 + $0x140] sm:$0xff]
        %v2269 = vld [vmem:[#allocation7 + $0x148] sm:$0xff]
        %v2270 = vld [vmem:[#allocation7 + $0x150] sm:$0xff]
        %v2271 = vld [vmem:[#allocation7 + $0x158] sm:$0xff]
        %v2272 = vld [vmem:[#allocation7 + $0x160] sm:$0xff]
        %v2273 = vld [vmem:[#allocation7 + $0x168] sm:$0xff]
        %v2274 = vld [vmem:[#allocation7 + $0x170] sm:$0xff]
        %v2275 = vld [vmem:[#allocation7 + $0x178] sm:$0xff]
        %v2276 = vld [vmem:[#allocation7 + $0x180] sm:$0xff]
        %v2277 = vld [vmem:[#allocation7 + $0x188] sm:$0xff]
        %v2278 = vld [vmem:[#allocation7 + $0x190] sm:$0xff]
        %v2279 = vld [vmem:[#allocation7 + $0x198] sm:$0xff]
        %v2280 = vld [vmem:[#allocation7 + $0x1a0] sm:$0xff]
        %v2281 = vld [vmem:[#allocation7 + $0x1a8] sm:$0xff]
        %v2282 = vld [vmem:[#allocation7 + $0x1b0] sm:$0xff]
        %v2283 = vld [vmem:[#allocation7 + $0x1b8] sm:$0xff]
        %v2284 = vld [vmem:[#allocation7 + $0x1c0] sm:$0xff]
        %v2285 = vld [vmem:[#allocation7 + $0x1c8] sm:$0xff]
        %v2286 = vld [vmem:[#allocation7 + $0x1d0] sm:$0xff]
        %v2287 = vld [vmem:[#allocation7 + $0x1d8] sm:$0xff]
        %v2288 = vld [vmem:[#allocation7 + $0x1e0] sm:$0xff]
        %v2289 = vld [vmem:[#allocation7 + $0x1e8] sm:$0xff]
        %v2290 = vld [vmem:[#allocation7 + $0x1f0] sm:$0xff]
        %v2291 = vld [vmem:[#allocation7 + $0x1f8] sm:$0xff]
        %v2292 = vld [vmem:[#allocation7 + $0x200] sm:$0xff]
        %v2293 = vld [vmem:[#allocation7 + $0x208] sm:$0xff]
        %v2294 = vld [vmem:[#allocation7 + $0x210] sm:$0xff]
        %v2295 = vld [vmem:[#allocation7 + $0x218] sm:$0xff]
        %v2296 = vld [vmem:[#allocation7 + $0x220] sm:$0xff]
        %v2297 = vld [vmem:[#allocation7 + $0x228] sm:$0xff]
        %v2298 = vld [vmem:[#allocation7 + $0x230] sm:$0xff]
        %v2299 = vld [vmem:[#allocation7 + $0x238] sm:$0xff]
        %v2300 = vld [vmem:[#allocation7 + $0x240] sm:$0xff]
        %v2301 = vld [vmem:[#allocation7 + $0x248] sm:$0xff]
        %v2302 = vld [vmem:[#allocation7 + $0x250] sm:$0xff]
        %v2303 = vld [vmem:[#allocation7 + $0x258] sm:$0xff]
        %v2304 = vld [vmem:[#allocation7 + $0x260] sm:$0xff]
        %v2305 = vld [vmem:[#allocation7 + $0x268] sm:$0xff]
        %v2306 = vld [vmem:[#allocation7 + $0x270] sm:$0xff]
        %v2307 = vld [vmem:[#allocation7 + $0x278] sm:$0xff]
        %v2308 = vld [vmem:[#allocation7 + $0x280] sm:$0xff]
        %v2309 = vld [vmem:[#allocation7 + $0x288] sm:$0xff]
        %v2310 = vld [vmem:[#allocation7 + $0x290] sm:$0xff]
        %v2311 = vld [vmem:[#allocation7 + $0x298] sm:$0xff]
        %v2312 = vld [vmem:[#allocation7 + $0x2a0] sm:$0xff]
        %v2313 = vld [vmem:[#allocation7 + $0x2a8] sm:$0xff]
        %v2314 = vld [vmem:[#allocation7 + $0x2b0] sm:$0xff]
        %v2315 = vld [vmem:[#allocation7 + $0x2b8] sm:$0xff]
        %v2316 = vld [vmem:[#allocation7 + $0x2c0] sm:$0xff]
        %v2317 = vld [vmem:[#allocation7 + $0x2c8] sm:$0xff]
        %v2318 = vld [vmem:[#allocation7 + $0x2d0] sm:$0xff]
        %v2319 = vld [vmem:[#allocation7 + $0x2d8] sm:$0xff]
        %v2320 = vld [vmem:[#allocation7 + $0x2e0] sm:$0xff]
        %v2321 = vld [vmem:[#allocation7 + $0x2e8] sm:$0xff]
        %v2322 = vld [vmem:[#allocation7 + $0x2f0] sm:$0xff]
        %v2323 = vld [vmem:[#allocation7 + $0x2f8] sm:$0xff]
        %v2324 = vld [vmem:[#allocation7 + $0x300] sm:$0xff]
        %v2325 = vld [vmem:[#allocation7 + $0x308] sm:$0xff]
        %v2326 = vld [vmem:[#allocation7 + $0x310] sm:$0xff]
        %v2327 = vld [vmem:[#allocation7 + $0x318] sm:$0xff]
        %v2328 = vld [vmem:[#allocation7 + $0x320] sm:$0xff]
        %v2329 = vld [vmem:[#allocation7 + $0x328] sm:$0xff]
        %v2330 = vld [vmem:[#allocation7 + $0x330] sm:$0xff]
        %v2331 = vld [vmem:[#allocation7 + $0x338] sm:$0xff]
        %v2332 = vld [vmem:[#allocation7 + $0x340] sm:$0xff]
        %v2333 = vld [vmem:[#allocation7 + $0x348] sm:$0xff]
        %v2334 = vld [vmem:[#allocation7 + $0x350] sm:$0xff]
        %v2335 = vld [vmem:[#allocation7 + $0x358] sm:$0xff]
        %v2336 = vld [vmem:[#allocation7 + $0x360] sm:$0xff]
        %v2337 = vld [vmem:[#allocation7 + $0x368] sm:$0xff]
        %v2338 = vld [vmem:[#allocation7 + $0x370] sm:$0xff]
        %v2339 = vld [vmem:[#allocation7 + $0x378] sm:$0xff]
        %v2340 = vld [vmem:[#allocation7 + $0x380] sm:$0xff]
        %v2341 = vld [vmem:[#allocation7 + $0x388] sm:$0xff]
        %v2342 = vld [vmem:[#allocation7 + $0x390] sm:$0xff]
        %v2343 = vld [vmem:[#allocation7 + $0x398] sm:$0xff]
        %v2344 = vld [vmem:[#allocation7 + $0x3a0] sm:$0xff]
        %v2345 = vld [vmem:[#allocation7 + $0x3a8] sm:$0xff]
        %v2346 = vld [vmem:[#allocation7 + $0x3b0] sm:$0xff]
        %v2347 = vld [vmem:[#allocation7 + $0x3b8] sm:$0xff]
        %v2348 = vld [vmem:[#allocation7 + $0x3c0] sm:$0xff]
        %v2349 = vld [vmem:[#allocation7 + $0x3c8] sm:$0xff]
        %v2350 = vld [vmem:[#allocation7 + $0x3d0] sm:$0xff]
        %v2351 = vld [vmem:[#allocation7 + $0x3d8] sm:$0xff]
        %v2352 = vld [vmem:[#allocation7 + $0x3e0] sm:$0xff]
        %v2353 = vld [vmem:[#allocation7 + $0x3e8] sm:$0xff]
        %v2354 = vld [vmem:[#allocation7 + $0x3f0] sm:$0xff]
        %v2355 = vld [vmem:[#allocation7 + $0x3f8] sm:$0xff]
        %v2356 = vld [vmem:[#allocation7 + $0x400] sm:$0xff]
        %v2357 = vld [vmem:[#allocation7 + $0x408] sm:$0xff]
        %v2358 = vld [vmem:[#allocation7 + $0x410] sm:$0xff]
        %v2359 = vld [vmem:[#allocation7 + $0x418] sm:$0xff]
        %v2360 = vld [vmem:[#allocation7 + $0x420] sm:$0xff]
        %v2361 = vld [vmem:[#allocation7 + $0x428] sm:$0xff]
        %v2362 = vld [vmem:[#allocation7 + $0x430] sm:$0xff]
        %v2363 = vld [vmem:[#allocation7 + $0x438] sm:$0xff]
        %v2364 = vld [vmem:[#allocation7 + $0x440] sm:$0xff]
        %v2365 = vld [vmem:[#allocation7 + $0x448] sm:$0xff]
        %v2366 = vld [vmem:[#allocation7 + $0x450] sm:$0xff]
        %v2367 = vld [vmem:[#allocation7 + $0x458] sm:$0xff]
        %v2368 = vld [vmem:[#allocation7 + $0x460] sm:$0xff]
        %v2369 = vld [vmem:[#allocation7 + $0x468] sm:$0xff]
        %v2370 = vld [vmem:[#allocation7 + $0x470] sm:$0xff]
        %v2371 = vld [vmem:[#allocation7 + $0x478] sm:$0xff]
        %v2372 = vld [vmem:[#allocation7 + $0x480] sm:$0xff]
        %v2373 = vld [vmem:[#allocation7 + $0x488] sm:$0xff]
        %v2374 = vld [vmem:[#allocation7 + $0x490] sm:$0xff]
        %v2375 = vld [vmem:[#allocation7 + $0x498] sm:$0xff]
        %v2376 = vld [vmem:[#allocation7 + $0x4a0] sm:$0xff]
        %v2377 = vld [vmem:[#allocation7 + $0x4a8] sm:$0xff]
        %v2378 = vld [vmem:[#allocation7 + $0x4b0] sm:$0xff]
        %v2379 = vld [vmem:[#allocation7 + $0x4b8] sm:$0xff]
        %v2380 = vld [vmem:[#allocation7 + $0x4c0] sm:$0xff]
        %v2381 = vld [vmem:[#allocation7 + $0x4c8] sm:$0xff]
        %v2382 = vld [vmem:[#allocation7 + $0x4d0] sm:$0xff]
        %v2383 = vld [vmem:[#allocation7 + $0x4d8] sm:$0xff]
        %v2384 = vld [vmem:[#allocation7 + $0x4e0] sm:$0xff]
        %v2385 = vld [vmem:[#allocation7 + $0x4e8] sm:$0xff]
        %v2386 = vld [vmem:[#allocation7 + $0x4f0] sm:$0xff]
        %v2387 = vld [vmem:[#allocation7 + $0x4f8] sm:$0xff]
        %v2388 = vld [vmem:[#allocation7 + $0x500] sm:$0xff]
        %v2389 = vld [vmem:[#allocation7 + $0x508] sm:$0xff]
        %v2390 = vld [vmem:[#allocation7 + $0x510] sm:$0xff]
        %v2391 = vld [vmem:[#allocation7 + $0x518] sm:$0xff]
        %v2392 = vld [vmem:[#allocation7 + $0x520] sm:$0xff]
        %v2393 = vld [vmem:[#allocation7 + $0x528] sm:$0xff]
        %v2394 = vld [vmem:[#allocation7 + $0x530] sm:$0xff]
        %v2395 = vld [vmem:[#allocation7 + $0x538] sm:$0xff]
        %v2396 = vld [vmem:[#allocation7 + $0x540] sm:$0xff]
        %v2397 = vld [vmem:[#allocation7 + $0x548] sm:$0xff]
        %v2398 = vld [vmem:[#allocation7 + $0x550] sm:$0xff]
        %v2399 = vld [vmem:[#allocation7 + $0x558] sm:$0xff]
        %v2400 = vld [vmem:[#allocation7 + $0x560] sm:$0xff]
        %v2401 = vld [vmem:[#allocation7 + $0x568] sm:$0xff]
        %v2402 = vld [vmem:[#allocation7 + $0x570] sm:$0xff]
        %v2403 = vld [vmem:[#allocation7 + $0x578] sm:$0xff]
        %v2404 = vld [vmem:[#allocation7 + $0x580] sm:$0xff]
        %v2405 = vld [vmem:[#allocation7 + $0x588] sm:$0xff]
        %v2406 = vld [vmem:[#allocation7 + $0x590] sm:$0xff]
        %v2407 = vld [vmem:[#allocation7 + $0x598] sm:$0xff]
        %v2408 = vld [vmem:[#allocation7 + $0x5a0] sm:$0xff]
        %v2409 = vld [vmem:[#allocation7 + $0x5a8] sm:$0xff]
        %v2410 = vld [vmem:[#allocation7 + $0x5b0] sm:$0xff]
        %v2411 = vld [vmem:[#allocation7 + $0x5b8] sm:$0xff]
        %v2412 = vld [vmem:[#allocation7 + $0x5c0] sm:$0xff]
        %v2413 = vld [vmem:[#allocation7 + $0x5c8] sm:$0xff]
        %v2414 = vld [vmem:[#allocation7 + $0x5d0] sm:$0xff]
        %v2415 = vld [vmem:[#allocation7 + $0x5d8] sm:$0xff]
        %v2416 = vld [vmem:[#allocation7 + $0x5e0] sm:$0xff]
        %v2417 = vld [vmem:[#allocation7 + $0x5e8] sm:$0xff]
        %v2418 = vld [vmem:[#allocation7 + $0x5f0] sm:$0xff]
        %v2419 = vld [vmem:[#allocation7 + $0x5f8] sm:$0xff]
        %2420 = vmatprep.subr.mxu0 %v1873
        %2421 = vmatpush1.msra.mxu0 %v1871
        %2422 = vmatprep.subr.mxu0 %v1867
        %2423 = vmatpush1.msra.mxu0 %v1865
        %2424 = vmatprep.subr.mxu0 %v1861
        %2425 = vmatpush1.msra.mxu0 %v1859
        %2426 = vmatprep.subr.mxu0 %v1855
        %2427 = vmatpush1.msra.mxu0 %v1853
        %2428 = vmatprep.subr.mxu0 %v1849
        %2429 = vmatpush1.msra.mxu0 %v1847
        %2430 = vmatprep.subr.mxu0 %v1843
        %2431 = vmatpush1.msra.mxu0 %v1841
        %2432 = vmatprep.subr.mxu0 %v1837
        %2433 = vmatpush1.msra.mxu0 %v1835
        %2434 = vmatprep.subr.mxu0 %v1831
        %2435 = vmatpush1.msra.mxu0 %v1829
        %2436 = vmatprep.subr.mxu0 %v1825
        %2437 = vmatpush1.msra.mxu0 %v1823
        %2438 = vmatprep.subr.mxu0 %v1819
        %2439 = vmatpush1.msra.mxu0 %v1817
        %2440 = vmatprep.subr.mxu0 %v1813
        %2441 = vmatpush1.msra.mxu0 %v1811
        %2442 = vmatprep.subr.mxu0 %v1807
        %2443 = vmatpush1.msra.mxu0 %v1805
        %2444 = vmatprep.subr.mxu0 %v1801
        %2445 = vmatpush1.msra.mxu0 %v1799
        %2446 = vmatprep.subr.mxu0 %v1795
        %2447 = vmatpush1.msra.mxu0 %v1793
        %2448 = vmatprep.subr.mxu0 %v1789
        %2449 = vmatpush1.msra.mxu0 %v1787
        %2450 = vmatprep.subr.mxu0 %v1783
        %2451 = vmatpush1.msra.mxu0 %v1781
        %2452 = vmatprep.subr.mxu0 %v1969
        %2453 = vmatpush2.msra.mxu0 %v1967
        %2454 = vmatprep.subr.mxu0 %v1963
        %2455 = vmatpush2.msra.mxu0 %v1961
        %2456 = vmatprep.subr.mxu0 %v1957
        %2457 = vmatpush2.msra.mxu0 %v1955
        %2458 = vmatprep.subr.mxu0 %v1951
        %2459 = vmatpush2.msra.mxu0 %v1949
        %2460 = vmatprep.subr.mxu0 %v1945
        %2461 = vmatpush2.msra.mxu0 %v1943
        %2462 = vmatprep.subr.mxu0 %v1939
        %2463 = vmatpush2.msra.mxu0 %v1937
        %2464 = vmatprep.subr.mxu0 %v1933
        %2465 = vmatpush2.msra.mxu0 %v1931
        %2466 = vmatprep.subr.mxu0 %v1927
        %2467 = vmatpush2.msra.mxu0 %v1925
        %2468 = vmatprep.subr.mxu0 %v1921
        %2469 = vmatpush2.msra.mxu0 %v1919
        %2470 = vmatprep.subr.mxu0 %v1915
        %2471 = vmatpush2.msra.mxu0 %v1913
        %2472 = vmatprep.subr.mxu0 %v1909
        %2473 = vmatpush2.msra.mxu0 %v1907
        %2474 = vmatprep.subr.mxu0 %v1903
        %2475 = vmatpush2.msra.mxu0 %v1901
        %2476 = vmatprep.subr.mxu0 %v1897
        %2477 = vmatpush2.msra.mxu0 %v1895
        %2478 = vmatprep.subr.mxu0 %v1891
        %2479 = vmatpush2.msra.mxu0 %v1889
        %2480 = vmatprep.subr.mxu0 %v1885
        %2481 = vmatpush2.msra.mxu0 %v1883
        %2482 = vmatprep.subr.mxu0 %v1879
        %2483 = vmatpush2.msra.mxu0 %v1877
        %2484 = vmatprep.mubr.f32.mxu0 %v2229
        %2485 = vmatmul.mubr.f32.gmra.mxu0 %v2228
        %v2486 = vpop.f32.mrf.mxu0
        %v2487 = vadd.f32 0.0, %v2486
        %v2488 = vpop.f32.mrf.mxu0
        %v2489 = vadd.f32 0.0, %v2488
        %2490 = vmatprep.mubr.f32.mxu0 %v2231
        %2491 = vmatmul.mubr.f32.gmra.mxu0 %v2230
        %v2492 = vpop.f32.mrf.mxu0
        %v2493 = vadd.f32 0.0, %v2492
        %v2494 = vpop.f32.mrf.mxu0
        %v2495 = vadd.f32 0.0, %v2494
        %2496 = vmatprep.mubr.f32.mxu0 %v2233
        %2497 = vmatmul.mubr.f32.gmra.mxu0 %v2232
        %v2498 = vpop.f32.mrf.mxu0
        %v2499 = vadd.f32 0.0, %v2498
        %v2500 = vpop.f32.mrf.mxu0
        %v2501 = vadd.f32 0.0, %v2500
        %2502 = vmatprep.mubr.f32.mxu0 %v2235
        %2503 = vmatmul.mubr.f32.gmra.mxu0 %v2234
        %v2504 = vpop.f32.mrf.mxu0
        %v2505 = vadd.f32 0.0, %v2504
        %v2506 = vpop.f32.mrf.mxu0
        %v2507 = vadd.f32 0.0, %v2506
        %2508 = vmatprep.mubr.f32.mxu0 %v2237
        %2509 = vmatmul.mubr.f32.gmra.mxu0 %v2236
        %v2510 = vpop.f32.mrf.mxu0
        %v2511 = vadd.f32 0.0, %v2510
        %v2512 = vpop.f32.mrf.mxu0
        %v2513 = vadd.f32 0.0, %v2512
        %2514 = vmatprep.mubr.f32.mxu0 %v2239
        %2515 = vmatmul.mubr.f32.gmra.mxu0 %v2238
        %v2516 = vpop.f32.mrf.mxu0
        %v2517 = vadd.f32 0.0, %v2516
        %v2518 = vpop.f32.mrf.mxu0
        %v2519 = vadd.f32 0.0, %v2518
        %2520 = vmatprep.mubr.f32.mxu0 %v2241
        %2521 = vmatmul.mubr.f32.gmra.mxu0 %v2240
        %v2522 = vpop.f32.mrf.mxu0
        %v2523 = vadd.f32 0.0, %v2522
        %v2524 = vpop.f32.mrf.mxu0
        %v2525 = vadd.f32 0.0, %v2524
        %2526 = vmatprep.mubr.f32.mxu0 %v2243
        %2527 = vmatmul.mubr.f32.gmra.mxu0 %v2242
        %v2528 = vpop.f32.mrf.mxu0
        %v2529 = vadd.f32 0.0, %v2528
        %v2530 = vpop.f32.mrf.mxu0
        %v2531 = vadd.f32 0.0, %v2530
        %2532 = vmatprep.mubr.f32.mxu0 %v2245
        %2533 = vmatmul.mubr.f32.gmra.mxu0 %v2244
        %v2534 = vpop.f32.mrf.mxu0
        %v2535 = vadd.f32 0.0, %v2534
        %v2536 = vpop.f32.mrf.mxu0
        %v2537 = vadd.f32 0.0, %v2536
        %2538 = vmatprep.mubr.f32.mxu0 %v2247
        %2539 = vmatmul.mubr.f32.gmra.mxu0 %v2246
        %v2540 = vpop.f32.mrf.mxu0
        %v2541 = vadd.f32 0.0, %v2540
        %v2542 = vpop.f32.mrf.mxu0
        %v2543 = vadd.f32 0.0, %v2542
        %2544 = vmatprep.mubr.f32.mxu0 %v2249
        %2545 = vmatmul.mubr.f32.gmra.mxu0 %v2248
        %v2546 = vpop.f32.mrf.mxu0
        %v2547 = vadd.f32 0.0, %v2546
        %v2548 = vpop.f32.mrf.mxu0
        %v2549 = vadd.f32 0.0, %v2548
        %2550 = vmatprep.mubr.f32.mxu0 %v2251
        %2551 = vmatmul.mubr.f32.gmra.mxu0 %v2250
        %v2552 = vpop.f32.mrf.mxu0
        %v2553 = vadd.f32 0.0, %v2552
        %v2554 = vpop.f32.mrf.mxu0
        %v2555 = vadd.f32 0.0, %v2554
        %2556 = vmatprep.mubr.f32.mxu0 %v2253
        %2557 = vmatmul.mubr.f32.gmra.mxu0 %v2252
        %v2558 = vpop.f32.mrf.mxu0
        %v2559 = vadd.f32 0.0, %v2558
        %v2560 = vpop.f32.mrf.mxu0
        %v2561 = vadd.f32 0.0, %v2560
        %2562 = vmatprep.mubr.f32.mxu0 %v2255
        %2563 = vmatmul.mubr.f32.gmra.mxu0 %v2254
        %v2564 = vpop.f32.mrf.mxu0
        %v2565 = vadd.f32 0.0, %v2564
        %v2566 = vpop.f32.mrf.mxu0
        %v2567 = vadd.f32 0.0, %v2566
        %2568 = vmatprep.mubr.f32.mxu0 %v2257
        %2569 = vmatmul.mubr.f32.gmra.mxu0 %v2256
        %v2570 = vpop.f32.mrf.mxu0
        %v2571 = vadd.f32 0.0, %v2570
        %v2572 = vpop.f32.mrf.mxu0
        %v2573 = vadd.f32 0.0, %v2572
        %2574 = vmatprep.mubr.f32.mxu0 %v2259
        %2575 = vmatmul.mubr.f32.gmra.mxu0 %v2258
        %v2576 = vpop.f32.mrf.mxu0
        %v2577 = vadd.f32 0.0, %v2576
        %v2578 = vpop.f32.mrf.mxu0
        %v2579 = vadd.f32 0.0, %v2578
        %2580 = vmatprep.mubr.f32.mxu0 %v2261
        %2581 = vmatmul.mubr.f32.gmra.mxu0 %v2260
        %v2582 = vpop.f32.mrf.mxu0
        %v2583 = vadd.f32 0.0, %v2582
        %v2584 = vpop.f32.mrf.mxu0
        %v2585 = vadd.f32 0.0, %v2584
        %2586 = vmatprep.mubr.f32.mxu0 %v2263
        %2587 = vmatmul.mubr.f32.gmra.mxu0 %v2262
        %v2588 = vpop.f32.mrf.mxu0
        %v2589 = vadd.f32 0.0, %v2588
        %v2590 = vpop.f32.mrf.mxu0
        %v2591 = vadd.f32 0.0, %v2590
        %2592 = vmatprep.mubr.f32.mxu0 %v2265
        %2593 = vmatmul.mubr.f32.gmra.mxu0 %v2264
        %v2594 = vpop.f32.mrf.mxu0
        %v2595 = vadd.f32 0.0, %v2594
        %v2596 = vpop.f32.mrf.mxu0
        %v2597 = vadd.f32 0.0, %v2596
        %2598 = vmatprep.mubr.f32.mxu0 %v2267
        %2599 = vmatmul.mubr.f32.gmra.mxu0 %v2266
        %v2600 = vpop.f32.mrf.mxu0
        %v2601 = vadd.f32 0.0, %v2600
        %v2602 = vpop.f32.mrf.mxu0
        %v2603 = vadd.f32 0.0, %v2602
        %2604 = vmatprep.mubr.f32.mxu0 %v2269
        %2605 = vmatmul.mubr.f32.gmra.mxu0 %v2268
        %v2606 = vpop.f32.mrf.mxu0
        %v2607 = vadd.f32 0.0, %v2606
        %v2608 = vpop.f32.mrf.mxu0
        %v2609 = vadd.f32 0.0, %v2608
        %2610 = vmatprep.mubr.f32.mxu0 %v2271
        %2611 = vmatmul.mubr.f32.gmra.mxu0 %v2270
        %v2612 = vpop.f32.mrf.mxu0
        %v2613 = vadd.f32 0.0, %v2612
        %v2614 = vpop.f32.mrf.mxu0
        %v2615 = vadd.f32 0.0, %v2614
        %2616 = vmatprep.mubr.f32.mxu0 %v2273
        %2617 = vmatmul.mubr.f32.gmra.mxu0 %v2272
        %v2618 = vpop.f32.mrf.mxu0
        %v2619 = vadd.f32 0.0, %v2618
        %v2620 = vpop.f32.mrf.mxu0
        %v2621 = vadd.f32 0.0, %v2620
        %2622 = vmatprep.mubr.f32.mxu0 %v2275
        %2623 = vmatmul.mubr.f32.gmra.mxu0 %v2274
        %v2624 = vpop.f32.mrf.mxu0
        %v2625 = vadd.f32 0.0, %v2624
        %v2626 = vpop.f32.mrf.mxu0
        %v2627 = vadd.f32 0.0, %v2626
        %2628 = vmatprep.mubr.f32.mxu0 %v2277
        %2629 = vmatmul.mubr.f32.gmra.mxu0 %v2276
        %v2630 = vpop.f32.mrf.mxu0
        %v2631 = vadd.f32 0.0, %v2630
        %v2632 = vpop.f32.mrf.mxu0
        %v2633 = vadd.f32 0.0, %v2632
        %2634 = vmatprep.mubr.f32.mxu0 %v2279
        %2635 = vmatmul.mubr.f32.gmra.mxu0 %v2278
        %v2636 = vpop.f32.mrf.mxu0
        %v2637 = vadd.f32 0.0, %v2636
        %v2638 = vpop.f32.mrf.mxu0
        %v2639 = vadd.f32 0.0, %v2638
        %2640 = vmatprep.mubr.f32.mxu0 %v2281
        %2641 = vmatmul.mubr.f32.gmra.mxu0 %v2280
        %v2642 = vpop.f32.mrf.mxu0
        %v2643 = vadd.f32 0.0, %v2642
        %v2644 = vpop.f32.mrf.mxu0
        %v2645 = vadd.f32 0.0, %v2644
        %2646 = vmatprep.mubr.f32.mxu0 %v2283
        %2647 = vmatmul.mubr.f32.gmra.mxu0 %v2282
        %v2648 = vpop.f32.mrf.mxu0
        %v2649 = vadd.f32 0.0, %v2648
        %v2650 = vpop.f32.mrf.mxu0
        %v2651 = vadd.f32 0.0, %v2650
        %2652 = vmatprep.mubr.f32.mxu0 %v2285
        %2653 = vmatmul.mubr.f32.gmra.mxu0 %v2284
        %v2654 = vpop.f32.mrf.mxu0
        %v2655 = vadd.f32 0.0, %v2654
        %v2656 = vpop.f32.mrf.mxu0
        %v2657 = vadd.f32 0.0, %v2656
        %2658 = vmatprep.mubr.f32.mxu0 %v2287
        %2659 = vmatmul.mubr.f32.gmra.mxu0 %v2286
        %v2660 = vpop.f32.mrf.mxu0
        %v2661 = vadd.f32 0.0, %v2660
        %v2662 = vpop.f32.mrf.mxu0
        %v2663 = vadd.f32 0.0, %v2662
        %2664 = vmatprep.mubr.f32.mxu0 %v2289
        %2665 = vmatmul.mubr.f32.gmra.mxu0 %v2288
        %v2666 = vpop.f32.mrf.mxu0
        %v2667 = vadd.f32 0.0, %v2666
        %v2668 = vpop.f32.mrf.mxu0
        %v2669 = vadd.f32 0.0, %v2668
        %2670 = vmatprep.mubr.f32.mxu0 %v2291
        %2671 = vmatmul.mubr.f32.gmra.mxu0 %v2290
        %v2672 = vpop.f32.mrf.mxu0
        %v2673 = vadd.f32 0.0, %v2672
        %v2674 = vpop.f32.mrf.mxu0
        %v2675 = vadd.f32 0.0, %v2674
        %2676 = vmatprep.mubr.f32.mxu0 %v2293
        %2677 = vmatmul.mubr.f32.gmra.mxu0 %v2292
        %v2678 = vpop.f32.mrf.mxu0
        %v2679 = vadd.f32 0.0, %v2678
        %v2680 = vpop.f32.mrf.mxu0
        %v2681 = vadd.f32 0.0, %v2680
        %2682 = vmatprep.mubr.f32.mxu0 %v2295
        %2683 = vmatmul.mubr.f32.gmra.mxu0 %v2294
        %v2684 = vpop.f32.mrf.mxu0
        %v2685 = vadd.f32 0.0, %v2684
        %v2686 = vpop.f32.mrf.mxu0
        %v2687 = vadd.f32 0.0, %v2686
        %2688 = vmatprep.mubr.f32.mxu0 %v2297
        %2689 = vmatmul.mubr.f32.gmra.mxu0 %v2296
        %v2690 = vpop.f32.mrf.mxu0
        %v2691 = vadd.f32 0.0, %v2690
        %v2692 = vpop.f32.mrf.mxu0
        %v2693 = vadd.f32 0.0, %v2692
        %2694 = vmatprep.mubr.f32.mxu0 %v2299
        %2695 = vmatmul.mubr.f32.gmra.mxu0 %v2298
        %v2696 = vpop.f32.mrf.mxu0
        %v2697 = vadd.f32 0.0, %v2696
        %v2698 = vpop.f32.mrf.mxu0
        %v2699 = vadd.f32 0.0, %v2698
        %2700 = vmatprep.mubr.f32.mxu0 %v2301
        %2701 = vmatmul.mubr.f32.gmra.mxu0 %v2300
        %v2702 = vpop.f32.mrf.mxu0
        %v2703 = vadd.f32 0.0, %v2702
        %v2704 = vpop.f32.mrf.mxu0
        %v2705 = vadd.f32 0.0, %v2704
        %2706 = vmatprep.mubr.f32.mxu0 %v2303
        %2707 = vmatmul.mubr.f32.gmra.mxu0 %v2302
        %v2708 = vpop.f32.mrf.mxu0
        %v2709 = vadd.f32 0.0, %v2708
        %v2710 = vpop.f32.mrf.mxu0
        %v2711 = vadd.f32 0.0, %v2710
        %2712 = vmatprep.mubr.f32.mxu0 %v2305
        %2713 = vmatmul.mubr.f32.gmra.mxu0 %v2304
        %v2714 = vpop.f32.mrf.mxu0
        %v2715 = vadd.f32 0.0, %v2714
        %v2716 = vpop.f32.mrf.mxu0
        %v2717 = vadd.f32 0.0, %v2716
        %2718 = vmatprep.mubr.f32.mxu0 %v2307
        %2719 = vmatmul.mubr.f32.gmra.mxu0 %v2306
        %v2720 = vpop.f32.mrf.mxu0
        %v2721 = vadd.f32 0.0, %v2720
        %v2722 = vpop.f32.mrf.mxu0
        %v2723 = vadd.f32 0.0, %v2722
        %2724 = vmatprep.mubr.f32.mxu0 %v2309
        %2725 = vmatmul.mubr.f32.gmra.mxu0 %v2308
        %v2726 = vpop.f32.mrf.mxu0
        %v2727 = vadd.f32 0.0, %v2726
        %v2728 = vpop.f32.mrf.mxu0
        %v2729 = vadd.f32 0.0, %v2728
        %2730 = vmatprep.mubr.f32.mxu0 %v2311
        %2731 = vmatmul.mubr.f32.gmra.mxu0 %v2310
        %v2732 = vpop.f32.mrf.mxu0
        %v2733 = vadd.f32 0.0, %v2732
        %v2734 = vpop.f32.mrf.mxu0
        %v2735 = vadd.f32 0.0, %v2734
        %2736 = vmatprep.mubr.f32.mxu0 %v2313
        %2737 = vmatmul.mubr.f32.gmra.mxu0 %v2312
        %v2738 = vpop.f32.mrf.mxu0
        %v2739 = vadd.f32 0.0, %v2738
        %v2740 = vpop.f32.mrf.mxu0
        %v2741 = vadd.f32 0.0, %v2740
        %2742 = vmatprep.mubr.f32.mxu0 %v2315
        %2743 = vmatmul.mubr.f32.gmra.mxu0 %v2314
        %v2744 = vpop.f32.mrf.mxu0
        %v2745 = vadd.f32 0.0, %v2744
        %v2746 = vpop.f32.mrf.mxu0
        %v2747 = vadd.f32 0.0, %v2746
        %2748 = vmatprep.mubr.f32.mxu0 %v2317
        %2749 = vmatmul.mubr.f32.gmra.mxu0 %v2316
        %v2750 = vpop.f32.mrf.mxu0
        %v2751 = vadd.f32 0.0, %v2750
        %v2752 = vpop.f32.mrf.mxu0
        %v2753 = vadd.f32 0.0, %v2752
        %2754 = vmatprep.mubr.f32.mxu0 %v2319
        %2755 = vmatmul.mubr.f32.gmra.mxu0 %v2318
        %v2756 = vpop.f32.mrf.mxu0
        %v2757 = vadd.f32 0.0, %v2756
        %v2758 = vpop.f32.mrf.mxu0
        %v2759 = vadd.f32 0.0, %v2758
        %2760 = vmatprep.mubr.f32.mxu0 %v2321
        %2761 = vmatmul.mubr.f32.gmra.mxu0 %v2320
        %v2762 = vpop.f32.mrf.mxu0
        %v2763 = vadd.f32 0.0, %v2762
        %v2764 = vpop.f32.mrf.mxu0
        %v2765 = vadd.f32 0.0, %v2764
        %2766 = vmatprep.mubr.f32.mxu0 %v2323
        %2767 = vmatmul.mubr.f32.gmra.mxu0 %v2322
        %v2768 = vpop.f32.mrf.mxu0
        %v2769 = vadd.f32 0.0, %v2768
        %v2770 = vpop.f32.mrf.mxu0
        %v2771 = vadd.f32 0.0, %v2770
        %2772 = vmatprep.mubr.f32.mxu0 %v2325
        %2773 = vmatmul.mubr.f32.gmra.mxu0 %v2324
        %v2774 = vpop.f32.mrf.mxu0
        %v2775 = vadd.f32 0.0, %v2774
        %v2776 = vpop.f32.mrf.mxu0
        %v2777 = vadd.f32 0.0, %v2776
        %2778 = vmatprep.mubr.f32.mxu0 %v2327
        %2779 = vmatmul.mubr.f32.gmra.mxu0 %v2326
        %v2780 = vpop.f32.mrf.mxu0
        %v2781 = vadd.f32 0.0, %v2780
        %v2782 = vpop.f32.mrf.mxu0
        %v2783 = vadd.f32 0.0, %v2782
        %2784 = vmatprep.mubr.f32.mxu0 %v2329
        %2785 = vmatmul.mubr.f32.gmra.mxu0 %v2328
        %v2786 = vpop.f32.mrf.mxu0
        %v2787 = vadd.f32 0.0, %v2786
        %v2788 = vpop.f32.mrf.mxu0
        %v2789 = vadd.f32 0.0, %v2788
        %2790 = vmatprep.mubr.f32.mxu0 %v2331
        %2791 = vmatmul.mubr.f32.gmra.mxu0 %v2330
        %v2792 = vpop.f32.mrf.mxu0
        %v2793 = vadd.f32 0.0, %v2792
        %v2794 = vpop.f32.mrf.mxu0
        %v2795 = vadd.f32 0.0, %v2794
        %2796 = vmatprep.mubr.f32.mxu0 %v2333
        %2797 = vmatmul.mubr.f32.gmra.mxu0 %v2332
        %v2798 = vpop.f32.mrf.mxu0
        %v2799 = vadd.f32 0.0, %v2798
        %v2800 = vpop.f32.mrf.mxu0
        %v2801 = vadd.f32 0.0, %v2800
        %2802 = vmatprep.mubr.f32.mxu0 %v2335
        %2803 = vmatmul.mubr.f32.gmra.mxu0 %v2334
        %v2804 = vpop.f32.mrf.mxu0
        %v2805 = vadd.f32 0.0, %v2804
        %v2806 = vpop.f32.mrf.mxu0
        %v2807 = vadd.f32 0.0, %v2806
        %2808 = vmatprep.mubr.f32.mxu0 %v2337
        %2809 = vmatmul.mubr.f32.gmra.mxu0 %v2336
        %v2810 = vpop.f32.mrf.mxu0
        %v2811 = vadd.f32 0.0, %v2810
        %v2812 = vpop.f32.mrf.mxu0
        %v2813 = vadd.f32 0.0, %v2812
        %2814 = vmatprep.mubr.f32.mxu0 %v2339
        %2815 = vmatmul.mubr.f32.gmra.mxu0 %v2338
        %v2816 = vpop.f32.mrf.mxu0
        %v2817 = vadd.f32 0.0, %v2816
        %v2818 = vpop.f32.mrf.mxu0
        %v2819 = vadd.f32 0.0, %v2818
        %2820 = vmatprep.mubr.f32.mxu0 %v2341
        %2821 = vmatmul.mubr.f32.gmra.mxu0 %v2340
        %v2822 = vpop.f32.mrf.mxu0
        %v2823 = vadd.f32 0.0, %v2822
        %v2824 = vpop.f32.mrf.mxu0
        %v2825 = vadd.f32 0.0, %v2824
        %2826 = vmatprep.mubr.f32.mxu0 %v2343
        %2827 = vmatmul.mubr.f32.gmra.mxu0 %v2342
        %v2828 = vpop.f32.mrf.mxu0
        %v2829 = vadd.f32 0.0, %v2828
        %v2830 = vpop.f32.mrf.mxu0
        %v2831 = vadd.f32 0.0, %v2830
        %2832 = vmatprep.mubr.f32.mxu0 %v2345
        %2833 = vmatmul.mubr.f32.gmra.mxu0 %v2344
        %v2834 = vpop.f32.mrf.mxu0
        %v2835 = vadd.f32 0.0, %v2834
        %v2836 = vpop.f32.mrf.mxu0
        %v2837 = vadd.f32 0.0, %v2836
        %2838 = vmatprep.mubr.f32.mxu0 %v2347
        %2839 = vmatmul.mubr.f32.gmra.mxu0 %v2346
        %v2840 = vpop.f32.mrf.mxu0
        %v2841 = vadd.f32 0.0, %v2840
        %v2842 = vpop.f32.mrf.mxu0
        %v2843 = vadd.f32 0.0, %v2842
        %2844 = vmatprep.mubr.f32.mxu0 %v2349
        %2845 = vmatmul.mubr.f32.gmra.mxu0 %v2348
        %v2846 = vpop.f32.mrf.mxu0
        %v2847 = vadd.f32 0.0, %v2846
        %v2848 = vpop.f32.mrf.mxu0
        %v2849 = vadd.f32 0.0, %v2848
        %2850 = vmatprep.mubr.f32.mxu0 %v2351
        %2851 = vmatmul.mubr.f32.gmra.mxu0 %v2350
        %v2852 = vpop.f32.mrf.mxu0
        %v2853 = vadd.f32 0.0, %v2852
        %v2854 = vpop.f32.mrf.mxu0
        %v2855 = vadd.f32 0.0, %v2854
        %2856 = vmatprep.mubr.f32.mxu0 %v2353
        %2857 = vmatmul.mubr.f32.gmra.mxu0 %v2352
        %v2858 = vpop.f32.mrf.mxu0
        %v2859 = vadd.f32 0.0, %v2858
        %v2860 = vpop.f32.mrf.mxu0
        %v2861 = vadd.f32 0.0, %v2860
        %2862 = vmatprep.mubr.f32.mxu0 %v2355
        %2863 = vmatmul.mubr.f32.gmra.mxu0 %v2354
        %v2864 = vpop.f32.mrf.mxu0
        %v2865 = vadd.f32 0.0, %v2864
        %v2866 = vpop.f32.mrf.mxu0
        %v2867 = vadd.f32 0.0, %v2866
        %2868 = vmatprep.mubr.f32.mxu0 %v2357
        %2869 = vmatmul.mubr.f32.gmra.mxu0 %v2356
        %v2870 = vpop.f32.mrf.mxu0
        %v2871 = vadd.f32 0.0, %v2870
        %v2872 = vpop.f32.mrf.mxu0
        %v2873 = vadd.f32 0.0, %v2872
        %2874 = vmatprep.mubr.f32.mxu0 %v2359
        %2875 = vmatmul.mubr.f32.gmra.mxu0 %v2358
        %v2876 = vpop.f32.mrf.mxu0
        %v2877 = vadd.f32 0.0, %v2876
        %v2878 = vpop.f32.mrf.mxu0
        %v2879 = vadd.f32 0.0, %v2878
        %2880 = vmatprep.mubr.f32.mxu0 %v2361
        %2881 = vmatmul.mubr.f32.gmra.mxu0 %v2360
        %v2882 = vpop.f32.mrf.mxu0
        %v2883 = vadd.f32 0.0, %v2882
        %v2884 = vpop.f32.mrf.mxu0
        %v2885 = vadd.f32 0.0, %v2884
        %2886 = vmatprep.mubr.f32.mxu0 %v2363
        %2887 = vmatmul.mubr.f32.gmra.mxu0 %v2362
        %v2888 = vpop.f32.mrf.mxu0
        %v2889 = vadd.f32 0.0, %v2888
        %v2890 = vpop.f32.mrf.mxu0
        %v2891 = vadd.f32 0.0, %v2890
        %2892 = vmatprep.mubr.f32.mxu0 %v2365
        %2893 = vmatmul.mubr.f32.gmra.mxu0 %v2364
        %v2894 = vpop.f32.mrf.mxu0
        %v2895 = vadd.f32 0.0, %v2894
        %v2896 = vpop.f32.mrf.mxu0
        %v2897 = vadd.f32 0.0, %v2896
        %2898 = vmatprep.mubr.f32.mxu0 %v2367
        %2899 = vmatmul.mubr.f32.gmra.mxu0 %v2366
        %v2900 = vpop.f32.mrf.mxu0
        %v2901 = vadd.f32 0.0, %v2900
        %v2902 = vpop.f32.mrf.mxu0
        %v2903 = vadd.f32 0.0, %v2902
        %2904 = vmatprep.mubr.f32.mxu0 %v2369
        %2905 = vmatmul.mubr.f32.gmra.mxu0 %v2368
        %v2906 = vpop.f32.mrf.mxu0
        %v2907 = vadd.f32 0.0, %v2906
        %v2908 = vpop.f32.mrf.mxu0
        %v2909 = vadd.f32 0.0, %v2908
        %2910 = vmatprep.mubr.f32.mxu0 %v2371
        %2911 = vmatmul.mubr.f32.gmra.mxu0 %v2370
        %v2912 = vpop.f32.mrf.mxu0
        %v2913 = vadd.f32 0.0, %v2912
        %v2914 = vpop.f32.mrf.mxu0
        %v2915 = vadd.f32 0.0, %v2914
        %2916 = vmatprep.mubr.f32.mxu0 %v2373
        %2917 = vmatmul.mubr.f32.gmra.mxu0 %v2372
        %v2918 = vpop.f32.mrf.mxu0
        %v2919 = vadd.f32 0.0, %v2918
        %v2920 = vpop.f32.mrf.mxu0
        %v2921 = vadd.f32 0.0, %v2920
        %2922 = vmatprep.mubr.f32.mxu0 %v2375
        %2923 = vmatmul.mubr.f32.gmra.mxu0 %v2374
        %v2924 = vpop.f32.mrf.mxu0
        %v2925 = vadd.f32 0.0, %v2924
        %v2926 = vpop.f32.mrf.mxu0
        %v2927 = vadd.f32 0.0, %v2926
        %2928 = vmatprep.mubr.f32.mxu0 %v2377
        %2929 = vmatmul.mubr.f32.gmra.mxu0 %v2376
        %v2930 = vpop.f32.mrf.mxu0
        %v2931 = vadd.f32 0.0, %v2930
        %v2932 = vpop.f32.mrf.mxu0
        %v2933 = vadd.f32 0.0, %v2932
        %2934 = vmatprep.mubr.f32.mxu0 %v2379
        %2935 = vmatmul.mubr.f32.gmra.mxu0 %v2378
        %v2936 = vpop.f32.mrf.mxu0
        %v2937 = vadd.f32 0.0, %v2936
        %v2938 = vpop.f32.mrf.mxu0
        %v2939 = vadd.f32 0.0, %v2938
        %2940 = vmatprep.mubr.f32.mxu0 %v2381
        %2941 = vmatmul.mubr.f32.gmra.mxu0 %v2380
        %v2942 = vpop.f32.mrf.mxu0
        %v2943 = vadd.f32 0.0, %v2942
        %v2944 = vpop.f32.mrf.mxu0
        %v2945 = vadd.f32 0.0, %v2944
        %2946 = vmatprep.mubr.f32.mxu0 %v2383
        %2947 = vmatmul.mubr.f32.gmra.mxu0 %v2382
        %v2948 = vpop.f32.mrf.mxu0
        %v2949 = vadd.f32 0.0, %v2948
        %v2950 = vpop.f32.mrf.mxu0
        %v2951 = vadd.f32 0.0, %v2950
        %2952 = vmatprep.mubr.f32.mxu0 %v2385
        %2953 = vmatmul.mubr.f32.gmra.mxu0 %v2384
        %v2954 = vpop.f32.mrf.mxu0
        %v2955 = vadd.f32 0.0, %v2954
        %v2956 = vpop.f32.mrf.mxu0
        %v2957 = vadd.f32 0.0, %v2956
        %2958 = vmatprep.mubr.f32.mxu0 %v2387
        %2959 = vmatmul.mubr.f32.gmra.mxu0 %v2386
        %v2960 = vpop.f32.mrf.mxu0
        %v2961 = vadd.f32 0.0, %v2960
        %v2962 = vpop.f32.mrf.mxu0
        %v2963 = vadd.f32 0.0, %v2962
        %2964 = vmatprep.mubr.f32.mxu0 %v2389
        %2965 = vmatmul.mubr.f32.gmra.mxu0 %v2388
        %v2966 = vpop.f32.mrf.mxu0
        %v2967 = vadd.f32 0.0, %v2966
        %v2968 = vpop.f32.mrf.mxu0
        %v2969 = vadd.f32 0.0, %v2968
        %2970 = vmatprep.mubr.f32.mxu0 %v2391
        %2971 = vmatmul.mubr.f32.gmra.mxu0 %v2390
        %v2972 = vpop.f32.mrf.mxu0
        %v2973 = vadd.f32 0.0, %v2972
        %v2974 = vpop.f32.mrf.mxu0
        %v2975 = vadd.f32 0.0, %v2974
        %2976 = vmatprep.mubr.f32.mxu0 %v2393
        %2977 = vmatmul.mubr.f32.gmra.mxu0 %v2392
        %v2978 = vpop.f32.mrf.mxu0
        %v2979 = vadd.f32 0.0, %v2978
        %v2980 = vpop.f32.mrf.mxu0
        %v2981 = vadd.f32 0.0, %v2980
        %2982 = vmatprep.mubr.f32.mxu0 %v2395
        %2983 = vmatmul.mubr.f32.gmra.mxu0 %v2394
        %v2984 = vpop.f32.mrf.mxu0
        %v2985 = vadd.f32 0.0, %v2984
        %v2986 = vpop.f32.mrf.mxu0
        %v2987 = vadd.f32 0.0, %v2986
        %2988 = vmatprep.mubr.f32.mxu0 %v2397
        %2989 = vmatmul.mubr.f32.gmra.mxu0 %v2396
        %v2990 = vpop.f32.mrf.mxu0
        %v2991 = vadd.f32 0.0, %v2990
        %v2992 = vpop.f32.mrf.mxu0
        %v2993 = vadd.f32 0.0, %v2992
        %2994 = vmatprep.mubr.f32.mxu0 %v2399
        %2995 = vmatmul.mubr.f32.gmra.mxu0 %v2398
        %v2996 = vpop.f32.mrf.mxu0
        %v2997 = vadd.f32 0.0, %v2996
        %v2998 = vpop.f32.mrf.mxu0
        %v2999 = vadd.f32 0.0, %v2998
        %3000 = vmatprep.mubr.f32.mxu0 %v2401
        %3001 = vmatmul.mubr.f32.gmra.mxu0 %v2400
        %v3002 = vpop.f32.mrf.mxu0
        %v3003 = vadd.f32 0.0, %v3002
        %v3004 = vpop.f32.mrf.mxu0
        %v3005 = vadd.f32 0.0, %v3004
        %3006 = vmatprep.mubr.f32.mxu0 %v2403
        %3007 = vmatmul.mubr.f32.gmra.mxu0 %v2402
        %v3008 = vpop.f32.mrf.mxu0
        %v3009 = vadd.f32 0.0, %v3008
        %v3010 = vpop.f32.mrf.mxu0
        %v3011 = vadd.f32 0.0, %v3010
        %3012 = vmatprep.mubr.f32.mxu0 %v2405
        %3013 = vmatmul.mubr.f32.gmra.mxu0 %v2404
        %v3014 = vpop.f32.mrf.mxu0
        %v3015 = vadd.f32 0.0, %v3014
        %v3016 = vpop.f32.mrf.mxu0
        %v3017 = vadd.f32 0.0, %v3016
        %3018 = vmatprep.mubr.f32.mxu0 %v2407
        %3019 = vmatmul.mubr.f32.gmra.mxu0 %v2406
        %v3020 = vpop.f32.mrf.mxu0
        %v3021 = vadd.f32 0.0, %v3020
        %v3022 = vpop.f32.mrf.mxu0
        %v3023 = vadd.f32 0.0, %v3022
        %3024 = vmatprep.mubr.f32.mxu0 %v2409
        %3025 = vmatmul.mubr.f32.gmra.mxu0 %v2408
        %v3026 = vpop.f32.mrf.mxu0
        %v3027 = vadd.f32 0.0, %v3026
        %v3028 = vpop.f32.mrf.mxu0
        %v3029 = vadd.f32 0.0, %v3028
        %3030 = vmatprep.mubr.f32.mxu0 %v2411
        %3031 = vmatmul.mubr.f32.gmra.mxu0 %v2410
        %v3032 = vpop.f32.mrf.mxu0
        %v3033 = vadd.f32 0.0, %v3032
        %v3034 = vpop.f32.mrf.mxu0
        %v3035 = vadd.f32 0.0, %v3034
        %3036 = vmatprep.mubr.f32.mxu0 %v2413
        %3037 = vmatmul.mubr.f32.gmra.mxu0 %v2412
        %v3038 = vpop.f32.mrf.mxu0
        %v3039 = vadd.f32 0.0, %v3038
        %v3040 = vpop.f32.mrf.mxu0
        %v3041 = vadd.f32 0.0, %v3040
        %3042 = vmatprep.mubr.f32.mxu0 %v2415
        %3043 = vmatmul.mubr.f32.gmra.mxu0 %v2414
        %v3044 = vpop.f32.mrf.mxu0
        %v3045 = vadd.f32 0.0, %v3044
        %v3046 = vpop.f32.mrf.mxu0
        %v3047 = vadd.f32 0.0, %v3046
        %3048 = vmatprep.mubr.f32.mxu0 %v2417
        %3049 = vmatmul.mubr.f32.gmra.mxu0 %v2416
        %v3050 = vpop.f32.mrf.mxu0
        %v3051 = vadd.f32 0.0, %v3050
        %v3052 = vpop.f32.mrf.mxu0
        %v3053 = vadd.f32 0.0, %v3052
        %3054 = vmatprep.mubr.f32.mxu0 %v2419
        %3055 = vmatmul.mubr.f32.gmra.mxu0 %v2418
        %v3056 = vpop.f32.mrf.mxu0
        %v3057 = vadd.f32 0.0, %v3056
        %v3058 = vpop.f32.mrf.mxu0
        %v3059 = vadd.f32 0.0, %v3058
        %3060 = vdwg.mxu0
        %v3061 = vlaneseq
        %v3062 = vand.u32 %v3061, 127
        %v3063 = vadd.s32 %v3062, 128
        %vm3064 = vcmp.ge.s32.totalorder %v3062, 1
        %vm3065 = vcmp.ge.s32.totalorder %v3063, 1
        %3066 = vrot.lane.b32.xlu0 %v2487, 1
        %v3067 = vpop.permute.xlu0 %3066
        %3068 = vrot.lane.b32.xlu0 %v2493, 1
        %v3069 = vpop.permute.xlu0 %3068
        %3070 = vrot.lane.b32.xlu0 %v2499, 1
        %v3071 = vpop.permute.xlu0 %3070
        %3072 = vrot.lane.b32.xlu0 %v2505, 1
        %v3073 = vpop.permute.xlu0 %3072
        %3074 = vrot.lane.b32.xlu0 %v2511, 1
        %v3075 = vpop.permute.xlu0 %3074
        %3076 = vrot.lane.b32.xlu0 %v2517, 1
        %v3077 = vpop.permute.xlu0 %3076
        %3078 = vrot.lane.b32.xlu0 %v2523, 1
        %v3079 = vpop.permute.xlu0 %3078
        %3080 = vrot.lane.b32.xlu0 %v2529, 1
        %v3081 = vpop.permute.xlu0 %3080
        %3082 = vrot.lane.b32.xlu0 %v2535, 1
        %v3083 = vpop.permute.xlu0 %3082
        %3084 = vrot.lane.b32.xlu0 %v2541, 1
        %v3085 = vpop.permute.xlu0 %3084
        %3086 = vrot.lane.b32.xlu0 %v2547, 1
        %v3087 = vpop.permute.xlu0 %3086
        %3088 = vrot.lane.b32.xlu0 %v2553, 1
        %v3089 = vpop.permute.xlu0 %3088
        %3090 = vrot.lane.b32.xlu0 %v2559, 1
        %v3091 = vpop.permute.xlu0 %3090
        %3092 = vrot.lane.b32.xlu0 %v2565, 1
        %v3093 = vpop.permute.xlu0 %3092
        %3094 = vrot.lane.b32.xlu0 %v2571, 1
        %v3095 = vpop.permute.xlu0 %3094
        %3096 = vrot.lane.b32.xlu0 %v2577, 1
        %v3097 = vpop.permute.xlu0 %3096
        %3098 = vrot.lane.b32.xlu0 %v2583, 1
        %v3099 = vpop.permute.xlu0 %3098
        %3100 = vrot.lane.b32.xlu0 %v2589, 1
        %v3101 = vpop.permute.xlu0 %3100
        %3102 = vrot.lane.b32.xlu0 %v2595, 1
        %v3103 = vpop.permute.xlu0 %3102
        %3104 = vrot.lane.b32.xlu0 %v2601, 1
        %v3105 = vpop.permute.xlu0 %3104
        %3106 = vrot.lane.b32.xlu0 %v2607, 1
        %v3107 = vpop.permute.xlu0 %3106
        %3108 = vrot.lane.b32.xlu0 %v2613, 1
        %v3109 = vpop.permute.xlu0 %3108
        %3110 = vrot.lane.b32.xlu0 %v2619, 1
        %v3111 = vpop.permute.xlu0 %3110
        %3112 = vrot.lane.b32.xlu0 %v2625, 1
        %v3113 = vpop.permute.xlu0 %3112
        %3114 = vrot.lane.b32.xlu0 %v2631, 1
        %v3115 = vpop.permute.xlu0 %3114
        %3116 = vrot.lane.b32.xlu0 %v2637, 1
        %v3117 = vpop.permute.xlu0 %3116
        %3118 = vrot.lane.b32.xlu0 %v2643, 1
        %v3119 = vpop.permute.xlu0 %3118
        %3120 = vrot.lane.b32.xlu0 %v2649, 1
        %v3121 = vpop.permute.xlu0 %3120
        %3122 = vrot.lane.b32.xlu0 %v2655, 1
        %v3123 = vpop.permute.xlu0 %3122
        %3124 = vrot.lane.b32.xlu0 %v2661, 1
        %v3125 = vpop.permute.xlu0 %3124
        %3126 = vrot.lane.b32.xlu0 %v2667, 1
        %v3127 = vpop.permute.xlu0 %3126
        %3128 = vrot.lane.b32.xlu0 %v2673, 1
        %v3129 = vpop.permute.xlu0 %3128
        %3130 = vrot.lane.b32.xlu0 %v2489, 1
        %v3131 = vpop.permute.xlu0 %3130
        %3132 = vrot.lane.b32.xlu0 %v2495, 1
        %v3133 = vpop.permute.xlu0 %3132
        %3134 = vrot.lane.b32.xlu0 %v2501, 1
        %v3135 = vpop.permute.xlu0 %3134
        %3136 = vrot.lane.b32.xlu0 %v2507, 1
        %v3137 = vpop.permute.xlu0 %3136
        %3138 = vrot.lane.b32.xlu0 %v2513, 1
        %v3139 = vpop.permute.xlu0 %3138
        %3140 = vrot.lane.b32.xlu0 %v2519, 1
        %v3141 = vpop.permute.xlu0 %3140
        %3142 = vrot.lane.b32.xlu0 %v2525, 1
        %v3143 = vpop.permute.xlu0 %3142
        %3144 = vrot.lane.b32.xlu0 %v2531, 1
        %v3145 = vpop.permute.xlu0 %3144
        %3146 = vrot.lane.b32.xlu0 %v2537, 1
        %v3147 = vpop.permute.xlu0 %3146
        %3148 = vrot.lane.b32.xlu0 %v2543, 1
        %v3149 = vpop.permute.xlu0 %3148
        %3150 = vrot.lane.b32.xlu0 %v2549, 1
        %v3151 = vpop.permute.xlu0 %3150
        %3152 = vrot.lane.b32.xlu0 %v2555, 1
        %v3153 = vpop.permute.xlu0 %3152
        %3154 = vrot.lane.b32.xlu0 %v2561, 1
        %v3155 = vpop.permute.xlu0 %3154
        %3156 = vrot.lane.b32.xlu0 %v2567, 1
        %v3157 = vpop.permute.xlu0 %3156
        %3158 = vrot.lane.b32.xlu0 %v2573, 1
        %v3159 = vpop.permute.xlu0 %3158
        %3160 = vrot.lane.b32.xlu0 %v2579, 1
        %v3161 = vpop.permute.xlu0 %3160
        %3162 = vrot.lane.b32.xlu0 %v2585, 1
        %v3163 = vpop.permute.xlu0 %3162
        %3164 = vrot.lane.b32.xlu0 %v2591, 1
        %v3165 = vpop.permute.xlu0 %3164
        %3166 = vrot.lane.b32.xlu0 %v2597, 1
        %v3167 = vpop.permute.xlu0 %3166
        %3168 = vrot.lane.b32.xlu0 %v2603, 1
        %v3169 = vpop.permute.xlu0 %3168
        %3170 = vrot.lane.b32.xlu0 %v2609, 1
        %v3171 = vpop.permute.xlu0 %3170
        %3172 = vrot.lane.b32.xlu0 %v2615, 1
        %v3173 = vpop.permute.xlu0 %3172
        %3174 = vrot.lane.b32.xlu0 %v2621, 1
        %v3175 = vpop.permute.xlu0 %3174
        %3176 = vrot.lane.b32.xlu0 %v2627, 1
        %v3177 = vpop.permute.xlu0 %3176
        %3178 = vrot.lane.b32.xlu0 %v2633, 1
        %v3179 = vpop.permute.xlu0 %3178
        %3180 = vrot.lane.b32.xlu0 %v2639, 1
        %v3181 = vpop.permute.xlu0 %3180
        %3182 = vrot.lane.b32.xlu0 %v2645, 1
        %v3183 = vpop.permute.xlu0 %3182
        %3184 = vrot.lane.b32.xlu0 %v2651, 1
        %v3185 = vpop.permute.xlu0 %3184
        %3186 = vrot.lane.b32.xlu0 %v2657, 1
        %v3187 = vpop.permute.xlu0 %3186
        %3188 = vrot.lane.b32.xlu0 %v2663, 1
        %v3189 = vpop.permute.xlu0 %3188
        %3190 = vrot.lane.b32.xlu0 %v2669, 1
        %v3191 = vpop.permute.xlu0 %3190
        %3192 = vrot.lane.b32.xlu0 %v2675, 1
        %v3193 = vpop.permute.xlu0 %3192
        %vm3194 = vcmp.lt.s32.totalorder %v3062, 1
        %v3195 = vsel %vm3194, %v3067, %v3131
        %v3196 = vsel %vm3194, %v3069, %v3133
        %v3197 = vsel %vm3194, %v3071, %v3135
        %v3198 = vsel %vm3194, %v3073, %v3137
        %v3199 = vsel %vm3194, %v3075, %v3139
        %v3200 = vsel %vm3194, %v3077, %v3141
        %v3201 = vsel %vm3194, %v3079, %v3143
        %v3202 = vsel %vm3194, %v3081, %v3145
        %v3203 = vsel %vm3194, %v3083, %v3147
        %v3204 = vsel %vm3194, %v3085, %v3149
        %v3205 = vsel %vm3194, %v3087, %v3151
        %v3206 = vsel %vm3194, %v3089, %v3153
        %v3207 = vsel %vm3194, %v3091, %v3155
        %v3208 = vsel %vm3194, %v3093, %v3157
        %v3209 = vsel %vm3194, %v3095, %v3159
        %v3210 = vsel %vm3194, %v3097, %v3161
        %v3211 = vsel %vm3194, %v3099, %v3163
        %v3212 = vsel %vm3194, %v3101, %v3165
        %v3213 = vsel %vm3194, %v3103, %v3167
        %v3214 = vsel %vm3194, %v3105, %v3169
        %v3215 = vsel %vm3194, %v3107, %v3171
        %v3216 = vsel %vm3194, %v3109, %v3173
        %v3217 = vsel %vm3194, %v3111, %v3175
        %v3218 = vsel %vm3194, %v3113, %v3177
        %v3219 = vsel %vm3194, %v3115, %v3179
        %v3220 = vsel %vm3194, %v3117, %v3181
        %v3221 = vsel %vm3194, %v3119, %v3183
        %v3222 = vsel %vm3194, %v3121, %v3185
        %v3223 = vsel %vm3194, %v3123, %v3187
        %v3224 = vsel %vm3194, %v3125, %v3189
        %v3225 = vsel %vm3194, %v3127, %v3191
        %v3226 = vsel %vm3194, %v3129, %v3193
        %v3227 = vsel %vm3194, %v3131, %v3067
        %v3228 = vsel %vm3194, %v3133, %v3069
        %v3229 = vsel %vm3194, %v3135, %v3071
        %v3230 = vsel %vm3194, %v3137, %v3073
        %v3231 = vsel %vm3194, %v3139, %v3075
        %v3232 = vsel %vm3194, %v3141, %v3077
        %v3233 = vsel %vm3194, %v3143, %v3079
        %v3234 = vsel %vm3194, %v3145, %v3081
        %v3235 = vsel %vm3194, %v3147, %v3083
        %v3236 = vsel %vm3194, %v3149, %v3085
        %v3237 = vsel %vm3194, %v3151, %v3087
        %v3238 = vsel %vm3194, %v3153, %v3089
        %v3239 = vsel %vm3194, %v3155, %v3091
        %v3240 = vsel %vm3194, %v3157, %v3093
        %v3241 = vsel %vm3194, %v3159, %v3095
        %v3242 = vsel %vm3194, %v3161, %v3097
        %v3243 = vsel %vm3194, %v3163, %v3099
        %v3244 = vsel %vm3194, %v3165, %v3101
        %v3245 = vsel %vm3194, %v3167, %v3103
        %v3246 = vsel %vm3194, %v3169, %v3105
        %v3247 = vsel %vm3194, %v3171, %v3107
        %v3248 = vsel %vm3194, %v3173, %v3109
        %v3249 = vsel %vm3194, %v3175, %v3111
        %v3250 = vsel %vm3194, %v3177, %v3113
        %v3251 = vsel %vm3194, %v3179, %v3115
        %v3252 = vsel %vm3194, %v3181, %v3117
        %v3253 = vsel %vm3194, %v3183, %v3119
        %v3254 = vsel %vm3194, %v3185, %v3121
        %v3255 = vsel %vm3194, %v3187, %v3123
        %v3256 = vsel %vm3194, %v3189, %v3125
        %v3257 = vsel %vm3194, %v3191, %v3127
        %v3258 = vsel %vm3194, %v3193, %v3129
        %v3259 = vsel %vm3064, %v3227, 0.0
        %v3260 = vsel %vm3065, %v3195, 0.0
        %v3261 = vsel %vm3064, %v3228, 0.0
        %v3262 = vsel %vm3065, %v3196, 0.0
        %v3263 = vsel %vm3064, %v3229, 0.0
        %v3264 = vsel %vm3065, %v3197, 0.0
        %v3265 = vsel %vm3064, %v3230, 0.0
        %v3266 = vsel %vm3065, %v3198, 0.0
        %v3267 = vsel %vm3064, %v3231, 0.0
        %v3268 = vsel %vm3065, %v3199, 0.0
        %v3269 = vsel %vm3064, %v3232, 0.0
        %v3270 = vsel %vm3065, %v3200, 0.0
        %v3271 = vsel %vm3064, %v3233, 0.0
        %v3272 = vsel %vm3065, %v3201, 0.0
        %v3273 = vsel %vm3064, %v3234, 0.0
        %v3274 = vsel %vm3065, %v3202, 0.0
        %v3275 = vsel %vm3064, %v3235, 0.0
        %v3276 = vsel %vm3065, %v3203, 0.0
        %v3277 = vsel %vm3064, %v3236, 0.0
        %v3278 = vsel %vm3065, %v3204, 0.0
        %v3279 = vsel %vm3064, %v3237, 0.0
        %v3280 = vsel %vm3065, %v3205, 0.0
        %v3281 = vsel %vm3064, %v3238, 0.0
        %v3282 = vsel %vm3065, %v3206, 0.0
        %v3283 = vsel %vm3064, %v3239, 0.0
        %v3284 = vsel %vm3065, %v3207, 0.0
        %v3285 = vsel %vm3064, %v3240, 0.0
        %v3286 = vsel %vm3065, %v3208, 0.0
        %v3287 = vsel %vm3064, %v3241, 0.0
        %v3288 = vsel %vm3065, %v3209, 0.0
        %v3289 = vsel %vm3064, %v3242, 0.0
        %v3290 = vsel %vm3065, %v3210, 0.0
        %v3291 = vsel %vm3064, %v3243, 0.0
        %v3292 = vsel %vm3065, %v3211, 0.0
        %v3293 = vsel %vm3064, %v3244, 0.0
        %v3294 = vsel %vm3065, %v3212, 0.0
        %v3295 = vsel %vm3064, %v3245, 0.0
        %v3296 = vsel %vm3065, %v3213, 0.0
        %v3297 = vsel %vm3064, %v3246, 0.0
        %v3298 = vsel %vm3065, %v3214, 0.0
        %v3299 = vsel %vm3064, %v3247, 0.0
        %v3300 = vsel %vm3065, %v3215, 0.0
        %v3301 = vsel %vm3064, %v3248, 0.0
        %v3302 = vsel %vm3065, %v3216, 0.0
        %v3303 = vsel %vm3064, %v3249, 0.0
        %v3304 = vsel %vm3065, %v3217, 0.0
        %v3305 = vsel %vm3064, %v3250, 0.0
        %v3306 = vsel %vm3065, %v3218, 0.0
        %v3307 = vsel %vm3064, %v3251, 0.0
        %v3308 = vsel %vm3065, %v3219, 0.0
        %v3309 = vsel %vm3064, %v3252, 0.0
        %v3310 = vsel %vm3065, %v3220, 0.0
        %v3311 = vsel %vm3064, %v3253, 0.0
        %v3312 = vsel %vm3065, %v3221, 0.0
        %v3313 = vsel %vm3064, %v3254, 0.0
        %v3314 = vsel %vm3065, %v3222, 0.0
        %v3315 = vsel %vm3064, %v3255, 0.0
        %v3316 = vsel %vm3065, %v3223, 0.0
        %v3317 = vsel %vm3064, %v3256, 0.0
        %v3318 = vsel %vm3065, %v3224, 0.0
        %v3319 = vsel %vm3064, %v3257, 0.0
        %v3320 = vsel %vm3065, %v3225, 0.0
        %v3321 = vsel %vm3064, %v3258, 0.0
        %v3322 = vsel %vm3065, %v3226, 0.0
        %vm3323 = vcmp.lt.s32.totalorder %v3062, 255
        %vm3324 = vcmp.lt.s32.totalorder %v3063, 255
        %3325 = vrot.lane.b32.xlu0 %v2871, 127
        %v3326 = vpop.permute.xlu0 %3325
        %3327 = vrot.lane.b32.xlu0 %v2877, 127
        %v3328 = vpop.permute.xlu0 %3327
        %3329 = vrot.lane.b32.xlu0 %v2883, 127
        %v3330 = vpop.permute.xlu0 %3329
        %3331 = vrot.lane.b32.xlu0 %v2889, 127
        %v3332 = vpop.permute.xlu0 %3331
        %3333 = vrot.lane.b32.xlu0 %v2895, 127
        %v3334 = vpop.permute.xlu0 %3333
        %3335 = vrot.lane.b32.xlu0 %v2901, 127
        %v3336 = vpop.permute.xlu0 %3335
        %3337 = vrot.lane.b32.xlu0 %v2907, 127
        %v3338 = vpop.permute.xlu0 %3337
        %3339 = vrot.lane.b32.xlu0 %v2913, 127
        %v3340 = vpop.permute.xlu0 %3339
        %3341 = vrot.lane.b32.xlu0 %v2919, 127
        %v3342 = vpop.permute.xlu0 %3341
        %3343 = vrot.lane.b32.xlu0 %v2925, 127
        %v3344 = vpop.permute.xlu0 %3343
        %3345 = vrot.lane.b32.xlu0 %v2931, 127
        %v3346 = vpop.permute.xlu0 %3345
        %3347 = vrot.lane.b32.xlu0 %v2937, 127
        %v3348 = vpop.permute.xlu0 %3347
        %3349 = vrot.lane.b32.xlu0 %v2943, 127
        %v3350 = vpop.permute.xlu0 %3349
        %3351 = vrot.lane.b32.xlu0 %v2949, 127
        %v3352 = vpop.permute.xlu0 %3351
        %3353 = vrot.lane.b32.xlu0 %v2955, 127
        %v3354 = vpop.permute.xlu0 %3353
        %3355 = vrot.lane.b32.xlu0 %v2961, 127
        %v3356 = vpop.permute.xlu0 %3355
        %3357 = vrot.lane.b32.xlu0 %v2967, 127
        %v3358 = vpop.permute.xlu0 %3357
        %3359 = vrot.lane.b32.xlu0 %v2973, 127
        %v3360 = vpop.permute.xlu0 %3359
        %3361 = vrot.lane.b32.xlu0 %v2979, 127
        %v3362 = vpop.permute.xlu0 %3361
        %3363 = vrot.lane.b32.xlu0 %v2985, 127
        %v3364 = vpop.permute.xlu0 %3363
        %3365 = vrot.lane.b32.xlu0 %v2991, 127
        %v3366 = vpop.permute.xlu0 %3365
        %3367 = vrot.lane.b32.xlu0 %v2997, 127
        %v3368 = vpop.permute.xlu0 %3367
        %3369 = vrot.lane.b32.xlu0 %v3003, 127
        %v3370 = vpop.permute.xlu0 %3369
        %3371 = vrot.lane.b32.xlu0 %v3009, 127
        %v3372 = vpop.permute.xlu0 %3371
        %3373 = vrot.lane.b32.xlu0 %v3015, 127
        %v3374 = vpop.permute.xlu0 %3373
        %3375 = vrot.lane.b32.xlu0 %v3021, 127
        %v3376 = vpop.permute.xlu0 %3375
        %3377 = vrot.lane.b32.xlu0 %v3027, 127
        %v3378 = vpop.permute.xlu0 %3377
        %3379 = vrot.lane.b32.xlu0 %v3033, 127
        %v3380 = vpop.permute.xlu0 %3379
        %3381 = vrot.lane.b32.xlu0 %v3039, 127
        %v3382 = vpop.permute.xlu0 %3381
        %3383 = vrot.lane.b32.xlu0 %v3045, 127
        %v3384 = vpop.permute.xlu0 %3383
        %3385 = vrot.lane.b32.xlu0 %v3051, 127
        %v3386 = vpop.permute.xlu0 %3385
        %3387 = vrot.lane.b32.xlu0 %v3057, 127
        %v3388 = vpop.permute.xlu0 %3387
        %3389 = vrot.lane.b32.xlu0 %v2873, 127
        %v3390 = vpop.permute.xlu0 %3389
        %3391 = vrot.lane.b32.xlu0 %v2879, 127
        %v3392 = vpop.permute.xlu0 %3391
        %3393 = vrot.lane.b32.xlu0 %v2885, 127
        %v3394 = vpop.permute.xlu0 %3393
        %3395 = vrot.lane.b32.xlu0 %v2891, 127
        %v3396 = vpop.permute.xlu0 %3395
        %3397 = vrot.lane.b32.xlu0 %v2897, 127
        %v3398 = vpop.permute.xlu0 %3397
        %3399 = vrot.lane.b32.xlu0 %v2903, 127
        %v3400 = vpop.permute.xlu0 %3399
        %3401 = vrot.lane.b32.xlu0 %v2909, 127
        %v3402 = vpop.permute.xlu0 %3401
        %3403 = vrot.lane.b32.xlu0 %v2915, 127
        %v3404 = vpop.permute.xlu0 %3403
        %3405 = vrot.lane.b32.xlu0 %v2921, 127
        %v3406 = vpop.permute.xlu0 %3405
        %3407 = vrot.lane.b32.xlu0 %v2927, 127
        %v3408 = vpop.permute.xlu0 %3407
        %3409 = vrot.lane.b32.xlu0 %v2933, 127
        %v3410 = vpop.permute.xlu0 %3409
        %3411 = vrot.lane.b32.xlu0 %v2939, 127
        %v3412 = vpop.permute.xlu0 %3411
        %3413 = vrot.lane.b32.xlu0 %v2945, 127
        %v3414 = vpop.permute.xlu0 %3413
        %3415 = vrot.lane.b32.xlu0 %v2951, 127
        %v3416 = vpop.permute.xlu0 %3415
        %3417 = vrot.lane.b32.xlu0 %v2957, 127
        %v3418 = vpop.permute.xlu0 %3417
        %3419 = vrot.lane.b32.xlu0 %v2963, 127
        %v3420 = vpop.permute.xlu0 %3419
        %3421 = vrot.lane.b32.xlu0 %v2969, 127
        %v3422 = vpop.permute.xlu0 %3421
        %3423 = vrot.lane.b32.xlu0 %v2975, 127
        %v3424 = vpop.permute.xlu0 %3423
        %3425 = vrot.lane.b32.xlu0 %v2981, 127
        %v3426 = vpop.permute.xlu0 %3425
        %3427 = vrot.lane.b32.xlu0 %v2987, 127
        %v3428 = vpop.permute.xlu0 %3427
        %3429 = vrot.lane.b32.xlu0 %v2993, 127
        %v3430 = vpop.permute.xlu0 %3429
        %3431 = vrot.lane.b32.xlu0 %v2999, 127
        %v3432 = vpop.permute.xlu0 %3431
        %3433 = vrot.lane.b32.xlu0 %v3005, 127
        %v3434 = vpop.permute.xlu0 %3433
        %3435 = vrot.lane.b32.xlu0 %v3011, 127
        %v3436 = vpop.permute.xlu0 %3435
        %3437 = vrot.lane.b32.xlu0 %v3017, 127
        %v3438 = vpop.permute.xlu0 %3437
        %3439 = vrot.lane.b32.xlu0 %v3023, 127
        %v3440 = vpop.permute.xlu0 %3439
        %3441 = vrot.lane.b32.xlu0 %v3029, 127
        %v3442 = vpop.permute.xlu0 %3441
        %3443 = vrot.lane.b32.xlu0 %v3035, 127
        %v3444 = vpop.permute.xlu0 %3443
        %3445 = vrot.lane.b32.xlu0 %v3041, 127
        %v3446 = vpop.permute.xlu0 %3445
        %3447 = vrot.lane.b32.xlu0 %v3047, 127
        %v3448 = vpop.permute.xlu0 %3447
        %3449 = vrot.lane.b32.xlu0 %v3053, 127
        %v3450 = vpop.permute.xlu0 %3449
        %3451 = vrot.lane.b32.xlu0 %v3059, 127
        %v3452 = vpop.permute.xlu0 %3451
        %vm3453 = vcmp.lt.s32.totalorder %v3062, 127
        %v3454 = vsel %vm3453, %v3326, %v3390
        %v3455 = vsel %vm3453, %v3328, %v3392
        %v3456 = vsel %vm3453, %v3330, %v3394
        %v3457 = vsel %vm3453, %v3332, %v3396
        %v3458 = vsel %vm3453, %v3334, %v3398
        %v3459 = vsel %vm3453, %v3336, %v3400
        %v3460 = vsel %vm3453, %v3338, %v3402
        %v3461 = vsel %vm3453, %v3340, %v3404
        %v3462 = vsel %vm3453, %v3342, %v3406
        %v3463 = vsel %vm3453, %v3344, %v3408
        %v3464 = vsel %vm3453, %v3346, %v3410
        %v3465 = vsel %vm3453, %v3348, %v3412
        %v3466 = vsel %vm3453, %v3350, %v3414
        %v3467 = vsel %vm3453, %v3352, %v3416
        %v3468 = vsel %vm3453, %v3354, %v3418
        %v3469 = vsel %vm3453, %v3356, %v3420
        %v3470 = vsel %vm3453, %v3358, %v3422
        %v3471 = vsel %vm3453, %v3360, %v3424
        %v3472 = vsel %vm3453, %v3362, %v3426
        %v3473 = vsel %vm3453, %v3364, %v3428
        %v3474 = vsel %vm3453, %v3366, %v3430
        %v3475 = vsel %vm3453, %v3368, %v3432
        %v3476 = vsel %vm3453, %v3370, %v3434
        %v3477 = vsel %vm3453, %v3372, %v3436
        %v3478 = vsel %vm3453, %v3374, %v3438
        %v3479 = vsel %vm3453, %v3376, %v3440
        %v3480 = vsel %vm3453, %v3378, %v3442
        %v3481 = vsel %vm3453, %v3380, %v3444
        %v3482 = vsel %vm3453, %v3382, %v3446
        %v3483 = vsel %vm3453, %v3384, %v3448
        %v3484 = vsel %vm3453, %v3386, %v3450
        %v3485 = vsel %vm3453, %v3388, %v3452
        %v3486 = vsel %vm3453, %v3390, %v3326
        %v3487 = vsel %vm3453, %v3392, %v3328
        %v3488 = vsel %vm3453, %v3394, %v3330
        %v3489 = vsel %vm3453, %v3396, %v3332
        %v3490 = vsel %vm3453, %v3398, %v3334
        %v3491 = vsel %vm3453, %v3400, %v3336
        %v3492 = vsel %vm3453, %v3402, %v3338
        %v3493 = vsel %vm3453, %v3404, %v3340
        %v3494 = vsel %vm3453, %v3406, %v3342
        %v3495 = vsel %vm3453, %v3408, %v3344
        %v3496 = vsel %vm3453, %v3410, %v3346
        %v3497 = vsel %vm3453, %v3412, %v3348
        %v3498 = vsel %vm3453, %v3414, %v3350
        %v3499 = vsel %vm3453, %v3416, %v3352
        %v3500 = vsel %vm3453, %v3418, %v3354
        %v3501 = vsel %vm3453, %v3420, %v3356
        %v3502 = vsel %vm3453, %v3422, %v3358
        %v3503 = vsel %vm3453, %v3424, %v3360
        %v3504 = vsel %vm3453, %v3426, %v3362
        %v3505 = vsel %vm3453, %v3428, %v3364
        %v3506 = vsel %vm3453, %v3430, %v3366
        %v3507 = vsel %vm3453, %v3432, %v3368
        %v3508 = vsel %vm3453, %v3434, %v3370
        %v3509 = vsel %vm3453, %v3436, %v3372
        %v3510 = vsel %vm3453, %v3438, %v3374
        %v3511 = vsel %vm3453, %v3440, %v3376
        %v3512 = vsel %vm3453, %v3442, %v3378
        %v3513 = vsel %vm3453, %v3444, %v3380
        %v3514 = vsel %vm3453, %v3446, %v3382
        %v3515 = vsel %vm3453, %v3448, %v3384
        %v3516 = vsel %vm3453, %v3450, %v3386
        %v3517 = vsel %vm3453, %v3452, %v3388
        %v3518 = vsel %vm3323, %v3454, 0.0
        %v3519 = vsel %vm3324, %v3486, 0.0
        %v3520 = vsel %vm3323, %v3455, 0.0
        %v3521 = vsel %vm3324, %v3487, 0.0
        %v3522 = vsel %vm3323, %v3456, 0.0
        %v3523 = vsel %vm3324, %v3488, 0.0
        %v3524 = vsel %vm3323, %v3457, 0.0
        %v3525 = vsel %vm3324, %v3489, 0.0
        %v3526 = vsel %vm3323, %v3458, 0.0
        %v3527 = vsel %vm3324, %v3490, 0.0
        %v3528 = vsel %vm3323, %v3459, 0.0
        %v3529 = vsel %vm3324, %v3491, 0.0
        %v3530 = vsel %vm3323, %v3460, 0.0
        %v3531 = vsel %vm3324, %v3492, 0.0
        %v3532 = vsel %vm3323, %v3461, 0.0
        %v3533 = vsel %vm3324, %v3493, 0.0
        %v3534 = vsel %vm3323, %v3462, 0.0
        %v3535 = vsel %vm3324, %v3494, 0.0
        %v3536 = vsel %vm3323, %v3463, 0.0
        %v3537 = vsel %vm3324, %v3495, 0.0
        %v3538 = vsel %vm3323, %v3464, 0.0
        %v3539 = vsel %vm3324, %v3496, 0.0
        %v3540 = vsel %vm3323, %v3465, 0.0
        %v3541 = vsel %vm3324, %v3497, 0.0
        %v3542 = vsel %vm3323, %v3466, 0.0
        %v3543 = vsel %vm3324, %v3498, 0.0
        %v3544 = vsel %vm3323, %v3467, 0.0
        %v3545 = vsel %vm3324, %v3499, 0.0
        %v3546 = vsel %vm3323, %v3468, 0.0
        %v3547 = vsel %vm3324, %v3500, 0.0
        %v3548 = vsel %vm3323, %v3469, 0.0
        %v3549 = vsel %vm3324, %v3501, 0.0
        %v3550 = vsel %vm3323, %v3470, 0.0
        %v3551 = vsel %vm3324, %v3502, 0.0
        %v3552 = vsel %vm3323, %v3471, 0.0
        %v3553 = vsel %vm3324, %v3503, 0.0
        %v3554 = vsel %vm3323, %v3472, 0.0
        %v3555 = vsel %vm3324, %v3504, 0.0
        %v3556 = vsel %vm3323, %v3473, 0.0
        %v3557 = vsel %vm3324, %v3505, 0.0
        %v3558 = vsel %vm3323, %v3474, 0.0
        %v3559 = vsel %vm3324, %v3506, 0.0
        %v3560 = vsel %vm3323, %v3475, 0.0
        %v3561 = vsel %vm3324, %v3507, 0.0
        %v3562 = vsel %vm3323, %v3476, 0.0
        %v3563 = vsel %vm3324, %v3508, 0.0
        %v3564 = vsel %vm3323, %v3477, 0.0
        %v3565 = vsel %vm3324, %v3509, 0.0
        %v3566 = vsel %vm3323, %v3478, 0.0
        %v3567 = vsel %vm3324, %v3510, 0.0
        %v3568 = vsel %vm3323, %v3479, 0.0
        %v3569 = vsel %vm3324, %v3511, 0.0
        %v3570 = vsel %vm3323, %v3480, 0.0
        %v3571 = vsel %vm3324, %v3512, 0.0
        %v3572 = vsel %vm3323, %v3481, 0.0
        %v3573 = vsel %vm3324, %v3513, 0.0
        %v3574 = vsel %vm3323, %v3482, 0.0
        %v3575 = vsel %vm3324, %v3514, 0.0
        %v3576 = vsel %vm3323, %v3483, 0.0
        %v3577 = vsel %vm3324, %v3515, 0.0
        %v3578 = vsel %vm3323, %v3484, 0.0
        %v3579 = vsel %vm3324, %v3516, 0.0
        %v3580 = vsel %vm3323, %v3485, 0.0
        %v3581 = vsel %vm3324, %v3517, 0.0
        %v3582 = vadd.f32 %v3259, %v2679
        %v3583 = vadd.f32 %v3260, %v2681
        %v3584 = vadd.f32 %v3261, %v2685
        %v3585 = vadd.f32 %v3262, %v2687
        %v3586 = vadd.f32 %v3263, %v2691
        %v3587 = vadd.f32 %v3264, %v2693
        %v3588 = vadd.f32 %v3265, %v2697
        %v3589 = vadd.f32 %v3266, %v2699
        %v3590 = vadd.f32 %v3267, %v2703
        %v3591 = vadd.f32 %v3268, %v2705
        %v3592 = vadd.f32 %v3269, %v2709
        %v3593 = vadd.f32 %v3270, %v2711
        %v3594 = vadd.f32 %v3271, %v2715
        %v3595 = vadd.f32 %v3272, %v2717
        %v3596 = vadd.f32 %v3273, %v2721
        %v3597 = vadd.f32 %v3274, %v2723
        %v3598 = vadd.f32 %v3275, %v2727
        %v3599 = vadd.f32 %v3276, %v2729
        %v3600 = vadd.f32 %v3277, %v2733
        %v3601 = vadd.f32 %v3278, %v2735
        %v3602 = vadd.f32 %v3279, %v2739
        %v3603 = vadd.f32 %v3280, %v2741
        %v3604 = vadd.f32 %v3281, %v2745
        %v3605 = vadd.f32 %v3282, %v2747
        %v3606 = vadd.f32 %v3283, %v2751
        %v3607 = vadd.f32 %v3284, %v2753
        %v3608 = vadd.f32 %v3285, %v2757
        %v3609 = vadd.f32 %v3286, %v2759
        %v3610 = vadd.f32 %v3287, %v2763
        %v3611 = vadd.f32 %v3288, %v2765
        %v3612 = vadd.f32 %v3289, %v2769
        %v3613 = vadd.f32 %v3290, %v2771
        %v3614 = vadd.f32 %v3291, %v2775
        %v3615 = vadd.f32 %v3292, %v2777
        %v3616 = vadd.f32 %v3293, %v2781
        %v3617 = vadd.f32 %v3294, %v2783
        %v3618 = vadd.f32 %v3295, %v2787
        %v3619 = vadd.f32 %v3296, %v2789
        %v3620 = vadd.f32 %v3297, %v2793
        %v3621 = vadd.f32 %v3298, %v2795
        %v3622 = vadd.f32 %v3299, %v2799
        %v3623 = vadd.f32 %v3300, %v2801
        %v3624 = vadd.f32 %v3301, %v2805
        %v3625 = vadd.f32 %v3302, %v2807
        %v3626 = vadd.f32 %v3303, %v2811
        %v3627 = vadd.f32 %v3304, %v2813
        %v3628 = vadd.f32 %v3305, %v2817
        %v3629 = vadd.f32 %v3306, %v2819
        %v3630 = vadd.f32 %v3307, %v2823
        %v3631 = vadd.f32 %v3308, %v2825
        %v3632 = vadd.f32 %v3309, %v2829
        %v3633 = vadd.f32 %v3310, %v2831
        %v3634 = vadd.f32 %v3311, %v2835
        %v3635 = vadd.f32 %v3312, %v2837
        %v3636 = vadd.f32 %v3313, %v2841
        %v3637 = vadd.f32 %v3314, %v2843
        %v3638 = vadd.f32 %v3315, %v2847
        %v3639 = vadd.f32 %v3316, %v2849
        %v3640 = vadd.f32 %v3317, %v2853
        %v3641 = vadd.f32 %v3318, %v2855
        %v3642 = vadd.f32 %v3319, %v2859
        %v3643 = vadd.f32 %v3320, %v2861
        %v3644 = vadd.f32 %v3321, %v2865
        %v3645 = vadd.f32 %v3322, %v2867
        %v3646 = vadd.f32 %v3582, %v3518
        %v3647 = vadd.f32 %v3583, %v3519
        %v3648 = vadd.f32 %v3584, %v3520
        %v3649 = vadd.f32 %v3585, %v3521
        %v3650 = vadd.f32 %v3586, %v3522
        %v3651 = vadd.f32 %v3587, %v3523
        %v3652 = vadd.f32 %v3588, %v3524
        %v3653 = vadd.f32 %v3589, %v3525
        %v3654 = vadd.f32 %v3590, %v3526
        %v3655 = vadd.f32 %v3591, %v3527
        %v3656 = vadd.f32 %v3592, %v3528
        %v3657 = vadd.f32 %v3593, %v3529
        %v3658 = vadd.f32 %v3594, %v3530
        %v3659 = vadd.f32 %v3595, %v3531
        %v3660 = vadd.f32 %v3596, %v3532
        %v3661 = vadd.f32 %v3597, %v3533
        %v3662 = vadd.f32 %v3598, %v3534
        %v3663 = vadd.f32 %v3599, %v3535
        %v3664 = vadd.f32 %v3600, %v3536
        %v3665 = vadd.f32 %v3601, %v3537
        %v3666 = vadd.f32 %v3602, %v3538
        %v3667 = vadd.f32 %v3603, %v3539
        %v3668 = vadd.f32 %v3604, %v3540
        %v3669 = vadd.f32 %v3605, %v3541
        %v3670 = vadd.f32 %v3606, %v3542
        %v3671 = vadd.f32 %v3607, %v3543
        %v3672 = vadd.f32 %v3608, %v3544
        %v3673 = vadd.f32 %v3609, %v3545
        %v3674 = vadd.f32 %v3610, %v3546
        %v3675 = vadd.f32 %v3611, %v3547
        %v3676 = vadd.f32 %v3612, %v3548
        %v3677 = vadd.f32 %v3613, %v3549
        %v3678 = vadd.f32 %v3614, %v3550
        %v3679 = vadd.f32 %v3615, %v3551
        %v3680 = vadd.f32 %v3616, %v3552
        %v3681 = vadd.f32 %v3617, %v3553
        %v3682 = vadd.f32 %v3618, %v3554
        %v3683 = vadd.f32 %v3619, %v3555
        %v3684 = vadd.f32 %v3620, %v3556
        %v3685 = vadd.f32 %v3621, %v3557
        %v3686 = vadd.f32 %v3622, %v3558
        %v3687 = vadd.f32 %v3623, %v3559
        %v3688 = vadd.f32 %v3624, %v3560
        %v3689 = vadd.f32 %v3625, %v3561
        %v3690 = vadd.f32 %v3626, %v3562
        %v3691 = vadd.f32 %v3627, %v3563
        %v3692 = vadd.f32 %v3628, %v3564
        %v3693 = vadd.f32 %v3629, %v3565
        %v3694 = vadd.f32 %v3630, %v3566
        %v3695 = vadd.f32 %v3631, %v3567
        %v3696 = vadd.f32 %v3632, %v3568
        %v3697 = vadd.f32 %v3633, %v3569
        %v3698 = vadd.f32 %v3634, %v3570
        %v3699 = vadd.f32 %v3635, %v3571
        %v3700 = vadd.f32 %v3636, %v3572
        %v3701 = vadd.f32 %v3637, %v3573
        %v3702 = vadd.f32 %v3638, %v3574
        %v3703 = vadd.f32 %v3639, %v3575
        %v3704 = vadd.f32 %v3640, %v3576
        %v3705 = vadd.f32 %v3641, %v3577
        %v3706 = vadd.f32 %v3642, %v3578
        %v3707 = vadd.f32 %v3643, %v3579
        %v3708 = vadd.f32 %v3644, %v3580
        %v3709 = vadd.f32 %v3645, %v3581
        %v3710 = vld [vmem:[%s5] sm:$0xff]
        %v3711 = vld [vmem:[%s5 + $0x8] sm:$0xff]
        %v3712 = vld [vmem:[%s5 + $0x10] sm:$0xff]
        %v3713 = vld [vmem:[%s5 + $0x18] sm:$0xff]
        %v3714 = vld [vmem:[%s5 + $0x20] sm:$0xff]
        %v3715 = vld [vmem:[%s5 + $0x28] sm:$0xff]
        %v3716 = vld [vmem:[%s5 + $0x30] sm:$0xff]
        %v3717 = vld [vmem:[%s5 + $0x38] sm:$0xff]
        %v3718 = vld [vmem:[%s5 + $0x40] sm:$0xff]
        %v3719 = vld [vmem:[%s5 + $0x48] sm:$0xff]
        %v3720 = vld [vmem:[%s5 + $0x50] sm:$0xff]
        %v3721 = vld [vmem:[%s5 + $0x58] sm:$0xff]
        %v3722 = vld [vmem:[%s5 + $0x60] sm:$0xff]
        %v3723 = vld [vmem:[%s5 + $0x68] sm:$0xff]
        %v3724 = vld [vmem:[%s5 + $0x70] sm:$0xff]
        %v3725 = vld [vmem:[%s5 + $0x78] sm:$0xff]
        %v3726 = vld [vmem:[%s5 + $0x80] sm:$0xff]
        %v3727 = vld [vmem:[%s5 + $0x88] sm:$0xff]
        %v3728 = vld [vmem:[%s5 + $0x90] sm:$0xff]
        %v3729 = vld [vmem:[%s5 + $0x98] sm:$0xff]
        %v3730 = vld [vmem:[%s5 + $0xa0] sm:$0xff]
        %v3731 = vld [vmem:[%s5 + $0xa8] sm:$0xff]
        %v3732 = vld [vmem:[%s5 + $0xb0] sm:$0xff]
        %v3733 = vld [vmem:[%s5 + $0xb8] sm:$0xff]
        %v3734 = vld [vmem:[%s5 + $0xc0] sm:$0xff]
        %v3735 = vld [vmem:[%s5 + $0xc8] sm:$0xff]
        %v3736 = vld [vmem:[%s5 + $0xd0] sm:$0xff]
        %v3737 = vld [vmem:[%s5 + $0xd8] sm:$0xff]
        %v3738 = vld [vmem:[%s5 + $0xe0] sm:$0xff]
        %v3739 = vld [vmem:[%s5 + $0xe8] sm:$0xff]
        %v3740 = vld [vmem:[%s5 + $0xf0] sm:$0xff]
        %v3741 = vld [vmem:[%s5 + $0xf8] sm:$0xff]
        %3743 = vset.pattern.permute.xlu0 0
        %3744 = vperm.xlu0 %3743, %v3710
        %v3745 = vpop.permute.xlu0 %3744
        %3748 = vset.pattern.permute.xlu0 0
        %3749 = vperm.xlu0 %3748, %v3711
        %v3750 = vpop.permute.xlu0 %3749
        %3753 = vset.pattern.permute.xlu0 0
        %3754 = vperm.xlu0 %3753, %v3712
        %v3755 = vpop.permute.xlu0 %3754
        %3758 = vset.pattern.permute.xlu0 0
        %3759 = vperm.xlu0 %3758, %v3713
        %v3760 = vpop.permute.xlu0 %3759
        %3763 = vset.pattern.permute.xlu0 0
        %3764 = vperm.xlu0 %3763, %v3714
        %v3765 = vpop.permute.xlu0 %3764
        %3768 = vset.pattern.permute.xlu0 0
        %3769 = vperm.xlu0 %3768, %v3715
        %v3770 = vpop.permute.xlu0 %3769
        %3773 = vset.pattern.permute.xlu0 0
        %3774 = vperm.xlu0 %3773, %v3716
        %v3775 = vpop.permute.xlu0 %3774
        %3778 = vset.pattern.permute.xlu0 0
        %3779 = vperm.xlu0 %3778, %v3717
        %v3780 = vpop.permute.xlu0 %3779
        %3783 = vset.pattern.permute.xlu0 0
        %3784 = vperm.xlu0 %3783, %v3718
        %v3785 = vpop.permute.xlu0 %3784
        %3788 = vset.pattern.permute.xlu0 0
        %3789 = vperm.xlu0 %3788, %v3719
        %v3790 = vpop.permute.xlu0 %3789
        %3793 = vset.pattern.permute.xlu0 0
        %3794 = vperm.xlu0 %3793, %v3720
        %v3795 = vpop.permute.xlu0 %3794
        %3798 = vset.pattern.permute.xlu0 0
        %3799 = vperm.xlu0 %3798, %v3721
        %v3800 = vpop.permute.xlu0 %3799
        %3803 = vset.pattern.permute.xlu0 0
        %3804 = vperm.xlu0 %3803, %v3722
        %v3805 = vpop.permute.xlu0 %3804
        %3808 = vset.pattern.permute.xlu0 0
        %3809 = vperm.xlu0 %3808, %v3723
        %v3810 = vpop.permute.xlu0 %3809
        %3813 = vset.pattern.permute.xlu0 0
        %3814 = vperm.xlu0 %3813, %v3724
        %v3815 = vpop.permute.xlu0 %3814
        %3818 = vset.pattern.permute.xlu0 0
        %3819 = vperm.xlu0 %3818, %v3725
        %v3820 = vpop.permute.xlu0 %3819
        %3823 = vset.pattern.permute.xlu0 0
        %3824 = vperm.xlu0 %3823, %v3726
        %v3825 = vpop.permute.xlu0 %3824
        %3828 = vset.pattern.permute.xlu0 0
        %3829 = vperm.xlu0 %3828, %v3727
        %v3830 = vpop.permute.xlu0 %3829
        %3833 = vset.pattern.permute.xlu0 0
        %3834 = vperm.xlu0 %3833, %v3728
        %v3835 = vpop.permute.xlu0 %3834
        %3838 = vset.pattern.permute.xlu0 0
        %3839 = vperm.xlu0 %3838, %v3729
        %v3840 = vpop.permute.xlu0 %3839
        %3843 = vset.pattern.permute.xlu0 0
        %3844 = vperm.xlu0 %3843, %v3730
        %v3845 = vpop.permute.xlu0 %3844
        %3848 = vset.pattern.permute.xlu0 0
        %3849 = vperm.xlu0 %3848, %v3731
        %v3850 = vpop.permute.xlu0 %3849
        %3853 = vset.pattern.permute.xlu0 0
        %3854 = vperm.xlu0 %3853, %v3732
        %v3855 = vpop.permute.xlu0 %3854
        %3858 = vset.pattern.permute.xlu0 0
        %3859 = vperm.xlu0 %3858, %v3733
        %v3860 = vpop.permute.xlu0 %3859
        %3863 = vset.pattern.permute.xlu0 0
        %3864 = vperm.xlu0 %3863, %v3734
        %v3865 = vpop.permute.xlu0 %3864
        %3868 = vset.pattern.permute.xlu0 0
        %3869 = vperm.xlu0 %3868, %v3735
        %v3870 = vpop.permute.xlu0 %3869
        %3873 = vset.pattern.permute.xlu0 0
        %3874 = vperm.xlu0 %3873, %v3736
        %v3875 = vpop.permute.xlu0 %3874
        %3878 = vset.pattern.permute.xlu0 0
        %3879 = vperm.xlu0 %3878, %v3737
        %v3880 = vpop.permute.xlu0 %3879
        %3883 = vset.pattern.permute.xlu0 0
        %3884 = vperm.xlu0 %3883, %v3738
        %v3885 = vpop.permute.xlu0 %3884
        %3888 = vset.pattern.permute.xlu0 0
        %3889 = vperm.xlu0 %3888, %v3739
        %v3890 = vpop.permute.xlu0 %3889
        %3893 = vset.pattern.permute.xlu0 0
        %3894 = vperm.xlu0 %3893, %v3740
        %v3895 = vpop.permute.xlu0 %3894
        %3898 = vset.pattern.permute.xlu0 0
        %3899 = vperm.xlu0 %3898, %v3741
        %v3900 = vpop.permute.xlu0 %3899
        %v3902 = vadd.f32 %v3646, %v3745
        %v3903 = vadd.f32 %v3647, %v3745
        %v3904 = vadd.f32 %v3648, %v3750
        %v3905 = vadd.f32 %v3649, %v3750
        %v3906 = vadd.f32 %v3650, %v3755
        %v3907 = vadd.f32 %v3651, %v3755
        %v3908 = vadd.f32 %v3652, %v3760
        %v3909 = vadd.f32 %v3653, %v3760
        %v3910 = vadd.f32 %v3654, %v3765
        %v3911 = vadd.f32 %v3655, %v3765
        %v3912 = vadd.f32 %v3656, %v3770
        %v3913 = vadd.f32 %v3657, %v3770
        %v3914 = vadd.f32 %v3658, %v3775
        %v3915 = vadd.f32 %v3659, %v3775
        %v3916 = vadd.f32 %v3660, %v3780
        %v3917 = vadd.f32 %v3661, %v3780
        %v3918 = vadd.f32 %v3662, %v3785
        %v3919 = vadd.f32 %v3663, %v3785
        %v3920 = vadd.f32 %v3664, %v3790
        %v3921 = vadd.f32 %v3665, %v3790
        %v3922 = vadd.f32 %v3666, %v3795
        %v3923 = vadd.f32 %v3667, %v3795
        %v3924 = vadd.f32 %v3668, %v3800
        %v3925 = vadd.f32 %v3669, %v3800
        %v3926 = vadd.f32 %v3670, %v3805
        %v3927 = vadd.f32 %v3671, %v3805
        %v3928 = vadd.f32 %v3672, %v3810
        %v3929 = vadd.f32 %v3673, %v3810
        %v3930 = vadd.f32 %v3674, %v3815
        %v3931 = vadd.f32 %v3675, %v3815
        %v3932 = vadd.f32 %v3676, %v3820
        %v3933 = vadd.f32 %v3677, %v3820
        %v3934 = vadd.f32 %v3678, %v3825
        %v3935 = vadd.f32 %v3679, %v3825
        %v3936 = vadd.f32 %v3680, %v3830
        %v3937 = vadd.f32 %v3681, %v3830
        %v3938 = vadd.f32 %v3682, %v3835
        %v3939 = vadd.f32 %v3683, %v3835
        %v3940 = vadd.f32 %v3684, %v3840
        %v3941 = vadd.f32 %v3685, %v3840
        %v3942 = vadd.f32 %v3686, %v3845
        %v3943 = vadd.f32 %v3687, %v3845
        %v3944 = vadd.f32 %v3688, %v3850
        %v3945 = vadd.f32 %v3689, %v3850
        %v3946 = vadd.f32 %v3690, %v3855
        %v3947 = vadd.f32 %v3691, %v3855
        %v3948 = vadd.f32 %v3692, %v3860
        %v3949 = vadd.f32 %v3693, %v3860
        %v3950 = vadd.f32 %v3694, %v3865
        %v3951 = vadd.f32 %v3695, %v3865
        %v3952 = vadd.f32 %v3696, %v3870
        %v3953 = vadd.f32 %v3697, %v3870
        %v3954 = vadd.f32 %v3698, %v3875
        %v3955 = vadd.f32 %v3699, %v3875
        %v3956 = vadd.f32 %v3700, %v3880
        %v3957 = vadd.f32 %v3701, %v3880
        %v3958 = vadd.f32 %v3702, %v3885
        %v3959 = vadd.f32 %v3703, %v3885
        %v3960 = vadd.f32 %v3704, %v3890
        %v3961 = vadd.f32 %v3705, %v3890
        %v3962 = vadd.f32 %v3706, %v3895
        %v3963 = vadd.f32 %v3707, %v3895
        %v3964 = vadd.f32 %v3708, %v3900
        %v3965 = vadd.f32 %v3709, %v3900
        %v3966 = vxor.u32 %v3902, 2147483648
        %v3967 = vxor.u32 %v3903, 2147483648
        %v3968 = vxor.u32 %v3904, 2147483648
        %v3969 = vxor.u32 %v3905, 2147483648
        %v3970 = vxor.u32 %v3906, 2147483648
        %v3971 = vxor.u32 %v3907, 2147483648
        %v3972 = vxor.u32 %v3908, 2147483648
        %v3973 = vxor.u32 %v3909, 2147483648
        %v3974 = vxor.u32 %v3910, 2147483648
        %v3975 = vxor.u32 %v3911, 2147483648
        %v3976 = vxor.u32 %v3912, 2147483648
        %v3977 = vxor.u32 %v3913, 2147483648
        %v3978 = vxor.u32 %v3914, 2147483648
        %v3979 = vxor.u32 %v3915, 2147483648
        %v3980 = vxor.u32 %v3916, 2147483648
        %v3981 = vxor.u32 %v3917, 2147483648
        %v3982 = vxor.u32 %v3918, 2147483648
        %v3983 = vxor.u32 %v3919, 2147483648
        %v3984 = vxor.u32 %v3920, 2147483648
        %v3985 = vxor.u32 %v3921, 2147483648
        %v3986 = vxor.u32 %v3922, 2147483648
        %v3987 = vxor.u32 %v3923, 2147483648
        %v3988 = vxor.u32 %v3924, 2147483648
        %v3989 = vxor.u32 %v3925, 2147483648
        %v3990 = vxor.u32 %v3926, 2147483648
        %v3991 = vxor.u32 %v3927, 2147483648
        %v3992 = vxor.u32 %v3928, 2147483648
        %v3993 = vxor.u32 %v3929, 2147483648
        %v3994 = vxor.u32 %v3930, 2147483648
        %v3995 = vxor.u32 %v3931, 2147483648
        %v3996 = vxor.u32 %v3932, 2147483648
        %v3997 = vxor.u32 %v3933, 2147483648
        %v3998 = vxor.u32 %v3934, 2147483648
        %v3999 = vxor.u32 %v3935, 2147483648
        %v4000 = vxor.u32 %v3936, 2147483648
        %v4001 = vxor.u32 %v3937, 2147483648
        %v4002 = vxor.u32 %v3938, 2147483648
        %v4003 = vxor.u32 %v3939, 2147483648
        %v4004 = vxor.u32 %v3940, 2147483648
        %v4005 = vxor.u32 %v3941, 2147483648
        %v4006 = vxor.u32 %v3942, 2147483648
        %v4007 = vxor.u32 %v3943, 2147483648
        %v4008 = vxor.u32 %v3944, 2147483648
        %v4009 = vxor.u32 %v3945, 2147483648
        %v4010 = vxor.u32 %v3946, 2147483648
        %v4011 = vxor.u32 %v3947, 2147483648
        %v4012 = vxor.u32 %v3948, 2147483648
        %v4013 = vxor.u32 %v3949, 2147483648
        %v4014 = vxor.u32 %v3950, 2147483648
        %v4015 = vxor.u32 %v3951, 2147483648
        %v4016 = vxor.u32 %v3952, 2147483648
        %v4017 = vxor.u32 %v3953, 2147483648
        %v4018 = vxor.u32 %v3954, 2147483648
        %v4019 = vxor.u32 %v3955, 2147483648
        %v4020 = vxor.u32 %v3956, 2147483648
        %v4021 = vxor.u32 %v3957, 2147483648
        %v4022 = vxor.u32 %v3958, 2147483648
        %v4023 = vxor.u32 %v3959, 2147483648
        %v4024 = vxor.u32 %v3960, 2147483648
        %v4025 = vxor.u32 %v3961, 2147483648
        %v4026 = vxor.u32 %v3962, 2147483648
        %v4027 = vxor.u32 %v3963, 2147483648
        %v4028 = vxor.u32 %v3964, 2147483648
        %v4029 = vxor.u32 %v3965, 2147483648
        %v4030 = vmul.f32 %v3966, 1.442695
        %v4031 = vpow.pop %v4030
        %v4032 = vmul.f32 %v3967, 1.442695
        %v4033 = vpow.pop %v4032
        %v4034 = vmul.f32 %v3968, 1.442695
        %v4035 = vpow.pop %v4034
        %v4036 = vmul.f32 %v3969, 1.442695
        %v4037 = vpow.pop %v4036
        %v4038 = vmul.f32 %v3970, 1.442695
        %v4039 = vpow.pop %v4038
        %v4040 = vmul.f32 %v3971, 1.442695
        %v4041 = vpow.pop %v4040
        %v4042 = vmul.f32 %v3972, 1.442695
        %v4043 = vpow.pop %v4042
        %v4044 = vmul.f32 %v3973, 1.442695
        %v4045 = vpow.pop %v4044
        %v4046 = vmul.f32 %v3974, 1.442695
        %v4047 = vpow.pop %v4046
        %v4048 = vmul.f32 %v3975, 1.442695
        %v4049 = vpow.pop %v4048
        %v4050 = vmul.f32 %v3976, 1.442695
        %v4051 = vpow.pop %v4050
        %v4052 = vmul.f32 %v3977, 1.442695
        %v4053 = vpow.pop %v4052
        %v4054 = vmul.f32 %v3978, 1.442695
        %v4055 = vpow.pop %v4054
        %v4056 = vmul.f32 %v3979, 1.442695
        %v4057 = vpow.pop %v4056
        %v4058 = vmul.f32 %v3980, 1.442695
        %v4059 = vpow.pop %v4058
        %v4060 = vmul.f32 %v3981, 1.442695
        %v4061 = vpow.pop %v4060
        %v4062 = vmul.f32 %v3982, 1.442695
        %v4063 = vpow.pop %v4062
        %v4064 = vmul.f32 %v3983, 1.442695
        %v4065 = vpow.pop %v4064
        %v4066 = vmul.f32 %v3984, 1.442695
        %v4067 = vpow.pop %v4066
        %v4068 = vmul.f32 %v3985, 1.442695
        %v4069 = vpow.pop %v4068
        %v4070 = vmul.f32 %v3986, 1.442695
        %v4071 = vpow.pop %v4070
        %v4072 = vmul.f32 %v3987, 1.442695
        %v4073 = vpow.pop %v4072
        %v4074 = vmul.f32 %v3988, 1.442695
        %v4075 = vpow.pop %v4074
        %v4076 = vmul.f32 %v3989, 1.442695
        %v4077 = vpow.pop %v4076
        %v4078 = vmul.f32 %v3990, 1.442695
        %v4079 = vpow.pop %v4078
        %v4080 = vmul.f32 %v3991, 1.442695
        %v4081 = vpow.pop %v4080
        %v4082 = vmul.f32 %v3992, 1.442695
        %v4083 = vpow.pop %v4082
        %v4084 = vmul.f32 %v3993, 1.442695
        %v4085 = vpow.pop %v4084
        %v4086 = vmul.f32 %v3994, 1.442695
        %v4087 = vpow.pop %v4086
        %v4088 = vmul.f32 %v3995, 1.442695
        %v4089 = vpow.pop %v4088
        %v4090 = vmul.f32 %v3996, 1.442695
        %v4091 = vpow.pop %v4090
        %v4092 = vmul.f32 %v3997, 1.442695
        %v4093 = vpow.pop %v4092
        %v4094 = vmul.f32 %v3998, 1.442695
        %v4095 = vpow.pop %v4094
        %v4096 = vmul.f32 %v3999, 1.442695
        %v4097 = vpow.pop %v4096
        %v4098 = vmul.f32 %v4000, 1.442695
        %v4099 = vpow.pop %v4098
        %v4100 = vmul.f32 %v4001, 1.442695
        %v4101 = vpow.pop %v4100
        %v4102 = vmul.f32 %v4002, 1.442695
        %v4103 = vpow.pop %v4102
        %v4104 = vmul.f32 %v4003, 1.442695
        %v4105 = vpow.pop %v4104
        %v4106 = vmul.f32 %v4004, 1.442695
        %v4107 = vpow.pop %v4106
        %v4108 = vmul.f32 %v4005, 1.442695
        %v4109 = vpow.pop %v4108
        %v4110 = vmul.f32 %v4006, 1.442695
        %v4111 = vpow.pop %v4110
        %v4112 = vmul.f32 %v4007, 1.442695
        %v4113 = vpow.pop %v4112
        %v4114 = vmul.f32 %v4008, 1.442695
        %v4115 = vpow.pop %v4114
        %v4116 = vmul.f32 %v4009, 1.442695
        %v4117 = vpow.pop %v4116
        %v4118 = vmul.f32 %v4010, 1.442695
        %v4119 = vpow.pop %v4118
        %v4120 = vmul.f32 %v4011, 1.442695
        %v4121 = vpow.pop %v4120
        %v4122 = vmul.f32 %v4012, 1.442695
        %v4123 = vpow.pop %v4122
        %v4124 = vmul.f32 %v4013, 1.442695
        %v4125 = vpow.pop %v4124
        %v4126 = vmul.f32 %v4014, 1.442695
        %v4127 = vpow.pop %v4126
        %v4128 = vmul.f32 %v4015, 1.442695
        %v4129 = vpow.pop %v4128
        %v4130 = vmul.f32 %v4016, 1.442695
        %v4131 = vpow.pop %v4130
        %v4132 = vmul.f32 %v4017, 1.442695
        %v4133 = vpow.pop %v4132
        %v4134 = vmul.f32 %v4018, 1.442695
        %v4135 = vpow.pop %v4134
        %v4136 = vmul.f32 %v4019, 1.442695
        %v4137 = vpow.pop %v4136
        %v4138 = vmul.f32 %v4020, 1.442695
        %v4139 = vpow.pop %v4138
        %v4140 = vmul.f32 %v4021, 1.442695
        %v4141 = vpow.pop %v4140
        %v4142 = vmul.f32 %v4022, 1.442695
        %v4143 = vpow.pop %v4142
        %v4144 = vmul.f32 %v4023, 1.442695
        %v4145 = vpow.pop %v4144
        %v4146 = vmul.f32 %v4024, 1.442695
        %v4147 = vpow.pop %v4146
        %v4148 = vmul.f32 %v4025, 1.442695
        %v4149 = vpow.pop %v4148
        %v4150 = vmul.f32 %v4026, 1.442695
        %v4151 = vpow.pop %v4150
        %v4152 = vmul.f32 %v4027, 1.442695
        %v4153 = vpow.pop %v4152
        %v4154 = vmul.f32 %v4028, 1.442695
        %v4155 = vpow.pop %v4154
        %v4156 = vmul.f32 %v4029, 1.442695
        %v4157 = vpow.pop %v4156
        %v4158 = vadd.f32 %v4031, 1.0
        %v4159 = vadd.f32 %v4033, 1.0
        %v4160 = vadd.f32 %v4035, 1.0
        %v4161 = vadd.f32 %v4037, 1.0
        %v4162 = vadd.f32 %v4039, 1.0
        %v4163 = vadd.f32 %v4041, 1.0
        %v4164 = vadd.f32 %v4043, 1.0
        %v4165 = vadd.f32 %v4045, 1.0
        %v4166 = vadd.f32 %v4047, 1.0
        %v4167 = vadd.f32 %v4049, 1.0
        %v4168 = vadd.f32 %v4051, 1.0
        %v4169 = vadd.f32 %v4053, 1.0
        %v4170 = vadd.f32 %v4055, 1.0
        %v4171 = vadd.f32 %v4057, 1.0
        %v4172 = vadd.f32 %v4059, 1.0
        %v4173 = vadd.f32 %v4061, 1.0
        %v4174 = vadd.f32 %v4063, 1.0
        %v4175 = vadd.f32 %v4065, 1.0
        %v4176 = vadd.f32 %v4067, 1.0
        %v4177 = vadd.f32 %v4069, 1.0
        %v4178 = vadd.f32 %v4071, 1.0
        %v4179 = vadd.f32 %v4073, 1.0
        %v4180 = vadd.f32 %v4075, 1.0
        %v4181 = vadd.f32 %v4077, 1.0
        %v4182 = vadd.f32 %v4079, 1.0
        %v4183 = vadd.f32 %v4081, 1.0
        %v4184 = vadd.f32 %v4083, 1.0
        %v4185 = vadd.f32 %v4085, 1.0
        %v4186 = vadd.f32 %v4087, 1.0
        %v4187 = vadd.f32 %v4089, 1.0
        %v4188 = vadd.f32 %v4091, 1.0
        %v4189 = vadd.f32 %v4093, 1.0
        %v4190 = vadd.f32 %v4095, 1.0
        %v4191 = vadd.f32 %v4097, 1.0
        %v4192 = vadd.f32 %v4099, 1.0
        %v4193 = vadd.f32 %v4101, 1.0
        %v4194 = vadd.f32 %v4103, 1.0
        %v4195 = vadd.f32 %v4105, 1.0
        %v4196 = vadd.f32 %v4107, 1.0
        %v4197 = vadd.f32 %v4109, 1.0
        %v4198 = vadd.f32 %v4111, 1.0
        %v4199 = vadd.f32 %v4113, 1.0
        %v4200 = vadd.f32 %v4115, 1.0
        %v4201 = vadd.f32 %v4117, 1.0
        %v4202 = vadd.f32 %v4119, 1.0
        %v4203 = vadd.f32 %v4121, 1.0
        %v4204 = vadd.f32 %v4123, 1.0
        %v4205 = vadd.f32 %v4125, 1.0
        %v4206 = vadd.f32 %v4127, 1.0
        %v4207 = vadd.f32 %v4129, 1.0
        %v4208 = vadd.f32 %v4131, 1.0
        %v4209 = vadd.f32 %v4133, 1.0
        %v4210 = vadd.f32 %v4135, 1.0
        %v4211 = vadd.f32 %v4137, 1.0
        %v4212 = vadd.f32 %v4139, 1.0
        %v4213 = vadd.f32 %v4141, 1.0
        %v4214 = vadd.f32 %v4143, 1.0
        %v4215 = vadd.f32 %v4145, 1.0
        %v4216 = vadd.f32 %v4147, 1.0
        %v4217 = vadd.f32 %v4149, 1.0
        %v4218 = vadd.f32 %v4151, 1.0
        %v4219 = vadd.f32 %v4153, 1.0
        %v4220 = vadd.f32 %v4155, 1.0
        %v4221 = vadd.f32 %v4157, 1.0
        %v4222 = vrcp.pop %v4158
        %v4223 = vmul.f32 1.0, %v4222
        %v4224 = vrcp.pop %v4159
        %v4225 = vmul.f32 1.0, %v4224
        %v4226 = vrcp.pop %v4160
        %v4227 = vmul.f32 1.0, %v4226
        %v4228 = vrcp.pop %v4161
        %v4229 = vmul.f32 1.0, %v4228
        %v4230 = vrcp.pop %v4162
        %v4231 = vmul.f32 1.0, %v4230
        %v4232 = vrcp.pop %v4163
        %v4233 = vmul.f32 1.0, %v4232
        %v4234 = vrcp.pop %v4164
        %v4235 = vmul.f32 1.0, %v4234
        %v4236 = vrcp.pop %v4165
        %v4237 = vmul.f32 1.0, %v4236
        %v4238 = vrcp.pop %v4166
        %v4239 = vmul.f32 1.0, %v4238
        %v4240 = vrcp.pop %v4167
        %v4241 = vmul.f32 1.0, %v4240
        %v4242 = vrcp.pop %v4168
        %v4243 = vmul.f32 1.0, %v4242
        %v4244 = vrcp.pop %v4169
        %v4245 = vmul.f32 1.0, %v4244
        %v4246 = vrcp.pop %v4170
        %v4247 = vmul.f32 1.0, %v4246
        %v4248 = vrcp.pop %v4171
        %v4249 = vmul.f32 1.0, %v4248
        %v4250 = vrcp.pop %v4172
        %v4251 = vmul.f32 1.0, %v4250
        %v4252 = vrcp.pop %v4173
        %v4253 = vmul.f32 1.0, %v4252
        %v4254 = vrcp.pop %v4174
        %v4255 = vmul.f32 1.0, %v4254
        %v4256 = vrcp.pop %v4175
        %v4257 = vmul.f32 1.0, %v4256
        %v4258 = vrcp.pop %v4176
        %v4259 = vmul.f32 1.0, %v4258
        %v4260 = vrcp.pop %v4177
        %v4261 = vmul.f32 1.0, %v4260
        %v4262 = vrcp.pop %v4178
        %v4263 = vmul.f32 1.0, %v4262
        %v4264 = vrcp.pop %v4179
        %v4265 = vmul.f32 1.0, %v4264
        %v4266 = vrcp.pop %v4180
        %v4267 = vmul.f32 1.0, %v4266
        %v4268 = vrcp.pop %v4181
        %v4269 = vmul.f32 1.0, %v4268
        %v4270 = vrcp.pop %v4182
        %v4271 = vmul.f32 1.0, %v4270
        %v4272 = vrcp.pop %v4183
        %v4273 = vmul.f32 1.0, %v4272
        %v4274 = vrcp.pop %v4184
        %v4275 = vmul.f32 1.0, %v4274
        %v4276 = vrcp.pop %v4185
        %v4277 = vmul.f32 1.0, %v4276
        %v4278 = vrcp.pop %v4186
        %v4279 = vmul.f32 1.0, %v4278
        %v4280 = vrcp.pop %v4187
        %v4281 = vmul.f32 1.0, %v4280
        %v4282 = vrcp.pop %v4188
        %v4283 = vmul.f32 1.0, %v4282
        %v4284 = vrcp.pop %v4189
        %v4285 = vmul.f32 1.0, %v4284
        %v4286 = vrcp.pop %v4190
        %v4287 = vmul.f32 1.0, %v4286
        %v4288 = vrcp.pop %v4191
        %v4289 = vmul.f32 1.0, %v4288
        %v4290 = vrcp.pop %v4192
        %v4291 = vmul.f32 1.0, %v4290
        %v4292 = vrcp.pop %v4193
        %v4293 = vmul.f32 1.0, %v4292
        %v4294 = vrcp.pop %v4194
        %v4295 = vmul.f32 1.0, %v4294
        %v4296 = vrcp.pop %v4195
        %v4297 = vmul.f32 1.0, %v4296
        %v4298 = vrcp.pop %v4196
        %v4299 = vmul.f32 1.0, %v4298
        %v4300 = vrcp.pop %v4197
        %v4301 = vmul.f32 1.0, %v4300
        %v4302 = vrcp.pop %v4198
        %v4303 = vmul.f32 1.0, %v4302
        %v4304 = vrcp.pop %v4199
        %v4305 = vmul.f32 1.0, %v4304
        %v4306 = vrcp.pop %v4200
        %v4307 = vmul.f32 1.0, %v4306
        %v4308 = vrcp.pop %v4201
        %v4309 = vmul.f32 1.0, %v4308
        %v4310 = vrcp.pop %v4202
        %v4311 = vmul.f32 1.0, %v4310
        %v4312 = vrcp.pop %v4203
        %v4313 = vmul.f32 1.0, %v4312
        %v4314 = vrcp.pop %v4204
        %v4315 = vmul.f32 1.0, %v4314
        %v4316 = vrcp.pop %v4205
        %v4317 = vmul.f32 1.0, %v4316
        %v4318 = vrcp.pop %v4206
        %v4319 = vmul.f32 1.0, %v4318
        %v4320 = vrcp.pop %v4207
        %v4321 = vmul.f32 1.0, %v4320
        %v4322 = vrcp.pop %v4208
        %v4323 = vmul.f32 1.0, %v4322
        %v4324 = vrcp.pop %v4209
        %v4325 = vmul.f32 1.0, %v4324
        %v4326 = vrcp.pop %v4210
        %v4327 = vmul.f32 1.0, %v4326
        %v4328 = vrcp.pop %v4211
        %v4329 = vmul.f32 1.0, %v4328
        %v4330 = vrcp.pop %v4212
        %v4331 = vmul.f32 1.0, %v4330
        %v4332 = vrcp.pop %v4213
        %v4333 = vmul.f32 1.0, %v4332
        %v4334 = vrcp.pop %v4214
        %v4335 = vmul.f32 1.0, %v4334
        %v4336 = vrcp.pop %v4215
        %v4337 = vmul.f32 1.0, %v4336
        %v4338 = vrcp.pop %v4216
        %v4339 = vmul.f32 1.0, %v4338
        %v4340 = vrcp.pop %v4217
        %v4341 = vmul.f32 1.0, %v4340
        %v4342 = vrcp.pop %v4218
        %v4343 = vmul.f32 1.0, %v4342
        %v4344 = vrcp.pop %v4219
        %v4345 = vmul.f32 1.0, %v4344
        %v4346 = vrcp.pop %v4220
        %v4347 = vmul.f32 1.0, %v4346
        %v4348 = vrcp.pop %v4221
        %v4349 = vmul.f32 1.0, %v4348
        %v4350 = vmul.f32 %v3902, %v4223
        %v4351 = vmul.f32 %v3903, %v4225
        %v4352 = vmul.f32 %v3904, %v4227
        %v4353 = vmul.f32 %v3905, %v4229
        %v4354 = vmul.f32 %v3906, %v4231
        %v4355 = vmul.f32 %v3907, %v4233
        %v4356 = vmul.f32 %v3908, %v4235
        %v4357 = vmul.f32 %v3909, %v4237
        %v4358 = vmul.f32 %v3910, %v4239
        %v4359 = vmul.f32 %v3911, %v4241
        %v4360 = vmul.f32 %v3912, %v4243
        %v4361 = vmul.f32 %v3913, %v4245
        %v4362 = vmul.f32 %v3914, %v4247
        %v4363 = vmul.f32 %v3915, %v4249
        %v4364 = vmul.f32 %v3916, %v4251
        %v4365 = vmul.f32 %v3917, %v4253
        %v4366 = vmul.f32 %v3918, %v4255
        %v4367 = vmul.f32 %v3919, %v4257
        %v4368 = vmul.f32 %v3920, %v4259
        %v4369 = vmul.f32 %v3921, %v4261
        %v4370 = vmul.f32 %v3922, %v4263
        %v4371 = vmul.f32 %v3923, %v4265
        %v4372 = vmul.f32 %v3924, %v4267
        %v4373 = vmul.f32 %v3925, %v4269
        %v4374 = vmul.f32 %v3926, %v4271
        %v4375 = vmul.f32 %v3927, %v4273
        %v4376 = vmul.f32 %v3928, %v4275
        %v4377 = vmul.f32 %v3929, %v4277
        %v4378 = vmul.f32 %v3930, %v4279
        %v4379 = vmul.f32 %v3931, %v4281
        %v4380 = vmul.f32 %v3932, %v4283
        %v4381 = vmul.f32 %v3933, %v4285
        %v4382 = vmul.f32 %v3934, %v4287
        %v4383 = vmul.f32 %v3935, %v4289
        %v4384 = vmul.f32 %v3936, %v4291
        %v4385 = vmul.f32 %v3937, %v4293
        %v4386 = vmul.f32 %v3938, %v4295
        %v4387 = vmul.f32 %v3939, %v4297
        %v4388 = vmul.f32 %v3940, %v4299
        %v4389 = vmul.f32 %v3941, %v4301
        %v4390 = vmul.f32 %v3942, %v4303
        %v4391 = vmul.f32 %v3943, %v4305
        %v4392 = vmul.f32 %v3944, %v4307
        %v4393 = vmul.f32 %v3945, %v4309
        %v4394 = vmul.f32 %v3946, %v4311
        %v4395 = vmul.f32 %v3947, %v4313
        %v4396 = vmul.f32 %v3948, %v4315
        %v4397 = vmul.f32 %v3949, %v4317
        %v4398 = vmul.f32 %v3950, %v4319
        %v4399 = vmul.f32 %v3951, %v4321
        %v4400 = vmul.f32 %v3952, %v4323
        %v4401 = vmul.f32 %v3953, %v4325
        %v4402 = vmul.f32 %v3954, %v4327
        %v4403 = vmul.f32 %v3955, %v4329
        %v4404 = vmul.f32 %v3956, %v4331
        %v4405 = vmul.f32 %v3957, %v4333
        %v4406 = vmul.f32 %v3958, %v4335
        %v4407 = vmul.f32 %v3959, %v4337
        %v4408 = vmul.f32 %v3960, %v4339
        %v4409 = vmul.f32 %v3961, %v4341
        %v4410 = vmul.f32 %v3962, %v4343
        %v4411 = vmul.f32 %v3963, %v4345
        %v4412 = vmul.f32 %v3964, %v4347
        %v4413 = vmul.f32 %v3965, %v4349
        %v4414 = vld [vmem:[#allocation8] sm:$0xff]
        %v4415 = vld [vmem:[#allocation8 + $0x8] sm:$0xff]
        %v4416 = vld [vmem:[#allocation8 + $0x10] sm:$0xff]
        %v4417 = vld [vmem:[#allocation8 + $0x18] sm:$0xff]
        %v4418 = vld [vmem:[#allocation8 + $0x20] sm:$0xff]
        %v4419 = vld [vmem:[#allocation8 + $0x28] sm:$0xff]
        %v4420 = vld [vmem:[#allocation8 + $0x30] sm:$0xff]
        %v4421 = vld [vmem:[#allocation8 + $0x38] sm:$0xff]
        %v4422 = vld [vmem:[#allocation8 + $0x40] sm:$0xff]
        %v4423 = vld [vmem:[#allocation8 + $0x48] sm:$0xff]
        %v4424 = vld [vmem:[#allocation8 + $0x50] sm:$0xff]
        %v4425 = vld [vmem:[#allocation8 + $0x58] sm:$0xff]
        %v4426 = vld [vmem:[#allocation8 + $0x60] sm:$0xff]
        %v4427 = vld [vmem:[#allocation8 + $0x68] sm:$0xff]
        %v4428 = vld [vmem:[#allocation8 + $0x70] sm:$0xff]
        %v4429 = vld [vmem:[#allocation8 + $0x78] sm:$0xff]
        %v4430 = vld [vmem:[#allocation8 + $0x80] sm:$0xff]
        %v4431 = vld [vmem:[#allocation8 + $0x88] sm:$0xff]
        %v4432 = vld [vmem:[#allocation8 + $0x90] sm:$0xff]
        %v4433 = vld [vmem:[#allocation8 + $0x98] sm:$0xff]
        %v4434 = vld [vmem:[#allocation8 + $0xa0] sm:$0xff]
        %v4435 = vld [vmem:[#allocation8 + $0xa8] sm:$0xff]
        %v4436 = vld [vmem:[#allocation8 + $0xb0] sm:$0xff]
        %v4437 = vld [vmem:[#allocation8 + $0xb8] sm:$0xff]
        %v4438 = vld [vmem:[#allocation8 + $0xc0] sm:$0xff]
        %v4439 = vld [vmem:[#allocation8 + $0xc8] sm:$0xff]
        %v4440 = vld [vmem:[#allocation8 + $0xd0] sm:$0xff]
        %v4441 = vld [vmem:[#allocation8 + $0xd8] sm:$0xff]
        %v4442 = vld [vmem:[#allocation8 + $0xe0] sm:$0xff]
        %v4443 = vld [vmem:[#allocation8 + $0xe8] sm:$0xff]
        %v4444 = vld [vmem:[#allocation8 + $0xf0] sm:$0xff]
        %v4445 = vld [vmem:[#allocation8 + $0xf8] sm:$0xff]
        %v4446 = vld [vmem:[#allocation8 + $0x100] sm:$0xff]
        %v4447 = vld [vmem:[#allocation8 + $0x108] sm:$0xff]
        %v4448 = vld [vmem:[#allocation8 + $0x110] sm:$0xff]
        %v4449 = vld [vmem:[#allocation8 + $0x118] sm:$0xff]
        %v4450 = vld [vmem:[#allocation8 + $0x120] sm:$0xff]
        %v4451 = vld [vmem:[#allocation8 + $0x128] sm:$0xff]
        %v4452 = vld [vmem:[#allocation8 + $0x130] sm:$0xff]
        %v4453 = vld [vmem:[#allocation8 + $0x138] sm:$0xff]
        %v4454 = vld [vmem:[#allocation8 + $0x140] sm:$0xff]
        %v4455 = vld [vmem:[#allocation8 + $0x148] sm:$0xff]
        %v4456 = vld [vmem:[#allocation8 + $0x150] sm:$0xff]
        %v4457 = vld [vmem:[#allocation8 + $0x158] sm:$0xff]
        %v4458 = vld [vmem:[#allocation8 + $0x160] sm:$0xff]
        %v4459 = vld [vmem:[#allocation8 + $0x168] sm:$0xff]
        %v4460 = vld [vmem:[#allocation8 + $0x170] sm:$0xff]
        %v4461 = vld [vmem:[#allocation8 + $0x178] sm:$0xff]
        %v4462 = vld [vmem:[#allocation8 + $0x180] sm:$0xff]
        %v4463 = vld [vmem:[#allocation8 + $0x188] sm:$0xff]
        %v4464 = vld [vmem:[#allocation8 + $0x190] sm:$0xff]
        %v4465 = vld [vmem:[#allocation8 + $0x198] sm:$0xff]
        %v4466 = vld [vmem:[#allocation8 + $0x1a0] sm:$0xff]
        %v4467 = vld [vmem:[#allocation8 + $0x1a8] sm:$0xff]
        %v4468 = vld [vmem:[#allocation8 + $0x1b0] sm:$0xff]
        %v4469 = vld [vmem:[#allocation8 + $0x1b8] sm:$0xff]
        %v4470 = vld [vmem:[#allocation8 + $0x1c0] sm:$0xff]
        %v4471 = vld [vmem:[#allocation8 + $0x1c8] sm:$0xff]
        %v4472 = vld [vmem:[#allocation8 + $0x1d0] sm:$0xff]
        %v4473 = vld [vmem:[#allocation8 + $0x1d8] sm:$0xff]
        %v4474 = vld [vmem:[#allocation8 + $0x1e0] sm:$0xff]
        %v4475 = vld [vmem:[#allocation8 + $0x1e8] sm:$0xff]
        %v4476 = vld [vmem:[#allocation8 + $0x1f0] sm:$0xff]
        %v4477 = vld [vmem:[#allocation8 + $0x1f8] sm:$0xff]
        %v4478 = vld [vmem:[%s7] sm:$0x3]
        %v4480 = vlaneseq
        %v4481 = vshrl.u32 %v4480, 7
        %v4482 = vsub.s32 0, %v4481
        %v4483 = vrot.slane %v4478, %v4482
        %v4484 = vlaneseq
        %v4485 = vshrl.u32 %v4484, 7
        %v4486 = vsub.s32 1, %v4485
        %v4487 = vrot.slane %v4478, %v4486
        %4490 = vmatprep.subr.mxu0 %v4445
        %4491 = vmatpush1.msra.mxu0 %v4444
        %4492 = vmatprep.subr.mxu0 %v4443
        %4493 = vmatpush1.msra.mxu0 %v4442
        %4494 = vmatprep.subr.mxu0 %v4441
        %4495 = vmatpush1.msra.mxu0 %v4440
        %4496 = vmatprep.subr.mxu0 %v4439
        %4497 = vmatpush1.msra.mxu0 %v4438
        %4498 = vmatprep.subr.mxu0 %v4437
        %4499 = vmatpush1.msra.mxu0 %v4436
        %4500 = vmatprep.subr.mxu0 %v4435
        %4501 = vmatpush1.msra.mxu0 %v4434
        %4502 = vmatprep.subr.mxu0 %v4433
        %4503 = vmatpush1.msra.mxu0 %v4432
        %4504 = vmatprep.subr.mxu0 %v4431
        %4505 = vmatpush1.msra.mxu0 %v4430
        %4506 = vmatprep.subr.mxu0 %v4429
        %4507 = vmatpush1.msra.mxu0 %v4428
        %4508 = vmatprep.subr.mxu0 %v4427
        %4509 = vmatpush1.msra.mxu0 %v4426
        %4510 = vmatprep.subr.mxu0 %v4425
        %4511 = vmatpush1.msra.mxu0 %v4424
        %4512 = vmatprep.subr.mxu0 %v4423
        %4513 = vmatpush1.msra.mxu0 %v4422
        %4514 = vmatprep.subr.mxu0 %v4421
        %4515 = vmatpush1.msra.mxu0 %v4420
        %4516 = vmatprep.subr.mxu0 %v4419
        %4517 = vmatpush1.msra.mxu0 %v4418
        %4518 = vmatprep.subr.mxu0 %v4417
        %4519 = vmatpush1.msra.mxu0 %v4416
        %4520 = vmatprep.subr.mxu0 %v4415
        %4521 = vmatpush1.msra.mxu0 %v4414
        %4522 = vmatprep.subr.mxu0 %v4477
        %4523 = vmatpush2.msra.mxu0 %v4476
        %4524 = vmatprep.subr.mxu0 %v4475
        %4525 = vmatpush2.msra.mxu0 %v4474
        %4526 = vmatprep.subr.mxu0 %v4473
        %4527 = vmatpush2.msra.mxu0 %v4472
        %4528 = vmatprep.subr.mxu0 %v4471
        %4529 = vmatpush2.msra.mxu0 %v4470
        %4530 = vmatprep.subr.mxu0 %v4469
        %4531 = vmatpush2.msra.mxu0 %v4468
        %4532 = vmatprep.subr.mxu0 %v4467
        %4533 = vmatpush2.msra.mxu0 %v4466
        %4534 = vmatprep.subr.mxu0 %v4465
        %4535 = vmatpush2.msra.mxu0 %v4464
        %4536 = vmatprep.subr.mxu0 %v4463
        %4537 = vmatpush2.msra.mxu0 %v4462
        %4538 = vmatprep.subr.mxu0 %v4461
        %4539 = vmatpush2.msra.mxu0 %v4460
        %4540 = vmatprep.subr.mxu0 %v4459
        %4541 = vmatpush2.msra.mxu0 %v4458
        %4542 = vmatprep.subr.mxu0 %v4457
        %4543 = vmatpush2.msra.mxu0 %v4456
        %4544 = vmatprep.subr.mxu0 %v4455
        %4545 = vmatpush2.msra.mxu0 %v4454
        %4546 = vmatprep.subr.mxu0 %v4453
        %4547 = vmatpush2.msra.mxu0 %v4452
        %4548 = vmatprep.subr.mxu0 %v4451
        %4549 = vmatpush2.msra.mxu0 %v4450
        %4550 = vmatprep.subr.mxu0 %v4449
        %4551 = vmatpush2.msra.mxu0 %v4448
        %4552 = vmatprep.subr.mxu0 %v4447
        %4553 = vmatpush2.msra.mxu0 %v4446
        %4554 = vmatprep.mubr.f32.mxu0 %v4351
        %4555 = vmatmul.mubr.f32.gmra.mxu0 %v4350
        %v4556 = vpop.f32.mrf.mxu0
        %v4557 = vadd.f32 %v4483, %v4556
        %v4558 = vpop.f32.mrf.mxu0
        %v4559 = vadd.f32 %v4487, %v4558
        %4560 = vmatprep.mubr.f32.mxu0 %v4353
        %4561 = vmatmul.mubr.f32.gmra.mxu0 %v4352
        %v4562 = vpop.f32.mrf.mxu0
        %v4563 = vadd.f32 %v4483, %v4562
        %v4564 = vpop.f32.mrf.mxu0
        %v4565 = vadd.f32 %v4487, %v4564
        %4566 = vmatprep.mubr.f32.mxu0 %v4355
        %4567 = vmatmul.mubr.f32.gmra.mxu0 %v4354
        %v4568 = vpop.f32.mrf.mxu0
        %v4569 = vadd.f32 %v4483, %v4568
        %v4570 = vpop.f32.mrf.mxu0
        %v4571 = vadd.f32 %v4487, %v4570
        %4572 = vmatprep.mubr.f32.mxu0 %v4357
        %4573 = vmatmul.mubr.f32.gmra.mxu0 %v4356
        %v4574 = vpop.f32.mrf.mxu0
        %v4575 = vadd.f32 %v4483, %v4574
        %v4576 = vpop.f32.mrf.mxu0
        %v4577 = vadd.f32 %v4487, %v4576
        %4578 = vmatprep.mubr.f32.mxu0 %v4359
        %4579 = vmatmul.mubr.f32.gmra.mxu0 %v4358
        %v4580 = vpop.f32.mrf.mxu0
        %v4581 = vadd.f32 %v4483, %v4580
        %v4582 = vpop.f32.mrf.mxu0
        %v4583 = vadd.f32 %v4487, %v4582
        %4584 = vmatprep.mubr.f32.mxu0 %v4361
        %4585 = vmatmul.mubr.f32.gmra.mxu0 %v4360
        %v4586 = vpop.f32.mrf.mxu0
        %v4587 = vadd.f32 %v4483, %v4586
        %v4588 = vpop.f32.mrf.mxu0
        %v4589 = vadd.f32 %v4487, %v4588
        %4590 = vmatprep.mubr.f32.mxu0 %v4363
        %4591 = vmatmul.mubr.f32.gmra.mxu0 %v4362
        %v4592 = vpop.f32.mrf.mxu0
        %v4593 = vadd.f32 %v4483, %v4592
        %v4594 = vpop.f32.mrf.mxu0
        %v4595 = vadd.f32 %v4487, %v4594
        %4596 = vmatprep.mubr.f32.mxu0 %v4365
        %4597 = vmatmul.mubr.f32.gmra.mxu0 %v4364
        %v4598 = vpop.f32.mrf.mxu0
        %v4599 = vadd.f32 %v4483, %v4598
        %v4600 = vpop.f32.mrf.mxu0
        %v4601 = vadd.f32 %v4487, %v4600
        %4602 = vmatprep.mubr.f32.mxu0 %v4367
        %4603 = vmatmul.mubr.f32.gmra.mxu0 %v4366
        %v4604 = vpop.f32.mrf.mxu0
        %v4605 = vadd.f32 %v4483, %v4604
        %v4606 = vpop.f32.mrf.mxu0
        %v4607 = vadd.f32 %v4487, %v4606
        %4608 = vmatprep.mubr.f32.mxu0 %v4369
        %4609 = vmatmul.mubr.f32.gmra.mxu0 %v4368
        %v4610 = vpop.f32.mrf.mxu0
        %v4611 = vadd.f32 %v4483, %v4610
        %v4612 = vpop.f32.mrf.mxu0
        %v4613 = vadd.f32 %v4487, %v4612
        %4614 = vmatprep.mubr.f32.mxu0 %v4371
        %4615 = vmatmul.mubr.f32.gmra.mxu0 %v4370
        %v4616 = vpop.f32.mrf.mxu0
        %v4617 = vadd.f32 %v4483, %v4616
        %v4618 = vpop.f32.mrf.mxu0
        %v4619 = vadd.f32 %v4487, %v4618
        %4620 = vmatprep.mubr.f32.mxu0 %v4373
        %4621 = vmatmul.mubr.f32.gmra.mxu0 %v4372
        %v4622 = vpop.f32.mrf.mxu0
        %v4623 = vadd.f32 %v4483, %v4622
        %v4624 = vpop.f32.mrf.mxu0
        %v4625 = vadd.f32 %v4487, %v4624
        %4626 = vmatprep.mubr.f32.mxu0 %v4375
        %4627 = vmatmul.mubr.f32.gmra.mxu0 %v4374
        %v4628 = vpop.f32.mrf.mxu0
        %v4629 = vadd.f32 %v4483, %v4628
        %v4630 = vpop.f32.mrf.mxu0
        %v4631 = vadd.f32 %v4487, %v4630
        %4632 = vmatprep.mubr.f32.mxu0 %v4377
        %4633 = vmatmul.mubr.f32.gmra.mxu0 %v4376
        %v4634 = vpop.f32.mrf.mxu0
        %v4635 = vadd.f32 %v4483, %v4634
        %v4636 = vpop.f32.mrf.mxu0
        %v4637 = vadd.f32 %v4487, %v4636
        %4638 = vmatprep.mubr.f32.mxu0 %v4379
        %4639 = vmatmul.mubr.f32.gmra.mxu0 %v4378
        %v4640 = vpop.f32.mrf.mxu0
        %v4641 = vadd.f32 %v4483, %v4640
        %v4642 = vpop.f32.mrf.mxu0
        %v4643 = vadd.f32 %v4487, %v4642
        %4644 = vmatprep.mubr.f32.mxu0 %v4381
        %4645 = vmatmul.mubr.f32.gmra.mxu0 %v4380
        %v4646 = vpop.f32.mrf.mxu0
        %v4647 = vadd.f32 %v4483, %v4646
        %v4648 = vpop.f32.mrf.mxu0
        %v4649 = vadd.f32 %v4487, %v4648
        %4650 = vmatprep.mubr.f32.mxu0 %v4383
        %4651 = vmatmul.mubr.f32.gmra.mxu0 %v4382
        %v4652 = vpop.f32.mrf.mxu0
        %v4653 = vadd.f32 %v4483, %v4652
        %v4654 = vpop.f32.mrf.mxu0
        %v4655 = vadd.f32 %v4487, %v4654
        %4656 = vmatprep.mubr.f32.mxu0 %v4385
        %4657 = vmatmul.mubr.f32.gmra.mxu0 %v4384
        %v4658 = vpop.f32.mrf.mxu0
        %v4659 = vadd.f32 %v4483, %v4658
        %v4660 = vpop.f32.mrf.mxu0
        %v4661 = vadd.f32 %v4487, %v4660
        %4662 = vmatprep.mubr.f32.mxu0 %v4387
        %4663 = vmatmul.mubr.f32.gmra.mxu0 %v4386
        %v4664 = vpop.f32.mrf.mxu0
        %v4665 = vadd.f32 %v4483, %v4664
        %v4666 = vpop.f32.mrf.mxu0
        %v4667 = vadd.f32 %v4487, %v4666
        %4668 = vmatprep.mubr.f32.mxu0 %v4389
        %4669 = vmatmul.mubr.f32.gmra.mxu0 %v4388
        %v4670 = vpop.f32.mrf.mxu0
        %v4671 = vadd.f32 %v4483, %v4670
        %v4672 = vpop.f32.mrf.mxu0
        %v4673 = vadd.f32 %v4487, %v4672
        %4674 = vmatprep.mubr.f32.mxu0 %v4391
        %4675 = vmatmul.mubr.f32.gmra.mxu0 %v4390
        %v4676 = vpop.f32.mrf.mxu0
        %v4677 = vadd.f32 %v4483, %v4676
        %v4678 = vpop.f32.mrf.mxu0
        %v4679 = vadd.f32 %v4487, %v4678
        %4680 = vmatprep.mubr.f32.mxu0 %v4393
        %4681 = vmatmul.mubr.f32.gmra.mxu0 %v4392
        %v4682 = vpop.f32.mrf.mxu0
        %v4683 = vadd.f32 %v4483, %v4682
        %v4684 = vpop.f32.mrf.mxu0
        %v4685 = vadd.f32 %v4487, %v4684
        %4686 = vmatprep.mubr.f32.mxu0 %v4395
        %4687 = vmatmul.mubr.f32.gmra.mxu0 %v4394
        %v4688 = vpop.f32.mrf.mxu0
        %v4689 = vadd.f32 %v4483, %v4688
        %v4690 = vpop.f32.mrf.mxu0
        %v4691 = vadd.f32 %v4487, %v4690
        %4692 = vmatprep.mubr.f32.mxu0 %v4397
        %4693 = vmatmul.mubr.f32.gmra.mxu0 %v4396
        %v4694 = vpop.f32.mrf.mxu0
        %v4695 = vadd.f32 %v4483, %v4694
        %v4696 = vpop.f32.mrf.mxu0
        %v4697 = vadd.f32 %v4487, %v4696
        %4698 = vmatprep.mubr.f32.mxu0 %v4399
        %4699 = vmatmul.mubr.f32.gmra.mxu0 %v4398
        %v4700 = vpop.f32.mrf.mxu0
        %v4701 = vadd.f32 %v4483, %v4700
        %v4702 = vpop.f32.mrf.mxu0
        %v4703 = vadd.f32 %v4487, %v4702
        %4704 = vmatprep.mubr.f32.mxu0 %v4401
        %4705 = vmatmul.mubr.f32.gmra.mxu0 %v4400
        %v4706 = vpop.f32.mrf.mxu0
        %v4707 = vadd.f32 %v4483, %v4706
        %v4708 = vpop.f32.mrf.mxu0
        %v4709 = vadd.f32 %v4487, %v4708
        %4710 = vmatprep.mubr.f32.mxu0 %v4403
        %4711 = vmatmul.mubr.f32.gmra.mxu0 %v4402
        %v4712 = vpop.f32.mrf.mxu0
        %v4713 = vadd.f32 %v4483, %v4712
        %v4714 = vpop.f32.mrf.mxu0
        %v4715 = vadd.f32 %v4487, %v4714
        %4716 = vmatprep.mubr.f32.mxu0 %v4405
        %4717 = vmatmul.mubr.f32.gmra.mxu0 %v4404
        %v4718 = vpop.f32.mrf.mxu0
        %v4719 = vadd.f32 %v4483, %v4718
        %v4720 = vpop.f32.mrf.mxu0
        %v4721 = vadd.f32 %v4487, %v4720
        %4722 = vmatprep.mubr.f32.mxu0 %v4407
        %4723 = vmatmul.mubr.f32.gmra.mxu0 %v4406
        %v4724 = vpop.f32.mrf.mxu0
        %v4725 = vadd.f32 %v4483, %v4724
        %v4726 = vpop.f32.mrf.mxu0
        %v4727 = vadd.f32 %v4487, %v4726
        %4728 = vmatprep.mubr.f32.mxu0 %v4409
        %4729 = vmatmul.mubr.f32.gmra.mxu0 %v4408
        %v4730 = vpop.f32.mrf.mxu0
        %v4731 = vadd.f32 %v4483, %v4730
        %v4732 = vpop.f32.mrf.mxu0
        %v4733 = vadd.f32 %v4487, %v4732
        %4734 = vmatprep.mubr.f32.mxu0 %v4411
        %4735 = vmatmul.mubr.f32.gmra.mxu0 %v4410
        %v4736 = vpop.f32.mrf.mxu0
        %v4737 = vadd.f32 %v4483, %v4736
        %v4738 = vpop.f32.mrf.mxu0
        %v4739 = vadd.f32 %v4487, %v4738
        %4740 = vmatprep.mubr.f32.mxu0 %v4413
        %4741 = vmatmul.mubr.f32.gmra.mxu0 %v4412
        %v4742 = vpop.f32.mrf.mxu0
        %v4743 = vadd.f32 %v4483, %v4742
        %v4744 = vpop.f32.mrf.mxu0
        %v4745 = vadd.f32 %v4487, %v4744
        %4746 = vdwg.mxu0
        %v4747 = vld [vmem:[#allocation10] sm:$0xff]
        %v4748 = vld [vmem:[#allocation10 + $0x8] sm:$0xff]
        %v4749 = vld [vmem:[#allocation10 + $0x10] sm:$0xff]
        %v4750 = vld [vmem:[#allocation10 + $0x18] sm:$0xff]
        %v4751 = vld [vmem:[#allocation10 + $0x20] sm:$0xff]
        %v4752 = vld [vmem:[#allocation10 + $0x28] sm:$0xff]
        %v4753 = vld [vmem:[#allocation10 + $0x30] sm:$0xff]
        %v4754 = vld [vmem:[#allocation10 + $0x38] sm:$0xff]
        %v4755 = vld [vmem:[#allocation10 + $0x40] sm:$0xff]
        %v4756 = vld [vmem:[#allocation10 + $0x48] sm:$0xff]
        %v4757 = vld [vmem:[#allocation10 + $0x50] sm:$0xff]
        %v4758 = vld [vmem:[#allocation10 + $0x58] sm:$0xff]
        %v4759 = vld [vmem:[#allocation10 + $0x60] sm:$0xff]
        %v4760 = vld [vmem:[#allocation10 + $0x68] sm:$0xff]
        %v4761 = vld [vmem:[#allocation10 + $0x70] sm:$0xff]
        %v4762 = vld [vmem:[#allocation10 + $0x78] sm:$0xff]
        %v4763 = vld [vmem:[#allocation10 + $0x80] sm:$0xff]
        %v4764 = vld [vmem:[#allocation10 + $0x88] sm:$0xff]
        %v4765 = vld [vmem:[#allocation10 + $0x90] sm:$0xff]
        %v4766 = vld [vmem:[#allocation10 + $0x98] sm:$0xff]
        %v4767 = vld [vmem:[#allocation10 + $0xa0] sm:$0xff]
        %v4768 = vld [vmem:[#allocation10 + $0xa8] sm:$0xff]
        %v4769 = vld [vmem:[#allocation10 + $0xb0] sm:$0xff]
        %v4770 = vld [vmem:[#allocation10 + $0xb8] sm:$0xff]
        %v4771 = vld [vmem:[#allocation10 + $0xc0] sm:$0xff]
        %v4772 = vld [vmem:[#allocation10 + $0xc8] sm:$0xff]
        %v4773 = vld [vmem:[#allocation10 + $0xd0] sm:$0xff]
        %v4774 = vld [vmem:[#allocation10 + $0xd8] sm:$0xff]
        %v4775 = vld [vmem:[#allocation10 + $0xe0] sm:$0xff]
        %v4776 = vld [vmem:[#allocation10 + $0xe8] sm:$0xff]
        %v4777 = vld [vmem:[#allocation10 + $0xf0] sm:$0xff]
        %v4778 = vld [vmem:[#allocation10 + $0xf8] sm:$0xff]
        %v4779 = vld [vmem:[#allocation10 + $0x100] sm:$0xff]
        %v4780 = vld [vmem:[#allocation10 + $0x108] sm:$0xff]
        %v4781 = vld [vmem:[#allocation10 + $0x110] sm:$0xff]
        %v4782 = vld [vmem:[#allocation10 + $0x118] sm:$0xff]
        %v4783 = vld [vmem:[#allocation10 + $0x120] sm:$0xff]
        %v4784 = vld [vmem:[#allocation10 + $0x128] sm:$0xff]
        %v4785 = vld [vmem:[#allocation10 + $0x130] sm:$0xff]
        %v4786 = vld [vmem:[#allocation10 + $0x138] sm:$0xff]
        %v4787 = vld [vmem:[#allocation10 + $0x140] sm:$0xff]
        %v4788 = vld [vmem:[#allocation10 + $0x148] sm:$0xff]
        %v4789 = vld [vmem:[#allocation10 + $0x150] sm:$0xff]
        %v4790 = vld [vmem:[#allocation10 + $0x158] sm:$0xff]
        %v4791 = vld [vmem:[#allocation10 + $0x160] sm:$0xff]
        %v4792 = vld [vmem:[#allocation10 + $0x168] sm:$0xff]
        %v4793 = vld [vmem:[#allocation10 + $0x170] sm:$0xff]
        %v4794 = vld [vmem:[#allocation10 + $0x178] sm:$0xff]
        %v4795 = vld [vmem:[#allocation10 + $0x180] sm:$0xff]
        %v4796 = vld [vmem:[#allocation10 + $0x188] sm:$0xff]
        %v4797 = vld [vmem:[#allocation10 + $0x190] sm:$0xff]
        %v4798 = vld [vmem:[#allocation10 + $0x198] sm:$0xff]
        %v4799 = vld [vmem:[#allocation10 + $0x1a0] sm:$0xff]
        %v4800 = vld [vmem:[#allocation10 + $0x1a8] sm:$0xff]
        %v4801 = vld [vmem:[#allocation10 + $0x1b0] sm:$0xff]
        %v4802 = vld [vmem:[#allocation10 + $0x1b8] sm:$0xff]
        %v4803 = vld [vmem:[#allocation10 + $0x1c0] sm:$0xff]
        %v4804 = vld [vmem:[#allocation10 + $0x1c8] sm:$0xff]
        %v4805 = vld [vmem:[#allocation10 + $0x1d0] sm:$0xff]
        %v4806 = vld [vmem:[#allocation10 + $0x1d8] sm:$0xff]
        %v4807 = vld [vmem:[#allocation10 + $0x1e0] sm:$0xff]
        %v4808 = vld [vmem:[#allocation10 + $0x1e8] sm:$0xff]
        %v4809 = vld [vmem:[#allocation10 + $0x1f0] sm:$0xff]
        %v4810 = vld [vmem:[#allocation10 + $0x1f8] sm:$0xff]
        %v4811 = vld [vmem:[#allocation10 + $0x200] sm:$0xff]
        %v4812 = vld [vmem:[#allocation10 + $0x208] sm:$0xff]
        %v4813 = vld [vmem:[#allocation10 + $0x210] sm:$0xff]
        %v4814 = vld [vmem:[#allocation10 + $0x218] sm:$0xff]
        %v4815 = vld [vmem:[#allocation10 + $0x220] sm:$0xff]
        %v4816 = vld [vmem:[#allocation10 + $0x228] sm:$0xff]
        %v4817 = vld [vmem:[#allocation10 + $0x230] sm:$0xff]
        %v4818 = vld [vmem:[#allocation10 + $0x238] sm:$0xff]
        %v4819 = vld [vmem:[#allocation10 + $0x240] sm:$0xff]
        %v4820 = vld [vmem:[#allocation10 + $0x248] sm:$0xff]
        %v4821 = vld [vmem:[#allocation10 + $0x250] sm:$0xff]
        %v4822 = vld [vmem:[#allocation10 + $0x258] sm:$0xff]
        %v4823 = vld [vmem:[#allocation10 + $0x260] sm:$0xff]
        %v4824 = vld [vmem:[#allocation10 + $0x268] sm:$0xff]
        %v4825 = vld [vmem:[#allocation10 + $0x270] sm:$0xff]
        %v4826 = vld [vmem:[#allocation10 + $0x278] sm:$0xff]
        %v4827 = vld [vmem:[#allocation10 + $0x280] sm:$0xff]
        %v4828 = vld [vmem:[#allocation10 + $0x288] sm:$0xff]
        %v4829 = vld [vmem:[#allocation10 + $0x290] sm:$0xff]
        %v4830 = vld [vmem:[#allocation10 + $0x298] sm:$0xff]
        %v4831 = vld [vmem:[#allocation10 + $0x2a0] sm:$0xff]
        %v4832 = vld [vmem:[#allocation10 + $0x2a8] sm:$0xff]
        %v4833 = vld [vmem:[#allocation10 + $0x2b0] sm:$0xff]
        %v4834 = vld [vmem:[#allocation10 + $0x2b8] sm:$0xff]
        %v4835 = vld [vmem:[#allocation10 + $0x2c0] sm:$0xff]
        %v4836 = vld [vmem:[#allocation10 + $0x2c8] sm:$0xff]
        %v4837 = vld [vmem:[#allocation10 + $0x2d0] sm:$0xff]
        %v4838 = vld [vmem:[#allocation10 + $0x2d8] sm:$0xff]
        %v4839 = vld [vmem:[#allocation10 + $0x2e0] sm:$0xff]
        %v4840 = vld [vmem:[#allocation10 + $0x2e8] sm:$0xff]
        %v4841 = vld [vmem:[#allocation10 + $0x2f0] sm:$0xff]
        %v4842 = vld [vmem:[#allocation10 + $0x2f8] sm:$0xff]
        %v4843 = vld [vmem:[#allocation10 + $0x300] sm:$0xff]
        %v4844 = vld [vmem:[#allocation10 + $0x308] sm:$0xff]
        %v4845 = vld [vmem:[#allocation10 + $0x310] sm:$0xff]
        %v4846 = vld [vmem:[#allocation10 + $0x318] sm:$0xff]
        %v4847 = vld [vmem:[#allocation10 + $0x320] sm:$0xff]
        %v4848 = vld [vmem:[#allocation10 + $0x328] sm:$0xff]
        %v4849 = vld [vmem:[#allocation10 + $0x330] sm:$0xff]
        %v4850 = vld [vmem:[#allocation10 + $0x338] sm:$0xff]
        %v4851 = vld [vmem:[#allocation10 + $0x340] sm:$0xff]
        %v4852 = vld [vmem:[#allocation10 + $0x348] sm:$0xff]
        %v4853 = vld [vmem:[#allocation10 + $0x350] sm:$0xff]
        %v4854 = vld [vmem:[#allocation10 + $0x358] sm:$0xff]
        %v4855 = vld [vmem:[#allocation10 + $0x360] sm:$0xff]
        %v4856 = vld [vmem:[#allocation10 + $0x368] sm:$0xff]
        %v4857 = vld [vmem:[#allocation10 + $0x370] sm:$0xff]
        %v4858 = vld [vmem:[#allocation10 + $0x378] sm:$0xff]
        %v4859 = vld [vmem:[#allocation10 + $0x380] sm:$0xff]
        %v4860 = vld [vmem:[#allocation10 + $0x388] sm:$0xff]
        %v4861 = vld [vmem:[#allocation10 + $0x390] sm:$0xff]
        %v4862 = vld [vmem:[#allocation10 + $0x398] sm:$0xff]
        %v4863 = vld [vmem:[#allocation10 + $0x3a0] sm:$0xff]
        %v4864 = vld [vmem:[#allocation10 + $0x3a8] sm:$0xff]
        %v4865 = vld [vmem:[#allocation10 + $0x3b0] sm:$0xff]
        %v4866 = vld [vmem:[#allocation10 + $0x3b8] sm:$0xff]
        %v4867 = vld [vmem:[#allocation10 + $0x3c0] sm:$0xff]
        %v4868 = vld [vmem:[#allocation10 + $0x3c8] sm:$0xff]
        %v4869 = vld [vmem:[#allocation10 + $0x3d0] sm:$0xff]
        %v4870 = vld [vmem:[#allocation10 + $0x3d8] sm:$0xff]
        %v4871 = vld [vmem:[#allocation10 + $0x3e0] sm:$0xff]
        %v4872 = vld [vmem:[#allocation10 + $0x3e8] sm:$0xff]
        %v4873 = vld [vmem:[#allocation10 + $0x3f0] sm:$0xff]
        %v4874 = vld [vmem:[#allocation10 + $0x3f8] sm:$0xff]
        %v4875 = vld [vmem:[%s9] sm:$0xf]
        %v4877 = vlaneseq
        %v4878 = vshrl.u32 %v4877, 7
        %v4879 = vsub.s32 0, %v4878
        %v4880 = vrot.slane %v4875, %v4879
        %v4881 = vlaneseq
        %v4882 = vshrl.u32 %v4881, 7
        %v4883 = vsub.s32 1, %v4882
        %v4884 = vrot.slane %v4875, %v4883
        %v4885 = vlaneseq
        %v4886 = vshrl.u32 %v4885, 7
        %v4887 = vsub.s32 2, %v4886
        %v4888 = vrot.slane %v4875, %v4887
        %v4889 = vlaneseq
        %v4890 = vshrl.u32 %v4889, 7
        %v4891 = vsub.s32 3, %v4890
        %v4892 = vrot.slane %v4875, %v4891
        %4897 = vmatprep.subr.mxu0 %v4808
        %4898 = vmatpush1.msra.mxu0 %v4807
        %4899 = vmatprep.subr.mxu0 %v4804
        %4900 = vmatpush1.msra.mxu0 %v4803
        %4901 = vmatprep.subr.mxu0 %v4800
        %4902 = vmatpush1.msra.mxu0 %v4799
        %4903 = vmatprep.subr.mxu0 %v4796
        %4904 = vmatpush1.msra.mxu0 %v4795
        %4905 = vmatprep.subr.mxu0 %v4792
        %4906 = vmatpush1.msra.mxu0 %v4791
        %4907 = vmatprep.subr.mxu0 %v4788
        %4908 = vmatpush1.msra.mxu0 %v4787
        %4909 = vmatprep.subr.mxu0 %v4784
        %4910 = vmatpush1.msra.mxu0 %v4783
        %4911 = vmatprep.subr.mxu0 %v4780
        %4912 = vmatpush1.msra.mxu0 %v4779
        %4913 = vmatprep.subr.mxu0 %v4776
        %4914 = vmatpush1.msra.mxu0 %v4775
        %4915 = vmatprep.subr.mxu0 %v4772
        %4916 = vmatpush1.msra.mxu0 %v4771
        %4917 = vmatprep.subr.mxu0 %v4768
        %4918 = vmatpush1.msra.mxu0 %v4767
        %4919 = vmatprep.subr.mxu0 %v4764
        %4920 = vmatpush1.msra.mxu0 %v4763
        %4921 = vmatprep.subr.mxu0 %v4760
        %4922 = vmatpush1.msra.mxu0 %v4759
        %4923 = vmatprep.subr.mxu0 %v4756
        %4924 = vmatpush1.msra.mxu0 %v4755
        %4925 = vmatprep.subr.mxu0 %v4752
        %4926 = vmatpush1.msra.mxu0 %v4751
        %4927 = vmatprep.subr.mxu0 %v4748
        %4928 = vmatpush1.msra.mxu0 %v4747
        %4929 = vmatprep.subr.mxu0 %v4872
        %4930 = vmatpush2.msra.mxu0 %v4871
        %4931 = vmatprep.subr.mxu0 %v4868
        %4932 = vmatpush2.msra.mxu0 %v4867
        %4933 = vmatprep.subr.mxu0 %v4864
        %4934 = vmatpush2.msra.mxu0 %v4863
        %4935 = vmatprep.subr.mxu0 %v4860
        %4936 = vmatpush2.msra.mxu0 %v4859
        %4937 = vmatprep.subr.mxu0 %v4856
        %4938 = vmatpush2.msra.mxu0 %v4855
        %4939 = vmatprep.subr.mxu0 %v4852
        %4940 = vmatpush2.msra.mxu0 %v4851
        %4941 = vmatprep.subr.mxu0 %v4848
        %4942 = vmatpush2.msra.mxu0 %v4847
        %4943 = vmatprep.subr.mxu0 %v4844
        %4944 = vmatpush2.msra.mxu0 %v4843
        %4945 = vmatprep.subr.mxu0 %v4840
        %4946 = vmatpush2.msra.mxu0 %v4839
        %4947 = vmatprep.subr.mxu0 %v4836
        %4948 = vmatpush2.msra.mxu0 %v4835
        %4949 = vmatprep.subr.mxu0 %v4832
        %4950 = vmatpush2.msra.mxu0 %v4831
        %4951 = vmatprep.subr.mxu0 %v4828
        %4952 = vmatpush2.msra.mxu0 %v4827
        %4953 = vmatprep.subr.mxu0 %v4824
        %4954 = vmatpush2.msra.mxu0 %v4823
        %4955 = vmatprep.subr.mxu0 %v4820
        %4956 = vmatpush2.msra.mxu0 %v4819
        %4957 = vmatprep.subr.mxu0 %v4816
        %4958 = vmatpush2.msra.mxu0 %v4815
        %4959 = vmatprep.subr.mxu0 %v4812
        %4960 = vmatpush2.msra.mxu0 %v4811
        %4961 = vmatprep.mubr.f32.mxu0 %v4559
        %4962 = vmatmul.mubr.f32.gmra.mxu0 %v4557
        %v4963 = vpop.f32.mrf.mxu0
        %v4964 = vadd.f32 %v4880, %v4963
        %v4965 = vpop.f32.mrf.mxu0
        %v4966 = vadd.f32 %v4884, %v4965
        %4967 = vmatprep.mubr.f32.mxu0 %v4565
        %4968 = vmatmul.mubr.f32.gmra.mxu0 %v4563
        %v4969 = vpop.f32.mrf.mxu0
        %v4970 = vadd.f32 %v4880, %v4969
        %v4971 = vpop.f32.mrf.mxu0
        %v4972 = vadd.f32 %v4884, %v4971
        %4973 = vmatprep.mubr.f32.mxu0 %v4571
        %4974 = vmatmul.mubr.f32.gmra.mxu0 %v4569
        %v4975 = vpop.f32.mrf.mxu0
        %v4976 = vadd.f32 %v4880, %v4975
        %v4977 = vpop.f32.mrf.mxu0
        %v4978 = vadd.f32 %v4884, %v4977
        %4979 = vmatprep.mubr.f32.mxu0 %v4577
        %4980 = vmatmul.mubr.f32.gmra.mxu0 %v4575
        %v4981 = vpop.f32.mrf.mxu0
        %v4982 = vadd.f32 %v4880, %v4981
        %v4983 = vpop.f32.mrf.mxu0
        %v4984 = vadd.f32 %v4884, %v4983
        %4985 = vmatprep.mubr.f32.mxu0 %v4583
        %4986 = vmatmul.mubr.f32.gmra.mxu0 %v4581
        %v4987 = vpop.f32.mrf.mxu0
        %v4988 = vadd.f32 %v4880, %v4987
        %v4989 = vpop.f32.mrf.mxu0
        %v4990 = vadd.f32 %v4884, %v4989
        %4991 = vmatprep.mubr.f32.mxu0 %v4589
        %4992 = vmatmul.mubr.f32.gmra.mxu0 %v4587
        %v4993 = vpop.f32.mrf.mxu0
        %v4994 = vadd.f32 %v4880, %v4993
        %v4995 = vpop.f32.mrf.mxu0
        %v4996 = vadd.f32 %v4884, %v4995
        %4997 = vmatprep.mubr.f32.mxu0 %v4595
        %4998 = vmatmul.mubr.f32.gmra.mxu0 %v4593
        %v4999 = vpop.f32.mrf.mxu0
        %v5000 = vadd.f32 %v4880, %v4999
        %v5001 = vpop.f32.mrf.mxu0
        %v5002 = vadd.f32 %v4884, %v5001
        %5003 = vmatprep.mubr.f32.mxu0 %v4601
        %5004 = vmatmul.mubr.f32.gmra.mxu0 %v4599
        %v5005 = vpop.f32.mrf.mxu0
        %v5006 = vadd.f32 %v4880, %v5005
        %v5007 = vpop.f32.mrf.mxu0
        %v5008 = vadd.f32 %v4884, %v5007
        %5009 = vmatprep.mubr.f32.mxu0 %v4607
        %5010 = vmatmul.mubr.f32.gmra.mxu0 %v4605
        %v5011 = vpop.f32.mrf.mxu0
        %v5012 = vadd.f32 %v4880, %v5011
        %v5013 = vpop.f32.mrf.mxu0
        %v5014 = vadd.f32 %v4884, %v5013
        %5015 = vmatprep.mubr.f32.mxu0 %v4613
        %5016 = vmatmul.mubr.f32.gmra.mxu0 %v4611
        %v5017 = vpop.f32.mrf.mxu0
        %v5018 = vadd.f32 %v4880, %v5017
        %v5019 = vpop.f32.mrf.mxu0
        %v5020 = vadd.f32 %v4884, %v5019
        %5021 = vmatprep.mubr.f32.mxu0 %v4619
        %5022 = vmatmul.mubr.f32.gmra.mxu0 %v4617
        %v5023 = vpop.f32.mrf.mxu0
        %v5024 = vadd.f32 %v4880, %v5023
        %v5025 = vpop.f32.mrf.mxu0
        %v5026 = vadd.f32 %v4884, %v5025
        %5027 = vmatprep.mubr.f32.mxu0 %v4625
        %5028 = vmatmul.mubr.f32.gmra.mxu0 %v4623
        %v5029 = vpop.f32.mrf.mxu0
        %v5030 = vadd.f32 %v4880, %v5029
        %v5031 = vpop.f32.mrf.mxu0
        %v5032 = vadd.f32 %v4884, %v5031
        %5033 = vmatprep.mubr.f32.mxu0 %v4631
        %5034 = vmatmul.mubr.f32.gmra.mxu0 %v4629
        %v5035 = vpop.f32.mrf.mxu0
        %v5036 = vadd.f32 %v4880, %v5035
        %v5037 = vpop.f32.mrf.mxu0
        %v5038 = vadd.f32 %v4884, %v5037
        %5039 = vmatprep.mubr.f32.mxu0 %v4637
        %5040 = vmatmul.mubr.f32.gmra.mxu0 %v4635
        %v5041 = vpop.f32.mrf.mxu0
        %v5042 = vadd.f32 %v4880, %v5041
        %v5043 = vpop.f32.mrf.mxu0
        %v5044 = vadd.f32 %v4884, %v5043
        %5045 = vmatprep.mubr.f32.mxu0 %v4643
        %5046 = vmatmul.mubr.f32.gmra.mxu0 %v4641
        %v5047 = vpop.f32.mrf.mxu0
        %v5048 = vadd.f32 %v4880, %v5047
        %v5049 = vpop.f32.mrf.mxu0
        %v5050 = vadd.f32 %v4884, %v5049
        %5051 = vmatprep.mubr.f32.mxu0 %v4649
        %5052 = vmatmul.mubr.f32.gmra.mxu0 %v4647
        %v5053 = vpop.f32.mrf.mxu0
        %v5054 = vadd.f32 %v4880, %v5053
        %v5055 = vpop.f32.mrf.mxu0
        %v5056 = vadd.f32 %v4884, %v5055
        %5057 = vmatprep.mubr.f32.mxu0 %v4655
        %5058 = vmatmul.mubr.f32.gmra.mxu0 %v4653
        %v5059 = vpop.f32.mrf.mxu0
        %v5060 = vadd.f32 %v4880, %v5059
        %v5061 = vpop.f32.mrf.mxu0
        %v5062 = vadd.f32 %v4884, %v5061
        %5063 = vmatprep.mubr.f32.mxu0 %v4661
        %5064 = vmatmul.mubr.f32.gmra.mxu0 %v4659
        %v5065 = vpop.f32.mrf.mxu0
        %v5066 = vadd.f32 %v4880, %v5065
        %v5067 = vpop.f32.mrf.mxu0
        %v5068 = vadd.f32 %v4884, %v5067
        %5069 = vmatprep.mubr.f32.mxu0 %v4667
        %5070 = vmatmul.mubr.f32.gmra.mxu0 %v4665
        %v5071 = vpop.f32.mrf.mxu0
        %v5072 = vadd.f32 %v4880, %v5071
        %v5073 = vpop.f32.mrf.mxu0
        %v5074 = vadd.f32 %v4884, %v5073
        %5075 = vmatprep.mubr.f32.mxu0 %v4673
        %5076 = vmatmul.mubr.f32.gmra.mxu0 %v4671
        %v5077 = vpop.f32.mrf.mxu0
        %v5078 = vadd.f32 %v4880, %v5077
        %v5079 = vpop.f32.mrf.mxu0
        %v5080 = vadd.f32 %v4884, %v5079
        %5081 = vmatprep.mubr.f32.mxu0 %v4679
        %5082 = vmatmul.mubr.f32.gmra.mxu0 %v4677
        %v5083 = vpop.f32.mrf.mxu0
        %v5084 = vadd.f32 %v4880, %v5083
        %v5085 = vpop.f32.mrf.mxu0
        %v5086 = vadd.f32 %v4884, %v5085
        %5087 = vmatprep.mubr.f32.mxu0 %v4685
        %5088 = vmatmul.mubr.f32.gmra.mxu0 %v4683
        %v5089 = vpop.f32.mrf.mxu0
        %v5090 = vadd.f32 %v4880, %v5089
        %v5091 = vpop.f32.mrf.mxu0
        %v5092 = vadd.f32 %v4884, %v5091
        %5093 = vmatprep.mubr.f32.mxu0 %v4691
        %5094 = vmatmul.mubr.f32.gmra.mxu0 %v4689
        %v5095 = vpop.f32.mrf.mxu0
        %v5096 = vadd.f32 %v4880, %v5095
        %v5097 = vpop.f32.mrf.mxu0
        %v5098 = vadd.f32 %v4884, %v5097
        %5099 = vmatprep.mubr.f32.mxu0 %v4697
        %5100 = vmatmul.mubr.f32.gmra.mxu0 %v4695
        %v5101 = vpop.f32.mrf.mxu0
        %v5102 = vadd.f32 %v4880, %v5101
        %v5103 = vpop.f32.mrf.mxu0
        %v5104 = vadd.f32 %v4884, %v5103
        %5105 = vmatprep.mubr.f32.mxu0 %v4703
        %5106 = vmatmul.mubr.f32.gmra.mxu0 %v4701
        %v5107 = vpop.f32.mrf.mxu0
        %v5108 = vadd.f32 %v4880, %v5107
        %v5109 = vpop.f32.mrf.mxu0
        %v5110 = vadd.f32 %v4884, %v5109
        %5111 = vmatprep.mubr.f32.mxu0 %v4709
        %5112 = vmatmul.mubr.f32.gmra.mxu0 %v4707
        %v5113 = vpop.f32.mrf.mxu0
        %v5114 = vadd.f32 %v4880, %v5113
        %v5115 = vpop.f32.mrf.mxu0
        %v5116 = vadd.f32 %v4884, %v5115
        %5117 = vmatprep.mubr.f32.mxu0 %v4715
        %5118 = vmatmul.mubr.f32.gmra.mxu0 %v4713
        %v5119 = vpop.f32.mrf.mxu0
        %v5120 = vadd.f32 %v4880, %v5119
        %v5121 = vpop.f32.mrf.mxu0
        %v5122 = vadd.f32 %v4884, %v5121
        %5123 = vmatprep.mubr.f32.mxu0 %v4721
        %5124 = vmatmul.mubr.f32.gmra.mxu0 %v4719
        %v5125 = vpop.f32.mrf.mxu0
        %v5126 = vadd.f32 %v4880, %v5125
        %v5127 = vpop.f32.mrf.mxu0
        %v5128 = vadd.f32 %v4884, %v5127
        %5129 = vmatprep.mubr.f32.mxu0 %v4727
        %5130 = vmatmul.mubr.f32.gmra.mxu0 %v4725
        %v5131 = vpop.f32.mrf.mxu0
        %v5132 = vadd.f32 %v4880, %v5131
        %v5133 = vpop.f32.mrf.mxu0
        %v5134 = vadd.f32 %v4884, %v5133
        %5135 = vmatprep.mubr.f32.mxu0 %v4733
        %5136 = vmatmul.mubr.f32.gmra.mxu0 %v4731
        %v5137 = vpop.f32.mrf.mxu0
        %v5138 = vadd.f32 %v4880, %v5137
        %v5139 = vpop.f32.mrf.mxu0
        %v5140 = vadd.f32 %v4884, %v5139
        %5141 = vmatprep.mubr.f32.mxu0 %v4739
        %5142 = vmatmul.mubr.f32.gmra.mxu0 %v4737
        %v5143 = vpop.f32.mrf.mxu0
        %v5144 = vadd.f32 %v4880, %v5143
        %v5145 = vpop.f32.mrf.mxu0
        %v5146 = vadd.f32 %v4884, %v5145
        %5147 = vmatprep.mubr.f32.mxu0 %v4745
        %5148 = vmatmul.mubr.f32.gmra.mxu0 %v4743
        %v5149 = vpop.f32.mrf.mxu0
        %v5150 = vadd.f32 %v4880, %v5149
        %v5151 = vpop.f32.mrf.mxu0
        %v5152 = vadd.f32 %v4884, %v5151
        %5153 = vdwg.mxu0
        %5154 = vmatprep.subr.mxu0 %v4810
        %5155 = vmatpush1.msra.mxu0 %v4809
        %5156 = vmatprep.subr.mxu0 %v4806
        %5157 = vmatpush1.msra.mxu0 %v4805
        %5158 = vmatprep.subr.mxu0 %v4802
        %5159 = vmatpush1.msra.mxu0 %v4801
        %5160 = vmatprep.subr.mxu0 %v4798
        %5161 = vmatpush1.msra.mxu0 %v4797
        %5162 = vmatprep.subr.mxu0 %v4794
        %5163 = vmatpush1.msra.mxu0 %v4793
        %5164 = vmatprep.subr.mxu0 %v4790
        %5165 = vmatpush1.msra.mxu0 %v4789
        %5166 = vmatprep.subr.mxu0 %v4786
        %5167 = vmatpush1.msra.mxu0 %v4785
        %5168 = vmatprep.subr.mxu0 %v4782
        %5169 = vmatpush1.msra.mxu0 %v4781
        %5170 = vmatprep.subr.mxu0 %v4778
        %5171 = vmatpush1.msra.mxu0 %v4777
        %5172 = vmatprep.subr.mxu0 %v4774
        %5173 = vmatpush1.msra.mxu0 %v4773
        %5174 = vmatprep.subr.mxu0 %v4770
        %5175 = vmatpush1.msra.mxu0 %v4769
        %5176 = vmatprep.subr.mxu0 %v4766
        %5177 = vmatpush1.msra.mxu0 %v4765
        %5178 = vmatprep.subr.mxu0 %v4762
        %5179 = vmatpush1.msra.mxu0 %v4761
        %5180 = vmatprep.subr.mxu0 %v4758
        %5181 = vmatpush1.msra.mxu0 %v4757
        %5182 = vmatprep.subr.mxu0 %v4754
        %5183 = vmatpush1.msra.mxu0 %v4753
        %5184 = vmatprep.subr.mxu0 %v4750
        %5185 = vmatpush1.msra.mxu0 %v4749
        %5186 = vmatprep.subr.mxu0 %v4874
        %5187 = vmatpush2.msra.mxu0 %v4873
        %5188 = vmatprep.subr.mxu0 %v4870
        %5189 = vmatpush2.msra.mxu0 %v4869
        %5190 = vmatprep.subr.mxu0 %v4866
        %5191 = vmatpush2.msra.mxu0 %v4865
        %5192 = vmatprep.subr.mxu0 %v4862
        %5193 = vmatpush2.msra.mxu0 %v4861
        %5194 = vmatprep.subr.mxu0 %v4858
        %5195 = vmatpush2.msra.mxu0 %v4857
        %5196 = vmatprep.subr.mxu0 %v4854
        %5197 = vmatpush2.msra.mxu0 %v4853
        %5198 = vmatprep.subr.mxu0 %v4850
        %5199 = vmatpush2.msra.mxu0 %v4849
        %5200 = vmatprep.subr.mxu0 %v4846
        %5201 = vmatpush2.msra.mxu0 %v4845
        %5202 = vmatprep.subr.mxu0 %v4842
        %5203 = vmatpush2.msra.mxu0 %v4841
        %5204 = vmatprep.subr.mxu0 %v4838
        %5205 = vmatpush2.msra.mxu0 %v4837
        %5206 = vmatprep.subr.mxu0 %v4834
        %5207 = vmatpush2.msra.mxu0 %v4833
        %5208 = vmatprep.subr.mxu0 %v4830
        %5209 = vmatpush2.msra.mxu0 %v4829
        %5210 = vmatprep.subr.mxu0 %v4826
        %5211 = vmatpush2.msra.mxu0 %v4825
        %5212 = vmatprep.subr.mxu0 %v4822
        %5213 = vmatpush2.msra.mxu0 %v4821
        %5214 = vmatprep.subr.mxu0 %v4818
        %5215 = vmatpush2.msra.mxu0 %v4817
        %5216 = vmatprep.subr.mxu0 %v4814
        %5217 = vmatpush2.msra.mxu0 %v4813
        %5218 = vmatprep.mubr.f32.mxu0 %v4559
        %5219 = vmatmul.mubr.f32.gmra.mxu0 %v4557
        %v5220 = vpop.f32.mrf.mxu0
        %v5221 = vadd.f32 %v4888, %v5220
        %v5222 = vpop.f32.mrf.mxu0
        %v5223 = vadd.f32 %v4892, %v5222
        %5224 = vmatprep.mubr.f32.mxu0 %v4565
        %5225 = vmatmul.mubr.f32.gmra.mxu0 %v4563
        %v5226 = vpop.f32.mrf.mxu0
        %v5227 = vadd.f32 %v4888, %v5226
        %v5228 = vpop.f32.mrf.mxu0
        %v5229 = vadd.f32 %v4892, %v5228
        %5230 = vmatprep.mubr.f32.mxu0 %v4571
        %5231 = vmatmul.mubr.f32.gmra.mxu0 %v4569
        %v5232 = vpop.f32.mrf.mxu0
        %v5233 = vadd.f32 %v4888, %v5232
        %v5234 = vpop.f32.mrf.mxu0
        %v5235 = vadd.f32 %v4892, %v5234
        %5236 = vmatprep.mubr.f32.mxu0 %v4577
        %5237 = vmatmul.mubr.f32.gmra.mxu0 %v4575
        %v5238 = vpop.f32.mrf.mxu0
        %v5239 = vadd.f32 %v4888, %v5238
        %v5240 = vpop.f32.mrf.mxu0
        %v5241 = vadd.f32 %v4892, %v5240
        %5242 = vmatprep.mubr.f32.mxu0 %v4583
        %5243 = vmatmul.mubr.f32.gmra.mxu0 %v4581
        %v5244 = vpop.f32.mrf.mxu0
        %v5245 = vadd.f32 %v4888, %v5244
        %v5246 = vpop.f32.mrf.mxu0
        %v5247 = vadd.f32 %v4892, %v5246
        %5248 = vmatprep.mubr.f32.mxu0 %v4589
        %5249 = vmatmul.mubr.f32.gmra.mxu0 %v4587
        %v5250 = vpop.f32.mrf.mxu0
        %v5251 = vadd.f32 %v4888, %v5250
        %v5252 = vpop.f32.mrf.mxu0
        %v5253 = vadd.f32 %v4892, %v5252
        %5254 = vmatprep.mubr.f32.mxu0 %v4595
        %5255 = vmatmul.mubr.f32.gmra.mxu0 %v4593
        %v5256 = vpop.f32.mrf.mxu0
        %v5257 = vadd.f32 %v4888, %v5256
        %v5258 = vpop.f32.mrf.mxu0
        %v5259 = vadd.f32 %v4892, %v5258
        %5260 = vmatprep.mubr.f32.mxu0 %v4601
        %5261 = vmatmul.mubr.f32.gmra.mxu0 %v4599
        %v5262 = vpop.f32.mrf.mxu0
        %v5263 = vadd.f32 %v4888, %v5262
        %v5264 = vpop.f32.mrf.mxu0
        %v5265 = vadd.f32 %v4892, %v5264
        %5266 = vmatprep.mubr.f32.mxu0 %v4607
        %5267 = vmatmul.mubr.f32.gmra.mxu0 %v4605
        %v5268 = vpop.f32.mrf.mxu0
        %v5269 = vadd.f32 %v4888, %v5268
        %v5270 = vpop.f32.mrf.mxu0
        %v5271 = vadd.f32 %v4892, %v5270
        %5272 = vmatprep.mubr.f32.mxu0 %v4613
        %5273 = vmatmul.mubr.f32.gmra.mxu0 %v4611
        %v5274 = vpop.f32.mrf.mxu0
        %v5275 = vadd.f32 %v4888, %v5274
        %v5276 = vpop.f32.mrf.mxu0
        %v5277 = vadd.f32 %v4892, %v5276
        %5278 = vmatprep.mubr.f32.mxu0 %v4619
        %5279 = vmatmul.mubr.f32.gmra.mxu0 %v4617
        %v5280 = vpop.f32.mrf.mxu0
        %v5281 = vadd.f32 %v4888, %v5280
        %v5282 = vpop.f32.mrf.mxu0
        %v5283 = vadd.f32 %v4892, %v5282
        %5284 = vmatprep.mubr.f32.mxu0 %v4625
        %5285 = vmatmul.mubr.f32.gmra.mxu0 %v4623
        %v5286 = vpop.f32.mrf.mxu0
        %v5287 = vadd.f32 %v4888, %v5286
        %v5288 = vpop.f32.mrf.mxu0
        %v5289 = vadd.f32 %v4892, %v5288
        %5290 = vmatprep.mubr.f32.mxu0 %v4631
        %5291 = vmatmul.mubr.f32.gmra.mxu0 %v4629
        %v5292 = vpop.f32.mrf.mxu0
        %v5293 = vadd.f32 %v4888, %v5292
        %v5294 = vpop.f32.mrf.mxu0
        %v5295 = vadd.f32 %v4892, %v5294
        %5296 = vmatprep.mubr.f32.mxu0 %v4637
        %5297 = vmatmul.mubr.f32.gmra.mxu0 %v4635
        %v5298 = vpop.f32.mrf.mxu0
        %v5299 = vadd.f32 %v4888, %v5298
        %v5300 = vpop.f32.mrf.mxu0
        %v5301 = vadd.f32 %v4892, %v5300
        %5302 = vmatprep.mubr.f32.mxu0 %v4643
        %5303 = vmatmul.mubr.f32.gmra.mxu0 %v4641
        %v5304 = vpop.f32.mrf.mxu0
        %v5305 = vadd.f32 %v4888, %v5304
        %v5306 = vpop.f32.mrf.mxu0
        %v5307 = vadd.f32 %v4892, %v5306
        %5308 = vmatprep.mubr.f32.mxu0 %v4649
        %5309 = vmatmul.mubr.f32.gmra.mxu0 %v4647
        %v5310 = vpop.f32.mrf.mxu0
        %v5311 = vadd.f32 %v4888, %v5310
        %v5312 = vpop.f32.mrf.mxu0
        %v5313 = vadd.f32 %v4892, %v5312
        %5314 = vmatprep.mubr.f32.mxu0 %v4655
        %5315 = vmatmul.mubr.f32.gmra.mxu0 %v4653
        %v5316 = vpop.f32.mrf.mxu0
        %v5317 = vadd.f32 %v4888, %v5316
        %v5318 = vpop.f32.mrf.mxu0
        %v5319 = vadd.f32 %v4892, %v5318
        %5320 = vmatprep.mubr.f32.mxu0 %v4661
        %5321 = vmatmul.mubr.f32.gmra.mxu0 %v4659
        %v5322 = vpop.f32.mrf.mxu0
        %v5323 = vadd.f32 %v4888, %v5322
        %v5324 = vpop.f32.mrf.mxu0
        %v5325 = vadd.f32 %v4892, %v5324
        %5326 = vmatprep.mubr.f32.mxu0 %v4667
        %5327 = vmatmul.mubr.f32.gmra.mxu0 %v4665
        %v5328 = vpop.f32.mrf.mxu0
        %v5329 = vadd.f32 %v4888, %v5328
        %v5330 = vpop.f32.mrf.mxu0
        %v5331 = vadd.f32 %v4892, %v5330
        %5332 = vmatprep.mubr.f32.mxu0 %v4673
        %5333 = vmatmul.mubr.f32.gmra.mxu0 %v4671
        %v5334 = vpop.f32.mrf.mxu0
        %v5335 = vadd.f32 %v4888, %v5334
        %v5336 = vpop.f32.mrf.mxu0
        %v5337 = vadd.f32 %v4892, %v5336
        %5338 = vmatprep.mubr.f32.mxu0 %v4679
        %5339 = vmatmul.mubr.f32.gmra.mxu0 %v4677
        %v5340 = vpop.f32.mrf.mxu0
        %v5341 = vadd.f32 %v4888, %v5340
        %v5342 = vpop.f32.mrf.mxu0
        %v5343 = vadd.f32 %v4892, %v5342
        %5344 = vmatprep.mubr.f32.mxu0 %v4685
        %5345 = vmatmul.mubr.f32.gmra.mxu0 %v4683
        %v5346 = vpop.f32.mrf.mxu0
        %v5347 = vadd.f32 %v4888, %v5346
        %v5348 = vpop.f32.mrf.mxu0
        %v5349 = vadd.f32 %v4892, %v5348
        %5350 = vmatprep.mubr.f32.mxu0 %v4691
        %5351 = vmatmul.mubr.f32.gmra.mxu0 %v4689
        %v5352 = vpop.f32.mrf.mxu0
        %v5353 = vadd.f32 %v4888, %v5352
        %v5354 = vpop.f32.mrf.mxu0
        %v5355 = vadd.f32 %v4892, %v5354
        %5356 = vmatprep.mubr.f32.mxu0 %v4697
        %5357 = vmatmul.mubr.f32.gmra.mxu0 %v4695
        %v5358 = vpop.f32.mrf.mxu0
        %v5359 = vadd.f32 %v4888, %v5358
        %v5360 = vpop.f32.mrf.mxu0
        %v5361 = vadd.f32 %v4892, %v5360
        %5362 = vmatprep.mubr.f32.mxu0 %v4703
        %5363 = vmatmul.mubr.f32.gmra.mxu0 %v4701
        %v5364 = vpop.f32.mrf.mxu0
        %v5365 = vadd.f32 %v4888, %v5364
        %v5366 = vpop.f32.mrf.mxu0
        %v5367 = vadd.f32 %v4892, %v5366
        %5368 = vmatprep.mubr.f32.mxu0 %v4709
        %5369 = vmatmul.mubr.f32.gmra.mxu0 %v4707
        %v5370 = vpop.f32.mrf.mxu0
        %v5371 = vadd.f32 %v4888, %v5370
        %v5372 = vpop.f32.mrf.mxu0
        %v5373 = vadd.f32 %v4892, %v5372
        %5374 = vmatprep.mubr.f32.mxu0 %v4715
        %5375 = vmatmul.mubr.f32.gmra.mxu0 %v4713
        %v5376 = vpop.f32.mrf.mxu0
        %v5377 = vadd.f32 %v4888, %v5376
        %v5378 = vpop.f32.mrf.mxu0
        %v5379 = vadd.f32 %v4892, %v5378
        %5380 = vmatprep.mubr.f32.mxu0 %v4721
        %5381 = vmatmul.mubr.f32.gmra.mxu0 %v4719
        %v5382 = vpop.f32.mrf.mxu0
        %v5383 = vadd.f32 %v4888, %v5382
        %v5384 = vpop.f32.mrf.mxu0
        %v5385 = vadd.f32 %v4892, %v5384
        %5386 = vmatprep.mubr.f32.mxu0 %v4727
        %5387 = vmatmul.mubr.f32.gmra.mxu0 %v4725
        %v5388 = vpop.f32.mrf.mxu0
        %v5389 = vadd.f32 %v4888, %v5388
        %v5390 = vpop.f32.mrf.mxu0
        %v5391 = vadd.f32 %v4892, %v5390
        %5392 = vmatprep.mubr.f32.mxu0 %v4733
        %5393 = vmatmul.mubr.f32.gmra.mxu0 %v4731
        %v5394 = vpop.f32.mrf.mxu0
        %v5395 = vadd.f32 %v4888, %v5394
        %v5396 = vpop.f32.mrf.mxu0
        %v5397 = vadd.f32 %v4892, %v5396
        %5398 = vmatprep.mubr.f32.mxu0 %v4739
        %5399 = vmatmul.mubr.f32.gmra.mxu0 %v4737
        %v5400 = vpop.f32.mrf.mxu0
        %v5401 = vadd.f32 %v4888, %v5400
        %v5402 = vpop.f32.mrf.mxu0
        %v5403 = vadd.f32 %v4892, %v5402
        %5404 = vmatprep.mubr.f32.mxu0 %v4745
        %5405 = vmatmul.mubr.f32.gmra.mxu0 %v4743
        %v5406 = vpop.f32.mrf.mxu0
        %v5407 = vadd.f32 %v4888, %v5406
        %v5408 = vpop.f32.mrf.mxu0
        %v5409 = vadd.f32 %v4892, %v5408
        %5410 = vdwg.mxu0
        %v5411 = vmax.f32 %v4964, 0.0
        %v5412 = vmax.f32 %v4966, 0.0
        %v5413 = vmax.f32 %v4970, 0.0
        %v5414 = vmax.f32 %v4972, 0.0
        %v5415 = vmax.f32 %v4976, 0.0
        %v5416 = vmax.f32 %v4978, 0.0
        %v5417 = vmax.f32 %v4982, 0.0
        %v5418 = vmax.f32 %v4984, 0.0
        %v5419 = vmax.f32 %v4988, 0.0
        %v5420 = vmax.f32 %v4990, 0.0
        %v5421 = vmax.f32 %v4994, 0.0
        %v5422 = vmax.f32 %v4996, 0.0
        %v5423 = vmax.f32 %v5000, 0.0
        %v5424 = vmax.f32 %v5002, 0.0
        %v5425 = vmax.f32 %v5006, 0.0
        %v5426 = vmax.f32 %v5008, 0.0
        %v5427 = vmax.f32 %v5012, 0.0
        %v5428 = vmax.f32 %v5014, 0.0
        %v5429 = vmax.f32 %v5018, 0.0
        %v5430 = vmax.f32 %v5020, 0.0
        %v5431 = vmax.f32 %v5024, 0.0
        %v5432 = vmax.f32 %v5026, 0.0
        %v5433 = vmax.f32 %v5030, 0.0
        %v5434 = vmax.f32 %v5032, 0.0
        %v5435 = vmax.f32 %v5036, 0.0
        %v5436 = vmax.f32 %v5038, 0.0
        %v5437 = vmax.f32 %v5042, 0.0
        %v5438 = vmax.f32 %v5044, 0.0
        %v5439 = vmax.f32 %v5048, 0.0
        %v5440 = vmax.f32 %v5050, 0.0
        %v5441 = vmax.f32 %v5054, 0.0
        %v5442 = vmax.f32 %v5056, 0.0
        %v5443 = vmax.f32 %v5060, 0.0
        %v5444 = vmax.f32 %v5062, 0.0
        %v5445 = vmax.f32 %v5066, 0.0
        %v5446 = vmax.f32 %v5068, 0.0
        %v5447 = vmax.f32 %v5072, 0.0
        %v5448 = vmax.f32 %v5074, 0.0
        %v5449 = vmax.f32 %v5078, 0.0
        %v5450 = vmax.f32 %v5080, 0.0
        %v5451 = vmax.f32 %v5084, 0.0
        %v5452 = vmax.f32 %v5086, 0.0
        %v5453 = vmax.f32 %v5090, 0.0
        %v5454 = vmax.f32 %v5092, 0.0
        %v5455 = vmax.f32 %v5096, 0.0
        %v5456 = vmax.f32 %v5098, 0.0
        %v5457 = vmax.f32 %v5102, 0.0
        %v5458 = vmax.f32 %v5104, 0.0
        %v5459 = vmax.f32 %v5108, 0.0
        %v5460 = vmax.f32 %v5110, 0.0
        %v5461 = vmax.f32 %v5114, 0.0
        %v5462 = vmax.f32 %v5116, 0.0
        %v5463 = vmax.f32 %v5120, 0.0
        %v5464 = vmax.f32 %v5122, 0.0
        %v5465 = vmax.f32 %v5126, 0.0
        %v5466 = vmax.f32 %v5128, 0.0
        %v5467 = vmax.f32 %v5132, 0.0
        %v5468 = vmax.f32 %v5134, 0.0
        %v5469 = vmax.f32 %v5138, 0.0
        %v5470 = vmax.f32 %v5140, 0.0
        %v5471 = vmax.f32 %v5144, 0.0
        %v5472 = vmax.f32 %v5146, 0.0
        %v5473 = vmax.f32 %v5150, 0.0
        %v5474 = vmax.f32 %v5152, 0.0
        %vm5475 = vcmp.ne.f32.partialorder %v4964, %v4964
        %vm5476 = vcmp.ne.f32.partialorder %v4966, %v4966
        %vm5477 = vcmp.ne.f32.partialorder %v4970, %v4970
        %vm5478 = vcmp.ne.f32.partialorder %v4972, %v4972
        %vm5479 = vcmp.ne.f32.partialorder %v4976, %v4976
        %vm5480 = vcmp.ne.f32.partialorder %v4978, %v4978
        %vm5481 = vcmp.ne.f32.partialorder %v4982, %v4982
        %vm5482 = vcmp.ne.f32.partialorder %v4984, %v4984
        %vm5483 = vcmp.ne.f32.partialorder %v4988, %v4988
        %vm5484 = vcmp.ne.f32.partialorder %v4990, %v4990
        %vm5485 = vcmp.ne.f32.partialorder %v4994, %v4994
        %vm5486 = vcmp.ne.f32.partialorder %v4996, %v4996
        %vm5487 = vcmp.ne.f32.partialorder %v5000, %v5000
        %vm5488 = vcmp.ne.f32.partialorder %v5002, %v5002
        %vm5489 = vcmp.ne.f32.partialorder %v5006, %v5006
        %vm5490 = vcmp.ne.f32.partialorder %v5008, %v5008
        %vm5491 = vcmp.ne.f32.partialorder %v5012, %v5012
        %vm5492 = vcmp.ne.f32.partialorder %v5014, %v5014
        %vm5493 = vcmp.ne.f32.partialorder %v5018, %v5018
        %vm5494 = vcmp.ne.f32.partialorder %v5020, %v5020
        %vm5495 = vcmp.ne.f32.partialorder %v5024, %v5024
        %vm5496 = vcmp.ne.f32.partialorder %v5026, %v5026
        %vm5497 = vcmp.ne.f32.partialorder %v5030, %v5030
        %vm5498 = vcmp.ne.f32.partialorder %v5032, %v5032
        %vm5499 = vcmp.ne.f32.partialorder %v5036, %v5036
        %vm5500 = vcmp.ne.f32.partialorder %v5038, %v5038
        %vm5501 = vcmp.ne.f32.partialorder %v5042, %v5042
        %vm5502 = vcmp.ne.f32.partialorder %v5044, %v5044
        %vm5503 = vcmp.ne.f32.partialorder %v5048, %v5048
        %vm5504 = vcmp.ne.f32.partialorder %v5050, %v5050
        %vm5505 = vcmp.ne.f32.partialorder %v5054, %v5054
        %vm5506 = vcmp.ne.f32.partialorder %v5056, %v5056
        %vm5507 = vcmp.ne.f32.partialorder %v5060, %v5060
        %vm5508 = vcmp.ne.f32.partialorder %v5062, %v5062
        %vm5509 = vcmp.ne.f32.partialorder %v5066, %v5066
        %vm5510 = vcmp.ne.f32.partialorder %v5068, %v5068
        %vm5511 = vcmp.ne.f32.partialorder %v5072, %v5072
        %vm5512 = vcmp.ne.f32.partialorder %v5074, %v5074
        %vm5513 = vcmp.ne.f32.partialorder %v5078, %v5078
        %vm5514 = vcmp.ne.f32.partialorder %v5080, %v5080
        %vm5515 = vcmp.ne.f32.partialorder %v5084, %v5084
        %vm5516 = vcmp.ne.f32.partialorder %v5086, %v5086
        %vm5517 = vcmp.ne.f32.partialorder %v5090, %v5090
        %vm5518 = vcmp.ne.f32.partialorder %v5092, %v5092
        %vm5519 = vcmp.ne.f32.partialorder %v5096, %v5096
        %vm5520 = vcmp.ne.f32.partialorder %v5098, %v5098
        %vm5521 = vcmp.ne.f32.partialorder %v5102, %v5102
        %vm5522 = vcmp.ne.f32.partialorder %v5104, %v5104
        %vm5523 = vcmp.ne.f32.partialorder %v5108, %v5108
        %vm5524 = vcmp.ne.f32.partialorder %v5110, %v5110
        %vm5525 = vcmp.ne.f32.partialorder %v5114, %v5114
        %vm5526 = vcmp.ne.f32.partialorder %v5116, %v5116
        %vm5527 = vcmp.ne.f32.partialorder %v5120, %v5120
        %vm5528 = vcmp.ne.f32.partialorder %v5122, %v5122
        %vm5529 = vcmp.ne.f32.partialorder %v5126, %v5126
        %vm5530 = vcmp.ne.f32.partialorder %v5128, %v5128
        %vm5531 = vcmp.ne.f32.partialorder %v5132, %v5132
        %vm5532 = vcmp.ne.f32.partialorder %v5134, %v5134
        %vm5533 = vcmp.ne.f32.partialorder %v5138, %v5138
        %vm5534 = vcmp.ne.f32.partialorder %v5140, %v5140
        %vm5535 = vcmp.ne.f32.partialorder %v5144, %v5144
        %vm5536 = vcmp.ne.f32.partialorder %v5146, %v5146
        %vm5537 = vcmp.ne.f32.partialorder %v5150, %v5150
        %vm5538 = vcmp.ne.f32.partialorder %v5152, %v5152
        %v5539 = vadd.f32 %v4964, 0.0
        %v5540 = vadd.f32 %v4966, 0.0
        %v5541 = vadd.f32 %v4970, 0.0
        %v5542 = vadd.f32 %v4972, 0.0
        %v5543 = vadd.f32 %v4976, 0.0
        %v5544 = vadd.f32 %v4978, 0.0
        %v5545 = vadd.f32 %v4982, 0.0
        %v5546 = vadd.f32 %v4984, 0.0
        %v5547 = vadd.f32 %v4988, 0.0
        %v5548 = vadd.f32 %v4990, 0.0
        %v5549 = vadd.f32 %v4994, 0.0
        %v5550 = vadd.f32 %v4996, 0.0
        %v5551 = vadd.f32 %v5000, 0.0
        %v5552 = vadd.f32 %v5002, 0.0
        %v5553 = vadd.f32 %v5006, 0.0
        %v5554 = vadd.f32 %v5008, 0.0
        %v5555 = vadd.f32 %v5012, 0.0
        %v5556 = vadd.f32 %v5014, 0.0
        %v5557 = vadd.f32 %v5018, 0.0
        %v5558 = vadd.f32 %v5020, 0.0
        %v5559 = vadd.f32 %v5024, 0.0
        %v5560 = vadd.f32 %v5026, 0.0
        %v5561 = vadd.f32 %v5030, 0.0
        %v5562 = vadd.f32 %v5032, 0.0
        %v5563 = vadd.f32 %v5036, 0.0
        %v5564 = vadd.f32 %v5038, 0.0
        %v5565 = vadd.f32 %v5042, 0.0
        %v5566 = vadd.f32 %v5044, 0.0
        %v5567 = vadd.f32 %v5048, 0.0
        %v5568 = vadd.f32 %v5050, 0.0
        %v5569 = vadd.f32 %v5054, 0.0
        %v5570 = vadd.f32 %v5056, 0.0
        %v5571 = vadd.f32 %v5060, 0.0
        %v5572 = vadd.f32 %v5062, 0.0
        %v5573 = vadd.f32 %v5066, 0.0
        %v5574 = vadd.f32 %v5068, 0.0
        %v5575 = vadd.f32 %v5072, 0.0
        %v5576 = vadd.f32 %v5074, 0.0
        %v5577 = vadd.f32 %v5078, 0.0
        %v5578 = vadd.f32 %v5080, 0.0
        %v5579 = vadd.f32 %v5084, 0.0
        %v5580 = vadd.f32 %v5086, 0.0
        %v5581 = vadd.f32 %v5090, 0.0
        %v5582 = vadd.f32 %v5092, 0.0
        %v5583 = vadd.f32 %v5096, 0.0
        %v5584 = vadd.f32 %v5098, 0.0
        %v5585 = vadd.f32 %v5102, 0.0
        %v5586 = vadd.f32 %v5104, 0.0
        %v5587 = vadd.f32 %v5108, 0.0
        %v5588 = vadd.f32 %v5110, 0.0
        %v5589 = vadd.f32 %v5114, 0.0
        %v5590 = vadd.f32 %v5116, 0.0
        %v5591 = vadd.f32 %v5120, 0.0
        %v5592 = vadd.f32 %v5122, 0.0
        %v5593 = vadd.f32 %v5126, 0.0
        %v5594 = vadd.f32 %v5128, 0.0
        %v5595 = vadd.f32 %v5132, 0.0
        %v5596 = vadd.f32 %v5134, 0.0
        %v5597 = vadd.f32 %v5138, 0.0
        %v5598 = vadd.f32 %v5140, 0.0
        %v5599 = vadd.f32 %v5144, 0.0
        %v5600 = vadd.f32 %v5146, 0.0
        %v5601 = vadd.f32 %v5150, 0.0
        %v5602 = vadd.f32 %v5152, 0.0
        %v5603 = vand.u32 2147483647, %v4964
        %v5604 = vand.u32 2147483647, %v4966
        %v5605 = vand.u32 2147483647, %v4970
        %v5606 = vand.u32 2147483647, %v4972
        %v5607 = vand.u32 2147483647, %v4976
        %v5608 = vand.u32 2147483647, %v4978
        %v5609 = vand.u32 2147483647, %v4982
        %v5610 = vand.u32 2147483647, %v4984
        %v5611 = vand.u32 2147483647, %v4988
        %v5612 = vand.u32 2147483647, %v4990
        %v5613 = vand.u32 2147483647, %v4994
        %v5614 = vand.u32 2147483647, %v4996
        %v5615 = vand.u32 2147483647, %v5000
        %v5616 = vand.u32 2147483647, %v5002
        %v5617 = vand.u32 2147483647, %v5006
        %v5618 = vand.u32 2147483647, %v5008
        %v5619 = vand.u32 2147483647, %v5012
        %v5620 = vand.u32 2147483647, %v5014
        %v5621 = vand.u32 2147483647, %v5018
        %v5622 = vand.u32 2147483647, %v5020
        %v5623 = vand.u32 2147483647, %v5024
        %v5624 = vand.u32 2147483647, %v5026
        %v5625 = vand.u32 2147483647, %v5030
        %v5626 = vand.u32 2147483647, %v5032
        %v5627 = vand.u32 2147483647, %v5036
        %v5628 = vand.u32 2147483647, %v5038
        %v5629 = vand.u32 2147483647, %v5042
        %v5630 = vand.u32 2147483647, %v5044
        %v5631 = vand.u32 2147483647, %v5048
        %v5632 = vand.u32 2147483647, %v5050
        %v5633 = vand.u32 2147483647, %v5054
        %v5634 = vand.u32 2147483647, %v5056
        %v5635 = vand.u32 2147483647, %v5060
        %v5636 = vand.u32 2147483647, %v5062
        %v5637 = vand.u32 2147483647, %v5066
        %v5638 = vand.u32 2147483647, %v5068
        %v5639 = vand.u32 2147483647, %v5072
        %v5640 = vand.u32 2147483647, %v5074
        %v5641 = vand.u32 2147483647, %v5078
        %v5642 = vand.u32 2147483647, %v5080
        %v5643 = vand.u32 2147483647, %v5084
        %v5644 = vand.u32 2147483647, %v5086
        %v5645 = vand.u32 2147483647, %v5090
        %v5646 = vand.u32 2147483647, %v5092
        %v5647 = vand.u32 2147483647, %v5096
        %v5648 = vand.u32 2147483647, %v5098
        %v5649 = vand.u32 2147483647, %v5102
        %v5650 = vand.u32 2147483647, %v5104
        %v5651 = vand.u32 2147483647, %v5108
        %v5652 = vand.u32 2147483647, %v5110
        %v5653 = vand.u32 2147483647, %v5114
        %v5654 = vand.u32 2147483647, %v5116
        %v5655 = vand.u32 2147483647, %v5120
        %v5656 = vand.u32 2147483647, %v5122
        %v5657 = vand.u32 2147483647, %v5126
        %v5658 = vand.u32 2147483647, %v5128
        %v5659 = vand.u32 2147483647, %v5132
        %v5660 = vand.u32 2147483647, %v5134
        %v5661 = vand.u32 2147483647, %v5138
        %v5662 = vand.u32 2147483647, %v5140
        %v5663 = vand.u32 2147483647, %v5144
        %v5664 = vand.u32 2147483647, %v5146
        %v5665 = vand.u32 2147483647, %v5150
        %v5666 = vand.u32 2147483647, %v5152
        %v5667 = vsub.f32 0.0, %v5603
        %v5668 = vsub.f32 0.0, %v5604
        %v5669 = vsub.f32 0.0, %v5605
        %v5670 = vsub.f32 0.0, %v5606
        %v5671 = vsub.f32 0.0, %v5607
        %v5672 = vsub.f32 0.0, %v5608
        %v5673 = vsub.f32 0.0, %v5609
        %v5674 = vsub.f32 0.0, %v5610
        %v5675 = vsub.f32 0.0, %v5611
        %v5676 = vsub.f32 0.0, %v5612
        %v5677 = vsub.f32 0.0, %v5613
        %v5678 = vsub.f32 0.0, %v5614
        %v5679 = vsub.f32 0.0, %v5615
        %v5680 = vsub.f32 0.0, %v5616
        %v5681 = vsub.f32 0.0, %v5617
        %v5682 = vsub.f32 0.0, %v5618
        %v5683 = vsub.f32 0.0, %v5619
        %v5684 = vsub.f32 0.0, %v5620
        %v5685 = vsub.f32 0.0, %v5621
        %v5686 = vsub.f32 0.0, %v5622
        %v5687 = vsub.f32 0.0, %v5623
        %v5688 = vsub.f32 0.0, %v5624
        %v5689 = vsub.f32 0.0, %v5625
        %v5690 = vsub.f32 0.0, %v5626
        %v5691 = vsub.f32 0.0, %v5627
        %v5692 = vsub.f32 0.0, %v5628
        %v5693 = vsub.f32 0.0, %v5629
        %v5694 = vsub.f32 0.0, %v5630
        %v5695 = vsub.f32 0.0, %v5631
        %v5696 = vsub.f32 0.0, %v5632
        %v5697 = vsub.f32 0.0, %v5633
        %v5698 = vsub.f32 0.0, %v5634
        %v5699 = vsub.f32 0.0, %v5635
        %v5700 = vsub.f32 0.0, %v5636
        %v5701 = vsub.f32 0.0, %v5637
        %v5702 = vsub.f32 0.0, %v5638
        %v5703 = vsub.f32 0.0, %v5639
        %v5704 = vsub.f32 0.0, %v5640
        %v5705 = vsub.f32 0.0, %v5641
        %v5706 = vsub.f32 0.0, %v5642
        %v5707 = vsub.f32 0.0, %v5643
        %v5708 = vsub.f32 0.0, %v5644
        %v5709 = vsub.f32 0.0, %v5645
        %v5710 = vsub.f32 0.0, %v5646
        %v5711 = vsub.f32 0.0, %v5647
        %v5712 = vsub.f32 0.0, %v5648
        %v5713 = vsub.f32 0.0, %v5649
        %v5714 = vsub.f32 0.0, %v5650
        %v5715 = vsub.f32 0.0, %v5651
        %v5716 = vsub.f32 0.0, %v5652
        %v5717 = vsub.f32 0.0, %v5653
        %v5718 = vsub.f32 0.0, %v5654
        %v5719 = vsub.f32 0.0, %v5655
        %v5720 = vsub.f32 0.0, %v5656
        %v5721 = vsub.f32 0.0, %v5657
        %v5722 = vsub.f32 0.0, %v5658
        %v5723 = vsub.f32 0.0, %v5659
        %v5724 = vsub.f32 0.0, %v5660
        %v5725 = vsub.f32 0.0, %v5661
        %v5726 = vsub.f32 0.0, %v5662
        %v5727 = vsub.f32 0.0, %v5663
        %v5728 = vsub.f32 0.0, %v5664
        %v5729 = vsub.f32 0.0, %v5665
        %v5730 = vsub.f32 0.0, %v5666
        %v5731 = vmul.f32 %v5667, 1.442695
        %v5732 = vpow.pop %v5731
        %v5733 = vmul.f32 %v5668, 1.442695
        %v5734 = vpow.pop %v5733
        %v5735 = vmul.f32 %v5669, 1.442695
        %v5736 = vpow.pop %v5735
        %v5737 = vmul.f32 %v5670, 1.442695
        %v5738 = vpow.pop %v5737
        %v5739 = vmul.f32 %v5671, 1.442695
        %v5740 = vpow.pop %v5739
        %v5741 = vmul.f32 %v5672, 1.442695
        %v5742 = vpow.pop %v5741
        %v5743 = vmul.f32 %v5673, 1.442695
        %v5744 = vpow.pop %v5743
        %v5745 = vmul.f32 %v5674, 1.442695
        %v5746 = vpow.pop %v5745
        %v5747 = vmul.f32 %v5675, 1.442695
        %v5748 = vpow.pop %v5747
        %v5749 = vmul.f32 %v5676, 1.442695
        %v5750 = vpow.pop %v5749
        %v5751 = vmul.f32 %v5677, 1.442695
        %v5752 = vpow.pop %v5751
        %v5753 = vmul.f32 %v5678, 1.442695
        %v5754 = vpow.pop %v5753
        %v5755 = vmul.f32 %v5679, 1.442695
        %v5756 = vpow.pop %v5755
        %v5757 = vmul.f32 %v5680, 1.442695
        %v5758 = vpow.pop %v5757
        %v5759 = vmul.f32 %v5681, 1.442695
        %v5760 = vpow.pop %v5759
        %v5761 = vmul.f32 %v5682, 1.442695
        %v5762 = vpow.pop %v5761
        %v5763 = vmul.f32 %v5683, 1.442695
        %v5764 = vpow.pop %v5763
        %v5765 = vmul.f32 %v5684, 1.442695
        %v5766 = vpow.pop %v5765
        %v5767 = vmul.f32 %v5685, 1.442695
        %v5768 = vpow.pop %v5767
        %v5769 = vmul.f32 %v5686, 1.442695
        %v5770 = vpow.pop %v5769
        %v5771 = vmul.f32 %v5687, 1.442695
        %v5772 = vpow.pop %v5771
        %v5773 = vmul.f32 %v5688, 1.442695
        %v5774 = vpow.pop %v5773
        %v5775 = vmul.f32 %v5689, 1.442695
        %v5776 = vpow.pop %v5775
        %v5777 = vmul.f32 %v5690, 1.442695
        %v5778 = vpow.pop %v5777
        %v5779 = vmul.f32 %v5691, 1.442695
        %v5780 = vpow.pop %v5779
        %v5781 = vmul.f32 %v5692, 1.442695
        %v5782 = vpow.pop %v5781
        %v5783 = vmul.f32 %v5693, 1.442695
        %v5784 = vpow.pop %v5783
        %v5785 = vmul.f32 %v5694, 1.442695
        %v5786 = vpow.pop %v5785
        %v5787 = vmul.f32 %v5695, 1.442695
        %v5788 = vpow.pop %v5787
        %v5789 = vmul.f32 %v5696, 1.442695
        %v5790 = vpow.pop %v5789
        %v5791 = vmul.f32 %v5697, 1.442695
        %v5792 = vpow.pop %v5791
        %v5793 = vmul.f32 %v5698, 1.442695
        %v5794 = vpow.pop %v5793
        %v5795 = vmul.f32 %v5699, 1.442695
        %v5796 = vpow.pop %v5795
        %v5797 = vmul.f32 %v5700, 1.442695
        %v5798 = vpow.pop %v5797
        %v5799 = vmul.f32 %v5701, 1.442695
        %v5800 = vpow.pop %v5799
        %v5801 = vmul.f32 %v5702, 1.442695
        %v5802 = vpow.pop %v5801
        %v5803 = vmul.f32 %v5703, 1.442695
        %v5804 = vpow.pop %v5803
        %v5805 = vmul.f32 %v5704, 1.442695
        %v5806 = vpow.pop %v5805
        %v5807 = vmul.f32 %v5705, 1.442695
        %v5808 = vpow.pop %v5807
        %v5809 = vmul.f32 %v5706, 1.442695
        %v5810 = vpow.pop %v5809
        %v5811 = vmul.f32 %v5707, 1.442695
        %v5812 = vpow.pop %v5811
        %v5813 = vmul.f32 %v5708, 1.442695
        %v5814 = vpow.pop %v5813
        %v5815 = vmul.f32 %v5709, 1.442695
        %v5816 = vpow.pop %v5815
        %v5817 = vmul.f32 %v5710, 1.442695
        %v5818 = vpow.pop %v5817
        %v5819 = vmul.f32 %v5711, 1.442695
        %v5820 = vpow.pop %v5819
        %v5821 = vmul.f32 %v5712, 1.442695
        %v5822 = vpow.pop %v5821
        %v5823 = vmul.f32 %v5713, 1.442695
        %v5824 = vpow.pop %v5823
        %v5825 = vmul.f32 %v5714, 1.442695
        %v5826 = vpow.pop %v5825
        %v5827 = vmul.f32 %v5715, 1.442695
        %v5828 = vpow.pop %v5827
        %v5829 = vmul.f32 %v5716, 1.442695
        %v5830 = vpow.pop %v5829
        %v5831 = vmul.f32 %v5717, 1.442695
        %v5832 = vpow.pop %v5831
        %v5833 = vmul.f32 %v5718, 1.442695
        %v5834 = vpow.pop %v5833
        %v5835 = vmul.f32 %v5719, 1.442695
        %v5836 = vpow.pop %v5835
        %v5837 = vmul.f32 %v5720, 1.442695
        %v5838 = vpow.pop %v5837
        %v5839 = vmul.f32 %v5721, 1.442695
        %v5840 = vpow.pop %v5839
        %v5841 = vmul.f32 %v5722, 1.442695
        %v5842 = vpow.pop %v5841
        %v5843 = vmul.f32 %v5723, 1.442695
        %v5844 = vpow.pop %v5843
        %v5845 = vmul.f32 %v5724, 1.442695
        %v5846 = vpow.pop %v5845
        %v5847 = vmul.f32 %v5725, 1.442695
        %v5848 = vpow.pop %v5847
        %v5849 = vmul.f32 %v5726, 1.442695
        %v5850 = vpow.pop %v5849
        %v5851 = vmul.f32 %v5727, 1.442695
        %v5852 = vpow.pop %v5851
        %v5853 = vmul.f32 %v5728, 1.442695
        %v5854 = vpow.pop %v5853
        %v5855 = vmul.f32 %v5729, 1.442695
        %v5856 = vpow.pop %v5855
        %v5857 = vmul.f32 %v5730, 1.442695
        %v5858 = vpow.pop %v5857
        %v5859 = vadd.f32 %v5732, 1.0
        %v5860 = vlog2.pop %v5859
        %v5861 = vmul.f32 %v5860, 0.6931472
        %v5862 = vmul.f32 -0.5, %v5732
        %v5863 = vadd.f32 %v5862, 1.0
        %v5864 = vmul.f32 %v5863, %v5732
        %v5865 = vand.u32 2147483647, %v5732
        %vm5866 = vcmp.lt.f32.partialorder %v5865, 0.0004427343
        %v5867 = vsel %vm5866, %v5864, %v5861
        %v5868 = vadd.f32 %v5734, 1.0
        %v5869 = vlog2.pop %v5868
        %v5870 = vmul.f32 %v5869, 0.6931472
        %v5871 = vmul.f32 -0.5, %v5734
        %v5872 = vadd.f32 %v5871, 1.0
        %v5873 = vmul.f32 %v5872, %v5734
        %v5874 = vand.u32 2147483647, %v5734
        %vm5875 = vcmp.lt.f32.partialorder %v5874, 0.0004427343
        %v5876 = vsel %vm5875, %v5873, %v5870
        %v5877 = vadd.f32 %v5736, 1.0
        %v5878 = vlog2.pop %v5877
        %v5879 = vmul.f32 %v5878, 0.6931472
        %v5880 = vmul.f32 -0.5, %v5736
        %v5881 = vadd.f32 %v5880, 1.0
        %v5882 = vmul.f32 %v5881, %v5736
        %v5883 = vand.u32 2147483647, %v5736
        %vm5884 = vcmp.lt.f32.partialorder %v5883, 0.0004427343
        %v5885 = vsel %vm5884, %v5882, %v5879
        %v5886 = vadd.f32 %v5738, 1.0
        %v5887 = vlog2.pop %v5886
        %v5888 = vmul.f32 %v5887, 0.6931472
        %v5889 = vmul.f32 -0.5, %v5738
        %v5890 = vadd.f32 %v5889, 1.0
        %v5891 = vmul.f32 %v5890, %v5738
        %v5892 = vand.u32 2147483647, %v5738
        %vm5893 = vcmp.lt.f32.partialorder %v5892, 0.0004427343
        %v5894 = vsel %vm5893, %v5891, %v5888
        %v5895 = vadd.f32 %v5740, 1.0
        %v5896 = vlog2.pop %v5895
        %v5897 = vmul.f32 %v5896, 0.6931472
        %v5898 = vmul.f32 -0.5, %v5740
        %v5899 = vadd.f32 %v5898, 1.0
        %v5900 = vmul.f32 %v5899, %v5740
        %v5901 = vand.u32 2147483647, %v5740
        %vm5902 = vcmp.lt.f32.partialorder %v5901, 0.0004427343
        %v5903 = vsel %vm5902, %v5900, %v5897
        %v5904 = vadd.f32 %v5742, 1.0
        %v5905 = vlog2.pop %v5904
        %v5906 = vmul.f32 %v5905, 0.6931472
        %v5907 = vmul.f32 -0.5, %v5742
        %v5908 = vadd.f32 %v5907, 1.0
        %v5909 = vmul.f32 %v5908, %v5742
        %v5910 = vand.u32 2147483647, %v5742
        %vm5911 = vcmp.lt.f32.partialorder %v5910, 0.0004427343
        %v5912 = vsel %vm5911, %v5909, %v5906
        %v5913 = vadd.f32 %v5744, 1.0
        %v5914 = vlog2.pop %v5913
        %v5915 = vmul.f32 %v5914, 0.6931472
        %v5916 = vmul.f32 -0.5, %v5744
        %v5917 = vadd.f32 %v5916, 1.0
        %v5918 = vmul.f32 %v5917, %v5744
        %v5919 = vand.u32 2147483647, %v5744
        %vm5920 = vcmp.lt.f32.partialorder %v5919, 0.0004427343
        %v5921 = vsel %vm5920, %v5918, %v5915
        %v5922 = vadd.f32 %v5746, 1.0
        %v5923 = vlog2.pop %v5922
        %v5924 = vmul.f32 %v5923, 0.6931472
        %v5925 = vmul.f32 -0.5, %v5746
        %v5926 = vadd.f32 %v5925, 1.0
        %v5927 = vmul.f32 %v5926, %v5746
        %v5928 = vand.u32 2147483647, %v5746
        %vm5929 = vcmp.lt.f32.partialorder %v5928, 0.0004427343
        %v5930 = vsel %vm5929, %v5927, %v5924
        %v5931 = vadd.f32 %v5748, 1.0
        %v5932 = vlog2.pop %v5931
        %v5933 = vmul.f32 %v5932, 0.6931472
        %v5934 = vmul.f32 -0.5, %v5748
        %v5935 = vadd.f32 %v5934, 1.0
        %v5936 = vmul.f32 %v5935, %v5748
        %v5937 = vand.u32 2147483647, %v5748
        %vm5938 = vcmp.lt.f32.partialorder %v5937, 0.0004427343
        %v5939 = vsel %vm5938, %v5936, %v5933
        %v5940 = vadd.f32 %v5750, 1.0
        %v5941 = vlog2.pop %v5940
        %v5942 = vmul.f32 %v5941, 0.6931472
        %v5943 = vmul.f32 -0.5, %v5750
        %v5944 = vadd.f32 %v5943, 1.0
        %v5945 = vmul.f32 %v5944, %v5750
        %v5946 = vand.u32 2147483647, %v5750
        %vm5947 = vcmp.lt.f32.partialorder %v5946, 0.0004427343
        %v5948 = vsel %vm5947, %v5945, %v5942
        %v5949 = vadd.f32 %v5752, 1.0
        %v5950 = vlog2.pop %v5949
        %v5951 = vmul.f32 %v5950, 0.6931472
        %v5952 = vmul.f32 -0.5, %v5752
        %v5953 = vadd.f32 %v5952, 1.0
        %v5954 = vmul.f32 %v5953, %v5752
        %v5955 = vand.u32 2147483647, %v5752
        %vm5956 = vcmp.lt.f32.partialorder %v5955, 0.0004427343
        %v5957 = vsel %vm5956, %v5954, %v5951
        %v5958 = vadd.f32 %v5754, 1.0
        %v5959 = vlog2.pop %v5958
        %v5960 = vmul.f32 %v5959, 0.6931472
        %v5961 = vmul.f32 -0.5, %v5754
        %v5962 = vadd.f32 %v5961, 1.0
        %v5963 = vmul.f32 %v5962, %v5754
        %v5964 = vand.u32 2147483647, %v5754
        %vm5965 = vcmp.lt.f32.partialorder %v5964, 0.0004427343
        %v5966 = vsel %vm5965, %v5963, %v5960
        %v5967 = vadd.f32 %v5756, 1.0
        %v5968 = vlog2.pop %v5967
        %v5969 = vmul.f32 %v5968, 0.6931472
        %v5970 = vmul.f32 -0.5, %v5756
        %v5971 = vadd.f32 %v5970, 1.0
        %v5972 = vmul.f32 %v5971, %v5756
        %v5973 = vand.u32 2147483647, %v5756
        %vm5974 = vcmp.lt.f32.partialorder %v5973, 0.0004427343
        %v5975 = vsel %vm5974, %v5972, %v5969
        %v5976 = vadd.f32 %v5758, 1.0
        %v5977 = vlog2.pop %v5976
        %v5978 = vmul.f32 %v5977, 0.6931472
        %v5979 = vmul.f32 -0.5, %v5758
        %v5980 = vadd.f32 %v5979, 1.0
        %v5981 = vmul.f32 %v5980, %v5758
        %v5982 = vand.u32 2147483647, %v5758
        %vm5983 = vcmp.lt.f32.partialorder %v5982, 0.0004427343
        %v5984 = vsel %vm5983, %v5981, %v5978
        %v5985 = vadd.f32 %v5760, 1.0
        %v5986 = vlog2.pop %v5985
        %v5987 = vmul.f32 %v5986, 0.6931472
        %v5988 = vmul.f32 -0.5, %v5760
        %v5989 = vadd.f32 %v5988, 1.0
        %v5990 = vmul.f32 %v5989, %v5760
        %v5991 = vand.u32 2147483647, %v5760
        %vm5992 = vcmp.lt.f32.partialorder %v5991, 0.0004427343
        %v5993 = vsel %vm5992, %v5990, %v5987
        %v5994 = vadd.f32 %v5762, 1.0
        %v5995 = vlog2.pop %v5994
        %v5996 = vmul.f32 %v5995, 0.6931472
        %v5997 = vmul.f32 -0.5, %v5762
        %v5998 = vadd.f32 %v5997, 1.0
        %v5999 = vmul.f32 %v5998, %v5762
        %v6000 = vand.u32 2147483647, %v5762
        %vm6001 = vcmp.lt.f32.partialorder %v6000, 0.0004427343
        %v6002 = vsel %vm6001, %v5999, %v5996
        %v6003 = vadd.f32 %v5764, 1.0
        %v6004 = vlog2.pop %v6003
        %v6005 = vmul.f32 %v6004, 0.6931472
        %v6006 = vmul.f32 -0.5, %v5764
        %v6007 = vadd.f32 %v6006, 1.0
        %v6008 = vmul.f32 %v6007, %v5764
        %v6009 = vand.u32 2147483647, %v5764
        %vm6010 = vcmp.lt.f32.partialorder %v6009, 0.0004427343
        %v6011 = vsel %vm6010, %v6008, %v6005
        %v6012 = vadd.f32 %v5766, 1.0
        %v6013 = vlog2.pop %v6012
        %v6014 = vmul.f32 %v6013, 0.6931472
        %v6015 = vmul.f32 -0.5, %v5766
        %v6016 = vadd.f32 %v6015, 1.0
        %v6017 = vmul.f32 %v6016, %v5766
        %v6018 = vand.u32 2147483647, %v5766
        %vm6019 = vcmp.lt.f32.partialorder %v6018, 0.0004427343
        %v6020 = vsel %vm6019, %v6017, %v6014
        %v6021 = vadd.f32 %v5768, 1.0
        %v6022 = vlog2.pop %v6021
        %v6023 = vmul.f32 %v6022, 0.6931472
        %v6024 = vmul.f32 -0.5, %v5768
        %v6025 = vadd.f32 %v6024, 1.0
        %v6026 = vmul.f32 %v6025, %v5768
        %v6027 = vand.u32 2147483647, %v5768
        %vm6028 = vcmp.lt.f32.partialorder %v6027, 0.0004427343
        %v6029 = vsel %vm6028, %v6026, %v6023
        %v6030 = vadd.f32 %v5770, 1.0
        %v6031 = vlog2.pop %v6030
        %v6032 = vmul.f32 %v6031, 0.6931472
        %v6033 = vmul.f32 -0.5, %v5770
        %v6034 = vadd.f32 %v6033, 1.0
        %v6035 = vmul.f32 %v6034, %v5770
        %v6036 = vand.u32 2147483647, %v5770
        %vm6037 = vcmp.lt.f32.partialorder %v6036, 0.0004427343
        %v6038 = vsel %vm6037, %v6035, %v6032
        %v6039 = vadd.f32 %v5772, 1.0
        %v6040 = vlog2.pop %v6039
        %v6041 = vmul.f32 %v6040, 0.6931472
        %v6042 = vmul.f32 -0.5, %v5772
        %v6043 = vadd.f32 %v6042, 1.0
        %v6044 = vmul.f32 %v6043, %v5772
        %v6045 = vand.u32 2147483647, %v5772
        %vm6046 = vcmp.lt.f32.partialorder %v6045, 0.0004427343
        %v6047 = vsel %vm6046, %v6044, %v6041
        %v6048 = vadd.f32 %v5774, 1.0
        %v6049 = vlog2.pop %v6048
        %v6050 = vmul.f32 %v6049, 0.6931472
        %v6051 = vmul.f32 -0.5, %v5774
        %v6052 = vadd.f32 %v6051, 1.0
        %v6053 = vmul.f32 %v6052, %v5774
        %v6054 = vand.u32 2147483647, %v5774
        %vm6055 = vcmp.lt.f32.partialorder %v6054, 0.0004427343
        %v6056 = vsel %vm6055, %v6053, %v6050
        %v6057 = vadd.f32 %v5776, 1.0
        %v6058 = vlog2.pop %v6057
        %v6059 = vmul.f32 %v6058, 0.6931472
        %v6060 = vmul.f32 -0.5, %v5776
        %v6061 = vadd.f32 %v6060, 1.0
        %v6062 = vmul.f32 %v6061, %v5776
        %v6063 = vand.u32 2147483647, %v5776
        %vm6064 = vcmp.lt.f32.partialorder %v6063, 0.0004427343
        %v6065 = vsel %vm6064, %v6062, %v6059
        %v6066 = vadd.f32 %v5778, 1.0
        %v6067 = vlog2.pop %v6066
        %v6068 = vmul.f32 %v6067, 0.6931472
        %v6069 = vmul.f32 -0.5, %v5778
        %v6070 = vadd.f32 %v6069, 1.0
        %v6071 = vmul.f32 %v6070, %v5778
        %v6072 = vand.u32 2147483647, %v5778
        %vm6073 = vcmp.lt.f32.partialorder %v6072, 0.0004427343
        %v6074 = vsel %vm6073, %v6071, %v6068
        %v6075 = vadd.f32 %v5780, 1.0
        %v6076 = vlog2.pop %v6075
        %v6077 = vmul.f32 %v6076, 0.6931472
        %v6078 = vmul.f32 -0.5, %v5780
        %v6079 = vadd.f32 %v6078, 1.0
        %v6080 = vmul.f32 %v6079, %v5780
        %v6081 = vand.u32 2147483647, %v5780
        %vm6082 = vcmp.lt.f32.partialorder %v6081, 0.0004427343
        %v6083 = vsel %vm6082, %v6080, %v6077
        %v6084 = vadd.f32 %v5782, 1.0
        %v6085 = vlog2.pop %v6084
        %v6086 = vmul.f32 %v6085, 0.6931472
        %v6087 = vmul.f32 -0.5, %v5782
        %v6088 = vadd.f32 %v6087, 1.0
        %v6089 = vmul.f32 %v6088, %v5782
        %v6090 = vand.u32 2147483647, %v5782
        %vm6091 = vcmp.lt.f32.partialorder %v6090, 0.0004427343
        %v6092 = vsel %vm6091, %v6089, %v6086
        %v6093 = vadd.f32 %v5784, 1.0
        %v6094 = vlog2.pop %v6093
        %v6095 = vmul.f32 %v6094, 0.6931472
        %v6096 = vmul.f32 -0.5, %v5784
        %v6097 = vadd.f32 %v6096, 1.0
        %v6098 = vmul.f32 %v6097, %v5784
        %v6099 = vand.u32 2147483647, %v5784
        %vm6100 = vcmp.lt.f32.partialorder %v6099, 0.0004427343
        %v6101 = vsel %vm6100, %v6098, %v6095
        %v6102 = vadd.f32 %v5786, 1.0
        %v6103 = vlog2.pop %v6102
        %v6104 = vmul.f32 %v6103, 0.6931472
        %v6105 = vmul.f32 -0.5, %v5786
        %v6106 = vadd.f32 %v6105, 1.0
        %v6107 = vmul.f32 %v6106, %v5786
        %v6108 = vand.u32 2147483647, %v5786
        %vm6109 = vcmp.lt.f32.partialorder %v6108, 0.0004427343
        %v6110 = vsel %vm6109, %v6107, %v6104
        %v6111 = vadd.f32 %v5788, 1.0
        %v6112 = vlog2.pop %v6111
        %v6113 = vmul.f32 %v6112, 0.6931472
        %v6114 = vmul.f32 -0.5, %v5788
        %v6115 = vadd.f32 %v6114, 1.0
        %v6116 = vmul.f32 %v6115, %v5788
        %v6117 = vand.u32 2147483647, %v5788
        %vm6118 = vcmp.lt.f32.partialorder %v6117, 0.0004427343
        %v6119 = vsel %vm6118, %v6116, %v6113
        %v6120 = vadd.f32 %v5790, 1.0
        %v6121 = vlog2.pop %v6120
        %v6122 = vmul.f32 %v6121, 0.6931472
        %v6123 = vmul.f32 -0.5, %v5790
        %v6124 = vadd.f32 %v6123, 1.0
        %v6125 = vmul.f32 %v6124, %v5790
        %v6126 = vand.u32 2147483647, %v5790
        %vm6127 = vcmp.lt.f32.partialorder %v6126, 0.0004427343
        %v6128 = vsel %vm6127, %v6125, %v6122
        %v6129 = vadd.f32 %v5792, 1.0
        %v6130 = vlog2.pop %v6129
        %v6131 = vmul.f32 %v6130, 0.6931472
        %v6132 = vmul.f32 -0.5, %v5792
        %v6133 = vadd.f32 %v6132, 1.0
        %v6134 = vmul.f32 %v6133, %v5792
        %v6135 = vand.u32 2147483647, %v5792
        %vm6136 = vcmp.lt.f32.partialorder %v6135, 0.0004427343
        %v6137 = vsel %vm6136, %v6134, %v6131
        %v6138 = vadd.f32 %v5794, 1.0
        %v6139 = vlog2.pop %v6138
        %v6140 = vmul.f32 %v6139, 0.6931472
        %v6141 = vmul.f32 -0.5, %v5794
        %v6142 = vadd.f32 %v6141, 1.0
        %v6143 = vmul.f32 %v6142, %v5794
        %v6144 = vand.u32 2147483647, %v5794
        %vm6145 = vcmp.lt.f32.partialorder %v6144, 0.0004427343
        %v6146 = vsel %vm6145, %v6143, %v6140
        %v6147 = vadd.f32 %v5796, 1.0
        %v6148 = vlog2.pop %v6147
        %v6149 = vmul.f32 %v6148, 0.6931472
        %v6150 = vmul.f32 -0.5, %v5796
        %v6151 = vadd.f32 %v6150, 1.0
        %v6152 = vmul.f32 %v6151, %v5796
        %v6153 = vand.u32 2147483647, %v5796
        %vm6154 = vcmp.lt.f32.partialorder %v6153, 0.0004427343
        %v6155 = vsel %vm6154, %v6152, %v6149
        %v6156 = vadd.f32 %v5798, 1.0
        %v6157 = vlog2.pop %v6156
        %v6158 = vmul.f32 %v6157, 0.6931472
        %v6159 = vmul.f32 -0.5, %v5798
        %v6160 = vadd.f32 %v6159, 1.0
        %v6161 = vmul.f32 %v6160, %v5798
        %v6162 = vand.u32 2147483647, %v5798
        %vm6163 = vcmp.lt.f32.partialorder %v6162, 0.0004427343
        %v6164 = vsel %vm6163, %v6161, %v6158
        %v6165 = vadd.f32 %v5800, 1.0
        %v6166 = vlog2.pop %v6165
        %v6167 = vmul.f32 %v6166, 0.6931472
        %v6168 = vmul.f32 -0.5, %v5800
        %v6169 = vadd.f32 %v6168, 1.0
        %v6170 = vmul.f32 %v6169, %v5800
        %v6171 = vand.u32 2147483647, %v5800
        %vm6172 = vcmp.lt.f32.partialorder %v6171, 0.0004427343
        %v6173 = vsel %vm6172, %v6170, %v6167
        %v6174 = vadd.f32 %v5802, 1.0
        %v6175 = vlog2.pop %v6174
        %v6176 = vmul.f32 %v6175, 0.6931472
        %v6177 = vmul.f32 -0.5, %v5802
        %v6178 = vadd.f32 %v6177, 1.0
        %v6179 = vmul.f32 %v6178, %v5802
        %v6180 = vand.u32 2147483647, %v5802
        %vm6181 = vcmp.lt.f32.partialorder %v6180, 0.0004427343
        %v6182 = vsel %vm6181, %v6179, %v6176
        %v6183 = vadd.f32 %v5804, 1.0
        %v6184 = vlog2.pop %v6183
        %v6185 = vmul.f32 %v6184, 0.6931472
        %v6186 = vmul.f32 -0.5, %v5804
        %v6187 = vadd.f32 %v6186, 1.0
        %v6188 = vmul.f32 %v6187, %v5804
        %v6189 = vand.u32 2147483647, %v5804
        %vm6190 = vcmp.lt.f32.partialorder %v6189, 0.0004427343
        %v6191 = vsel %vm6190, %v6188, %v6185
        %v6192 = vadd.f32 %v5806, 1.0
        %v6193 = vlog2.pop %v6192
        %v6194 = vmul.f32 %v6193, 0.6931472
        %v6195 = vmul.f32 -0.5, %v5806
        %v6196 = vadd.f32 %v6195, 1.0
        %v6197 = vmul.f32 %v6196, %v5806
        %v6198 = vand.u32 2147483647, %v5806
        %vm6199 = vcmp.lt.f32.partialorder %v6198, 0.0004427343
        %v6200 = vsel %vm6199, %v6197, %v6194
        %v6201 = vadd.f32 %v5808, 1.0
        %v6202 = vlog2.pop %v6201
        %v6203 = vmul.f32 %v6202, 0.6931472
        %v6204 = vmul.f32 -0.5, %v5808
        %v6205 = vadd.f32 %v6204, 1.0
        %v6206 = vmul.f32 %v6205, %v5808
        %v6207 = vand.u32 2147483647, %v5808
        %vm6208 = vcmp.lt.f32.partialorder %v6207, 0.0004427343
        %v6209 = vsel %vm6208, %v6206, %v6203
        %v6210 = vadd.f32 %v5810, 1.0
        %v6211 = vlog2.pop %v6210
        %v6212 = vmul.f32 %v6211, 0.6931472
        %v6213 = vmul.f32 -0.5, %v5810
        %v6214 = vadd.f32 %v6213, 1.0
        %v6215 = vmul.f32 %v6214, %v5810
        %v6216 = vand.u32 2147483647, %v5810
        %vm6217 = vcmp.lt.f32.partialorder %v6216, 0.0004427343
        %v6218 = vsel %vm6217, %v6215, %v6212
        %v6219 = vadd.f32 %v5812, 1.0
        %v6220 = vlog2.pop %v6219
        %v6221 = vmul.f32 %v6220, 0.6931472
        %v6222 = vmul.f32 -0.5, %v5812
        %v6223 = vadd.f32 %v6222, 1.0
        %v6224 = vmul.f32 %v6223, %v5812
        %v6225 = vand.u32 2147483647, %v5812
        %vm6226 = vcmp.lt.f32.partialorder %v6225, 0.0004427343
        %v6227 = vsel %vm6226, %v6224, %v6221
        %v6228 = vadd.f32 %v5814, 1.0
        %v6229 = vlog2.pop %v6228
        %v6230 = vmul.f32 %v6229, 0.6931472
        %v6231 = vmul.f32 -0.5, %v5814
        %v6232 = vadd.f32 %v6231, 1.0
        %v6233 = vmul.f32 %v6232, %v5814
        %v6234 = vand.u32 2147483647, %v5814
        %vm6235 = vcmp.lt.f32.partialorder %v6234, 0.0004427343
        %v6236 = vsel %vm6235, %v6233, %v6230
        %v6237 = vadd.f32 %v5816, 1.0
        %v6238 = vlog2.pop %v6237
        %v6239 = vmul.f32 %v6238, 0.6931472
        %v6240 = vmul.f32 -0.5, %v5816
        %v6241 = vadd.f32 %v6240, 1.0
        %v6242 = vmul.f32 %v6241, %v5816
        %v6243 = vand.u32 2147483647, %v5816
        %vm6244 = vcmp.lt.f32.partialorder %v6243, 0.0004427343
        %v6245 = vsel %vm6244, %v6242, %v6239
        %v6246 = vadd.f32 %v5818, 1.0
        %v6247 = vlog2.pop %v6246
        %v6248 = vmul.f32 %v6247, 0.6931472
        %v6249 = vmul.f32 -0.5, %v5818
        %v6250 = vadd.f32 %v6249, 1.0
        %v6251 = vmul.f32 %v6250, %v5818
        %v6252 = vand.u32 2147483647, %v5818
        %vm6253 = vcmp.lt.f32.partialorder %v6252, 0.0004427343
        %v6254 = vsel %vm6253, %v6251, %v6248
        %v6255 = vadd.f32 %v5820, 1.0
        %v6256 = vlog2.pop %v6255
        %v6257 = vmul.f32 %v6256, 0.6931472
        %v6258 = vmul.f32 -0.5, %v5820
        %v6259 = vadd.f32 %v6258, 1.0
        %v6260 = vmul.f32 %v6259, %v5820
        %v6261 = vand.u32 2147483647, %v5820
        %vm6262 = vcmp.lt.f32.partialorder %v6261, 0.0004427343
        %v6263 = vsel %vm6262, %v6260, %v6257
        %v6264 = vadd.f32 %v5822, 1.0
        %v6265 = vlog2.pop %v6264
        %v6266 = vmul.f32 %v6265, 0.6931472
        %v6267 = vmul.f32 -0.5, %v5822
        %v6268 = vadd.f32 %v6267, 1.0
        %v6269 = vmul.f32 %v6268, %v5822
        %v6270 = vand.u32 2147483647, %v5822
        %vm6271 = vcmp.lt.f32.partialorder %v6270, 0.0004427343
        %v6272 = vsel %vm6271, %v6269, %v6266
        %v6273 = vadd.f32 %v5824, 1.0
        %v6274 = vlog2.pop %v6273
        %v6275 = vmul.f32 %v6274, 0.6931472
        %v6276 = vmul.f32 -0.5, %v5824
        %v6277 = vadd.f32 %v6276, 1.0
        %v6278 = vmul.f32 %v6277, %v5824
        %v6279 = vand.u32 2147483647, %v5824
        %vm6280 = vcmp.lt.f32.partialorder %v6279, 0.0004427343
        %v6281 = vsel %vm6280, %v6278, %v6275
        %v6282 = vadd.f32 %v5826, 1.0
        %v6283 = vlog2.pop %v6282
        %v6284 = vmul.f32 %v6283, 0.6931472
        %v6285 = vmul.f32 -0.5, %v5826
        %v6286 = vadd.f32 %v6285, 1.0
        %v6287 = vmul.f32 %v6286, %v5826
        %v6288 = vand.u32 2147483647, %v5826
        %vm6289 = vcmp.lt.f32.partialorder %v6288, 0.0004427343
        %v6290 = vsel %vm6289, %v6287, %v6284
        %v6291 = vadd.f32 %v5828, 1.0
        %v6292 = vlog2.pop %v6291
        %v6293 = vmul.f32 %v6292, 0.6931472
        %v6294 = vmul.f32 -0.5, %v5828
        %v6295 = vadd.f32 %v6294, 1.0
        %v6296 = vmul.f32 %v6295, %v5828
        %v6297 = vand.u32 2147483647, %v5828
        %vm6298 = vcmp.lt.f32.partialorder %v6297, 0.0004427343
        %v6299 = vsel %vm6298, %v6296, %v6293
        %v6300 = vadd.f32 %v5830, 1.0
        %v6301 = vlog2.pop %v6300
        %v6302 = vmul.f32 %v6301, 0.6931472
        %v6303 = vmul.f32 -0.5, %v5830
        %v6304 = vadd.f32 %v6303, 1.0
        %v6305 = vmul.f32 %v6304, %v5830
        %v6306 = vand.u32 2147483647, %v5830
        %vm6307 = vcmp.lt.f32.partialorder %v6306, 0.0004427343
        %v6308 = vsel %vm6307, %v6305, %v6302
        %v6309 = vadd.f32 %v5832, 1.0
        %v6310 = vlog2.pop %v6309
        %v6311 = vmul.f32 %v6310, 0.6931472
        %v6312 = vmul.f32 -0.5, %v5832
        %v6313 = vadd.f32 %v6312, 1.0
        %v6314 = vmul.f32 %v6313, %v5832
        %v6315 = vand.u32 2147483647, %v5832
        %vm6316 = vcmp.lt.f32.partialorder %v6315, 0.0004427343
        %v6317 = vsel %vm6316, %v6314, %v6311
        %v6318 = vadd.f32 %v5834, 1.0
        %v6319 = vlog2.pop %v6318
        %v6320 = vmul.f32 %v6319, 0.6931472
        %v6321 = vmul.f32 -0.5, %v5834
        %v6322 = vadd.f32 %v6321, 1.0
        %v6323 = vmul.f32 %v6322, %v5834
        %v6324 = vand.u32 2147483647, %v5834
        %vm6325 = vcmp.lt.f32.partialorder %v6324, 0.0004427343
        %v6326 = vsel %vm6325, %v6323, %v6320
        %v6327 = vadd.f32 %v5836, 1.0
        %v6328 = vlog2.pop %v6327
        %v6329 = vmul.f32 %v6328, 0.6931472
        %v6330 = vmul.f32 -0.5, %v5836
        %v6331 = vadd.f32 %v6330, 1.0
        %v6332 = vmul.f32 %v6331, %v5836
        %v6333 = vand.u32 2147483647, %v5836
        %vm6334 = vcmp.lt.f32.partialorder %v6333, 0.0004427343
        %v6335 = vsel %vm6334, %v6332, %v6329
        %v6336 = vadd.f32 %v5838, 1.0
        %v6337 = vlog2.pop %v6336
        %v6338 = vmul.f32 %v6337, 0.6931472
        %v6339 = vmul.f32 -0.5, %v5838
        %v6340 = vadd.f32 %v6339, 1.0
        %v6341 = vmul.f32 %v6340, %v5838
        %v6342 = vand.u32 2147483647, %v5838
        %vm6343 = vcmp.lt.f32.partialorder %v6342, 0.0004427343
        %v6344 = vsel %vm6343, %v6341, %v6338
        %v6345 = vadd.f32 %v5840, 1.0
        %v6346 = vlog2.pop %v6345
        %v6347 = vmul.f32 %v6346, 0.6931472
        %v6348 = vmul.f32 -0.5, %v5840
        %v6349 = vadd.f32 %v6348, 1.0
        %v6350 = vmul.f32 %v6349, %v5840
        %v6351 = vand.u32 2147483647, %v5840
        %vm6352 = vcmp.lt.f32.partialorder %v6351, 0.0004427343
        %v6353 = vsel %vm6352, %v6350, %v6347
        %v6354 = vadd.f32 %v5842, 1.0
        %v6355 = vlog2.pop %v6354
        %v6356 = vmul.f32 %v6355, 0.6931472
        %v6357 = vmul.f32 -0.5, %v5842
        %v6358 = vadd.f32 %v6357, 1.0
        %v6359 = vmul.f32 %v6358, %v5842
        %v6360 = vand.u32 2147483647, %v5842
        %vm6361 = vcmp.lt.f32.partialorder %v6360, 0.0004427343
        %v6362 = vsel %vm6361, %v6359, %v6356
        %v6363 = vadd.f32 %v5844, 1.0
        %v6364 = vlog2.pop %v6363
        %v6365 = vmul.f32 %v6364, 0.6931472
        %v6366 = vmul.f32 -0.5, %v5844
        %v6367 = vadd.f32 %v6366, 1.0
        %v6368 = vmul.f32 %v6367, %v5844
        %v6369 = vand.u32 2147483647, %v5844
        %vm6370 = vcmp.lt.f32.partialorder %v6369, 0.0004427343
        %v6371 = vsel %vm6370, %v6368, %v6365
        %v6372 = vadd.f32 %v5846, 1.0
        %v6373 = vlog2.pop %v6372
        %v6374 = vmul.f32 %v6373, 0.6931472
        %v6375 = vmul.f32 -0.5, %v5846
        %v6376 = vadd.f32 %v6375, 1.0
        %v6377 = vmul.f32 %v6376, %v5846
        %v6378 = vand.u32 2147483647, %v5846
        %vm6379 = vcmp.lt.f32.partialorder %v6378, 0.0004427343
        %v6380 = vsel %vm6379, %v6377, %v6374
        %v6381 = vadd.f32 %v5848, 1.0
        %v6382 = vlog2.pop %v6381
        %v6383 = vmul.f32 %v6382, 0.6931472
        %v6384 = vmul.f32 -0.5, %v5848
        %v6385 = vadd.f32 %v6384, 1.0
        %v6386 = vmul.f32 %v6385, %v5848
        %v6387 = vand.u32 2147483647, %v5848
        %vm6388 = vcmp.lt.f32.partialorder %v6387, 0.0004427343
        %v6389 = vsel %vm6388, %v6386, %v6383
        %v6390 = vadd.f32 %v5850, 1.0
        %v6391 = vlog2.pop %v6390
        %v6392 = vmul.f32 %v6391, 0.6931472
        %v6393 = vmul.f32 -0.5, %v5850
        %v6394 = vadd.f32 %v6393, 1.0
        %v6395 = vmul.f32 %v6394, %v5850
        %v6396 = vand.u32 2147483647, %v5850
        %vm6397 = vcmp.lt.f32.partialorder %v6396, 0.0004427343
        %v6398 = vsel %vm6397, %v6395, %v6392
        %v6399 = vadd.f32 %v5852, 1.0
        %v6400 = vlog2.pop %v6399
        %v6401 = vmul.f32 %v6400, 0.6931472
        %v6402 = vmul.f32 -0.5, %v5852
        %v6403 = vadd.f32 %v6402, 1.0
        %v6404 = vmul.f32 %v6403, %v5852
        %v6405 = vand.u32 2147483647, %v5852
        %vm6406 = vcmp.lt.f32.partialorder %v6405, 0.0004427343
        %v6407 = vsel %vm6406, %v6404, %v6401
        %v6408 = vadd.f32 %v5854, 1.0
        %v6409 = vlog2.pop %v6408
        %v6410 = vmul.f32 %v6409, 0.6931472
        %v6411 = vmul.f32 -0.5, %v5854
        %v6412 = vadd.f32 %v6411, 1.0
        %v6413 = vmul.f32 %v6412, %v5854
        %v6414 = vand.u32 2147483647, %v5854
        %vm6415 = vcmp.lt.f32.partialorder %v6414, 0.0004427343
        %v6416 = vsel %vm6415, %v6413, %v6410
        %v6417 = vadd.f32 %v5856, 1.0
        %v6418 = vlog2.pop %v6417
        %v6419 = vmul.f32 %v6418, 0.6931472
        %v6420 = vmul.f32 -0.5, %v5856
        %v6421 = vadd.f32 %v6420, 1.0
        %v6422 = vmul.f32 %v6421, %v5856
        %v6423 = vand.u32 2147483647, %v5856
        %vm6424 = vcmp.lt.f32.partialorder %v6423, 0.0004427343
        %v6425 = vsel %vm6424, %v6422, %v6419
        %v6426 = vadd.f32 %v5858, 1.0
        %v6427 = vlog2.pop %v6426
        %v6428 = vmul.f32 %v6427, 0.6931472
        %v6429 = vmul.f32 -0.5, %v5858
        %v6430 = vadd.f32 %v6429, 1.0
        %v6431 = vmul.f32 %v6430, %v5858
        %v6432 = vand.u32 2147483647, %v5858
        %vm6433 = vcmp.lt.f32.partialorder %v6432, 0.0004427343
        %v6434 = vsel %vm6433, %v6431, %v6428
        %v6435 = vadd.f32 %v5411, %v5867
        %v6436 = vadd.f32 %v5412, %v5876
        %v6437 = vadd.f32 %v5413, %v5885
        %v6438 = vadd.f32 %v5414, %v5894
        %v6439 = vadd.f32 %v5415, %v5903
        %v6440 = vadd.f32 %v5416, %v5912
        %v6441 = vadd.f32 %v5417, %v5921
        %v6442 = vadd.f32 %v5418, %v5930
        %v6443 = vadd.f32 %v5419, %v5939
        %v6444 = vadd.f32 %v5420, %v5948
        %v6445 = vadd.f32 %v5421, %v5957
        %v6446 = vadd.f32 %v5422, %v5966
        %v6447 = vadd.f32 %v5423, %v5975
        %v6448 = vadd.f32 %v5424, %v5984
        %v6449 = vadd.f32 %v5425, %v5993
        %v6450 = vadd.f32 %v5426, %v6002
        %v6451 = vadd.f32 %v5427, %v6011
        %v6452 = vadd.f32 %v5428, %v6020
        %v6453 = vadd.f32 %v5429, %v6029
        %v6454 = vadd.f32 %v5430, %v6038
        %v6455 = vadd.f32 %v5431, %v6047
        %v6456 = vadd.f32 %v5432, %v6056
        %v6457 = vadd.f32 %v5433, %v6065
        %v6458 = vadd.f32 %v5434, %v6074
        %v6459 = vadd.f32 %v5435, %v6083
        %v6460 = vadd.f32 %v5436, %v6092
        %v6461 = vadd.f32 %v5437, %v6101
        %v6462 = vadd.f32 %v5438, %v6110
        %v6463 = vadd.f32 %v5439, %v6119
        %v6464 = vadd.f32 %v5440, %v6128
        %v6465 = vadd.f32 %v5441, %v6137
        %v6466 = vadd.f32 %v5442, %v6146
        %v6467 = vadd.f32 %v5443, %v6155
        %v6468 = vadd.f32 %v5444, %v6164
        %v6469 = vadd.f32 %v5445, %v6173
        %v6470 = vadd.f32 %v5446, %v6182
        %v6471 = vadd.f32 %v5447, %v6191
        %v6472 = vadd.f32 %v5448, %v6200
        %v6473 = vadd.f32 %v5449, %v6209
        %v6474 = vadd.f32 %v5450, %v6218
        %v6475 = vadd.f32 %v5451, %v6227
        %v6476 = vadd.f32 %v5452, %v6236
        %v6477 = vadd.f32 %v5453, %v6245
        %v6478 = vadd.f32 %v5454, %v6254
        %v6479 = vadd.f32 %v5455, %v6263
        %v6480 = vadd.f32 %v5456, %v6272
        %v6481 = vadd.f32 %v5457, %v6281
        %v6482 = vadd.f32 %v5458, %v6290
        %v6483 = vadd.f32 %v5459, %v6299
        %v6484 = vadd.f32 %v5460, %v6308
        %v6485 = vadd.f32 %v5461, %v6317
        %v6486 = vadd.f32 %v5462, %v6326
        %v6487 = vadd.f32 %v5463, %v6335
        %v6488 = vadd.f32 %v5464, %v6344
        %v6489 = vadd.f32 %v5465, %v6353
        %v6490 = vadd.f32 %v5466, %v6362
        %v6491 = vadd.f32 %v5467, %v6371
        %v6492 = vadd.f32 %v5468, %v6380
        %v6493 = vadd.f32 %v5469, %v6389
        %v6494 = vadd.f32 %v5470, %v6398
        %v6495 = vadd.f32 %v5471, %v6407
        %v6496 = vadd.f32 %v5472, %v6416
        %v6497 = vadd.f32 %v5473, %v6425
        %v6498 = vadd.f32 %v5474, %v6434
        %v6499 = vsel %vm5475, %v5539, %v6435
        %v6500 = vsel %vm5476, %v5540, %v6436
        %v6501 = vsel %vm5477, %v5541, %v6437
        %v6502 = vsel %vm5478, %v5542, %v6438
        %v6503 = vsel %vm5479, %v5543, %v6439
        %v6504 = vsel %vm5480, %v5544, %v6440
        %v6505 = vsel %vm5481, %v5545, %v6441
        %v6506 = vsel %vm5482, %v5546, %v6442
        %v6507 = vsel %vm5483, %v5547, %v6443
        %v6508 = vsel %vm5484, %v5548, %v6444
        %v6509 = vsel %vm5485, %v5549, %v6445
        %v6510 = vsel %vm5486, %v5550, %v6446
        %v6511 = vsel %vm5487, %v5551, %v6447
        %v6512 = vsel %vm5488, %v5552, %v6448
        %v6513 = vsel %vm5489, %v5553, %v6449
        %v6514 = vsel %vm5490, %v5554, %v6450
        %v6515 = vsel %vm5491, %v5555, %v6451
        %v6516 = vsel %vm5492, %v5556, %v6452
        %v6517 = vsel %vm5493, %v5557, %v6453
        %v6518 = vsel %vm5494, %v5558, %v6454
        %v6519 = vsel %vm5495, %v5559, %v6455
        %v6520 = vsel %vm5496, %v5560, %v6456
        %v6521 = vsel %vm5497, %v5561, %v6457
        %v6522 = vsel %vm5498, %v5562, %v6458
        %v6523 = vsel %vm5499, %v5563, %v6459
        %v6524 = vsel %vm5500, %v5564, %v6460
        %v6525 = vsel %vm5501, %v5565, %v6461
        %v6526 = vsel %vm5502, %v5566, %v6462
        %v6527 = vsel %vm5503, %v5567, %v6463
        %v6528 = vsel %vm5504, %v5568, %v6464
        %v6529 = vsel %vm5505, %v5569, %v6465
        %v6530 = vsel %vm5506, %v5570, %v6466
        %v6531 = vsel %vm5507, %v5571, %v6467
        %v6532 = vsel %vm5508, %v5572, %v6468
        %v6533 = vsel %vm5509, %v5573, %v6469
        %v6534 = vsel %vm5510, %v5574, %v6470
        %v6535 = vsel %vm5511, %v5575, %v6471
        %v6536 = vsel %vm5512, %v5576, %v6472
        %v6537 = vsel %vm5513, %v5577, %v6473
        %v6538 = vsel %vm5514, %v5578, %v6474
        %v6539 = vsel %vm5515, %v5579, %v6475
        %v6540 = vsel %vm5516, %v5580, %v6476
        %v6541 = vsel %vm5517, %v5581, %v6477
        %v6542 = vsel %vm5518, %v5582, %v6478
        %v6543 = vsel %vm5519, %v5583, %v6479
        %v6544 = vsel %vm5520, %v5584, %v6480
        %v6545 = vsel %vm5521, %v5585, %v6481
        %v6546 = vsel %vm5522, %v5586, %v6482
        %v6547 = vsel %vm5523, %v5587, %v6483
        %v6548 = vsel %vm5524, %v5588, %v6484
        %v6549 = vsel %vm5525, %v5589, %v6485
        %v6550 = vsel %vm5526, %v5590, %v6486
        %v6551 = vsel %vm5527, %v5591, %v6487
        %v6552 = vsel %vm5528, %v5592, %v6488
        %v6553 = vsel %vm5529, %v5593, %v6489
        %v6554 = vsel %vm5530, %v5594, %v6490
        %v6555 = vsel %vm5531, %v5595, %v6491
        %v6556 = vsel %vm5532, %v5596, %v6492
        %v6557 = vsel %vm5533, %v5597, %v6493
        %v6558 = vsel %vm5534, %v5598, %v6494
        %v6559 = vsel %vm5535, %v5599, %v6495
        %v6560 = vsel %vm5536, %v5600, %v6496
        %v6561 = vsel %vm5537, %v5601, %v6497
        %v6562 = vsel %vm5538, %v5602, %v6498
        %v6563 = vmul.f32 %v5221, %v5223
        %v6564 = vmul.f32 %v5227, %v5229
        %v6565 = vmul.f32 %v5233, %v5235
        %v6566 = vmul.f32 %v5239, %v5241
        %v6567 = vmul.f32 %v5245, %v5247
        %v6568 = vmul.f32 %v5251, %v5253
        %v6569 = vmul.f32 %v5257, %v5259
        %v6570 = vmul.f32 %v5263, %v5265
        %v6571 = vmul.f32 %v5269, %v5271
        %v6572 = vmul.f32 %v5275, %v5277
        %v6573 = vmul.f32 %v5281, %v5283
        %v6574 = vmul.f32 %v5287, %v5289
        %v6575 = vmul.f32 %v5293, %v5295
        %v6576 = vmul.f32 %v5299, %v5301
        %v6577 = vmul.f32 %v5305, %v5307
        %v6578 = vmul.f32 %v5311, %v5313
        %v6579 = vmul.f32 %v5317, %v5319
        %v6580 = vmul.f32 %v5323, %v5325
        %v6581 = vmul.f32 %v5329, %v5331
        %v6582 = vmul.f32 %v5335, %v5337
        %v6583 = vmul.f32 %v5341, %v5343
        %v6584 = vmul.f32 %v5347, %v5349
        %v6585 = vmul.f32 %v5353, %v5355
        %v6586 = vmul.f32 %v5359, %v5361
        %v6587 = vmul.f32 %v5365, %v5367
        %v6588 = vmul.f32 %v5371, %v5373
        %v6589 = vmul.f32 %v5377, %v5379
        %v6590 = vmul.f32 %v5383, %v5385
        %v6591 = vmul.f32 %v5389, %v5391
        %v6592 = vmul.f32 %v5395, %v5397
        %v6593 = vmul.f32 %v5401, %v5403
        %v6594 = vmul.f32 %v5407, %v5409
        %6595 = vadd.xlane.f32.xlu0 %v6563
        %v6596 = vpop.xlane.xlu0 %6595
        %6597 = vadd.xlane.f32.xlu0 %v6564
        %v6598 = vpop.xlane.xlu0 %6597
        %6599 = vadd.xlane.f32.xlu0 %v6565
        %v6600 = vpop.xlane.xlu0 %6599
        %6601 = vadd.xlane.f32.xlu0 %v6566
        %v6602 = vpop.xlane.xlu0 %6601
        %6603 = vadd.xlane.f32.xlu0 %v6567
        %v6604 = vpop.xlane.xlu0 %6603
        %6605 = vadd.xlane.f32.xlu0 %v6568
        %v6606 = vpop.xlane.xlu0 %6605
        %6607 = vadd.xlane.f32.xlu0 %v6569
        %v6608 = vpop.xlane.xlu0 %6607
        %6609 = vadd.xlane.f32.xlu0 %v6570
        %v6610 = vpop.xlane.xlu0 %6609
        %6611 = vadd.xlane.f32.xlu0 %v6571
        %v6612 = vpop.xlane.xlu0 %6611
        %6613 = vadd.xlane.f32.xlu0 %v6572
        %v6614 = vpop.xlane.xlu0 %6613
        %6615 = vadd.xlane.f32.xlu0 %v6573
        %v6616 = vpop.xlane.xlu0 %6615
        %6617 = vadd.xlane.f32.xlu0 %v6574
        %v6618 = vpop.xlane.xlu0 %6617
        %6619 = vadd.xlane.f32.xlu0 %v6575
        %v6620 = vpop.xlane.xlu0 %6619
        %6621 = vadd.xlane.f32.xlu0 %v6576
        %v6622 = vpop.xlane.xlu0 %6621
        %6623 = vadd.xlane.f32.xlu0 %v6577
        %v6624 = vpop.xlane.xlu0 %6623
        %6625 = vadd.xlane.f32.xlu0 %v6578
        %v6626 = vpop.xlane.xlu0 %6625
        %6627 = vadd.xlane.f32.xlu0 %v6579
        %v6628 = vpop.xlane.xlu0 %6627
        %6629 = vadd.xlane.f32.xlu0 %v6580
        %v6630 = vpop.xlane.xlu0 %6629
        %6631 = vadd.xlane.f32.xlu0 %v6581
        %v6632 = vpop.xlane.xlu0 %6631
        %6633 = vadd.xlane.f32.xlu0 %v6582
        %v6634 = vpop.xlane.xlu0 %6633
        %6635 = vadd.xlane.f32.xlu0 %v6583
        %v6636 = vpop.xlane.xlu0 %6635
        %6637 = vadd.xlane.f32.xlu0 %v6584
        %v6638 = vpop.xlane.xlu0 %6637
        %6639 = vadd.xlane.f32.xlu0 %v6585
        %v6640 = vpop.xlane.xlu0 %6639
        %6641 = vadd.xlane.f32.xlu0 %v6586
        %v6642 = vpop.xlane.xlu0 %6641
        %6643 = vadd.xlane.f32.xlu0 %v6587
        %v6644 = vpop.xlane.xlu0 %6643
        %6645 = vadd.xlane.f32.xlu0 %v6588
        %v6646 = vpop.xlane.xlu0 %6645
        %6647 = vadd.xlane.f32.xlu0 %v6589
        %v6648 = vpop.xlane.xlu0 %6647
        %6649 = vadd.xlane.f32.xlu0 %v6590
        %v6650 = vpop.xlane.xlu0 %6649
        %6651 = vadd.xlane.f32.xlu0 %v6591
        %v6652 = vpop.xlane.xlu0 %6651
        %6653 = vadd.xlane.f32.xlu0 %v6592
        %v6654 = vpop.xlane.xlu0 %6653
        %6655 = vadd.xlane.f32.xlu0 %v6593
        %v6656 = vpop.xlane.xlu0 %6655
        %6657 = vadd.xlane.f32.xlu0 %v6594
        %v6658 = vpop.xlane.xlu0 %6657
        %v6659 = vmul.f32 %v4557, %v6499
        %v6660 = vmul.f32 %v4559, %v6500
        %v6661 = vmul.f32 %v4563, %v6501
        %v6662 = vmul.f32 %v4565, %v6502
        %v6663 = vmul.f32 %v4569, %v6503
        %v6664 = vmul.f32 %v4571, %v6504
        %v6665 = vmul.f32 %v4575, %v6505
        %v6666 = vmul.f32 %v4577, %v6506
        %v6667 = vmul.f32 %v4581, %v6507
        %v6668 = vmul.f32 %v4583, %v6508
        %v6669 = vmul.f32 %v4587, %v6509
        %v6670 = vmul.f32 %v4589, %v6510
        %v6671 = vmul.f32 %v4593, %v6511
        %v6672 = vmul.f32 %v4595, %v6512
        %v6673 = vmul.f32 %v4599, %v6513
        %v6674 = vmul.f32 %v4601, %v6514
        %v6675 = vmul.f32 %v4605, %v6515
        %v6676 = vmul.f32 %v4607, %v6516
        %v6677 = vmul.f32 %v4611, %v6517
        %v6678 = vmul.f32 %v4613, %v6518
        %v6679 = vmul.f32 %v4617, %v6519
        %v6680 = vmul.f32 %v4619, %v6520
        %v6681 = vmul.f32 %v4623, %v6521
        %v6682 = vmul.f32 %v4625, %v6522
        %v6683 = vmul.f32 %v4629, %v6523
        %v6684 = vmul.f32 %v4631, %v6524
        %v6685 = vmul.f32 %v4635, %v6525
        %v6686 = vmul.f32 %v4637, %v6526
        %v6687 = vmul.f32 %v4641, %v6527
        %v6688 = vmul.f32 %v4643, %v6528
        %v6689 = vmul.f32 %v4647, %v6529
        %v6690 = vmul.f32 %v4649, %v6530
        %v6691 = vmul.f32 %v4653, %v6531
        %v6692 = vmul.f32 %v4655, %v6532
        %v6693 = vmul.f32 %v4659, %v6533
        %v6694 = vmul.f32 %v4661, %v6534
        %v6695 = vmul.f32 %v4665, %v6535
        %v6696 = vmul.f32 %v4667, %v6536
        %v6697 = vmul.f32 %v4671, %v6537
        %v6698 = vmul.f32 %v4673, %v6538
        %v6699 = vmul.f32 %v4677, %v6539
        %v6700 = vmul.f32 %v4679, %v6540
        %v6701 = vmul.f32 %v4683, %v6541
        %v6702 = vmul.f32 %v4685, %v6542
        %v6703 = vmul.f32 %v4689, %v6543
        %v6704 = vmul.f32 %v4691, %v6544
        %v6705 = vmul.f32 %v4695, %v6545
        %v6706 = vmul.f32 %v4697, %v6546
        %v6707 = vmul.f32 %v4701, %v6547
        %v6708 = vmul.f32 %v4703, %v6548
        %v6709 = vmul.f32 %v4707, %v6549
        %v6710 = vmul.f32 %v4709, %v6550
        %v6711 = vmul.f32 %v4713, %v6551
        %v6712 = vmul.f32 %v4715, %v6552
        %v6713 = vmul.f32 %v4719, %v6553
        %v6714 = vmul.f32 %v4721, %v6554
        %v6715 = vmul.f32 %v4725, %v6555
        %v6716 = vmul.f32 %v4727, %v6556
        %v6717 = vmul.f32 %v4731, %v6557
        %v6718 = vmul.f32 %v4733, %v6558
        %v6719 = vmul.f32 %v4737, %v6559
        %v6720 = vmul.f32 %v4739, %v6560
        %v6721 = vmul.f32 %v4743, %v6561
        %v6722 = vmul.f32 %v4745, %v6562
        %v6723 = vmul.f32 %v6659, %v6596
        %v6724 = vmul.f32 %v6660, %v6596
        %v6725 = vmul.f32 %v6661, %v6598
        %v6726 = vmul.f32 %v6662, %v6598
        %v6727 = vmul.f32 %v6663, %v6600
        %v6728 = vmul.f32 %v6664, %v6600
        %v6729 = vmul.f32 %v6665, %v6602
        %v6730 = vmul.f32 %v6666, %v6602
        %v6731 = vmul.f32 %v6667, %v6604
        %v6732 = vmul.f32 %v6668, %v6604
        %v6733 = vmul.f32 %v6669, %v6606
        %v6734 = vmul.f32 %v6670, %v6606
        %v6735 = vmul.f32 %v6671, %v6608
        %v6736 = vmul.f32 %v6672, %v6608
        %v6737 = vmul.f32 %v6673, %v6610
        %v6738 = vmul.f32 %v6674, %v6610
        %v6739 = vmul.f32 %v6675, %v6612
        %v6740 = vmul.f32 %v6676, %v6612
        %v6741 = vmul.f32 %v6677, %v6614
        %v6742 = vmul.f32 %v6678, %v6614
        %v6743 = vmul.f32 %v6679, %v6616
        %v6744 = vmul.f32 %v6680, %v6616
        %v6745 = vmul.f32 %v6681, %v6618
        %v6746 = vmul.f32 %v6682, %v6618
        %v6747 = vmul.f32 %v6683, %v6620
        %v6748 = vmul.f32 %v6684, %v6620
        %v6749 = vmul.f32 %v6685, %v6622
        %v6750 = vmul.f32 %v6686, %v6622
        %v6751 = vmul.f32 %v6687, %v6624
        %v6752 = vmul.f32 %v6688, %v6624
        %v6753 = vmul.f32 %v6689, %v6626
        %v6754 = vmul.f32 %v6690, %v6626
        %v6755 = vmul.f32 %v6691, %v6628
        %v6756 = vmul.f32 %v6692, %v6628
        %v6757 = vmul.f32 %v6693, %v6630
        %v6758 = vmul.f32 %v6694, %v6630
        %v6759 = vmul.f32 %v6695, %v6632
        %v6760 = vmul.f32 %v6696, %v6632
        %v6761 = vmul.f32 %v6697, %v6634
        %v6762 = vmul.f32 %v6698, %v6634
        %v6763 = vmul.f32 %v6699, %v6636
        %v6764 = vmul.f32 %v6700, %v6636
        %v6765 = vmul.f32 %v6701, %v6638
        %v6766 = vmul.f32 %v6702, %v6638
        %v6767 = vmul.f32 %v6703, %v6640
        %v6768 = vmul.f32 %v6704, %v6640
        %v6769 = vmul.f32 %v6705, %v6642
        %v6770 = vmul.f32 %v6706, %v6642
        %v6771 = vmul.f32 %v6707, %v6644
        %v6772 = vmul.f32 %v6708, %v6644
        %v6773 = vmul.f32 %v6709, %v6646
        %v6774 = vmul.f32 %v6710, %v6646
        %v6775 = vmul.f32 %v6711, %v6648
        %v6776 = vmul.f32 %v6712, %v6648
        %v6777 = vmul.f32 %v6713, %v6650
        %v6778 = vmul.f32 %v6714, %v6650
        %v6779 = vmul.f32 %v6715, %v6652
        %v6780 = vmul.f32 %v6716, %v6652
        %v6781 = vmul.f32 %v6717, %v6654
        %v6782 = vmul.f32 %v6718, %v6654
        %v6783 = vmul.f32 %v6719, %v6656
        %v6784 = vmul.f32 %v6720, %v6656
        %v6785 = vmul.f32 %v6721, %v6658
        %v6786 = vmul.f32 %v6722, %v6658
        %v6787 = vxor.u32 %v6723, 2147483648
        %v6788 = vxor.u32 %v6724, 2147483648
        %v6789 = vxor.u32 %v6725, 2147483648
        %v6790 = vxor.u32 %v6726, 2147483648
        %v6791 = vxor.u32 %v6727, 2147483648
        %v6792 = vxor.u32 %v6728, 2147483648
        %v6793 = vxor.u32 %v6729, 2147483648
        %v6794 = vxor.u32 %v6730, 2147483648
        %v6795 = vxor.u32 %v6731, 2147483648
        %v6796 = vxor.u32 %v6732, 2147483648
        %v6797 = vxor.u32 %v6733, 2147483648
        %v6798 = vxor.u32 %v6734, 2147483648
        %v6799 = vxor.u32 %v6735, 2147483648
        %v6800 = vxor.u32 %v6736, 2147483648
        %v6801 = vxor.u32 %v6737, 2147483648
        %v6802 = vxor.u32 %v6738, 2147483648
        %v6803 = vxor.u32 %v6739, 2147483648
        %v6804 = vxor.u32 %v6740, 2147483648
        %v6805 = vxor.u32 %v6741, 2147483648
        %v6806 = vxor.u32 %v6742, 2147483648
        %v6807 = vxor.u32 %v6743, 2147483648
        %v6808 = vxor.u32 %v6744, 2147483648
        %v6809 = vxor.u32 %v6745, 2147483648
        %v6810 = vxor.u32 %v6746, 2147483648
        %v6811 = vxor.u32 %v6747, 2147483648
        %v6812 = vxor.u32 %v6748, 2147483648
        %v6813 = vxor.u32 %v6749, 2147483648
        %v6814 = vxor.u32 %v6750, 2147483648
        %v6815 = vxor.u32 %v6751, 2147483648
        %v6816 = vxor.u32 %v6752, 2147483648
        %v6817 = vxor.u32 %v6753, 2147483648
        %v6818 = vxor.u32 %v6754, 2147483648
        %v6819 = vxor.u32 %v6755, 2147483648
        %v6820 = vxor.u32 %v6756, 2147483648
        %v6821 = vxor.u32 %v6757, 2147483648
        %v6822 = vxor.u32 %v6758, 2147483648
        %v6823 = vxor.u32 %v6759, 2147483648
        %v6824 = vxor.u32 %v6760, 2147483648
        %v6825 = vxor.u32 %v6761, 2147483648
        %v6826 = vxor.u32 %v6762, 2147483648
        %v6827 = vxor.u32 %v6763, 2147483648
        %v6828 = vxor.u32 %v6764, 2147483648
        %v6829 = vxor.u32 %v6765, 2147483648
        %v6830 = vxor.u32 %v6766, 2147483648
        %v6831 = vxor.u32 %v6767, 2147483648
        %v6832 = vxor.u32 %v6768, 2147483648
        %v6833 = vxor.u32 %v6769, 2147483648
        %v6834 = vxor.u32 %v6770, 2147483648
        %v6835 = vxor.u32 %v6771, 2147483648
        %v6836 = vxor.u32 %v6772, 2147483648
        %v6837 = vxor.u32 %v6773, 2147483648
        %v6838 = vxor.u32 %v6774, 2147483648
        %v6839 = vxor.u32 %v6775, 2147483648
        %v6840 = vxor.u32 %v6776, 2147483648
        %v6841 = vxor.u32 %v6777, 2147483648
        %v6842 = vxor.u32 %v6778, 2147483648
        %v6843 = vxor.u32 %v6779, 2147483648
        %v6844 = vxor.u32 %v6780, 2147483648
        %v6845 = vxor.u32 %v6781, 2147483648
        %v6846 = vxor.u32 %v6782, 2147483648
        %v6847 = vxor.u32 %v6783, 2147483648
        %v6848 = vxor.u32 %v6784, 2147483648
        %v6849 = vxor.u32 %v6785, 2147483648
        %v6850 = vxor.u32 %v6786, 2147483648
        %v6851 = vmul.f32 %v6787, 1.442695
        %v6852 = vpow.pop %v6851
        %v6853 = vmul.f32 %v6788, 1.442695
        %v6854 = vpow.pop %v6853
        %v6855 = vmul.f32 %v6789, 1.442695
        %v6856 = vpow.pop %v6855
        %v6857 = vmul.f32 %v6790, 1.442695
        %v6858 = vpow.pop %v6857
        %v6859 = vmul.f32 %v6791, 1.442695
        %v6860 = vpow.pop %v6859
        %v6861 = vmul.f32 %v6792, 1.442695
        %v6862 = vpow.pop %v6861
        %v6863 = vmul.f32 %v6793, 1.442695
        %v6864 = vpow.pop %v6863
        %v6865 = vmul.f32 %v6794, 1.442695
        %v6866 = vpow.pop %v6865
        %v6867 = vmul.f32 %v6795, 1.442695
        %v6868 = vpow.pop %v6867
        %v6869 = vmul.f32 %v6796, 1.442695
        %v6870 = vpow.pop %v6869
        %v6871 = vmul.f32 %v6797, 1.442695
        %v6872 = vpow.pop %v6871
        %v6873 = vmul.f32 %v6798, 1.442695
        %v6874 = vpow.pop %v6873
        %v6875 = vmul.f32 %v6799, 1.442695
        %v6876 = vpow.pop %v6875
        %v6877 = vmul.f32 %v6800, 1.442695
        %v6878 = vpow.pop %v6877
        %v6879 = vmul.f32 %v6801, 1.442695
        %v6880 = vpow.pop %v6879
        %v6881 = vmul.f32 %v6802, 1.442695
        %v6882 = vpow.pop %v6881
        %v6883 = vmul.f32 %v6803, 1.442695
        %v6884 = vpow.pop %v6883
        %v6885 = vmul.f32 %v6804, 1.442695
        %v6886 = vpow.pop %v6885
        %v6887 = vmul.f32 %v6805, 1.442695
        %v6888 = vpow.pop %v6887
        %v6889 = vmul.f32 %v6806, 1.442695
        %v6890 = vpow.pop %v6889
        %v6891 = vmul.f32 %v6807, 1.442695
        %v6892 = vpow.pop %v6891
        %v6893 = vmul.f32 %v6808, 1.442695
        %v6894 = vpow.pop %v6893
        %v6895 = vmul.f32 %v6809, 1.442695
        %v6896 = vpow.pop %v6895
        %v6897 = vmul.f32 %v6810, 1.442695
        %v6898 = vpow.pop %v6897
        %v6899 = vmul.f32 %v6811, 1.442695
        %v6900 = vpow.pop %v6899
        %v6901 = vmul.f32 %v6812, 1.442695
        %v6902 = vpow.pop %v6901
        %v6903 = vmul.f32 %v6813, 1.442695
        %v6904 = vpow.pop %v6903
        %v6905 = vmul.f32 %v6814, 1.442695
        %v6906 = vpow.pop %v6905
        %v6907 = vmul.f32 %v6815, 1.442695
        %v6908 = vpow.pop %v6907
        %v6909 = vmul.f32 %v6816, 1.442695
        %v6910 = vpow.pop %v6909
        %v6911 = vmul.f32 %v6817, 1.442695
        %v6912 = vpow.pop %v6911
        %v6913 = vmul.f32 %v6818, 1.442695
        %v6914 = vpow.pop %v6913
        %v6915 = vmul.f32 %v6819, 1.442695
        %v6916 = vpow.pop %v6915
        %v6917 = vmul.f32 %v6820, 1.442695
        %v6918 = vpow.pop %v6917
        %v6919 = vmul.f32 %v6821, 1.442695
        %v6920 = vpow.pop %v6919
        %v6921 = vmul.f32 %v6822, 1.442695
        %v6922 = vpow.pop %v6921
        %v6923 = vmul.f32 %v6823, 1.442695
        %v6924 = vpow.pop %v6923
        %v6925 = vmul.f32 %v6824, 1.442695
        %v6926 = vpow.pop %v6925
        %v6927 = vmul.f32 %v6825, 1.442695
        %v6928 = vpow.pop %v6927
        %v6929 = vmul.f32 %v6826, 1.442695
        %v6930 = vpow.pop %v6929
        %v6931 = vmul.f32 %v6827, 1.442695
        %v6932 = vpow.pop %v6931
        %v6933 = vmul.f32 %v6828, 1.442695
        %v6934 = vpow.pop %v6933
        %v6935 = vmul.f32 %v6829, 1.442695
        %v6936 = vpow.pop %v6935
        %v6937 = vmul.f32 %v6830, 1.442695
        %v6938 = vpow.pop %v6937
        %v6939 = vmul.f32 %v6831, 1.442695
        %v6940 = vpow.pop %v6939
        %v6941 = vmul.f32 %v6832, 1.442695
        %v6942 = vpow.pop %v6941
        %v6943 = vmul.f32 %v6833, 1.442695
        %v6944 = vpow.pop %v6943
        %v6945 = vmul.f32 %v6834, 1.442695
        %v6946 = vpow.pop %v6945
        %v6947 = vmul.f32 %v6835, 1.442695
        %v6948 = vpow.pop %v6947
        %v6949 = vmul.f32 %v6836, 1.442695
        %v6950 = vpow.pop %v6949
        %v6951 = vmul.f32 %v6837, 1.442695
        %v6952 = vpow.pop %v6951
        %v6953 = vmul.f32 %v6838, 1.442695
        %v6954 = vpow.pop %v6953
        %v6955 = vmul.f32 %v6839, 1.442695
        %v6956 = vpow.pop %v6955
        %v6957 = vmul.f32 %v6840, 1.442695
        %v6958 = vpow.pop %v6957
        %v6959 = vmul.f32 %v6841, 1.442695
        %v6960 = vpow.pop %v6959
        %v6961 = vmul.f32 %v6842, 1.442695
        %v6962 = vpow.pop %v6961
        %v6963 = vmul.f32 %v6843, 1.442695
        %v6964 = vpow.pop %v6963
        %v6965 = vmul.f32 %v6844, 1.442695
        %v6966 = vpow.pop %v6965
        %v6967 = vmul.f32 %v6845, 1.442695
        %v6968 = vpow.pop %v6967
        %v6969 = vmul.f32 %v6846, 1.442695
        %v6970 = vpow.pop %v6969
        %v6971 = vmul.f32 %v6847, 1.442695
        %v6972 = vpow.pop %v6971
        %v6973 = vmul.f32 %v6848, 1.442695
        %v6974 = vpow.pop %v6973
        %v6975 = vmul.f32 %v6849, 1.442695
        %v6976 = vpow.pop %v6975
        %v6977 = vmul.f32 %v6850, 1.442695
        %v6978 = vpow.pop %v6977
        %v6979 = vadd.f32 %v6852, 1.0
        %v6980 = vadd.f32 %v6854, 1.0
        %v6981 = vadd.f32 %v6856, 1.0
        %v6982 = vadd.f32 %v6858, 1.0
        %v6983 = vadd.f32 %v6860, 1.0
        %v6984 = vadd.f32 %v6862, 1.0
        %v6985 = vadd.f32 %v6864, 1.0
        %v6986 = vadd.f32 %v6866, 1.0
        %v6987 = vadd.f32 %v6868, 1.0
        %v6988 = vadd.f32 %v6870, 1.0
        %v6989 = vadd.f32 %v6872, 1.0
        %v6990 = vadd.f32 %v6874, 1.0
        %v6991 = vadd.f32 %v6876, 1.0
        %v6992 = vadd.f32 %v6878, 1.0
        %v6993 = vadd.f32 %v6880, 1.0
        %v6994 = vadd.f32 %v6882, 1.0
        %v6995 = vadd.f32 %v6884, 1.0
        %v6996 = vadd.f32 %v6886, 1.0
        %v6997 = vadd.f32 %v6888, 1.0
        %v6998 = vadd.f32 %v6890, 1.0
        %v6999 = vadd.f32 %v6892, 1.0
        %v7000 = vadd.f32 %v6894, 1.0
        %v7001 = vadd.f32 %v6896, 1.0
        %v7002 = vadd.f32 %v6898, 1.0
        %v7003 = vadd.f32 %v6900, 1.0
        %v7004 = vadd.f32 %v6902, 1.0
        %v7005 = vadd.f32 %v6904, 1.0
        %v7006 = vadd.f32 %v6906, 1.0
        %v7007 = vadd.f32 %v6908, 1.0
        %v7008 = vadd.f32 %v6910, 1.0
        %v7009 = vadd.f32 %v6912, 1.0
        %v7010 = vadd.f32 %v6914, 1.0
        %v7011 = vadd.f32 %v6916, 1.0
        %v7012 = vadd.f32 %v6918, 1.0
        %v7013 = vadd.f32 %v6920, 1.0
        %v7014 = vadd.f32 %v6922, 1.0
        %v7015 = vadd.f32 %v6924, 1.0
        %v7016 = vadd.f32 %v6926, 1.0
        %v7017 = vadd.f32 %v6928, 1.0
        %v7018 = vadd.f32 %v6930, 1.0
        %v7019 = vadd.f32 %v6932, 1.0
        %v7020 = vadd.f32 %v6934, 1.0
        %v7021 = vadd.f32 %v6936, 1.0
        %v7022 = vadd.f32 %v6938, 1.0
        %v7023 = vadd.f32 %v6940, 1.0
        %v7024 = vadd.f32 %v6942, 1.0
        %v7025 = vadd.f32 %v6944, 1.0
        %v7026 = vadd.f32 %v6946, 1.0
        %v7027 = vadd.f32 %v6948, 1.0
        %v7028 = vadd.f32 %v6950, 1.0
        %v7029 = vadd.f32 %v6952, 1.0
        %v7030 = vadd.f32 %v6954, 1.0
        %v7031 = vadd.f32 %v6956, 1.0
        %v7032 = vadd.f32 %v6958, 1.0
        %v7033 = vadd.f32 %v6960, 1.0
        %v7034 = vadd.f32 %v6962, 1.0
        %v7035 = vadd.f32 %v6964, 1.0
        %v7036 = vadd.f32 %v6966, 1.0
        %v7037 = vadd.f32 %v6968, 1.0
        %v7038 = vadd.f32 %v6970, 1.0
        %v7039 = vadd.f32 %v6972, 1.0
        %v7040 = vadd.f32 %v6974, 1.0
        %v7041 = vadd.f32 %v6976, 1.0
        %v7042 = vadd.f32 %v6978, 1.0
        %v7043 = vrcp.pop %v6979
        %v7044 = vmul.f32 1.0, %v7043
        %v7045 = vrcp.pop %v6980
        %v7046 = vmul.f32 1.0, %v7045
        %v7047 = vrcp.pop %v6981
        %v7048 = vmul.f32 1.0, %v7047
        %v7049 = vrcp.pop %v6982
        %v7050 = vmul.f32 1.0, %v7049
        %v7051 = vrcp.pop %v6983
        %v7052 = vmul.f32 1.0, %v7051
        %v7053 = vrcp.pop %v6984
        %v7054 = vmul.f32 1.0, %v7053
        %v7055 = vrcp.pop %v6985
        %v7056 = vmul.f32 1.0, %v7055
        %v7057 = vrcp.pop %v6986
        %v7058 = vmul.f32 1.0, %v7057
        %v7059 = vrcp.pop %v6987
        %v7060 = vmul.f32 1.0, %v7059
        %v7061 = vrcp.pop %v6988
        %v7062 = vmul.f32 1.0, %v7061
        %v7063 = vrcp.pop %v6989
        %v7064 = vmul.f32 1.0, %v7063
        %v7065 = vrcp.pop %v6990
        %v7066 = vmul.f32 1.0, %v7065
        %v7067 = vrcp.pop %v6991
        %v7068 = vmul.f32 1.0, %v7067
        %v7069 = vrcp.pop %v6992
        %v7070 = vmul.f32 1.0, %v7069
        %v7071 = vrcp.pop %v6993
        %v7072 = vmul.f32 1.0, %v7071
        %v7073 = vrcp.pop %v6994
        %v7074 = vmul.f32 1.0, %v7073
        %v7075 = vrcp.pop %v6995
        %v7076 = vmul.f32 1.0, %v7075
        %v7077 = vrcp.pop %v6996
        %v7078 = vmul.f32 1.0, %v7077
        %v7079 = vrcp.pop %v6997
        %v7080 = vmul.f32 1.0, %v7079
        %v7081 = vrcp.pop %v6998
        %v7082 = vmul.f32 1.0, %v7081
        %v7083 = vrcp.pop %v6999
        %v7084 = vmul.f32 1.0, %v7083
        %v7085 = vrcp.pop %v7000
        %v7086 = vmul.f32 1.0, %v7085
        %v7087 = vrcp.pop %v7001
        %v7088 = vmul.f32 1.0, %v7087
        %v7089 = vrcp.pop %v7002
        %v7090 = vmul.f32 1.0, %v7089
        %v7091 = vrcp.pop %v7003
        %v7092 = vmul.f32 1.0, %v7091
        %v7093 = vrcp.pop %v7004
        %v7094 = vmul.f32 1.0, %v7093
        %v7095 = vrcp.pop %v7005
        %v7096 = vmul.f32 1.0, %v7095
        %v7097 = vrcp.pop %v7006
        %v7098 = vmul.f32 1.0, %v7097
        %v7099 = vrcp.pop %v7007
        %v7100 = vmul.f32 1.0, %v7099
        %v7101 = vrcp.pop %v7008
        %v7102 = vmul.f32 1.0, %v7101
        %v7103 = vrcp.pop %v7009
        %v7104 = vmul.f32 1.0, %v7103
        %v7105 = vrcp.pop %v7010
        %v7106 = vmul.f32 1.0, %v7105
        %v7107 = vrcp.pop %v7011
        %v7108 = vmul.f32 1.0, %v7107
        %v7109 = vrcp.pop %v7012
        %v7110 = vmul.f32 1.0, %v7109
        %v7111 = vrcp.pop %v7013
        %v7112 = vmul.f32 1.0, %v7111
        %v7113 = vrcp.pop %v7014
        %v7114 = vmul.f32 1.0, %v7113
        %v7115 = vrcp.pop %v7015
        %v7116 = vmul.f32 1.0, %v7115
        %v7117 = vrcp.pop %v7016
        %v7118 = vmul.f32 1.0, %v7117
        %v7119 = vrcp.pop %v7017
        %v7120 = vmul.f32 1.0, %v7119
        %v7121 = vrcp.pop %v7018
        %v7122 = vmul.f32 1.0, %v7121
        %v7123 = vrcp.pop %v7019
        %v7124 = vmul.f32 1.0, %v7123
        %v7125 = vrcp.pop %v7020
        %v7126 = vmul.f32 1.0, %v7125
        %v7127 = vrcp.pop %v7021
        %v7128 = vmul.f32 1.0, %v7127
        %v7129 = vrcp.pop %v7022
        %v7130 = vmul.f32 1.0, %v7129
        %v7131 = vrcp.pop %v7023
        %v7132 = vmul.f32 1.0, %v7131
        %v7133 = vrcp.pop %v7024
        %v7134 = vmul.f32 1.0, %v7133
        %v7135 = vrcp.pop %v7025
        %v7136 = vmul.f32 1.0, %v7135
        %v7137 = vrcp.pop %v7026
        %v7138 = vmul.f32 1.0, %v7137
        %v7139 = vrcp.pop %v7027
        %v7140 = vmul.f32 1.0, %v7139
        %v7141 = vrcp.pop %v7028
        %v7142 = vmul.f32 1.0, %v7141
        %v7143 = vrcp.pop %v7029
        %v7144 = vmul.f32 1.0, %v7143
        %v7145 = vrcp.pop %v7030
        %v7146 = vmul.f32 1.0, %v7145
        %v7147 = vrcp.pop %v7031
        %v7148 = vmul.f32 1.0, %v7147
        %v7149 = vrcp.pop %v7032
        %v7150 = vmul.f32 1.0, %v7149
        %v7151 = vrcp.pop %v7033
        %v7152 = vmul.f32 1.0, %v7151
        %v7153 = vrcp.pop %v7034
        %v7154 = vmul.f32 1.0, %v7153
        %v7155 = vrcp.pop %v7035
        %v7156 = vmul.f32 1.0, %v7155
        %v7157 = vrcp.pop %v7036
        %v7158 = vmul.f32 1.0, %v7157
        %v7159 = vrcp.pop %v7037
        %v7160 = vmul.f32 1.0, %v7159
        %v7161 = vrcp.pop %v7038
        %v7162 = vmul.f32 1.0, %v7161
        %v7163 = vrcp.pop %v7039
        %v7164 = vmul.f32 1.0, %v7163
        %v7165 = vrcp.pop %v7040
        %v7166 = vmul.f32 1.0, %v7165
        %v7167 = vrcp.pop %v7041
        %v7168 = vmul.f32 1.0, %v7167
        %v7169 = vrcp.pop %v7042
        %v7170 = vmul.f32 1.0, %v7169
        %v7171 = vmul.f32 %v6723, %v7044
        %v7172 = vmul.f32 %v6724, %v7046
        %v7173 = vmul.f32 %v6725, %v7048
        %v7174 = vmul.f32 %v6726, %v7050
        %v7175 = vmul.f32 %v6727, %v7052
        %v7176 = vmul.f32 %v6728, %v7054
        %v7177 = vmul.f32 %v6729, %v7056
        %v7178 = vmul.f32 %v6730, %v7058
        %v7179 = vmul.f32 %v6731, %v7060
        %v7180 = vmul.f32 %v6732, %v7062
        %v7181 = vmul.f32 %v6733, %v7064
        %v7182 = vmul.f32 %v6734, %v7066
        %v7183 = vmul.f32 %v6735, %v7068
        %v7184 = vmul.f32 %v6736, %v7070
        %v7185 = vmul.f32 %v6737, %v7072
        %v7186 = vmul.f32 %v6738, %v7074
        %v7187 = vmul.f32 %v6739, %v7076
        %v7188 = vmul.f32 %v6740, %v7078
        %v7189 = vmul.f32 %v6741, %v7080
        %v7190 = vmul.f32 %v6742, %v7082
        %v7191 = vmul.f32 %v6743, %v7084
        %v7192 = vmul.f32 %v6744, %v7086
        %v7193 = vmul.f32 %v6745, %v7088
        %v7194 = vmul.f32 %v6746, %v7090
        %v7195 = vmul.f32 %v6747, %v7092
        %v7196 = vmul.f32 %v6748, %v7094
        %v7197 = vmul.f32 %v6749, %v7096
        %v7198 = vmul.f32 %v6750, %v7098
        %v7199 = vmul.f32 %v6751, %v7100
        %v7200 = vmul.f32 %v6752, %v7102
        %v7201 = vmul.f32 %v6753, %v7104
        %v7202 = vmul.f32 %v6754, %v7106
        %v7203 = vmul.f32 %v6755, %v7108
        %v7204 = vmul.f32 %v6756, %v7110
        %v7205 = vmul.f32 %v6757, %v7112
        %v7206 = vmul.f32 %v6758, %v7114
        %v7207 = vmul.f32 %v6759, %v7116
        %v7208 = vmul.f32 %v6760, %v7118
        %v7209 = vmul.f32 %v6761, %v7120
        %v7210 = vmul.f32 %v6762, %v7122
        %v7211 = vmul.f32 %v6763, %v7124
        %v7212 = vmul.f32 %v6764, %v7126
        %v7213 = vmul.f32 %v6765, %v7128
        %v7214 = vmul.f32 %v6766, %v7130
        %v7215 = vmul.f32 %v6767, %v7132
        %v7216 = vmul.f32 %v6768, %v7134
        %v7217 = vmul.f32 %v6769, %v7136
        %v7218 = vmul.f32 %v6770, %v7138
        %v7219 = vmul.f32 %v6771, %v7140
        %v7220 = vmul.f32 %v6772, %v7142
        %v7221 = vmul.f32 %v6773, %v7144
        %v7222 = vmul.f32 %v6774, %v7146
        %v7223 = vmul.f32 %v6775, %v7148
        %v7224 = vmul.f32 %v6776, %v7150
        %v7225 = vmul.f32 %v6777, %v7152
        %v7226 = vmul.f32 %v6778, %v7154
        %v7227 = vmul.f32 %v6779, %v7156
        %v7228 = vmul.f32 %v6780, %v7158
        %v7229 = vmul.f32 %v6781, %v7160
        %v7230 = vmul.f32 %v6782, %v7162
        %v7231 = vmul.f32 %v6783, %v7164
        %v7232 = vmul.f32 %v6784, %v7166
        %v7233 = vmul.f32 %v6785, %v7168
        %v7234 = vmul.f32 %v6786, %v7170
        %v7235 = vxor.u32 %v2038, 2147483648
        %v7236 = vxor.u32 %v2040, 2147483648
        %v7237 = vxor.u32 %v2044, 2147483648
        %v7238 = vxor.u32 %v2046, 2147483648
        %v7239 = vxor.u32 %v2050, 2147483648
        %v7240 = vxor.u32 %v2052, 2147483648
        %v7241 = vxor.u32 %v2056, 2147483648
        %v7242 = vxor.u32 %v2058, 2147483648
        %v7243 = vxor.u32 %v2062, 2147483648
        %v7244 = vxor.u32 %v2064, 2147483648
        %v7245 = vxor.u32 %v2068, 2147483648
        %v7246 = vxor.u32 %v2070, 2147483648
        %v7247 = vxor.u32 %v2074, 2147483648
        %v7248 = vxor.u32 %v2076, 2147483648
        %v7249 = vxor.u32 %v2080, 2147483648
        %v7250 = vxor.u32 %v2082, 2147483648
        %v7251 = vxor.u32 %v2086, 2147483648
        %v7252 = vxor.u32 %v2088, 2147483648
        %v7253 = vxor.u32 %v2092, 2147483648
        %v7254 = vxor.u32 %v2094, 2147483648
        %v7255 = vxor.u32 %v2098, 2147483648
        %v7256 = vxor.u32 %v2100, 2147483648
        %v7257 = vxor.u32 %v2104, 2147483648
        %v7258 = vxor.u32 %v2106, 2147483648
        %v7259 = vxor.u32 %v2110, 2147483648
        %v7260 = vxor.u32 %v2112, 2147483648
        %v7261 = vxor.u32 %v2116, 2147483648
        %v7262 = vxor.u32 %v2118, 2147483648
        %v7263 = vxor.u32 %v2122, 2147483648
        %v7264 = vxor.u32 %v2124, 2147483648
        %v7265 = vxor.u32 %v2128, 2147483648
        %v7266 = vxor.u32 %v2130, 2147483648
        %v7267 = vxor.u32 %v2134, 2147483648
        %v7268 = vxor.u32 %v2136, 2147483648
        %v7269 = vxor.u32 %v2140, 2147483648
        %v7270 = vxor.u32 %v2142, 2147483648
        %v7271 = vxor.u32 %v2146, 2147483648
        %v7272 = vxor.u32 %v2148, 2147483648
        %v7273 = vxor.u32 %v2152, 2147483648
        %v7274 = vxor.u32 %v2154, 2147483648
        %v7275 = vxor.u32 %v2158, 2147483648
        %v7276 = vxor.u32 %v2160, 2147483648
        %v7277 = vxor.u32 %v2164, 2147483648
        %v7278 = vxor.u32 %v2166, 2147483648
        %v7279 = vxor.u32 %v2170, 2147483648
        %v7280 = vxor.u32 %v2172, 2147483648
        %v7281 = vxor.u32 %v2176, 2147483648
        %v7282 = vxor.u32 %v2178, 2147483648
        %v7283 = vxor.u32 %v2182, 2147483648
        %v7284 = vxor.u32 %v2184, 2147483648
        %v7285 = vxor.u32 %v2188, 2147483648
        %v7286 = vxor.u32 %v2190, 2147483648
        %v7287 = vxor.u32 %v2194, 2147483648
        %v7288 = vxor.u32 %v2196, 2147483648
        %v7289 = vxor.u32 %v2200, 2147483648
        %v7290 = vxor.u32 %v2202, 2147483648
        %v7291 = vxor.u32 %v2206, 2147483648
        %v7292 = vxor.u32 %v2208, 2147483648
        %v7293 = vxor.u32 %v2212, 2147483648
        %v7294 = vxor.u32 %v2214, 2147483648
        %v7295 = vxor.u32 %v2218, 2147483648
        %v7296 = vxor.u32 %v2220, 2147483648
        %v7297 = vxor.u32 %v2224, 2147483648
        %v7298 = vxor.u32 %v2226, 2147483648
        %v7299 = vmul.f32 %v7235, 1.442695
        %v7300 = vpow.pop %v7299
        %v7301 = vmul.f32 %v7236, 1.442695
        %v7302 = vpow.pop %v7301
        %v7303 = vmul.f32 %v7237, 1.442695
        %v7304 = vpow.pop %v7303
        %v7305 = vmul.f32 %v7238, 1.442695
        %v7306 = vpow.pop %v7305
        %v7307 = vmul.f32 %v7239, 1.442695
        %v7308 = vpow.pop %v7307
        %v7309 = vmul.f32 %v7240, 1.442695
        %v7310 = vpow.pop %v7309
        %v7311 = vmul.f32 %v7241, 1.442695
        %v7312 = vpow.pop %v7311
        %v7313 = vmul.f32 %v7242, 1.442695
        %v7314 = vpow.pop %v7313
        %v7315 = vmul.f32 %v7243, 1.442695
        %v7316 = vpow.pop %v7315
        %v7317 = vmul.f32 %v7244, 1.442695
        %v7318 = vpow.pop %v7317
        %v7319 = vmul.f32 %v7245, 1.442695
        %v7320 = vpow.pop %v7319
        %v7321 = vmul.f32 %v7246, 1.442695
        %v7322 = vpow.pop %v7321
        %v7323 = vmul.f32 %v7247, 1.442695
        %v7324 = vpow.pop %v7323
        %v7325 = vmul.f32 %v7248, 1.442695
        %v7326 = vpow.pop %v7325
        %v7327 = vmul.f32 %v7249, 1.442695
        %v7328 = vpow.pop %v7327
        %v7329 = vmul.f32 %v7250, 1.442695
        %v7330 = vpow.pop %v7329
        %v7331 = vmul.f32 %v7251, 1.442695
        %v7332 = vpow.pop %v7331
        %v7333 = vmul.f32 %v7252, 1.442695
        %v7334 = vpow.pop %v7333
        %v7335 = vmul.f32 %v7253, 1.442695
        %v7336 = vpow.pop %v7335
        %v7337 = vmul.f32 %v7254, 1.442695
        %v7338 = vpow.pop %v7337
        %v7339 = vmul.f32 %v7255, 1.442695
        %v7340 = vpow.pop %v7339
        %v7341 = vmul.f32 %v7256, 1.442695
        %v7342 = vpow.pop %v7341
        %v7343 = vmul.f32 %v7257, 1.442695
        %v7344 = vpow.pop %v7343
        %v7345 = vmul.f32 %v7258, 1.442695
        %v7346 = vpow.pop %v7345
        %v7347 = vmul.f32 %v7259, 1.442695
        %v7348 = vpow.pop %v7347
        %v7349 = vmul.f32 %v7260, 1.442695
        %v7350 = vpow.pop %v7349
        %v7351 = vmul.f32 %v7261, 1.442695
        %v7352 = vpow.pop %v7351
        %v7353 = vmul.f32 %v7262, 1.442695
        %v7354 = vpow.pop %v7353
        %v7355 = vmul.f32 %v7263, 1.442695
        %v7356 = vpow.pop %v7355
        %v7357 = vmul.f32 %v7264, 1.442695
        %v7358 = vpow.pop %v7357
        %v7359 = vmul.f32 %v7265, 1.442695
        %v7360 = vpow.pop %v7359
        %v7361 = vmul.f32 %v7266, 1.442695
        %v7362 = vpow.pop %v7361
        %v7363 = vmul.f32 %v7267, 1.442695
        %v7364 = vpow.pop %v7363
        %v7365 = vmul.f32 %v7268, 1.442695
        %v7366 = vpow.pop %v7365
        %v7367 = vmul.f32 %v7269, 1.442695
        %v7368 = vpow.pop %v7367
        %v7369 = vmul.f32 %v7270, 1.442695
        %v7370 = vpow.pop %v7369
        %v7371 = vmul.f32 %v7271, 1.442695
        %v7372 = vpow.pop %v7371
        %v7373 = vmul.f32 %v7272, 1.442695
        %v7374 = vpow.pop %v7373
        %v7375 = vmul.f32 %v7273, 1.442695
        %v7376 = vpow.pop %v7375
        %v7377 = vmul.f32 %v7274, 1.442695
        %v7378 = vpow.pop %v7377
        %v7379 = vmul.f32 %v7275, 1.442695
        %v7380 = vpow.pop %v7379
        %v7381 = vmul.f32 %v7276, 1.442695
        %v7382 = vpow.pop %v7381
        %v7383 = vmul.f32 %v7277, 1.442695
        %v7384 = vpow.pop %v7383
        %v7385 = vmul.f32 %v7278, 1.442695
        %v7386 = vpow.pop %v7385
        %v7387 = vmul.f32 %v7279, 1.442695
        %v7388 = vpow.pop %v7387
        %v7389 = vmul.f32 %v7280, 1.442695
        %v7390 = vpow.pop %v7389
        %v7391 = vmul.f32 %v7281, 1.442695
        %v7392 = vpow.pop %v7391
        %v7393 = vmul.f32 %v7282, 1.442695
        %v7394 = vpow.pop %v7393
        %v7395 = vmul.f32 %v7283, 1.442695
        %v7396 = vpow.pop %v7395
        %v7397 = vmul.f32 %v7284, 1.442695
        %v7398 = vpow.pop %v7397
        %v7399 = vmul.f32 %v7285, 1.442695
        %v7400 = vpow.pop %v7399
        %v7401 = vmul.f32 %v7286, 1.442695
        %v7402 = vpow.pop %v7401
        %v7403 = vmul.f32 %v7287, 1.442695
        %v7404 = vpow.pop %v7403
        %v7405 = vmul.f32 %v7288, 1.442695
        %v7406 = vpow.pop %v7405
        %v7407 = vmul.f32 %v7289, 1.442695
        %v7408 = vpow.pop %v7407
        %v7409 = vmul.f32 %v7290, 1.442695
        %v7410 = vpow.pop %v7409
        %v7411 = vmul.f32 %v7291, 1.442695
        %v7412 = vpow.pop %v7411
        %v7413 = vmul.f32 %v7292, 1.442695
        %v7414 = vpow.pop %v7413
        %v7415 = vmul.f32 %v7293, 1.442695
        %v7416 = vpow.pop %v7415
        %v7417 = vmul.f32 %v7294, 1.442695
        %v7418 = vpow.pop %v7417
        %v7419 = vmul.f32 %v7295, 1.442695
        %v7420 = vpow.pop %v7419
        %v7421 = vmul.f32 %v7296, 1.442695
        %v7422 = vpow.pop %v7421
        %v7423 = vmul.f32 %v7297, 1.442695
        %v7424 = vpow.pop %v7423
        %v7425 = vmul.f32 %v7298, 1.442695
        %v7426 = vpow.pop %v7425
        %v7427 = vadd.f32 %v7300, 1.0
        %v7428 = vadd.f32 %v7302, 1.0
        %v7429 = vadd.f32 %v7304, 1.0
        %v7430 = vadd.f32 %v7306, 1.0
        %v7431 = vadd.f32 %v7308, 1.0
        %v7432 = vadd.f32 %v7310, 1.0
        %v7433 = vadd.f32 %v7312, 1.0
        %v7434 = vadd.f32 %v7314, 1.0
        %v7435 = vadd.f32 %v7316, 1.0
        %v7436 = vadd.f32 %v7318, 1.0
        %v7437 = vadd.f32 %v7320, 1.0
        %v7438 = vadd.f32 %v7322, 1.0
        %v7439 = vadd.f32 %v7324, 1.0
        %v7440 = vadd.f32 %v7326, 1.0
        %v7441 = vadd.f32 %v7328, 1.0
        %v7442 = vadd.f32 %v7330, 1.0
        %v7443 = vadd.f32 %v7332, 1.0
        %v7444 = vadd.f32 %v7334, 1.0
        %v7445 = vadd.f32 %v7336, 1.0
        %v7446 = vadd.f32 %v7338, 1.0
        %v7447 = vadd.f32 %v7340, 1.0
        %v7448 = vadd.f32 %v7342, 1.0
        %v7449 = vadd.f32 %v7344, 1.0
        %v7450 = vadd.f32 %v7346, 1.0
        %v7451 = vadd.f32 %v7348, 1.0
        %v7452 = vadd.f32 %v7350, 1.0
        %v7453 = vadd.f32 %v7352, 1.0
        %v7454 = vadd.f32 %v7354, 1.0
        %v7455 = vadd.f32 %v7356, 1.0
        %v7456 = vadd.f32 %v7358, 1.0
        %v7457 = vadd.f32 %v7360, 1.0
        %v7458 = vadd.f32 %v7362, 1.0
        %v7459 = vadd.f32 %v7364, 1.0
        %v7460 = vadd.f32 %v7366, 1.0
        %v7461 = vadd.f32 %v7368, 1.0
        %v7462 = vadd.f32 %v7370, 1.0
        %v7463 = vadd.f32 %v7372, 1.0
        %v7464 = vadd.f32 %v7374, 1.0
        %v7465 = vadd.f32 %v7376, 1.0
        %v7466 = vadd.f32 %v7378, 1.0
        %v7467 = vadd.f32 %v7380, 1.0
        %v7468 = vadd.f32 %v7382, 1.0
        %v7469 = vadd.f32 %v7384, 1.0
        %v7470 = vadd.f32 %v7386, 1.0
        %v7471 = vadd.f32 %v7388, 1.0
        %v7472 = vadd.f32 %v7390, 1.0
        %v7473 = vadd.f32 %v7392, 1.0
        %v7474 = vadd.f32 %v7394, 1.0
        %v7475 = vadd.f32 %v7396, 1.0
        %v7476 = vadd.f32 %v7398, 1.0
        %v7477 = vadd.f32 %v7400, 1.0
        %v7478 = vadd.f32 %v7402, 1.0
        %v7479 = vadd.f32 %v7404, 1.0
        %v7480 = vadd.f32 %v7406, 1.0
        %v7481 = vadd.f32 %v7408, 1.0
        %v7482 = vadd.f32 %v7410, 1.0
        %v7483 = vadd.f32 %v7412, 1.0
        %v7484 = vadd.f32 %v7414, 1.0
        %v7485 = vadd.f32 %v7416, 1.0
        %v7486 = vadd.f32 %v7418, 1.0
        %v7487 = vadd.f32 %v7420, 1.0
        %v7488 = vadd.f32 %v7422, 1.0
        %v7489 = vadd.f32 %v7424, 1.0
        %v7490 = vadd.f32 %v7426, 1.0
        %v7491 = vrcp.pop %v7427
        %v7492 = vmul.f32 1.0, %v7491
        %v7493 = vrcp.pop %v7428
        %v7494 = vmul.f32 1.0, %v7493
        %v7495 = vrcp.pop %v7429
        %v7496 = vmul.f32 1.0, %v7495
        %v7497 = vrcp.pop %v7430
        %v7498 = vmul.f32 1.0, %v7497
        %v7499 = vrcp.pop %v7431
        %v7500 = vmul.f32 1.0, %v7499
        %v7501 = vrcp.pop %v7432
        %v7502 = vmul.f32 1.0, %v7501
        %v7503 = vrcp.pop %v7433
        %v7504 = vmul.f32 1.0, %v7503
        %v7505 = vrcp.pop %v7434
        %v7506 = vmul.f32 1.0, %v7505
        %v7507 = vrcp.pop %v7435
        %v7508 = vmul.f32 1.0, %v7507
        %v7509 = vrcp.pop %v7436
        %v7510 = vmul.f32 1.0, %v7509
        %v7511 = vrcp.pop %v7437
        %v7512 = vmul.f32 1.0, %v7511
        %v7513 = vrcp.pop %v7438
        %v7514 = vmul.f32 1.0, %v7513
        %v7515 = vrcp.pop %v7439
        %v7516 = vmul.f32 1.0, %v7515
        %v7517 = vrcp.pop %v7440
        %v7518 = vmul.f32 1.0, %v7517
        %v7519 = vrcp.pop %v7441
        %v7520 = vmul.f32 1.0, %v7519
        %v7521 = vrcp.pop %v7442
        %v7522 = vmul.f32 1.0, %v7521
        %v7523 = vrcp.pop %v7443
        %v7524 = vmul.f32 1.0, %v7523
        %v7525 = vrcp.pop %v7444
        %v7526 = vmul.f32 1.0, %v7525
        %v7527 = vrcp.pop %v7445
        %v7528 = vmul.f32 1.0, %v7527
        %v7529 = vrcp.pop %v7446
        %v7530 = vmul.f32 1.0, %v7529
        %v7531 = vrcp.pop %v7447
        %v7532 = vmul.f32 1.0, %v7531
        %v7533 = vrcp.pop %v7448
        %v7534 = vmul.f32 1.0, %v7533
        %v7535 = vrcp.pop %v7449
        %v7536 = vmul.f32 1.0, %v7535
        %v7537 = vrcp.pop %v7450
        %v7538 = vmul.f32 1.0, %v7537
        %v7539 = vrcp.pop %v7451
        %v7540 = vmul.f32 1.0, %v7539
        %v7541 = vrcp.pop %v7452
        %v7542 = vmul.f32 1.0, %v7541
        %v7543 = vrcp.pop %v7453
        %v7544 = vmul.f32 1.0, %v7543
        %v7545 = vrcp.pop %v7454
        %v7546 = vmul.f32 1.0, %v7545
        %v7547 = vrcp.pop %v7455
        %v7548 = vmul.f32 1.0, %v7547
        %v7549 = vrcp.pop %v7456
        %v7550 = vmul.f32 1.0, %v7549
        %v7551 = vrcp.pop %v7457
        %v7552 = vmul.f32 1.0, %v7551
        %v7553 = vrcp.pop %v7458
        %v7554 = vmul.f32 1.0, %v7553
        %v7555 = vrcp.pop %v7459
        %v7556 = vmul.f32 1.0, %v7555
        %v7557 = vrcp.pop %v7460
        %v7558 = vmul.f32 1.0, %v7557
        %v7559 = vrcp.pop %v7461
        %v7560 = vmul.f32 1.0, %v7559
        %v7561 = vrcp.pop %v7462
        %v7562 = vmul.f32 1.0, %v7561
        %v7563 = vrcp.pop %v7463
        %v7564 = vmul.f32 1.0, %v7563
        %v7565 = vrcp.pop %v7464
        %v7566 = vmul.f32 1.0, %v7565
        %v7567 = vrcp.pop %v7465
        %v7568 = vmul.f32 1.0, %v7567
        %v7569 = vrcp.pop %v7466
        %v7570 = vmul.f32 1.0, %v7569
        %v7571 = vrcp.pop %v7467
        %v7572 = vmul.f32 1.0, %v7571
        %v7573 = vrcp.pop %v7468
        %v7574 = vmul.f32 1.0, %v7573
        %v7575 = vrcp.pop %v7469
        %v7576 = vmul.f32 1.0, %v7575
        %v7577 = vrcp.pop %v7470
        %v7578 = vmul.f32 1.0, %v7577
        %v7579 = vrcp.pop %v7471
        %v7580 = vmul.f32 1.0, %v7579
        %v7581 = vrcp.pop %v7472
        %v7582 = vmul.f32 1.0, %v7581
        %v7583 = vrcp.pop %v7473
        %v7584 = vmul.f32 1.0, %v7583
        %v7585 = vrcp.pop %v7474
        %v7586 = vmul.f32 1.0, %v7585
        %v7587 = vrcp.pop %v7475
        %v7588 = vmul.f32 1.0, %v7587
        %v7589 = vrcp.pop %v7476
        %v7590 = vmul.f32 1.0, %v7589
        %v7591 = vrcp.pop %v7477
        %v7592 = vmul.f32 1.0, %v7591
        %v7593 = vrcp.pop %v7478
        %v7594 = vmul.f32 1.0, %v7593
        %v7595 = vrcp.pop %v7479
        %v7596 = vmul.f32 1.0, %v7595
        %v7597 = vrcp.pop %v7480
        %v7598 = vmul.f32 1.0, %v7597
        %v7599 = vrcp.pop %v7481
        %v7600 = vmul.f32 1.0, %v7599
        %v7601 = vrcp.pop %v7482
        %v7602 = vmul.f32 1.0, %v7601
        %v7603 = vrcp.pop %v7483
        %v7604 = vmul.f32 1.0, %v7603
        %v7605 = vrcp.pop %v7484
        %v7606 = vmul.f32 1.0, %v7605
        %v7607 = vrcp.pop %v7485
        %v7608 = vmul.f32 1.0, %v7607
        %v7609 = vrcp.pop %v7486
        %v7610 = vmul.f32 1.0, %v7609
        %v7611 = vrcp.pop %v7487
        %v7612 = vmul.f32 1.0, %v7611
        %v7613 = vrcp.pop %v7488
        %v7614 = vmul.f32 1.0, %v7613
        %v7615 = vrcp.pop %v7489
        %v7616 = vmul.f32 1.0, %v7615
        %v7617 = vrcp.pop %v7490
        %v7618 = vmul.f32 1.0, %v7617
        %v7619 = vmul.f32 %v2038, %v7492
        %v7620 = vmul.f32 %v2040, %v7494
        %v7621 = vmul.f32 %v2044, %v7496
        %v7622 = vmul.f32 %v2046, %v7498
        %v7623 = vmul.f32 %v2050, %v7500
        %v7624 = vmul.f32 %v2052, %v7502
        %v7625 = vmul.f32 %v2056, %v7504
        %v7626 = vmul.f32 %v2058, %v7506
        %v7627 = vmul.f32 %v2062, %v7508
        %v7628 = vmul.f32 %v2064, %v7510
        %v7629 = vmul.f32 %v2068, %v7512
        %v7630 = vmul.f32 %v2070, %v7514
        %v7631 = vmul.f32 %v2074, %v7516
        %v7632 = vmul.f32 %v2076, %v7518
        %v7633 = vmul.f32 %v2080, %v7520
        %v7634 = vmul.f32 %v2082, %v7522
        %v7635 = vmul.f32 %v2086, %v7524
        %v7636 = vmul.f32 %v2088, %v7526
        %v7637 = vmul.f32 %v2092, %v7528
        %v7638 = vmul.f32 %v2094, %v7530
        %v7639 = vmul.f32 %v2098, %v7532
        %v7640 = vmul.f32 %v2100, %v7534
        %v7641 = vmul.f32 %v2104, %v7536
        %v7642 = vmul.f32 %v2106, %v7538
        %v7643 = vmul.f32 %v2110, %v7540
        %v7644 = vmul.f32 %v2112, %v7542
        %v7645 = vmul.f32 %v2116, %v7544
        %v7646 = vmul.f32 %v2118, %v7546
        %v7647 = vmul.f32 %v2122, %v7548
        %v7648 = vmul.f32 %v2124, %v7550
        %v7649 = vmul.f32 %v2128, %v7552
        %v7650 = vmul.f32 %v2130, %v7554
        %v7651 = vmul.f32 %v2134, %v7556
        %v7652 = vmul.f32 %v2136, %v7558
        %v7653 = vmul.f32 %v2140, %v7560
        %v7654 = vmul.f32 %v2142, %v7562
        %v7655 = vmul.f32 %v2146, %v7564
        %v7656 = vmul.f32 %v2148, %v7566
        %v7657 = vmul.f32 %v2152, %v7568
        %v7658 = vmul.f32 %v2154, %v7570
        %v7659 = vmul.f32 %v2158, %v7572
        %v7660 = vmul.f32 %v2160, %v7574
        %v7661 = vmul.f32 %v2164, %v7576
        %v7662 = vmul.f32 %v2166, %v7578
        %v7663 = vmul.f32 %v2170, %v7580
        %v7664 = vmul.f32 %v2172, %v7582
        %v7665 = vmul.f32 %v2176, %v7584
        %v7666 = vmul.f32 %v2178, %v7586
        %v7667 = vmul.f32 %v2182, %v7588
        %v7668 = vmul.f32 %v2184, %v7590
        %v7669 = vmul.f32 %v2188, %v7592
        %v7670 = vmul.f32 %v2190, %v7594
        %v7671 = vmul.f32 %v2194, %v7596
        %v7672 = vmul.f32 %v2196, %v7598
        %v7673 = vmul.f32 %v2200, %v7600
        %v7674 = vmul.f32 %v2202, %v7602
        %v7675 = vmul.f32 %v2206, %v7604
        %v7676 = vmul.f32 %v2208, %v7606
        %v7677 = vmul.f32 %v2212, %v7608
        %v7678 = vmul.f32 %v2214, %v7610
        %v7679 = vmul.f32 %v2218, %v7612
        %v7680 = vmul.f32 %v2220, %v7614
        %v7681 = vmul.f32 %v2224, %v7616
        %v7682 = vmul.f32 %v2226, %v7618
        %v7683 = vmul.f32 %v7171, %v7619
        %v7684 = vmul.f32 %v7172, %v7620
        %v7685 = vmul.f32 %v7173, %v7621
        %v7686 = vmul.f32 %v7174, %v7622
        %v7687 = vmul.f32 %v7175, %v7623
        %v7688 = vmul.f32 %v7176, %v7624
        %v7689 = vmul.f32 %v7177, %v7625
        %v7690 = vmul.f32 %v7178, %v7626
        %v7691 = vmul.f32 %v7179, %v7627
        %v7692 = vmul.f32 %v7180, %v7628
        %v7693 = vmul.f32 %v7181, %v7629
        %v7694 = vmul.f32 %v7182, %v7630
        %v7695 = vmul.f32 %v7183, %v7631
        %v7696 = vmul.f32 %v7184, %v7632
        %v7697 = vmul.f32 %v7185, %v7633
        %v7698 = vmul.f32 %v7186, %v7634
        %v7699 = vmul.f32 %v7187, %v7635
        %v7700 = vmul.f32 %v7188, %v7636
        %v7701 = vmul.f32 %v7189, %v7637
        %v7702 = vmul.f32 %v7190, %v7638
        %v7703 = vmul.f32 %v7191, %v7639
        %v7704 = vmul.f32 %v7192, %v7640
        %v7705 = vmul.f32 %v7193, %v7641
        %v7706 = vmul.f32 %v7194, %v7642
        %v7707 = vmul.f32 %v7195, %v7643
        %v7708 = vmul.f32 %v7196, %v7644
        %v7709 = vmul.f32 %v7197, %v7645
        %v7710 = vmul.f32 %v7198, %v7646
        %v7711 = vmul.f32 %v7199, %v7647
        %v7712 = vmul.f32 %v7200, %v7648
        %v7713 = vmul.f32 %v7201, %v7649
        %v7714 = vmul.f32 %v7202, %v7650
        %v7715 = vmul.f32 %v7203, %v7651
        %v7716 = vmul.f32 %v7204, %v7652
        %v7717 = vmul.f32 %v7205, %v7653
        %v7718 = vmul.f32 %v7206, %v7654
        %v7719 = vmul.f32 %v7207, %v7655
        %v7720 = vmul.f32 %v7208, %v7656
        %v7721 = vmul.f32 %v7209, %v7657
        %v7722 = vmul.f32 %v7210, %v7658
        %v7723 = vmul.f32 %v7211, %v7659
        %v7724 = vmul.f32 %v7212, %v7660
        %v7725 = vmul.f32 %v7213, %v7661
        %v7726 = vmul.f32 %v7214, %v7662
        %v7727 = vmul.f32 %v7215, %v7663
        %v7728 = vmul.f32 %v7216, %v7664
        %v7729 = vmul.f32 %v7217, %v7665
        %v7730 = vmul.f32 %v7218, %v7666
        %v7731 = vmul.f32 %v7219, %v7667
        %v7732 = vmul.f32 %v7220, %v7668
        %v7733 = vmul.f32 %v7221, %v7669
        %v7734 = vmul.f32 %v7222, %v7670
        %v7735 = vmul.f32 %v7223, %v7671
        %v7736 = vmul.f32 %v7224, %v7672
        %v7737 = vmul.f32 %v7225, %v7673
        %v7738 = vmul.f32 %v7226, %v7674
        %v7739 = vmul.f32 %v7227, %v7675
        %v7740 = vmul.f32 %v7228, %v7676
        %v7741 = vmul.f32 %v7229, %v7677
        %v7742 = vmul.f32 %v7230, %v7678
        %v7743 = vmul.f32 %v7231, %v7679
        %v7744 = vmul.f32 %v7232, %v7680
        %v7745 = vmul.f32 %v7233, %v7681
        %v7746 = vmul.f32 %v7234, %v7682
        %v7747 = vld [vmem:[%s10] sm:$0xff]
        %v7748 = vld [vmem:[%s10 + $0x8] sm:$0xff]
        %v7749 = vld [vmem:[%s10 + $0x10] sm:$0xff]
        %v7750 = vld [vmem:[%s10 + $0x18] sm:$0xff]
        %v7751 = vld [vmem:[%s10 + $0x20] sm:$0xff]
        %v7752 = vld [vmem:[%s10 + $0x28] sm:$0xff]
        %v7753 = vld [vmem:[%s10 + $0x30] sm:$0xff]
        %v7754 = vld [vmem:[%s10 + $0x38] sm:$0xff]
        %v7755 = vld [vmem:[%s10 + $0x40] sm:$0xff]
        %v7756 = vld [vmem:[%s10 + $0x48] sm:$0xff]
        %v7757 = vld [vmem:[%s10 + $0x50] sm:$0xff]
        %v7758 = vld [vmem:[%s10 + $0x58] sm:$0xff]
        %v7759 = vld [vmem:[%s10 + $0x60] sm:$0xff]
        %v7760 = vld [vmem:[%s10 + $0x68] sm:$0xff]
        %v7761 = vld [vmem:[%s10 + $0x70] sm:$0xff]
        %v7762 = vld [vmem:[%s10 + $0x78] sm:$0xff]
        %v7763 = vld [vmem:[%s10 + $0x80] sm:$0xff]
        %v7764 = vld [vmem:[%s10 + $0x88] sm:$0xff]
        %v7765 = vld [vmem:[%s10 + $0x90] sm:$0xff]
        %v7766 = vld [vmem:[%s10 + $0x98] sm:$0xff]
        %v7767 = vld [vmem:[%s10 + $0xa0] sm:$0xff]
        %v7768 = vld [vmem:[%s10 + $0xa8] sm:$0xff]
        %v7769 = vld [vmem:[%s10 + $0xb0] sm:$0xff]
        %v7770 = vld [vmem:[%s10 + $0xb8] sm:$0xff]
        %v7771 = vld [vmem:[%s10 + $0xc0] sm:$0xff]
        %v7772 = vld [vmem:[%s10 + $0xc8] sm:$0xff]
        %v7773 = vld [vmem:[%s10 + $0xd0] sm:$0xff]
        %v7774 = vld [vmem:[%s10 + $0xd8] sm:$0xff]
        %v7775 = vld [vmem:[%s10 + $0xe0] sm:$0xff]
        %v7776 = vld [vmem:[%s10 + $0xe8] sm:$0xff]
        %v7777 = vld [vmem:[%s10 + $0xf0] sm:$0xff]
        %v7778 = vld [vmem:[%s10 + $0xf8] sm:$0xff]
        %v7779 = vld [vmem:[%s11] sm:$0x1]
        %v7781 = vlaneseq
        %v7782 = vshrl.u32 %v7781, 7
        %v7783 = vsub.s32 0, %v7782
        %v7784 = vrot.slane %v7779, %v7783
        %7786 = vmatprep.subr.mxu0 0.0
        %7787 = vmatpush1.msra.mxu0 %v7762
        %7788 = vmatprep.subr.mxu0 0.0
        %7789 = vmatpush1.msra.mxu0 %v7761
        %7790 = vmatprep.subr.mxu0 0.0
        %7791 = vmatpush1.msra.mxu0 %v7760
        %7792 = vmatprep.subr.mxu0 0.0
        %7793 = vmatpush1.msra.mxu0 %v7759
        %7794 = vmatprep.subr.mxu0 0.0
        %7795 = vmatpush1.msra.mxu0 %v7758
        %7796 = vmatprep.subr.mxu0 0.0
        %7797 = vmatpush1.msra.mxu0 %v7757
        %7798 = vmatprep.subr.mxu0 0.0
        %7799 = vmatpush1.msra.mxu0 %v7756
        %7800 = vmatprep.subr.mxu0 0.0
        %7801 = vmatpush1.msra.mxu0 %v7755
        %7802 = vmatprep.subr.mxu0 0.0
        %7803 = vmatpush1.msra.mxu0 %v7754
        %7804 = vmatprep.subr.mxu0 0.0
        %7805 = vmatpush1.msra.mxu0 %v7753
        %7806 = vmatprep.subr.mxu0 0.0
        %7807 = vmatpush1.msra.mxu0 %v7752
        %7808 = vmatprep.subr.mxu0 0.0
        %7809 = vmatpush1.msra.mxu0 %v7751
        %7810 = vmatprep.subr.mxu0 0.0
        %7811 = vmatpush1.msra.mxu0 %v7750
        %7812 = vmatprep.subr.mxu0 0.0
        %7813 = vmatpush1.msra.mxu0 %v7749
        %7814 = vmatprep.subr.mxu0 0.0
        %7815 = vmatpush1.msra.mxu0 %v7748
        %7816 = vmatprep.subr.mxu0 0.0
        %7817 = vmatpush1.msra.mxu0 %v7747
        %7818 = vmatprep.subr.mxu0 0.0
        %7819 = vmatpush2.msra.mxu0 %v7778
        %7820 = vmatprep.subr.mxu0 0.0
        %7821 = vmatpush2.msra.mxu0 %v7777
        %7822 = vmatprep.subr.mxu0 0.0
        %7823 = vmatpush2.msra.mxu0 %v7776
        %7824 = vmatprep.subr.mxu0 0.0
        %7825 = vmatpush2.msra.mxu0 %v7775
        %7826 = vmatprep.subr.mxu0 0.0
        %7827 = vmatpush2.msra.mxu0 %v7774
        %7828 = vmatprep.subr.mxu0 0.0
        %7829 = vmatpush2.msra.mxu0 %v7773
        %7830 = vmatprep.subr.mxu0 0.0
        %7831 = vmatpush2.msra.mxu0 %v7772
        %7832 = vmatprep.subr.mxu0 0.0
        %7833 = vmatpush2.msra.mxu0 %v7771
        %7834 = vmatprep.subr.mxu0 0.0
        %7835 = vmatpush2.msra.mxu0 %v7770
        %7836 = vmatprep.subr.mxu0 0.0
        %7837 = vmatpush2.msra.mxu0 %v7769
        %7838 = vmatprep.subr.mxu0 0.0
        %7839 = vmatpush2.msra.mxu0 %v7768
        %7840 = vmatprep.subr.mxu0 0.0
        %7841 = vmatpush2.msra.mxu0 %v7767
        %7842 = vmatprep.subr.mxu0 0.0
        %7843 = vmatpush2.msra.mxu0 %v7766
        %7844 = vmatprep.subr.mxu0 0.0
        %7845 = vmatpush2.msra.mxu0 %v7765
        %7846 = vmatprep.subr.mxu0 0.0
        %7847 = vmatpush2.msra.mxu0 %v7764
        %7848 = vmatprep.subr.mxu0 0.0
        %7849 = vmatpush2.msra.mxu0 %v7763
        %7850 = vmatprep.mubr.f32.mxu0 %v7684
        %7851 = vmatmul.mubr.f32.gmra.mxu0 %v7683
        %v7852 = vpop.f32.mrf.mxu0
        %v7853 = vadd.f32 %v7784, %v7852
        %v7854 = vpop.f32.mrf.mxu0
        %7855 = vmatprep.mubr.f32.mxu0 %v7686
        %7856 = vmatmul.mubr.f32.gmra.mxu0 %v7685
        %v7857 = vpop.f32.mrf.mxu0
        %v7858 = vadd.f32 %v7784, %v7857
        %v7859 = vpop.f32.mrf.mxu0
        %7860 = vmatprep.mubr.f32.mxu0 %v7688
        %7861 = vmatmul.mubr.f32.gmra.mxu0 %v7687
        %v7862 = vpop.f32.mrf.mxu0
        %v7863 = vadd.f32 %v7784, %v7862
        %v7864 = vpop.f32.mrf.mxu0
        %7865 = vmatprep.mubr.f32.mxu0 %v7690
        %7866 = vmatmul.mubr.f32.gmra.mxu0 %v7689
        %v7867 = vpop.f32.mrf.mxu0
        %v7868 = vadd.f32 %v7784, %v7867
        %v7869 = vpop.f32.mrf.mxu0
        %7870 = vmatprep.mubr.f32.mxu0 %v7692
        %7871 = vmatmul.mubr.f32.gmra.mxu0 %v7691
        %v7872 = vpop.f32.mrf.mxu0
        %v7873 = vadd.f32 %v7784, %v7872
        %v7874 = vpop.f32.mrf.mxu0
        %7875 = vmatprep.mubr.f32.mxu0 %v7694
        %7876 = vmatmul.mubr.f32.gmra.mxu0 %v7693
        %v7877 = vpop.f32.mrf.mxu0
        %v7878 = vadd.f32 %v7784, %v7877
        %v7879 = vpop.f32.mrf.mxu0
        %7880 = vmatprep.mubr.f32.mxu0 %v7696
        %7881 = vmatmul.mubr.f32.gmra.mxu0 %v7695
        %v7882 = vpop.f32.mrf.mxu0
        %v7883 = vadd.f32 %v7784, %v7882
        %v7884 = vpop.f32.mrf.mxu0
        %7885 = vmatprep.mubr.f32.mxu0 %v7698
        %7886 = vmatmul.mubr.f32.gmra.mxu0 %v7697
        %v7887 = vpop.f32.mrf.mxu0
        %v7888 = vadd.f32 %v7784, %v7887
        %v7889 = vpop.f32.mrf.mxu0
        %7890 = vmatprep.mubr.f32.mxu0 %v7700
        %7891 = vmatmul.mubr.f32.gmra.mxu0 %v7699
        %v7892 = vpop.f32.mrf.mxu0
        %v7893 = vadd.f32 %v7784, %v7892
        %v7894 = vpop.f32.mrf.mxu0
        %7895 = vmatprep.mubr.f32.mxu0 %v7702
        %7896 = vmatmul.mubr.f32.gmra.mxu0 %v7701
        %v7897 = vpop.f32.mrf.mxu0
        %v7898 = vadd.f32 %v7784, %v7897
        %v7899 = vpop.f32.mrf.mxu0
        %7900 = vmatprep.mubr.f32.mxu0 %v7704
        %7901 = vmatmul.mubr.f32.gmra.mxu0 %v7703
        %v7902 = vpop.f32.mrf.mxu0
        %v7903 = vadd.f32 %v7784, %v7902
        %v7904 = vpop.f32.mrf.mxu0
        %7905 = vmatprep.mubr.f32.mxu0 %v7706
        %7906 = vmatmul.mubr.f32.gmra.mxu0 %v7705
        %v7907 = vpop.f32.mrf.mxu0
        %v7908 = vadd.f32 %v7784, %v7907
        %v7909 = vpop.f32.mrf.mxu0
        %7910 = vmatprep.mubr.f32.mxu0 %v7708
        %7911 = vmatmul.mubr.f32.gmra.mxu0 %v7707
        %v7912 = vpop.f32.mrf.mxu0
        %v7913 = vadd.f32 %v7784, %v7912
        %v7914 = vpop.f32.mrf.mxu0
        %7915 = vmatprep.mubr.f32.mxu0 %v7710
        %7916 = vmatmul.mubr.f32.gmra.mxu0 %v7709
        %v7917 = vpop.f32.mrf.mxu0
        %v7918 = vadd.f32 %v7784, %v7917
        %v7919 = vpop.f32.mrf.mxu0
        %7920 = vmatprep.mubr.f32.mxu0 %v7712
        %7921 = vmatmul.mubr.f32.gmra.mxu0 %v7711
        %v7922 = vpop.f32.mrf.mxu0
        %v7923 = vadd.f32 %v7784, %v7922
        %v7924 = vpop.f32.mrf.mxu0
        %7925 = vmatprep.mubr.f32.mxu0 %v7714
        %7926 = vmatmul.mubr.f32.gmra.mxu0 %v7713
        %v7927 = vpop.f32.mrf.mxu0
        %v7928 = vadd.f32 %v7784, %v7927
        %v7929 = vpop.f32.mrf.mxu0
        %7930 = vmatprep.mubr.f32.mxu0 %v7716
        %7931 = vmatmul.mubr.f32.gmra.mxu0 %v7715
        %v7932 = vpop.f32.mrf.mxu0
        %v7933 = vadd.f32 %v7784, %v7932
        %v7934 = vpop.f32.mrf.mxu0
        %7935 = vmatprep.mubr.f32.mxu0 %v7718
        %7936 = vmatmul.mubr.f32.gmra.mxu0 %v7717
        %v7937 = vpop.f32.mrf.mxu0
        %v7938 = vadd.f32 %v7784, %v7937
        %v7939 = vpop.f32.mrf.mxu0
        %7940 = vmatprep.mubr.f32.mxu0 %v7720
        %7941 = vmatmul.mubr.f32.gmra.mxu0 %v7719
        %v7942 = vpop.f32.mrf.mxu0
        %v7943 = vadd.f32 %v7784, %v7942
        %v7944 = vpop.f32.mrf.mxu0
        %7945 = vmatprep.mubr.f32.mxu0 %v7722
        %7946 = vmatmul.mubr.f32.gmra.mxu0 %v7721
        %v7947 = vpop.f32.mrf.mxu0
        %v7948 = vadd.f32 %v7784, %v7947
        %v7949 = vpop.f32.mrf.mxu0
        %7950 = vmatprep.mubr.f32.mxu0 %v7724
        %7951 = vmatmul.mubr.f32.gmra.mxu0 %v7723
        %v7952 = vpop.f32.mrf.mxu0
        %v7953 = vadd.f32 %v7784, %v7952
        %v7954 = vpop.f32.mrf.mxu0
        %7955 = vmatprep.mubr.f32.mxu0 %v7726
        %7956 = vmatmul.mubr.f32.gmra.mxu0 %v7725
        %v7957 = vpop.f32.mrf.mxu0
        %v7958 = vadd.f32 %v7784, %v7957
        %v7959 = vpop.f32.mrf.mxu0
        %7960 = vmatprep.mubr.f32.mxu0 %v7728
        %7961 = vmatmul.mubr.f32.gmra.mxu0 %v7727
        %v7962 = vpop.f32.mrf.mxu0
        %v7963 = vadd.f32 %v7784, %v7962
        %v7964 = vpop.f32.mrf.mxu0
        %7965 = vmatprep.mubr.f32.mxu0 %v7730
        %7966 = vmatmul.mubr.f32.gmra.mxu0 %v7729
        %v7967 = vpop.f32.mrf.mxu0
        %v7968 = vadd.f32 %v7784, %v7967
        %v7969 = vpop.f32.mrf.mxu0
        %7970 = vmatprep.mubr.f32.mxu0 %v7732
        %7971 = vmatmul.mubr.f32.gmra.mxu0 %v7731
        %v7972 = vpop.f32.mrf.mxu0
        %v7973 = vadd.f32 %v7784, %v7972
        %v7974 = vpop.f32.mrf.mxu0
        %7975 = vmatprep.mubr.f32.mxu0 %v7734
        %7976 = vmatmul.mubr.f32.gmra.mxu0 %v7733
        %v7977 = vpop.f32.mrf.mxu0
        %v7978 = vadd.f32 %v7784, %v7977
        %v7979 = vpop.f32.mrf.mxu0
        %7980 = vmatprep.mubr.f32.mxu0 %v7736
        %7981 = vmatmul.mubr.f32.gmra.mxu0 %v7735
        %v7982 = vpop.f32.mrf.mxu0
        %v7983 = vadd.f32 %v7784, %v7982
        %v7984 = vpop.f32.mrf.mxu0
        %7985 = vmatprep.mubr.f32.mxu0 %v7738
        %7986 = vmatmul.mubr.f32.gmra.mxu0 %v7737
        %v7987 = vpop.f32.mrf.mxu0
        %v7988 = vadd.f32 %v7784, %v7987
        %v7989 = vpop.f32.mrf.mxu0
        %7990 = vmatprep.mubr.f32.mxu0 %v7740
        %7991 = vmatmul.mubr.f32.gmra.mxu0 %v7739
        %v7992 = vpop.f32.mrf.mxu0
        %v7993 = vadd.f32 %v7784, %v7992
        %v7994 = vpop.f32.mrf.mxu0
        %7995 = vmatprep.mubr.f32.mxu0 %v7742
        %7996 = vmatmul.mubr.f32.gmra.mxu0 %v7741
        %v7997 = vpop.f32.mrf.mxu0
        %v7998 = vadd.f32 %v7784, %v7997
        %v7999 = vpop.f32.mrf.mxu0
        %8000 = vmatprep.mubr.f32.mxu0 %v7744
        %8001 = vmatmul.mubr.f32.gmra.mxu0 %v7743
        %v8002 = vpop.f32.mrf.mxu0
        %v8003 = vadd.f32 %v7784, %v8002
        %v8004 = vpop.f32.mrf.mxu0
        %8005 = vmatprep.mubr.f32.mxu0 %v7746
        %8006 = vmatmul.mubr.f32.gmra.mxu0 %v7745
        %v8007 = vpop.f32.mrf.mxu0
        %v8008 = vadd.f32 %v7784, %v8007
        %v8009 = vpop.f32.mrf.mxu0
        %8010 = vdwg.mxu0
        %8011 = vst [vmem:[%s520] sm:$0xff] %v7853
        %8012 = vst [vmem:[%s520 + $0x8] sm:$0xff] %v7858
        %8013 = vst [vmem:[%s520 + $0x10] sm:$0xff] %v7863
        %8014 = vst [vmem:[%s520 + $0x18] sm:$0xff] %v7868
        %8015 = vst [vmem:[%s520 + $0x20] sm:$0xff] %v7873
        %8016 = vst [vmem:[%s520 + $0x28] sm:$0xff] %v7878
        %8017 = vst [vmem:[%s520 + $0x30] sm:$0xff] %v7883
        %8018 = vst [vmem:[%s520 + $0x38] sm:$0xff] %v7888
        %8019 = vst [vmem:[%s520 + $0x40] sm:$0xff] %v7893
        %8020 = vst [vmem:[%s520 + $0x48] sm:$0xff] %v7898
        %8021 = vst [vmem:[%s520 + $0x50] sm:$0xff] %v7903
        %8022 = vst [vmem:[%s520 + $0x58] sm:$0xff] %v7908
        %8023 = vst [vmem:[%s520 + $0x60] sm:$0xff] %v7913
        %8024 = vst [vmem:[%s520 + $0x68] sm:$0xff] %v7918
        %8025 = vst [vmem:[%s520 + $0x70] sm:$0xff] %v7923
        %8026 = vst [vmem:[%s520 + $0x78] sm:$0xff] %v7928
        %8027 = vst [vmem:[%s520 + $0x80] sm:$0xff] %v7933
        %8028 = vst [vmem:[%s520 + $0x88] sm:$0xff] %v7938
        %8029 = vst [vmem:[%s520 + $0x90] sm:$0xff] %v7943
        %8030 = vst [vmem:[%s520 + $0x98] sm:$0xff] %v7948
        %8031 = vst [vmem:[%s520 + $0xa0] sm:$0xff] %v7953
        %8032 = vst [vmem:[%s520 + $0xa8] sm:$0xff] %v7958
        %8033 = vst [vmem:[%s520 + $0xb0] sm:$0xff] %v7963
        %8034 = vst [vmem:[%s520 + $0xb8] sm:$0xff] %v7968
        %8035 = vst [vmem:[%s520 + $0xc0] sm:$0xff] %v7973
        %8036 = vst [vmem:[%s520 + $0xc8] sm:$0xff] %v7978
        %8037 = vst [vmem:[%s520 + $0xd0] sm:$0xff] %v7983
        %8038 = vst [vmem:[%s520 + $0xd8] sm:$0xff] %v7988
        %8039 = vst [vmem:[%s520 + $0xe0] sm:$0xff] %v7993
        %8040 = vst [vmem:[%s520 + $0xe8] sm:$0xff] %v7998
        %8041 = vst [vmem:[%s520 + $0xf0] sm:$0xff] %v8003
        %8042 = vst [vmem:[%s520 + $0xf8] sm:$0xff] %v8008
        %v8043 = vrot.slane %v7853, 4
        %v8044 = vmax.f32 %v7853, %v8043
        %v8045 = vrot.slane %v8044, 2
        %v8046 = vmax.f32 %v8044, %v8045
        %v8047 = vrot.slane %v8046, 1
        %v8048 = vmax.f32 %v8046, %v8047
        %v8049 = vrot.slane %v7858, 4
        %v8050 = vmax.f32 %v7858, %v8049
        %v8051 = vrot.slane %v8050, 2
        %v8052 = vmax.f32 %v8050, %v8051
        %v8053 = vrot.slane %v8052, 1
        %v8054 = vmax.f32 %v8052, %v8053
        %v8055 = vrot.slane %v7863, 4
        %v8056 = vmax.f32 %v7863, %v8055
        %v8057 = vrot.slane %v8056, 2
        %v8058 = vmax.f32 %v8056, %v8057
        %v8059 = vrot.slane %v8058, 1
        %v8060 = vmax.f32 %v8058, %v8059
        %v8061 = vrot.slane %v7868, 4
        %v8062 = vmax.f32 %v7868, %v8061
        %v8063 = vrot.slane %v8062, 2
        %v8064 = vmax.f32 %v8062, %v8063
        %v8065 = vrot.slane %v8064, 1
        %v8066 = vmax.f32 %v8064, %v8065
        %v8067 = vrot.slane %v7873, 4
        %v8068 = vmax.f32 %v7873, %v8067
        %v8069 = vrot.slane %v8068, 2
        %v8070 = vmax.f32 %v8068, %v8069
        %v8071 = vrot.slane %v8070, 1
        %v8072 = vmax.f32 %v8070, %v8071
        %v8073 = vrot.slane %v7878, 4
        %v8074 = vmax.f32 %v7878, %v8073
        %v8075 = vrot.slane %v8074, 2
        %v8076 = vmax.f32 %v8074, %v8075
        %v8077 = vrot.slane %v8076, 1
        %v8078 = vmax.f32 %v8076, %v8077
        %v8079 = vrot.slane %v7883, 4
        %v8080 = vmax.f32 %v7883, %v8079
        %v8081 = vrot.slane %v8080, 2
        %v8082 = vmax.f32 %v8080, %v8081
        %v8083 = vrot.slane %v8082, 1
        %v8084 = vmax.f32 %v8082, %v8083
        %v8085 = vrot.slane %v7888, 4
        %v8086 = vmax.f32 %v7888, %v8085
        %v8087 = vrot.slane %v8086, 2
        %v8088 = vmax.f32 %v8086, %v8087
        %v8089 = vrot.slane %v8088, 1
        %v8090 = vmax.f32 %v8088, %v8089
        %v8091 = vrot.slane %v7893, 4
        %v8092 = vmax.f32 %v7893, %v8091
        %v8093 = vrot.slane %v8092, 2
        %v8094 = vmax.f32 %v8092, %v8093
        %v8095 = vrot.slane %v8094, 1
        %v8096 = vmax.f32 %v8094, %v8095
        %v8097 = vrot.slane %v7898, 4
        %v8098 = vmax.f32 %v7898, %v8097
        %v8099 = vrot.slane %v8098, 2
        %v8100 = vmax.f32 %v8098, %v8099
        %v8101 = vrot.slane %v8100, 1
        %v8102 = vmax.f32 %v8100, %v8101
        %v8103 = vrot.slane %v7903, 4
        %v8104 = vmax.f32 %v7903, %v8103
        %v8105 = vrot.slane %v8104, 2
        %v8106 = vmax.f32 %v8104, %v8105
        %v8107 = vrot.slane %v8106, 1
        %v8108 = vmax.f32 %v8106, %v8107
        %v8109 = vrot.slane %v7908, 4
        %v8110 = vmax.f32 %v7908, %v8109
        %v8111 = vrot.slane %v8110, 2
        %v8112 = vmax.f32 %v8110, %v8111
        %v8113 = vrot.slane %v8112, 1
        %v8114 = vmax.f32 %v8112, %v8113
        %v8115 = vrot.slane %v7913, 4
        %v8116 = vmax.f32 %v7913, %v8115
        %v8117 = vrot.slane %v8116, 2
        %v8118 = vmax.f32 %v8116, %v8117
        %v8119 = vrot.slane %v8118, 1
        %v8120 = vmax.f32 %v8118, %v8119
        %v8121 = vrot.slane %v7918, 4
        %v8122 = vmax.f32 %v7918, %v8121
        %v8123 = vrot.slane %v8122, 2
        %v8124 = vmax.f32 %v8122, %v8123
        %v8125 = vrot.slane %v8124, 1
        %v8126 = vmax.f32 %v8124, %v8125
        %v8127 = vrot.slane %v7923, 4
        %v8128 = vmax.f32 %v7923, %v8127
        %v8129 = vrot.slane %v8128, 2
        %v8130 = vmax.f32 %v8128, %v8129
        %v8131 = vrot.slane %v8130, 1
        %v8132 = vmax.f32 %v8130, %v8131
        %v8133 = vrot.slane %v7928, 4
        %v8134 = vmax.f32 %v7928, %v8133
        %v8135 = vrot.slane %v8134, 2
        %v8136 = vmax.f32 %v8134, %v8135
        %v8137 = vrot.slane %v8136, 1
        %v8138 = vmax.f32 %v8136, %v8137
        %v8139 = vrot.slane %v7933, 4
        %v8140 = vmax.f32 %v7933, %v8139
        %v8141 = vrot.slane %v8140, 2
        %v8142 = vmax.f32 %v8140, %v8141
        %v8143 = vrot.slane %v8142, 1
        %v8144 = vmax.f32 %v8142, %v8143
        %v8145 = vrot.slane %v7938, 4
        %v8146 = vmax.f32 %v7938, %v8145
        %v8147 = vrot.slane %v8146, 2
        %v8148 = vmax.f32 %v8146, %v8147
        %v8149 = vrot.slane %v8148, 1
        %v8150 = vmax.f32 %v8148, %v8149
        %v8151 = vrot.slane %v7943, 4
        %v8152 = vmax.f32 %v7943, %v8151
        %v8153 = vrot.slane %v8152, 2
        %v8154 = vmax.f32 %v8152, %v8153
        %v8155 = vrot.slane %v8154, 1
        %v8156 = vmax.f32 %v8154, %v8155
        %v8157 = vrot.slane %v7948, 4
        %v8158 = vmax.f32 %v7948, %v8157
        %v8159 = vrot.slane %v8158, 2
        %v8160 = vmax.f32 %v8158, %v8159
        %v8161 = vrot.slane %v8160, 1
        %v8162 = vmax.f32 %v8160, %v8161
        %v8163 = vrot.slane %v7953, 4
        %v8164 = vmax.f32 %v7953, %v8163
        %v8165 = vrot.slane %v8164, 2
        %v8166 = vmax.f32 %v8164, %v8165
        %v8167 = vrot.slane %v8166, 1
        %v8168 = vmax.f32 %v8166, %v8167
        %v8169 = vrot.slane %v7958, 4
        %v8170 = vmax.f32 %v7958, %v8169
        %v8171 = vrot.slane %v8170, 2
        %v8172 = vmax.f32 %v8170, %v8171
        %v8173 = vrot.slane %v8172, 1
        %v8174 = vmax.f32 %v8172, %v8173
        %v8175 = vrot.slane %v7963, 4
        %v8176 = vmax.f32 %v7963, %v8175
        %v8177 = vrot.slane %v8176, 2
        %v8178 = vmax.f32 %v8176, %v8177
        %v8179 = vrot.slane %v8178, 1
        %v8180 = vmax.f32 %v8178, %v8179
        %v8181 = vrot.slane %v7968, 4
        %v8182 = vmax.f32 %v7968, %v8181
        %v8183 = vrot.slane %v8182, 2
        %v8184 = vmax.f32 %v8182, %v8183
        %v8185 = vrot.slane %v8184, 1
        %v8186 = vmax.f32 %v8184, %v8185
        %v8187 = vrot.slane %v7973, 4
        %v8188 = vmax.f32 %v7973, %v8187
        %v8189 = vrot.slane %v8188, 2
        %v8190 = vmax.f32 %v8188, %v8189
        %v8191 = vrot.slane %v8190, 1
        %v8192 = vmax.f32 %v8190, %v8191
        %v8193 = vrot.slane %v7978, 4
        %v8194 = vmax.f32 %v7978, %v8193
        %v8195 = vrot.slane %v8194, 2
        %v8196 = vmax.f32 %v8194, %v8195
        %v8197 = vrot.slane %v8196, 1
        %v8198 = vmax.f32 %v8196, %v8197
        %v8199 = vrot.slane %v7983, 4
        %v8200 = vmax.f32 %v7983, %v8199
        %v8201 = vrot.slane %v8200, 2
        %v8202 = vmax.f32 %v8200, %v8201
        %v8203 = vrot.slane %v8202, 1
        %v8204 = vmax.f32 %v8202, %v8203
        %v8205 = vrot.slane %v7988, 4
        %v8206 = vmax.f32 %v7988, %v8205
        %v8207 = vrot.slane %v8206, 2
        %v8208 = vmax.f32 %v8206, %v8207
        %v8209 = vrot.slane %v8208, 1
        %v8210 = vmax.f32 %v8208, %v8209
        %v8211 = vrot.slane %v7993, 4
        %v8212 = vmax.f32 %v7993, %v8211
        %v8213 = vrot.slane %v8212, 2
        %v8214 = vmax.f32 %v8212, %v8213
        %v8215 = vrot.slane %v8214, 1
        %v8216 = vmax.f32 %v8214, %v8215
        %v8217 = vrot.slane %v7998, 4
        %v8218 = vmax.f32 %v7998, %v8217
        %v8219 = vrot.slane %v8218, 2
        %v8220 = vmax.f32 %v8218, %v8219
        %v8221 = vrot.slane %v8220, 1
        %v8222 = vmax.f32 %v8220, %v8221
        %v8223 = vrot.slane %v8003, 4
        %v8224 = vmax.f32 %v8003, %v8223
        %v8225 = vrot.slane %v8224, 2
        %v8226 = vmax.f32 %v8224, %v8225
        %v8227 = vrot.slane %v8226, 1
        %v8228 = vmax.f32 %v8226, %v8227
        %v8229 = vrot.slane %v8008, 4
        %v8230 = vmax.f32 %v8008, %v8229
        %v8231 = vrot.slane %v8230, 2
        %v8232 = vmax.f32 %v8230, %v8231
        %v8233 = vrot.slane %v8232, 1
        %v8234 = vmax.f32 %v8232, %v8233
        %vm8267 = vcmask 1041409
        %v8268 = vsel %vm8267, %v8054, %v8048
        %vm8269 = vcmask 1042434
        %v8270 = vsel %vm8269, %v8060, %v8268
        %vm8271 = vcmask 1043459
        %v8272 = vsel %vm8271, %v8066, %v8270
        %vm8273 = vcmask 1044484
        %v8274 = vsel %vm8273, %v8072, %v8272
        %vm8275 = vcmask 1045509
        %v8276 = vsel %vm8275, %v8078, %v8274
        %vm8277 = vcmask 1046534
        %v8278 = vsel %vm8277, %v8084, %v8276
        %vm8279 = vcmask 1047559
        %v8280 = vsel %vm8279, %v8090, %v8278
        %v8281 = vsel %vm8267, %v8102, %v8096
        %v8282 = vsel %vm8269, %v8108, %v8281
        %v8283 = vsel %vm8271, %v8114, %v8282
        %v8284 = vsel %vm8273, %v8120, %v8283
        %v8285 = vsel %vm8275, %v8126, %v8284
        %v8286 = vsel %vm8277, %v8132, %v8285
        %v8287 = vsel %vm8279, %v8138, %v8286
        %v8288 = vsel %vm8267, %v8150, %v8144
        %v8289 = vsel %vm8269, %v8156, %v8288
        %v8290 = vsel %vm8271, %v8162, %v8289
        %v8291 = vsel %vm8273, %v8168, %v8290
        %v8292 = vsel %vm8275, %v8174, %v8291
        %v8293 = vsel %vm8277, %v8180, %v8292
        %v8294 = vsel %vm8279, %v8186, %v8293
        %v8295 = vsel %vm8267, %v8198, %v8192
        %v8296 = vsel %vm8269, %v8204, %v8295
        %v8297 = vsel %vm8271, %v8210, %v8296
        %v8298 = vsel %vm8273, %v8216, %v8297
        %v8299 = vsel %vm8275, %v8222, %v8298
        %v8300 = vsel %vm8277, %v8228, %v8299
        %v8301 = vsel %vm8279, %v8234, %v8300
        %8306 = vst [vmem:[%s527] sm:$0xff] %v8280
        %8307 = vst [vmem:[%s527 + $0x8] sm:$0xff] %v8287
        %8308 = vst [vmem:[%s527 + $0x10] sm:$0xff] %v8294
        %8309 = vst [vmem:[%s527 + $0x18] sm:$0xff] %v8301
        %s8310 = sand.u32 %s301, 1
        %s8311 = scalar_lea.sflag [#allocation4], %s8310
        %s8312 = sand.u32 %s301, 1
        %s8313 = smul.addr %s8312, 256
        %s8314 = scalar_lea.vmem [#allocation11], %s8313
        %s8315 = sand.u32 %s327, 1
        %s8316 = scalar_lea.sflag [#allocation13], %s8315
        %s8317 = sand.u32 %s327, 1
        %s8318 = smul.addr %s8317, 32
        %s8319 = scalar_lea.vmem [#allocation12], %s8318
        // Predicated region
        $region89: #{tpu_custom_call.1} parent=67 // pred_check
          %p8320 = pneg %p311
        $region90: #{tpu_custom_call.1} parent=67 // pred_check_branch
          %8322 = sbr.rel (%p8320) target = $region92
        $region91: #{tpu_custom_call.1} parent=67 // pred_region
          %s8323 = smul.u32 32, %s36
          %s8325 = ssub.s32 4096, 4096
          %8326 = vsyncadd %s8311, %s8325
          %s8327 = smul.addr %s8323, 128
          %s8328 = scalar_lea.hbm %s12, %s8327
          %s8329 = sshll.u32 %s8314, 4
          %s8330 = int_to_ptr.vmem [resolvable:$true] %s8329
          %8335 = dma.vmem_to_hbm [thread:$0]  %s8330, 4096, %s8328, %s8311, 128, 128, 8
        $region92: #{tpu_custom_call.1} parent=67 // pred_fallthru
          _
        // Predicated region
        $region93: #{tpu_custom_call.1} parent=67 // pred_check
          %p8336 = pneg %p337
        $region94: #{tpu_custom_call.1} parent=67 // pred_check_branch
          %8338 = sbr.rel (%p8336) target = $region96
        $region95: #{tpu_custom_call.1} parent=67 // pred_region
          %s8339 = smul.u32 4, %s36
          %s8341 = ssub.s32 512, 512
          %8342 = vsyncadd %s8316, %s8341
          %s8343 = smul.addr %s8339, 128
          %s8344 = scalar_lea.hbm %s13, %s8343
          %s8345 = sshll.u32 %s8319, 4
          %s8346 = int_to_ptr.vmem [resolvable:$true] %s8345
          %8351 = dma.vmem_to_hbm [thread:$0]  %s8346, 512, %s8344, %s8316, 128, 128, 8
        $region96: #{tpu_custom_call.1} parent=67 // pred_fallthru
          _
      $region68: #{tpu_custom_call.1} parent=5 // pred_fallthru
        _
      %p8352 = scmp.le.s32.totalorder 2, %s31
      // Predicated region
      $region97: #{tpu_custom_call.1} parent=5 // pred_check
        %p8353 = pneg %p8352
      $region98: #{tpu_custom_call.1} parent=5 // pred_check_branch
        %8355 = sbr.rel (%p8353) target = $region100
      $region99: #{tpu_custom_call.1} parent=5 // pred_region
        %s8356 = ssub.s32 %s31, 2
        // Predicated region
        $region101: #{tpu_custom_call.1} parent=99 // pred_check
          %p8357 = pneg %p317
        $region102: #{tpu_custom_call.1} parent=99 // pred_check_branch
          %8359 = sbr.rel (%p8357) target = $region104
        $region103: #{tpu_custom_call.1} parent=99 // pred_region
          %s8360 = sand.u32 %s302, 1
          %s8361 = scalar_lea.sflag [#allocation4], %s8360
          %s8362 = sand.u32 %s302, 1
          %s8363 = smul.addr %s8362, 256
          %s8364 = scalar_lea.vmem [#allocation11], %s8363
          %8365 = dma.done %s8361, 4096
        $region104: #{tpu_custom_call.1} parent=99 // pred_fallthru
          _
        // Predicated region
        $region105: #{tpu_custom_call.1} parent=99 // pred_check
          %p8366 = pneg %p343
        $region106: #{tpu_custom_call.1} parent=99 // pred_check_branch
          %8368 = sbr.rel (%p8366) target = $region108
        $region107: #{tpu_custom_call.1} parent=99 // pred_region
          %s8369 = sand.u32 %s328, 1
          %s8370 = scalar_lea.sflag [#allocation13], %s8369
          %s8371 = sand.u32 %s328, 1
          %s8372 = smul.addr %s8371, 32
          %s8373 = scalar_lea.vmem [#allocation12], %s8372
          %8374 = dma.done %s8370, 512
        $region108: #{tpu_custom_call.1} parent=99 // pred_fallthru
          _
      $region100: #{tpu_custom_call.1} parent=5 // pred_fallthru
        _
    $region6: #{tpu_custom_call.1} parent=1 // loop_footer
      %s35 = sadd.s32 1, %s31
    $region7: #{tpu_custom_call.1} parent=1 // loop_footer_branch
      %30 = sbr.rel target = $region3
    $region8: #{tpu_custom_call.1} parent=1 // loop_exit
      _
    %8375 = vsyncpa [#allocation3], 1
    %s8376 = scalar_lea.sflag [#allocation3], 1
    %8377 = vsyncpa %s8376, 1
    %8378 = vsyncpa [#allocation6], 1
    %8379 = vsyncpa [#allocation9], 1
    %8380 = vsyncpa [#allocation4], 1
    %s8381 = scalar_lea.sflag [#allocation4], 1
    %8382 = vsyncpa %s8381, 1
    %8383 = vsyncpa [#allocation13], 1
    %s8384 = scalar_lea.sflag [#allocation13], 1
    %8385 = vsyncpa %s8384, 1

</llo_original>
